<compile_context>
chip_gen: v5e
topology: v5e:2x2
jax: 0.10.0
libtpu: 0.0.40
codegen_flags: <defaults>
</compile_context>

<pallas_src>
import jax
import jax.numpy as jnp
from jax.experimental import pallas as pl
from jax.experimental.pallas import tpu as pltpu

BN_EPS = 1e-5

# Set to jnp.bfloat16 on v6e/v7x to hit MXU peak (re-validate at ~2e-2 tol);
# kept f32 here so the strict 1e-3 check against the reference holds on all
# generations (v5e has no bf16 VPU support anyway).
MATMUL_DTYPE = jnp.float32


def basic_block_kernel(x_ref, w1_ref, g1_ref, b1_ref, w2_ref, g2_ref, b2_ref,
                       o_ref, pad_ref):
    """Whole BasicBlock in one kernel invocation (all operands fit in VMEM).

    x_ref  : (N, H, W, C)            float32
    w*_ref : (9*C, C)                float32  (taps folded into K, HWIO order)
    g*/b*  : (1, C)                  float32  (BatchNorm affine)
    o_ref  : (N, H, W, C)            float32
    pad_ref: (N, H+2, W+2, C) VMEM scratch used as the zero-padded image for
             both convolutions (border stays zero; interior rewritten).
    """
    N, H, W, C = x_ref.shape
    M = N * H * W

    # Zero the padded scratch once; only the interior is ever written after
    # this, so the 1-pixel zero border (padding=1) is preserved for both convs.
    pad_ref[...] = jnp.zeros_like(pad_ref)

    def conv3x3(w_ref):
        # Read the 9 shifted windows straight out of the padded scratch and
        # fold the taps into the contraction dim: a single MXU matmul with
        # K = 9*C instead of 9 small matmuls + 8 accumulate-adds.
        taps = [pad_ref[:, dy:dy + H, dx:dx + W, :]
                for dy in range(3) for dx in range(3)]
        patches = jnp.concatenate(taps, axis=-1)          # (N, H, W, 9*C)
        patches = patches.reshape(M, 9 * C)               # trivial major-dim collapse
        return jnp.dot(patches.astype(MATMUL_DTYPE),
                       w_ref[...].astype(MATMUL_DTYPE),
                       preferred_element_type=jnp.float32)  # (M, C)

    def batchnorm(v, g_ref, b_ref):
        # Training-mode BatchNorm2d, single pass: sum & sum-of-squares over
        # (N,H,W), then the affine folded into one scale/bias FMA per element.
        inv_n = 1.0 / float(M)
        s = jnp.sum(v, axis=0, keepdims=True)              # (1, C)
        sq = jnp.sum(v * v, axis=0, keepdims=True)         # (1, C)
        mean = s * inv_n
        var = sq * inv_n - mean * mean
        scale = g_ref[...] * jax.lax.rsqrt(var + BN_EPS)   # (1, C)
        bias = b_ref[...] - mean * scale                   # (1, C)
        return v * scale + bias

    x = x_ref[...].astype(jnp.float32)                     # (N, H, W, C)

    # conv1 -> BN1 -> relu
    pad_ref[:, 1:H + 1, 1:W + 1, :] = x
    h = conv3x3(w1_ref)                                    # (M, C)
    h = jnp.maximum(batchnorm(h, g1_ref, b1_ref), 0.0)

    # conv2 -> BN2 -> residual -> relu
    pad_ref[:, 1:H + 1, 1:W + 1, :] = h.reshape(N, H, W, C)
    h = conv3x3(w2_ref)
    h = batchnorm(h, g2_ref, b2_ref) + x.reshape(M, C)     # downsample is None
    o_ref[...] = jnp.maximum(h, 0.0).reshape(N, H, W, C).astype(o_ref.dtype)


def basic_block_nchw(x_nchw, w1_oihw, g1, b1, w2_oihw, g2, b2):
    """Wrapper: NCHW/OIHW (PyTorch) -> NHWC kernel -> NCHW output."""
    N, Cin, H, W = x_nchw.shape
    Cout = w1_oihw.shape[0]
    # downsample=None + residual add requires matching shapes (module default).
    assert Cin == Cout, "downsample=None path requires in_channels == out_channels"

    x = jnp.transpose(x_nchw, (0, 2, 3, 1))                           # NHWC
    # OIHW -> HWIO -> (9*Cin, Cout); row index = (ky*3 + kx)*Cin + ci, which
    # matches the tap-concatenation order inside the kernel.
    w1 = jnp.transpose(w1_oihw, (2, 3, 1, 0)).reshape(9 * Cin, Cout)
    w2 = jnp.transpose(w2_oihw, (2, 3, 1, 0)).reshape(9 * Cout, Cout)

    # Advisory cost estimate for XLA scheduling around the custom call.
    flops = 2 * 2 * (N * H * W) * (9 * Cin) * Cout          # two 3x3 convs
    bytes_accessed = 4 * (x.size + N * H * W * Cout
                          + w1.size + w2.size + 4 * Cout)
    cost = pl.CostEstimate(flops=flops,
                           transcendentals=2 * Cout,
                           bytes_accessed=bytes_accessed)

    vmem = pl.BlockSpec(memory_space=pltpu.MemorySpace.VMEM)
    out_nhwc = pl.pallas_call(
        basic_block_kernel,
        out_shape=jax.ShapeDtypeStruct((N, H, W, Cout), x.dtype),
        in_specs=[vmem] * 7,
        out_specs=vmem,
        scratch_shapes=[pltpu.VMEM((N, H + 2, W + 2, Cin), jnp.float32)],
        cost_estimate=cost,
        compiler_params=pltpu.CompilerParams(
            vmem_limit_bytes=32 * 1024 * 1024),  # safe on v5e/v6e/v7x
    )(x, w1, g1.reshape(1, -1), b1.reshape(1, -1),
      w2, g2.reshape(1, -1), b2.reshape(1, -1))

    return jnp.transpose(out_nhwc, (0, 3, 1, 2))                      # NCHW


def reference_nchw(x, w1, g1, b1, w2, g2, b2):
    """Pure-JAX reference (mirrors the PyTorch forward) for validation."""
    def conv(v, w):
        return jax.lax.conv_general_dilated(
            v, w, window_strides=(1, 1), padding=((1, 1), (1, 1)),
            dimension_numbers=("NCHW", "OIHW", "NCHW"))

    def bn(v, g, b):
        mean = jnp.mean(v, axis=(0, 2, 3), keepdims=True)
        var = jnp.mean((v - mean) ** 2, axis=(0, 2, 3), keepdims=True)
        vhat = (v - mean) * jax.lax.rsqrt(var + BN_EPS)
        return vhat * g.reshape(1, -1, 1, 1) + b.reshape(1, -1, 1, 1)

    h = jnp.maximum(bn(conv(x, w1), g1, b1), 0.0)
    h = bn(conv(h, w2), g2, b2) + x
    return jnp.maximum(h, 0.0)


if __name__ == "__main__":
    key = jax.random.PRNGKey(0)
    ks = jax.random.split(key, 7)

    N, Cin, Cout, H, W = 2, 8, 8, 16, 16   # in_channels == out_channels, stride=1

    x_nchw = jax.random.normal(ks[0], (N, Cin, H, W), jnp.float32)
    w1 = 0.1 * jax.random.normal(ks[1], (Cout, Cin, 3, 3), jnp.float32)
    w2 = 0.1 * jax.random.normal(ks[2], (Cout, Cout, 3, 3), jnp.float32)
    g1 = 1.0 + 0.1 * jax.random.normal(ks[3], (Cout,), jnp.float32)
    b1 = 0.1 * jax.random.normal(ks[4], (Cout,), jnp.float32)
    g2 = 1.0 + 0.1 * jax.random.normal(ks[5], (Cout,), jnp.float32)
    b2 = 0.1 * jax.random.normal(ks[6], (Cout,), jnp.float32)

    out = basic_block_nchw(x_nchw, w1, g1, b1, w2, g2, b2)
    jax.block_until_ready(out)

    ref = reference_nchw(x_nchw, w1, g1, b1, w2, g2, b2)
    assert out.shape == (N, Cout, H, W)
    assert jnp.allclose(out, ref, rtol=1e-3, atol=1e-3), "mismatch vs reference"

    print("KERNEL_OK")
</pallas_src>

<mosaic_0001>
module attributes {stable_mosaic.version = 11 : i64} {
  func.func @basic_block_kernel(%arg0: memref<2x16x16x8xf32, #tpu.memory_space<vmem>>, %arg1: memref<72x8xf32, #tpu.memory_space<vmem>>, %arg2: memref<1x8xf32, #tpu.memory_space<vmem>>, %arg3: memref<1x8xf32, #tpu.memory_space<vmem>>, %arg4: memref<72x8xf32, #tpu.memory_space<vmem>>, %arg5: memref<1x8xf32, #tpu.memory_space<vmem>>, %arg6: memref<1x8xf32, #tpu.memory_space<vmem>>, %arg7: memref<2x16x16x8xf32, #tpu.memory_space<vmem>>, %arg8: memref<2x18x18x8xf32, #tpu.memory_space<vmem>>) attributes {dimension_semantics = [], scalar_prefetch = 0 : i64, scratch_operands = 1 : i64, tpu.core_type = #tpu.core_type<tc>} {
    %cst = arith.constant 0.000000e+00 : f32
    %0 = vector.broadcast %cst : f32 to vector<2x18x18x8xf32>
    %c0 = arith.constant 0 : index
    %c0_0 = arith.constant 0 : index
    %c0_1 = arith.constant 0 : index
    %c0_2 = arith.constant 0 : index
    %1 = vector.load %arg8[%c0, %c0_0, %c0_1, %c0_2] : memref<2x18x18x8xf32, #tpu.memory_space<vmem>>, vector<2x18x18x8xf32>
    tpu.vector_store %arg8[%c0, %c0_0, %c0_1, %c0_2], %0 {strides = array<i32>} : memref<2x18x18x8xf32, #tpu.memory_space<vmem>>, vector<2x18x18x8xf32>,
    %c0_3 = arith.constant 0 : index
    %c0_4 = arith.constant 0 : index
    %c0_5 = arith.constant 0 : index
    %c0_6 = arith.constant 0 : index
    %2 = vector.load %arg0[%c0_3, %c0_4, %c0_5, %c0_6] : memref<2x16x16x8xf32, #tpu.memory_space<vmem>>, vector<2x16x16x8xf32>
    %c0_7 = arith.constant 0 : index
    %c1 = arith.constant 1 : index
    %c1_8 = arith.constant 1 : index
    %c0_9 = arith.constant 0 : index
    %3 = vector.load %arg8[%c0_7, %c1, %c1_8, %c0_9] : memref<2x18x18x8xf32, #tpu.memory_space<vmem>>, vector<2x16x16x8xf32>
    tpu.vector_store %arg8[%c0_7, %c1, %c1_8, %c0_9], %2 {strides = array<i32>} : memref<2x18x18x8xf32, #tpu.memory_space<vmem>>, vector<2x16x16x8xf32>,
    %c0_10 = arith.constant 0 : index
    %c0_11 = arith.constant 0 : index
    %c0_12 = arith.constant 0 : index
    %c0_13 = arith.constant 0 : index
    %4 = vector.load %arg8[%c0_10, %c0_11, %c0_12, %c0_13] : memref<2x18x18x8xf32, #tpu.memory_space<vmem>>, vector<2x16x16x8xf32>
    %c0_14 = arith.constant 0 : index
    %c0_15 = arith.constant 0 : index
    %c1_16 = arith.constant 1 : index
    %c0_17 = arith.constant 0 : index
    %5 = vector.load %arg8[%c0_14, %c0_15, %c1_16, %c0_17] : memref<2x18x18x8xf32, #tpu.memory_space<vmem>>, vector<2x16x16x8xf32>
    %c0_18 = arith.constant 0 : index
    %c0_19 = arith.constant 0 : index
    %c2 = arith.constant 2 : index
    %c0_20 = arith.constant 0 : index
    %6 = vector.load %arg8[%c0_18, %c0_19, %c2, %c0_20] : memref<2x18x18x8xf32, #tpu.memory_space<vmem>>, vector<2x16x16x8xf32>
    %c0_21 = arith.constant 0 : index
    %c1_22 = arith.constant 1 : index
    %c0_23 = arith.constant 0 : index
    %c0_24 = arith.constant 0 : index
    %7 = vector.load %arg8[%c0_21, %c1_22, %c0_23, %c0_24] : memref<2x18x18x8xf32, #tpu.memory_space<vmem>>, vector<2x16x16x8xf32>
    %c0_25 = arith.constant 0 : index
    %c1_26 = arith.constant 1 : index
    %c1_27 = arith.constant 1 : index
    %c0_28 = arith.constant 0 : index
    %8 = vector.load %arg8[%c0_25, %c1_26, %c1_27, %c0_28] : memref<2x18x18x8xf32, #tpu.memory_space<vmem>>, vector<2x16x16x8xf32>
    %c0_29 = arith.constant 0 : index
    %c1_30 = arith.constant 1 : index
    %c2_31 = arith.constant 2 : index
    %c0_32 = arith.constant 0 : index
    %9 = vector.load %arg8[%c0_29, %c1_30, %c2_31, %c0_32] : memref<2x18x18x8xf32, #tpu.memory_space<vmem>>, vector<2x16x16x8xf32>
    %c0_33 = arith.constant 0 : index
    %c2_34 = arith.constant 2 : index
    %c0_35 = arith.constant 0 : index
    %c0_36 = arith.constant 0 : index
    %10 = vector.load %arg8[%c0_33, %c2_34, %c0_35, %c0_36] : memref<2x18x18x8xf32, #tpu.memory_space<vmem>>, vector<2x16x16x8xf32>
    %c0_37 = arith.constant 0 : index
    %c2_38 = arith.constant 2 : index
    %c1_39 = arith.constant 1 : index
    %c0_40 = arith.constant 0 : index
    %11 = vector.load %arg8[%c0_37, %c2_38, %c1_39, %c0_40] : memref<2x18x18x8xf32, #tpu.memory_space<vmem>>, vector<2x16x16x8xf32>
    %c0_41 = arith.constant 0 : index
    %c2_42 = arith.constant 2 : index
    %c2_43 = arith.constant 2 : index
    %c0_44 = arith.constant 0 : index
    %12 = vector.load %arg8[%c0_41, %c2_42, %c2_43, %c0_44] : memref<2x18x18x8xf32, #tpu.memory_space<vmem>>, vector<2x16x16x8xf32>
    %13 = tpu.concatenate %4, %5, %6, %7, %8, %9, %10, %11, %12 in 3 : vector<2x16x16x8xf32>, vector<2x16x16x8xf32>, vector<2x16x16x8xf32>, vector<2x16x16x8xf32>, vector<2x16x16x8xf32>, vector<2x16x16x8xf32>, vector<2x16x16x8xf32>, vector<2x16x16x8xf32>, vector<2x16x16x8xf32> -> vector<2x16x16x72xf32>
    %14 = vector.shape_cast %13 : vector<2x16x16x72xf32> to vector<512x72xf32>
    %c0_45 = arith.constant 0 : index
    %c0_46 = arith.constant 0 : index
    %15 = vector.load %arg1[%c0_45, %c0_46] : memref<72x8xf32, #tpu.memory_space<vmem>>, vector<72x8xf32>
    %cst_47 = arith.constant dense<0.000000e+00> : vector<512x8xf32>
    %16 = tpu.matmul %14, %15, %cst_47 {dimension_numbers = #tpu.dot_dimension_numbers<[1], [0], [0], [1], [0, 0, 1, 1], [], []>} : vector<512x72xf32>, vector<72x8xf32>, vector<512x8xf32> -> vector<512x8xf32>
    %cst_48 = arith.constant dense<0.000000e+00> : vector<8xf32>
    %17 = vector.multi_reduction <add>, %16, %cst_48 [0] : vector<512x8xf32> to vector<8xf32>
    %18 = vector.shape_cast %17 : vector<8xf32> to vector<1x8xf32>
    %19 = arith.mulf %16, %16 : vector<512x8xf32>
    %cst_49 = arith.constant dense<0.000000e+00> : vector<8xf32>
    %20 = vector.multi_reduction <add>, %19, %cst_49 [0] : vector<512x8xf32> to vector<8xf32>
    %21 = vector.shape_cast %20 : vector<8xf32> to vector<1x8xf32>
    %cst_50 = arith.constant 0.001953125 : f32
    %22 = vector.broadcast %cst_50 : f32 to vector<1x8xf32>
    %23 = arith.mulf %18, %22 : vector<1x8xf32>
    %cst_51 = arith.constant 0.001953125 : f32
    %24 = vector.broadcast %cst_51 : f32 to vector<1x8xf32>
    %25 = arith.mulf %21, %24 : vector<1x8xf32>
    %26 = arith.mulf %23, %23 : vector<1x8xf32>
    %27 = arith.subf %25, %26 : vector<1x8xf32>
    %c0_52 = arith.constant 0 : index
    %c0_53 = arith.constant 0 : index
    %28 = vector.load %arg2[%c0_52, %c0_53] : memref<1x8xf32, #tpu.memory_space<vmem>>, vector<1x8xf32>
    %cst_54 = arith.constant 9.99999974E-6 : f32
    %29 = vector.broadcast %cst_54 : f32 to vector<1x8xf32>
    %30 = arith.addf %27, %29 : vector<1x8xf32>
    %31 = math.rsqrt %30 : vector<1x8xf32>
    %32 = arith.mulf %28, %31 : vector<1x8xf32>
    %c0_55 = arith.constant 0 : index
    %c0_56 = arith.constant 0 : index
    %33 = vector.load %arg3[%c0_55, %c0_56] : memref<1x8xf32, #tpu.memory_space<vmem>>, vector<1x8xf32>
    %34 = arith.mulf %23, %32 : vector<1x8xf32>
    %35 = arith.subf %33, %34 : vector<1x8xf32>
    %36 = vector.broadcast %32 : vector<1x8xf32> to vector<512x8xf32>
    %37 = arith.mulf %16, %36 : vector<512x8xf32>
    %38 = vector.broadcast %35 : vector<1x8xf32> to vector<512x8xf32>
    %39 = arith.addf %37, %38 : vector<512x8xf32>
    %cst_57 = arith.constant 0.000000e+00 : f32
    %40 = vector.broadcast %cst_57 : f32 to vector<512x8xf32>
    %41 = arith.maximumf %39, %40 : vector<512x8xf32>
    %42 = vector.shape_cast %41 : vector<512x8xf32> to vector<2x16x16x8xf32>
    %c0_58 = arith.constant 0 : index
    %c1_59 = arith.constant 1 : index
    %c1_60 = arith.constant 1 : index
    %c0_61 = arith.constant 0 : index
    %43 = vector.load %arg8[%c0_58, %c1_59, %c1_60, %c0_61] : memref<2x18x18x8xf32, #tpu.memory_space<vmem>>, vector<2x16x16x8xf32>
    tpu.vector_store %arg8[%c0_58, %c1_59, %c1_60, %c0_61], %42 {strides = array<i32>} : memref<2x18x18x8xf32, #tpu.memory_space<vmem>>, vector<2x16x16x8xf32>,
    %c0_62 = arith.constant 0 : index
    %c0_63 = arith.constant 0 : index
    %c0_64 = arith.constant 0 : index
    %c0_65 = arith.constant 0 : index
    %44 = vector.load %arg8[%c0_62, %c0_63, %c0_64, %c0_65] : memref<2x18x18x8xf32, #tpu.memory_space<vmem>>, vector<2x16x16x8xf32>
    %c0_66 = arith.constant 0 : index
    %c0_67 = arith.constant 0 : index
    %c1_68 = arith.constant 1 : index
    %c0_69 = arith.constant 0 : index
    %45 = vector.load %arg8[%c0_66, %c0_67, %c1_68, %c0_69] : memref<2x18x18x8xf32, #tpu.memory_space<vmem>>, vector<2x16x16x8xf32>
    %c0_70 = arith.constant 0 : index
    %c0_71 = arith.constant 0 : index
    %c2_72 = arith.constant 2 : index
    %c0_73 = arith.constant 0 : index
    %46 = vector.load %arg8[%c0_70, %c0_71, %c2_72, %c0_73] : memref<2x18x18x8xf32, #tpu.memory_space<vmem>>, vector<2x16x16x8xf32>
    %c0_74 = arith.constant 0 : index
    %c1_75 = arith.constant 1 : index
    %c0_76 = arith.constant 0 : index
    %c0_77 = arith.constant 0 : index
    %47 = vector.load %arg8[%c0_74, %c1_75, %c0_76, %c0_77] : memref<2x18x18x8xf32, #tpu.memory_space<vmem>>, vector<2x16x16x8xf32>
    %c0_78 = arith.constant 0 : index
    %c1_79 = arith.constant 1 : index
    %c1_80 = arith.constant 1 : index
    %c0_81 = arith.constant 0 : index
    %48 = vector.load %arg8[%c0_78, %c1_79, %c1_80, %c0_81] : memref<2x18x18x8xf32, #tpu.memory_space<vmem>>, vector<2x16x16x8xf32>
    %c0_82 = arith.constant 0 : index
    %c1_83 = arith.constant 1 : index
    %c2_84 = arith.constant 2 : index
    %c0_85 = arith.constant 0 : index
    %49 = vector.load %arg8[%c0_82, %c1_83, %c2_84, %c0_85] : memref<2x18x18x8xf32, #tpu.memory_space<vmem>>, vector<2x16x16x8xf32>
    %c0_86 = arith.constant 0 : index
    %c2_87 = arith.constant 2 : index
    %c0_88 = arith.constant 0 : index
    %c0_89 = arith.constant 0 : index
    %50 = vector.load %arg8[%c0_86, %c2_87, %c0_88, %c0_89] : memref<2x18x18x8xf32, #tpu.memory_space<vmem>>, vector<2x16x16x8xf32>
    %c0_90 = arith.constant 0 : index
    %c2_91 = arith.constant 2 : index
    %c1_92 = arith.constant 1 : index
    %c0_93 = arith.constant 0 : index
    %51 = vector.load %arg8[%c0_90, %c2_91, %c1_92, %c0_93] : memref<2x18x18x8xf32, #tpu.memory_space<vmem>>, vector<2x16x16x8xf32>
    %c0_94 = arith.constant 0 : index
    %c2_95 = arith.constant 2 : index
    %c2_96 = arith.constant 2 : index
    %c0_97 = arith.constant 0 : index
    %52 = vector.load %arg8[%c0_94, %c2_95, %c2_96, %c0_97] : memref<2x18x18x8xf32, #tpu.memory_space<vmem>>, vector<2x16x16x8xf32>
    %53 = tpu.concatenate %44, %45, %46, %47, %48, %49, %50, %51, %52 in 3 : vector<2x16x16x8xf32>, vector<2x16x16x8xf32>, vector<2x16x16x8xf32>, vector<2x16x16x8xf32>, vector<2x16x16x8xf32>, vector<2x16x16x8xf32>, vector<2x16x16x8xf32>, vector<2x16x16x8xf32>, vector<2x16x16x8xf32> -> vector<2x16x16x72xf32>
    %54 = vector.shape_cast %53 : vector<2x16x16x72xf32> to vector<512x72xf32>
    %c0_98 = arith.constant 0 : index
    %c0_99 = arith.constant 0 : index
    %55 = vector.load %arg4[%c0_98, %c0_99] : memref<72x8xf32, #tpu.memory_space<vmem>>, vector<72x8xf32>
    %cst_100 = arith.constant dense<0.000000e+00> : vector<512x8xf32>
    %56 = tpu.matmul %54, %55, %cst_100 {dimension_numbers = #tpu.dot_dimension_numbers<[1], [0], [0], [1], [0, 0, 1, 1], [], []>} : vector<512x72xf32>, vector<72x8xf32>, vector<512x8xf32> -> vector<512x8xf32>
    %cst_101 = arith.constant dense<0.000000e+00> : vector<8xf32>
    %57 = vector.multi_reduction <add>, %56, %cst_101 [0] : vector<512x8xf32> to vector<8xf32>
    %58 = vector.shape_cast %57 : vector<8xf32> to vector<1x8xf32>
    %59 = arith.mulf %56, %56 : vector<512x8xf32>
    %cst_102 = arith.constant dense<0.000000e+00> : vector<8xf32>
    %60 = vector.multi_reduction <add>, %59, %cst_102 [0] : vector<512x8xf32> to vector<8xf32>
    %61 = vector.shape_cast %60 : vector<8xf32> to vector<1x8xf32>
    %cst_103 = arith.constant 0.001953125 : f32
    %62 = vector.broadcast %cst_103 : f32 to vector<1x8xf32>
    %63 = arith.mulf %58, %62 : vector<1x8xf32>
    %cst_104 = arith.constant 0.001953125 : f32
    %64 = vector.broadcast %cst_104 : f32 to vector<1x8xf32>
    %65 = arith.mulf %61, %64 : vector<1x8xf32>
    %66 = arith.mulf %63, %63 : vector<1x8xf32>
    %67 = arith.subf %65, %66 : vector<1x8xf32>
    %c0_105 = arith.constant 0 : index
    %c0_106 = arith.constant 0 : index
    %68 = vector.load %arg5[%c0_105, %c0_106] : memref<1x8xf32, #tpu.memory_space<vmem>>, vector<1x8xf32>
    %cst_107 = arith.constant 9.99999974E-6 : f32
    %69 = vector.broadcast %cst_107 : f32 to vector<1x8xf32>
    %70 = arith.addf %67, %69 : vector<1x8xf32>
    %71 = math.rsqrt %70 : vector<1x8xf32>
    %72 = arith.mulf %68, %71 : vector<1x8xf32>
    %c0_108 = arith.constant 0 : index
    %c0_109 = arith.constant 0 : index
    %73 = vector.load %arg6[%c0_108, %c0_109] : memref<1x8xf32, #tpu.memory_space<vmem>>, vector<1x8xf32>
    %74 = arith.mulf %63, %72 : vector<1x8xf32>
    %75 = arith.subf %73, %74 : vector<1x8xf32>
    %76 = vector.broadcast %72 : vector<1x8xf32> to vector<512x8xf32>
    %77 = arith.mulf %56, %76 : vector<512x8xf32>
    %78 = vector.broadcast %75 : vector<1x8xf32> to vector<512x8xf32>
    %79 = arith.addf %77, %78 : vector<512x8xf32>
    %80 = vector.shape_cast %2 : vector<2x16x16x8xf32> to vector<512x8xf32>
    %81 = arith.addf %79, %80 : vector<512x8xf32>
    %cst_110 = arith.constant 0.000000e+00 : f32
    %82 = vector.broadcast %cst_110 : f32 to vector<512x8xf32>
    %83 = arith.maximumf %81, %82 : vector<512x8xf32>
    %84 = vector.shape_cast %83 : vector<512x8xf32> to vector<2x16x16x8xf32>
    %c0_111 = arith.constant 0 : index
    %c0_112 = arith.constant 0 : index
    %c0_113 = arith.constant 0 : index
    %c0_114 = arith.constant 0 : index
    %85 = vector.load %arg7[%c0_111, %c0_112, %c0_113, %c0_114] : memref<2x16x16x8xf32, #tpu.memory_space<vmem>>, vector<2x16x16x8xf32>
    tpu.vector_store %arg7[%c0_111, %c0_112, %c0_113, %c0_114], %84 {strides = array<i32>} : memref<2x16x16x8xf32, #tpu.memory_space<vmem>>, vector<2x16x16x8xf32>,
    return
  }
}

</mosaic_0001>

<llo_original>
// kernel: tpu_custom_call.1
$region0: #{tpu_custom_call.1}
  #allocation0 [shape = 'u32[]', space=smem, size = 0x4, offset = 0x4, fixed_abs, tag = 'smem constant byte address 0x4 - core index']
  #allocation1 [shape = 'u32[72,128]{1,0:T(1,128)}', space=vmem, size = 0x9000, scoped, tag = 'internal scratch']
  #allocation2 [shape = 'f32[2,18,18,8]{3,2,1,0:T(8,128)}', space=vmem, size = 0x6c000, scoped, tag = 'scratch operand']
  %s0 = inlined_call_operand.vmem [shape: f32[2,16,16,8], index: 0, kind: input, shape index: {}]
  %s1 = inlined_call_operand.vmem [shape: f32[72,8], index: 1, kind: input, shape index: {}]
  %s2 = inlined_call_operand.vmem [shape: f32[1,8], index: 2, kind: input, shape index: {}]
  %s3 = inlined_call_operand.vmem [shape: f32[1,8], index: 3, kind: input, shape index: {}]
  %s4 = inlined_call_operand.vmem [shape: f32[72,8], index: 4, kind: input, shape index: {}]
  %s5 = inlined_call_operand.vmem [shape: f32[1,8], index: 5, kind: input, shape index: {}]
  %s6 = inlined_call_operand.vmem [shape: f32[1,8], index: 6, kind: input, shape index: {}]
  %s7 = inlined_call_operand.vmem [shape: f32[2,16,16,8], index: 7, kind: output, shape index: {}]
  %s8 = sld [smem:[#allocation0]]
  $region38: #{tpu_custom_call.1} parent=0
    _
  %s10 = ssub.s32 1, %s8
  %s11 = scalar_select 0, %s10, %s8
  // Predicated region
  $region2: #{tpu_custom_call.1} parent=0 // pred_check
    _
  $region3: #{tpu_custom_call.1} parent=0 // pred_check_branch
    %13 = sbr.rel (0) target = $region5
  $region4: #{tpu_custom_call.1} parent=0 // pred_region
    _
  $region5: #{tpu_custom_call.1} parent=0 // pred_fallthru
    _
  // Predicated region
  $region6: #{tpu_custom_call.1} parent=0 // pred_check
    _
  $region7: #{tpu_custom_call.1} parent=0 // pred_check_branch
    %15 = sbr.rel (0) target = $region9
  $region8: #{tpu_custom_call.1} parent=0 // pred_region
    _
  $region9: #{tpu_custom_call.1} parent=0 // pred_fallthru
    _
  // Predicated region
  $region10: #{tpu_custom_call.1} parent=0 // pred_check
    _
  $region11: #{tpu_custom_call.1} parent=0 // pred_check_branch
    %17 = sbr.rel (0) target = $region13
  $region12: #{tpu_custom_call.1} parent=0 // pred_region
    _
  $region13: #{tpu_custom_call.1} parent=0 // pred_fallthru
    _
  // Predicated region
  $region14: #{tpu_custom_call.1} parent=0 // pred_check
    _
  $region15: #{tpu_custom_call.1} parent=0 // pred_check_branch
    %19 = sbr.rel (0) target = $region17
  $region16: #{tpu_custom_call.1} parent=0 // pred_region
    _
  $region17: #{tpu_custom_call.1} parent=0 // pred_fallthru
    _
  // Predicated region
  $region18: #{tpu_custom_call.1} parent=0 // pred_check
    _
  $region19: #{tpu_custom_call.1} parent=0 // pred_check_branch
    %21 = sbr.rel (0) target = $region21
  $region20: #{tpu_custom_call.1} parent=0 // pred_region
    _
  $region21: #{tpu_custom_call.1} parent=0 // pred_fallthru
    _
  // Predicated region
  $region22: #{tpu_custom_call.1} parent=0 // pred_check
    _
  $region23: #{tpu_custom_call.1} parent=0 // pred_check_branch
    %23 = sbr.rel (0) target = $region25
  $region24: #{tpu_custom_call.1} parent=0 // pred_region
    _
  $region25: #{tpu_custom_call.1} parent=0 // pred_fallthru
    _
  // Predicated region
  $region26: #{tpu_custom_call.1} parent=0 // pred_check
    _
  $region27: #{tpu_custom_call.1} parent=0 // pred_check_branch
    %25 = sbr.rel (0) target = $region29
  $region28: #{tpu_custom_call.1} parent=0 // pred_region
    _
  $region29: #{tpu_custom_call.1} parent=0 // pred_fallthru
    _
  %vm26 = vcmask 64512
  %27 = vst.msk [vmem:[#allocation2] sm:$0xff] %vm26, 0.0
  %28 = vst.msk [vmem:[#allocation2 + $0x8] sm:$0xff] %vm26, 0.0
  %vm29 = vcmask 58368
  %30 = vst.msk [vmem:[#allocation2 + $0x10] sm:$0x3] %vm29, 0.0
  %31 = vst.msk [vmem:[#allocation2 + $0x18] sm:$0xff] %vm26, 0.0
  %32 = vst.msk [vmem:[#allocation2 + $0x20] sm:$0xff] %vm26, 0.0
  %33 = vst.msk [vmem:[#allocation2 + $0x28] sm:$0x3] %vm29, 0.0
  %34 = vst.msk [vmem:[#allocation2 + $0x30] sm:$0xff] %vm26, 0.0
  %35 = vst.msk [vmem:[#allocation2 + $0x38] sm:$0xff] %vm26, 0.0
  %36 = vst.msk [vmem:[#allocation2 + $0x40] sm:$0x3] %vm29, 0.0
  %37 = vst.msk [vmem:[#allocation2 + $0x48] sm:$0xff] %vm26, 0.0
  %38 = vst.msk [vmem:[#allocation2 + $0x50] sm:$0xff] %vm26, 0.0
  %39 = vst.msk [vmem:[#allocation2 + $0x58] sm:$0x3] %vm29, 0.0
  %40 = vst.msk [vmem:[#allocation2 + $0x60] sm:$0xff] %vm26, 0.0
  %41 = vst.msk [vmem:[#allocation2 + $0x68] sm:$0xff] %vm26, 0.0
  %42 = vst.msk [vmem:[#allocation2 + $0x70] sm:$0x3] %vm29, 0.0
  %43 = vst.msk [vmem:[#allocation2 + $0x78] sm:$0xff] %vm26, 0.0
  %44 = vst.msk [vmem:[#allocation2 + $0x80] sm:$0xff] %vm26, 0.0
  %45 = vst.msk [vmem:[#allocation2 + $0x88] sm:$0x3] %vm29, 0.0
  %46 = vst.msk [vmem:[#allocation2 + $0x90] sm:$0xff] %vm26, 0.0
  %47 = vst.msk [vmem:[#allocation2 + $0x98] sm:$0xff] %vm26, 0.0
  %48 = vst.msk [vmem:[#allocation2 + $0xa0] sm:$0x3] %vm29, 0.0
  %49 = vst.msk [vmem:[#allocation2 + $0xa8] sm:$0xff] %vm26, 0.0
  %50 = vst.msk [vmem:[#allocation2 + $0xb0] sm:$0xff] %vm26, 0.0
  %51 = vst.msk [vmem:[#allocation2 + $0xb8] sm:$0x3] %vm29, 0.0
  %52 = vst.msk [vmem:[#allocation2 + $0xc0] sm:$0xff] %vm26, 0.0
  %53 = vst.msk [vmem:[#allocation2 + $0xc8] sm:$0xff] %vm26, 0.0
  %54 = vst.msk [vmem:[#allocation2 + $0xd0] sm:$0x3] %vm29, 0.0
  %55 = vst.msk [vmem:[#allocation2 + $0xd8] sm:$0xff] %vm26, 0.0
  %56 = vst.msk [vmem:[#allocation2 + $0xe0] sm:$0xff] %vm26, 0.0
  %57 = vst.msk [vmem:[#allocation2 + $0xe8] sm:$0x3] %vm29, 0.0
  %58 = vst.msk [vmem:[#allocation2 + $0xf0] sm:$0xff] %vm26, 0.0
  %59 = vst.msk [vmem:[#allocation2 + $0xf8] sm:$0xff] %vm26, 0.0
  %60 = vst.msk [vmem:[#allocation2 + $0x100] sm:$0x3] %vm29, 0.0
  %61 = vst.msk [vmem:[#allocation2 + $0x108] sm:$0xff] %vm26, 0.0
  %62 = vst.msk [vmem:[#allocation2 + $0x110] sm:$0xff] %vm26, 0.0
  %63 = vst.msk [vmem:[#allocation2 + $0x118] sm:$0x3] %vm29, 0.0
  %64 = vst.msk [vmem:[#allocation2 + $0x120] sm:$0xff] %vm26, 0.0
  %65 = vst.msk [vmem:[#allocation2 + $0x128] sm:$0xff] %vm26, 0.0
  %66 = vst.msk [vmem:[#allocation2 + $0x130] sm:$0x3] %vm29, 0.0
  %67 = vst.msk [vmem:[#allocation2 + $0x138] sm:$0xff] %vm26, 0.0
  %68 = vst.msk [vmem:[#allocation2 + $0x140] sm:$0xff] %vm26, 0.0
  %69 = vst.msk [vmem:[#allocation2 + $0x148] sm:$0x3] %vm29, 0.0
  %70 = vst.msk [vmem:[#allocation2 + $0x150] sm:$0xff] %vm26, 0.0
  %71 = vst.msk [vmem:[#allocation2 + $0x158] sm:$0xff] %vm26, 0.0
  %72 = vst.msk [vmem:[#allocation2 + $0x160] sm:$0x3] %vm29, 0.0
  %73 = vst.msk [vmem:[#allocation2 + $0x168] sm:$0xff] %vm26, 0.0
  %74 = vst.msk [vmem:[#allocation2 + $0x170] sm:$0xff] %vm26, 0.0
  %75 = vst.msk [vmem:[#allocation2 + $0x178] sm:$0x3] %vm29, 0.0
  %76 = vst.msk [vmem:[#allocation2 + $0x180] sm:$0xff] %vm26, 0.0
  %77 = vst.msk [vmem:[#allocation2 + $0x188] sm:$0xff] %vm26, 0.0
  %78 = vst.msk [vmem:[#allocation2 + $0x190] sm:$0x3] %vm29, 0.0
  %79 = vst.msk [vmem:[#allocation2 + $0x198] sm:$0xff] %vm26, 0.0
  %80 = vst.msk [vmem:[#allocation2 + $0x1a0] sm:$0xff] %vm26, 0.0
  %81 = vst.msk [vmem:[#allocation2 + $0x1a8] sm:$0x3] %vm29, 0.0
  %82 = vst.msk [vmem:[#allocation2 + $0x1b0] sm:$0xff] %vm26, 0.0
  %83 = vst.msk [vmem:[#allocation2 + $0x1b8] sm:$0xff] %vm26, 0.0
  %84 = vst.msk [vmem:[#allocation2 + $0x1c0] sm:$0x3] %vm29, 0.0
  %85 = vst.msk [vmem:[#allocation2 + $0x1c8] sm:$0xff] %vm26, 0.0
  %86 = vst.msk [vmem:[#allocation2 + $0x1d0] sm:$0xff] %vm26, 0.0
  %87 = vst.msk [vmem:[#allocation2 + $0x1d8] sm:$0x3] %vm29, 0.0
  %88 = vst.msk [vmem:[#allocation2 + $0x1e0] sm:$0xff] %vm26, 0.0
  %89 = vst.msk [vmem:[#allocation2 + $0x1e8] sm:$0xff] %vm26, 0.0
  %90 = vst.msk [vmem:[#allocation2 + $0x1f0] sm:$0x3] %vm29, 0.0
  %91 = vst.msk [vmem:[#allocation2 + $0x1f8] sm:$0xff] %vm26, 0.0
  %92 = vst.msk [vmem:[#allocation2 + $0x200] sm:$0xff] %vm26, 0.0
  %93 = vst.msk [vmem:[#allocation2 + $0x208] sm:$0x3] %vm29, 0.0
  %94 = vst.msk [vmem:[#allocation2 + $0x210] sm:$0xff] %vm26, 0.0
  %95 = vst.msk [vmem:[#allocation2 + $0x218] sm:$0xff] %vm26, 0.0
  %96 = vst.msk [vmem:[#allocation2 + $0x220] sm:$0x3] %vm29, 0.0
  %97 = vst.msk [vmem:[#allocation2 + $0x228] sm:$0xff] %vm26, 0.0
  %98 = vst.msk [vmem:[#allocation2 + $0x230] sm:$0xff] %vm26, 0.0
  %99 = vst.msk [vmem:[#allocation2 + $0x238] sm:$0x3] %vm29, 0.0
  %100 = vst.msk [vmem:[#allocation2 + $0x240] sm:$0xff] %vm26, 0.0
  %101 = vst.msk [vmem:[#allocation2 + $0x248] sm:$0xff] %vm26, 0.0
  %102 = vst.msk [vmem:[#allocation2 + $0x250] sm:$0x3] %vm29, 0.0
  %103 = vst.msk [vmem:[#allocation2 + $0x258] sm:$0xff] %vm26, 0.0
  %104 = vst.msk [vmem:[#allocation2 + $0x260] sm:$0xff] %vm26, 0.0
  %105 = vst.msk [vmem:[#allocation2 + $0x268] sm:$0x3] %vm29, 0.0
  %106 = vst.msk [vmem:[#allocation2 + $0x270] sm:$0xff] %vm26, 0.0
  %107 = vst.msk [vmem:[#allocation2 + $0x278] sm:$0xff] %vm26, 0.0
  %108 = vst.msk [vmem:[#allocation2 + $0x280] sm:$0x3] %vm29, 0.0
  %109 = vst.msk [vmem:[#allocation2 + $0x288] sm:$0xff] %vm26, 0.0
  %110 = vst.msk [vmem:[#allocation2 + $0x290] sm:$0xff] %vm26, 0.0
  %111 = vst.msk [vmem:[#allocation2 + $0x298] sm:$0x3] %vm29, 0.0
  %112 = vst.msk [vmem:[#allocation2 + $0x2a0] sm:$0xff] %vm26, 0.0
  %113 = vst.msk [vmem:[#allocation2 + $0x2a8] sm:$0xff] %vm26, 0.0
  %114 = vst.msk [vmem:[#allocation2 + $0x2b0] sm:$0x3] %vm29, 0.0
  %115 = vst.msk [vmem:[#allocation2 + $0x2b8] sm:$0xff] %vm26, 0.0
  %116 = vst.msk [vmem:[#allocation2 + $0x2c0] sm:$0xff] %vm26, 0.0
  %117 = vst.msk [vmem:[#allocation2 + $0x2c8] sm:$0x3] %vm29, 0.0
  %118 = vst.msk [vmem:[#allocation2 + $0x2d0] sm:$0xff] %vm26, 0.0
  %119 = vst.msk [vmem:[#allocation2 + $0x2d8] sm:$0xff] %vm26, 0.0
  %120 = vst.msk [vmem:[#allocation2 + $0x2e0] sm:$0x3] %vm29, 0.0
  %121 = vst.msk [vmem:[#allocation2 + $0x2e8] sm:$0xff] %vm26, 0.0
  %122 = vst.msk [vmem:[#allocation2 + $0x2f0] sm:$0xff] %vm26, 0.0
  %123 = vst.msk [vmem:[#allocation2 + $0x2f8] sm:$0x3] %vm29, 0.0
  %124 = vst.msk [vmem:[#allocation2 + $0x300] sm:$0xff] %vm26, 0.0
  %125 = vst.msk [vmem:[#allocation2 + $0x308] sm:$0xff] %vm26, 0.0
  %126 = vst.msk [vmem:[#allocation2 + $0x310] sm:$0x3] %vm29, 0.0
  %127 = vst.msk [vmem:[#allocation2 + $0x318] sm:$0xff] %vm26, 0.0
  %128 = vst.msk [vmem:[#allocation2 + $0x320] sm:$0xff] %vm26, 0.0
  %129 = vst.msk [vmem:[#allocation2 + $0x328] sm:$0x3] %vm29, 0.0
  %130 = vst.msk [vmem:[#allocation2 + $0x330] sm:$0xff] %vm26, 0.0
  %131 = vst.msk [vmem:[#allocation2 + $0x338] sm:$0xff] %vm26, 0.0
  %132 = vst.msk [vmem:[#allocation2 + $0x340] sm:$0x3] %vm29, 0.0
  %133 = vst.msk [vmem:[#allocation2 + $0x348] sm:$0xff] %vm26, 0.0
  %134 = vst.msk [vmem:[#allocation2 + $0x350] sm:$0xff] %vm26, 0.0
  %135 = vst.msk [vmem:[#allocation2 + $0x358] sm:$0x3] %vm29, 0.0
  %v136 = vld [vmem:[%s0] sm:$0xff]
  %v137 = vld [vmem:[%s0 + $0x8] sm:$0xff]
  %v138 = vld [vmem:[%s0 + $0x10] sm:$0xff]
  %v139 = vld [vmem:[%s0 + $0x18] sm:$0xff]
  %v140 = vld [vmem:[%s0 + $0x20] sm:$0xff]
  %v141 = vld [vmem:[%s0 + $0x28] sm:$0xff]
  %v142 = vld [vmem:[%s0 + $0x30] sm:$0xff]
  %v143 = vld [vmem:[%s0 + $0x38] sm:$0xff]
  %v144 = vld [vmem:[%s0 + $0x40] sm:$0xff]
  %v145 = vld [vmem:[%s0 + $0x48] sm:$0xff]
  %v146 = vld [vmem:[%s0 + $0x50] sm:$0xff]
  %v147 = vld [vmem:[%s0 + $0x58] sm:$0xff]
  %v148 = vld [vmem:[%s0 + $0x60] sm:$0xff]
  %v149 = vld [vmem:[%s0 + $0x68] sm:$0xff]
  %v150 = vld [vmem:[%s0 + $0x70] sm:$0xff]
  %v151 = vld [vmem:[%s0 + $0x78] sm:$0xff]
  %v152 = vld [vmem:[%s0 + $0x80] sm:$0xff]
  %v153 = vld [vmem:[%s0 + $0x88] sm:$0xff]
  %v154 = vld [vmem:[%s0 + $0x90] sm:$0xff]
  %v155 = vld [vmem:[%s0 + $0x98] sm:$0xff]
  %v156 = vld [vmem:[%s0 + $0xa0] sm:$0xff]
  %v157 = vld [vmem:[%s0 + $0xa8] sm:$0xff]
  %v158 = vld [vmem:[%s0 + $0xb0] sm:$0xff]
  %v159 = vld [vmem:[%s0 + $0xb8] sm:$0xff]
  %v160 = vld [vmem:[%s0 + $0xc0] sm:$0xff]
  %v161 = vld [vmem:[%s0 + $0xc8] sm:$0xff]
  %v162 = vld [vmem:[%s0 + $0xd0] sm:$0xff]
  %v163 = vld [vmem:[%s0 + $0xd8] sm:$0xff]
  %v164 = vld [vmem:[%s0 + $0xe0] sm:$0xff]
  %v165 = vld [vmem:[%s0 + $0xe8] sm:$0xff]
  %v166 = vld [vmem:[%s0 + $0xf0] sm:$0xff]
  %v167 = vld [vmem:[%s0 + $0xf8] sm:$0xff]
  %v168 = vld [vmem:[%s0 + $0x100] sm:$0xff]
  %v169 = vld [vmem:[%s0 + $0x108] sm:$0xff]
  %v170 = vld [vmem:[%s0 + $0x110] sm:$0xff]
  %v171 = vld [vmem:[%s0 + $0x118] sm:$0xff]
  %v172 = vld [vmem:[%s0 + $0x120] sm:$0xff]
  %v173 = vld [vmem:[%s0 + $0x128] sm:$0xff]
  %v174 = vld [vmem:[%s0 + $0x130] sm:$0xff]
  %v175 = vld [vmem:[%s0 + $0x138] sm:$0xff]
  %v176 = vld [vmem:[%s0 + $0x140] sm:$0xff]
  %v177 = vld [vmem:[%s0 + $0x148] sm:$0xff]
  %v178 = vld [vmem:[%s0 + $0x150] sm:$0xff]
  %v179 = vld [vmem:[%s0 + $0x158] sm:$0xff]
  %v180 = vld [vmem:[%s0 + $0x160] sm:$0xff]
  %v181 = vld [vmem:[%s0 + $0x168] sm:$0xff]
  %v182 = vld [vmem:[%s0 + $0x170] sm:$0xff]
  %v183 = vld [vmem:[%s0 + $0x178] sm:$0xff]
  %v184 = vld [vmem:[%s0 + $0x180] sm:$0xff]
  %v185 = vld [vmem:[%s0 + $0x188] sm:$0xff]
  %v186 = vld [vmem:[%s0 + $0x190] sm:$0xff]
  %v187 = vld [vmem:[%s0 + $0x198] sm:$0xff]
  %v188 = vld [vmem:[%s0 + $0x1a0] sm:$0xff]
  %v189 = vld [vmem:[%s0 + $0x1a8] sm:$0xff]
  %v190 = vld [vmem:[%s0 + $0x1b0] sm:$0xff]
  %v191 = vld [vmem:[%s0 + $0x1b8] sm:$0xff]
  %v192 = vld [vmem:[%s0 + $0x1c0] sm:$0xff]
  %v193 = vld [vmem:[%s0 + $0x1c8] sm:$0xff]
  %v194 = vld [vmem:[%s0 + $0x1d0] sm:$0xff]
  %v195 = vld [vmem:[%s0 + $0x1d8] sm:$0xff]
  %v196 = vld [vmem:[%s0 + $0x1e0] sm:$0xff]
  %v197 = vld [vmem:[%s0 + $0x1e8] sm:$0xff]
  %v198 = vld [vmem:[%s0 + $0x1f0] sm:$0xff]
  %v199 = vld [vmem:[%s0 + $0x1f8] sm:$0xff]
  %s200 = scalar_lea.vmem [#allocation2], 24
  %201 = vst.msk [vmem:[%s200 + $0x1] sm:$0xff] %vm26, %v136
  %202 = vst.msk [vmem:[%s200 + $0x9] sm:$0xff] %vm26, %v137
  %203 = vst.msk [vmem:[%s200 + $0x19] sm:$0xff] %vm26, %v138
  %204 = vst.msk [vmem:[%s200 + $0x21] sm:$0xff] %vm26, %v139
  %205 = vst.msk [vmem:[%s200 + $0x31] sm:$0xff] %vm26, %v140
  %206 = vst.msk [vmem:[%s200 + $0x39] sm:$0xff] %vm26, %v141
  %207 = vst.msk [vmem:[%s200 + $0x49] sm:$0xff] %vm26, %v142
  %208 = vst.msk [vmem:[%s200 + $0x51] sm:$0xff] %vm26, %v143
  %209 = vst.msk [vmem:[%s200 + $0x61] sm:$0xff] %vm26, %v144
  %210 = vst.msk [vmem:[%s200 + $0x69] sm:$0xff] %vm26, %v145
  %211 = vst.msk [vmem:[%s200 + $0x79] sm:$0xff] %vm26, %v146
  %212 = vst.msk [vmem:[%s200 + $0x81] sm:$0xff] %vm26, %v147
  %213 = vst.msk [vmem:[%s200 + $0x91] sm:$0xff] %vm26, %v148
  %214 = vst.msk [vmem:[%s200 + $0x99] sm:$0xff] %vm26, %v149
  %215 = vst.msk [vmem:[%s200 + $0xa9] sm:$0xff] %vm26, %v150
  %216 = vst.msk [vmem:[%s200 + $0xb1] sm:$0xff] %vm26, %v151
  %217 = vst.msk [vmem:[%s200 + $0xc1] sm:$0xff] %vm26, %v152
  %218 = vst.msk [vmem:[%s200 + $0xc9] sm:$0xff] %vm26, %v153
  %219 = vst.msk [vmem:[%s200 + $0xd9] sm:$0xff] %vm26, %v154
  %220 = vst.msk [vmem:[%s200 + $0xe1] sm:$0xff] %vm26, %v155
  %221 = vst.msk [vmem:[%s200 + $0xf1] sm:$0xff] %vm26, %v156
  %222 = vst.msk [vmem:[%s200 + $0xf9] sm:$0xff] %vm26, %v157
  %223 = vst.msk [vmem:[%s200 + $0x109] sm:$0xff] %vm26, %v158
  %224 = vst.msk [vmem:[%s200 + $0x111] sm:$0xff] %vm26, %v159
  %225 = vst.msk [vmem:[%s200 + $0x121] sm:$0xff] %vm26, %v160
  %226 = vst.msk [vmem:[%s200 + $0x129] sm:$0xff] %vm26, %v161
  %227 = vst.msk [vmem:[%s200 + $0x139] sm:$0xff] %vm26, %v162
  %228 = vst.msk [vmem:[%s200 + $0x141] sm:$0xff] %vm26, %v163
  %229 = vst.msk [vmem:[%s200 + $0x151] sm:$0xff] %vm26, %v164
  %230 = vst.msk [vmem:[%s200 + $0x159] sm:$0xff] %vm26, %v165
  %231 = vst.msk [vmem:[%s200 + $0x169] sm:$0xff] %vm26, %v166
  %232 = vst.msk [vmem:[%s200 + $0x171] sm:$0xff] %vm26, %v167
  %233 = vst.msk [vmem:[%s200 + $0x1b1] sm:$0xff] %vm26, %v168
  %234 = vst.msk [vmem:[%s200 + $0x1b9] sm:$0xff] %vm26, %v169
  %235 = vst.msk [vmem:[%s200 + $0x1c9] sm:$0xff] %vm26, %v170
  %236 = vst.msk [vmem:[%s200 + $0x1d1] sm:$0xff] %vm26, %v171
  %237 = vst.msk [vmem:[%s200 + $0x1e1] sm:$0xff] %vm26, %v172
  %238 = vst.msk [vmem:[%s200 + $0x1e9] sm:$0xff] %vm26, %v173
  %239 = vst.msk [vmem:[%s200 + $0x1f9] sm:$0xff] %vm26, %v174
  %240 = vst.msk [vmem:[%s200 + $0x201] sm:$0xff] %vm26, %v175
  %241 = vst.msk [vmem:[%s200 + $0x211] sm:$0xff] %vm26, %v176
  %242 = vst.msk [vmem:[%s200 + $0x219] sm:$0xff] %vm26, %v177
  %243 = vst.msk [vmem:[%s200 + $0x229] sm:$0xff] %vm26, %v178
  %244 = vst.msk [vmem:[%s200 + $0x231] sm:$0xff] %vm26, %v179
  %245 = vst.msk [vmem:[%s200 + $0x241] sm:$0xff] %vm26, %v180
  %246 = vst.msk [vmem:[%s200 + $0x249] sm:$0xff] %vm26, %v181
  %247 = vst.msk [vmem:[%s200 + $0x259] sm:$0xff] %vm26, %v182
  %248 = vst.msk [vmem:[%s200 + $0x261] sm:$0xff] %vm26, %v183
  %249 = vst.msk [vmem:[%s200 + $0x271] sm:$0xff] %vm26, %v184
  %250 = vst.msk [vmem:[%s200 + $0x279] sm:$0xff] %vm26, %v185
  %251 = vst.msk [vmem:[%s200 + $0x289] sm:$0xff] %vm26, %v186
  %252 = vst.msk [vmem:[%s200 + $0x291] sm:$0xff] %vm26, %v187
  %253 = vst.msk [vmem:[%s200 + $0x2a1] sm:$0xff] %vm26, %v188
  %254 = vst.msk [vmem:[%s200 + $0x2a9] sm:$0xff] %vm26, %v189
  %255 = vst.msk [vmem:[%s200 + $0x2b9] sm:$0xff] %vm26, %v190
  %256 = vst.msk [vmem:[%s200 + $0x2c1] sm:$0xff] %vm26, %v191
  %257 = vst.msk [vmem:[%s200 + $0x2d1] sm:$0xff] %vm26, %v192
  %258 = vst.msk [vmem:[%s200 + $0x2d9] sm:$0xff] %vm26, %v193
  %259 = vst.msk [vmem:[%s200 + $0x2e9] sm:$0xff] %vm26, %v194
  %260 = vst.msk [vmem:[%s200 + $0x2f1] sm:$0xff] %vm26, %v195
  %261 = vst.msk [vmem:[%s200 + $0x301] sm:$0xff] %vm26, %v196
  %262 = vst.msk [vmem:[%s200 + $0x309] sm:$0xff] %vm26, %v197
  %263 = vst.msk [vmem:[%s200 + $0x319] sm:$0xff] %vm26, %v198
  %264 = vst.msk [vmem:[%s200 + $0x321] sm:$0xff] %vm26, %v199
  %v265 = vld [vmem:[#allocation2] sm:$0xff]
  %v266 = vld [vmem:[#allocation2 + $0x8] sm:$0xff]
  %v267 = vld [vmem:[#allocation2 + $0x18] sm:$0xff]
  %v268 = vld [vmem:[#allocation2 + $0x20] sm:$0xff]
  %v269 = vld [vmem:[#allocation2 + $0x30] sm:$0xff]
  %v270 = vld [vmem:[#allocation2 + $0x38] sm:$0xff]
  %v271 = vld [vmem:[#allocation2 + $0x48] sm:$0xff]
  %v272 = vld [vmem:[#allocation2 + $0x50] sm:$0xff]
  %v273 = vld [vmem:[#allocation2 + $0x60] sm:$0xff]
  %v274 = vld [vmem:[#allocation2 + $0x68] sm:$0xff]
  %v275 = vld [vmem:[#allocation2 + $0x78] sm:$0xff]
  %v276 = vld [vmem:[#allocation2 + $0x80] sm:$0xff]
  %v277 = vld [vmem:[#allocation2 + $0x90] sm:$0xff]
  %v278 = vld [vmem:[#allocation2 + $0x98] sm:$0xff]
  %v279 = vld [vmem:[#allocation2 + $0xa8] sm:$0xff]
  %v280 = vld [vmem:[#allocation2 + $0xb0] sm:$0xff]
  %v281 = vld [vmem:[#allocation2 + $0xc0] sm:$0xff]
  %v282 = vld [vmem:[#allocation2 + $0xc8] sm:$0xff]
  %v283 = vld [vmem:[#allocation2 + $0xd8] sm:$0xff]
  %v284 = vld [vmem:[#allocation2 + $0xe0] sm:$0xff]
  %v285 = vld [vmem:[#allocation2 + $0xf0] sm:$0xff]
  %v286 = vld [vmem:[#allocation2 + $0xf8] sm:$0xff]
  %v287 = vld [vmem:[#allocation2 + $0x108] sm:$0xff]
  %v288 = vld [vmem:[#allocation2 + $0x110] sm:$0xff]
  %v289 = vld [vmem:[#allocation2 + $0x120] sm:$0xff]
  %v290 = vld [vmem:[#allocation2 + $0x128] sm:$0xff]
  %v291 = vld [vmem:[#allocation2 + $0x138] sm:$0xff]
  %v292 = vld [vmem:[#allocation2 + $0x140] sm:$0xff]
  %v293 = vld [vmem:[#allocation2 + $0x150] sm:$0xff]
  %v294 = vld [vmem:[#allocation2 + $0x158] sm:$0xff]
  %v295 = vld [vmem:[#allocation2 + $0x168] sm:$0xff]
  %v296 = vld [vmem:[#allocation2 + $0x170] sm:$0xff]
  %v297 = vld [vmem:[#allocation2 + $0x1b0] sm:$0xff]
  %v298 = vld [vmem:[#allocation2 + $0x1b8] sm:$0xff]
  %v299 = vld [vmem:[#allocation2 + $0x1c8] sm:$0xff]
  %v300 = vld [vmem:[#allocation2 + $0x1d0] sm:$0xff]
  %v301 = vld [vmem:[#allocation2 + $0x1e0] sm:$0xff]
  %v302 = vld [vmem:[#allocation2 + $0x1e8] sm:$0xff]
  %v303 = vld [vmem:[#allocation2 + $0x1f8] sm:$0xff]
  %v304 = vld [vmem:[#allocation2 + $0x200] sm:$0xff]
  %v305 = vld [vmem:[#allocation2 + $0x210] sm:$0xff]
  %v306 = vld [vmem:[#allocation2 + $0x218] sm:$0xff]
  %v307 = vld [vmem:[#allocation2 + $0x228] sm:$0xff]
  %v308 = vld [vmem:[#allocation2 + $0x230] sm:$0xff]
  %v309 = vld [vmem:[#allocation2 + $0x240] sm:$0xff]
  %v310 = vld [vmem:[#allocation2 + $0x248] sm:$0xff]
  %v311 = vld [vmem:[#allocation2 + $0x258] sm:$0xff]
  %v312 = vld [vmem:[#allocation2 + $0x260] sm:$0xff]
  %v313 = vld [vmem:[#allocation2 + $0x270] sm:$0xff]
  %v314 = vld [vmem:[#allocation2 + $0x278] sm:$0xff]
  %v315 = vld [vmem:[#allocation2 + $0x288] sm:$0xff]
  %v316 = vld [vmem:[#allocation2 + $0x290] sm:$0xff]
  %v317 = vld [vmem:[#allocation2 + $0x2a0] sm:$0xff]
  %v318 = vld [vmem:[#allocation2 + $0x2a8] sm:$0xff]
  %v319 = vld [vmem:[#allocation2 + $0x2b8] sm:$0xff]
  %v320 = vld [vmem:[#allocation2 + $0x2c0] sm:$0xff]
  %v321 = vld [vmem:[#allocation2 + $0x2d0] sm:$0xff]
  %v322 = vld [vmem:[#allocation2 + $0x2d8] sm:$0xff]
  %v323 = vld [vmem:[#allocation2 + $0x2e8] sm:$0xff]
  %v324 = vld [vmem:[#allocation2 + $0x2f0] sm:$0xff]
  %v325 = vld [vmem:[#allocation2 + $0x300] sm:$0xff]
  %v326 = vld [vmem:[#allocation2 + $0x308] sm:$0xff]
  %v327 = vld [vmem:[#allocation2 + $0x318] sm:$0xff]
  %v328 = vld [vmem:[#allocation2 + $0x320] sm:$0xff]
  %v329 = vld [vmem:[#allocation2 + $0x1] sm:$0xff]
  %v330 = vld [vmem:[#allocation2 + $0x9] sm:$0xff]
  %v331 = vld [vmem:[#allocation2 + $0x19] sm:$0xff]
  %v332 = vld [vmem:[#allocation2 + $0x21] sm:$0xff]
  %v333 = vld [vmem:[#allocation2 + $0x31] sm:$0xff]
  %v334 = vld [vmem:[#allocation2 + $0x39] sm:$0xff]
  %v335 = vld [vmem:[#allocation2 + $0x49] sm:$0xff]
  %v336 = vld [vmem:[#allocation2 + $0x51] sm:$0xff]
  %v337 = vld [vmem:[#allocation2 + $0x61] sm:$0xff]
  %v338 = vld [vmem:[#allocation2 + $0x69] sm:$0xff]
  %v339 = vld [vmem:[#allocation2 + $0x79] sm:$0xff]
  %v340 = vld [vmem:[#allocation2 + $0x81] sm:$0xff]
  %v341 = vld [vmem:[#allocation2 + $0x91] sm:$0xff]
  %v342 = vld [vmem:[#allocation2 + $0x99] sm:$0xff]
  %v343 = vld [vmem:[#allocation2 + $0xa9] sm:$0xff]
  %v344 = vld [vmem:[#allocation2 + $0xb1] sm:$0xff]
  %v345 = vld [vmem:[#allocation2 + $0xc1] sm:$0xff]
  %v346 = vld [vmem:[#allocation2 + $0xc9] sm:$0xff]
  %v347 = vld [vmem:[#allocation2 + $0xd9] sm:$0xff]
  %v348 = vld [vmem:[#allocation2 + $0xe1] sm:$0xff]
  %v349 = vld [vmem:[#allocation2 + $0xf1] sm:$0xff]
  %v350 = vld [vmem:[#allocation2 + $0xf9] sm:$0xff]
  %v351 = vld [vmem:[#allocation2 + $0x109] sm:$0xff]
  %v352 = vld [vmem:[#allocation2 + $0x111] sm:$0xff]
  %v353 = vld [vmem:[#allocation2 + $0x121] sm:$0xff]
  %v354 = vld [vmem:[#allocation2 + $0x129] sm:$0xff]
  %v355 = vld [vmem:[#allocation2 + $0x139] sm:$0xff]
  %v356 = vld [vmem:[#allocation2 + $0x141] sm:$0xff]
  %v357 = vld [vmem:[#allocation2 + $0x151] sm:$0xff]
  %v358 = vld [vmem:[#allocation2 + $0x159] sm:$0xff]
  %v359 = vld [vmem:[#allocation2 + $0x169] sm:$0xff]
  %v360 = vld [vmem:[#allocation2 + $0x171] sm:$0xff]
  %v361 = vld [vmem:[#allocation2 + $0x1b1] sm:$0xff]
  %v362 = vld [vmem:[#allocation2 + $0x1b9] sm:$0xff]
  %v363 = vld [vmem:[#allocation2 + $0x1c9] sm:$0xff]
  %v364 = vld [vmem:[#allocation2 + $0x1d1] sm:$0xff]
  %v365 = vld [vmem:[#allocation2 + $0x1e1] sm:$0xff]
  %v366 = vld [vmem:[#allocation2 + $0x1e9] sm:$0xff]
  %v367 = vld [vmem:[#allocation2 + $0x1f9] sm:$0xff]
  %v368 = vld [vmem:[#allocation2 + $0x201] sm:$0xff]
  %v369 = vld [vmem:[#allocation2 + $0x211] sm:$0xff]
  %v370 = vld [vmem:[#allocation2 + $0x219] sm:$0xff]
  %v371 = vld [vmem:[#allocation2 + $0x229] sm:$0xff]
  %v372 = vld [vmem:[#allocation2 + $0x231] sm:$0xff]
  %v373 = vld [vmem:[#allocation2 + $0x241] sm:$0xff]
  %v374 = vld [vmem:[#allocation2 + $0x249] sm:$0xff]
  %v375 = vld [vmem:[#allocation2 + $0x259] sm:$0xff]
  %v376 = vld [vmem:[#allocation2 + $0x261] sm:$0xff]
  %v377 = vld [vmem:[#allocation2 + $0x271] sm:$0xff]
  %v378 = vld [vmem:[#allocation2 + $0x279] sm:$0xff]
  %v379 = vld [vmem:[#allocation2 + $0x289] sm:$0xff]
  %v380 = vld [vmem:[#allocation2 + $0x291] sm:$0xff]
  %v381 = vld [vmem:[#allocation2 + $0x2a1] sm:$0xff]
  %v382 = vld [vmem:[#allocation2 + $0x2a9] sm:$0xff]
  %v383 = vld [vmem:[#allocation2 + $0x2b9] sm:$0xff]
  %v384 = vld [vmem:[#allocation2 + $0x2c1] sm:$0xff]
  %v385 = vld [vmem:[#allocation2 + $0x2d1] sm:$0xff]
  %v386 = vld [vmem:[#allocation2 + $0x2d9] sm:$0xff]
  %v387 = vld [vmem:[#allocation2 + $0x2e9] sm:$0xff]
  %v388 = vld [vmem:[#allocation2 + $0x2f1] sm:$0xff]
  %v389 = vld [vmem:[#allocation2 + $0x301] sm:$0xff]
  %v390 = vld [vmem:[#allocation2 + $0x309] sm:$0xff]
  %v391 = vld [vmem:[#allocation2 + $0x319] sm:$0xff]
  %v392 = vld [vmem:[#allocation2 + $0x321] sm:$0xff]
  %v393 = vld [vmem:[#allocation2 + $0x2] sm:$0xff]
  %v394 = vld [vmem:[#allocation2 + $0xa] sm:$0xff]
  %v395 = vld [vmem:[#allocation2 + $0x1a] sm:$0xff]
  %v396 = vld [vmem:[#allocation2 + $0x22] sm:$0xff]
  %v397 = vld [vmem:[#allocation2 + $0x32] sm:$0xff]
  %v398 = vld [vmem:[#allocation2 + $0x3a] sm:$0xff]
  %v399 = vld [vmem:[#allocation2 + $0x4a] sm:$0xff]
  %v400 = vld [vmem:[#allocation2 + $0x52] sm:$0xff]
  %v401 = vld [vmem:[#allocation2 + $0x62] sm:$0xff]
  %v402 = vld [vmem:[#allocation2 + $0x6a] sm:$0xff]
  %v403 = vld [vmem:[#allocation2 + $0x7a] sm:$0xff]
  %v404 = vld [vmem:[#allocation2 + $0x82] sm:$0xff]
  %v405 = vld [vmem:[#allocation2 + $0x92] sm:$0xff]
  %v406 = vld [vmem:[#allocation2 + $0x9a] sm:$0xff]
  %v407 = vld [vmem:[#allocation2 + $0xaa] sm:$0xff]
  %v408 = vld [vmem:[#allocation2 + $0xb2] sm:$0xff]
  %v409 = vld [vmem:[#allocation2 + $0xc2] sm:$0xff]
  %v410 = vld [vmem:[#allocation2 + $0xca] sm:$0xff]
  %v411 = vld [vmem:[#allocation2 + $0xda] sm:$0xff]
  %v412 = vld [vmem:[#allocation2 + $0xe2] sm:$0xff]
  %v413 = vld [vmem:[#allocation2 + $0xf2] sm:$0xff]
  %v414 = vld [vmem:[#allocation2 + $0xfa] sm:$0xff]
  %v415 = vld [vmem:[#allocation2 + $0x10a] sm:$0xff]
  %v416 = vld [vmem:[#allocation2 + $0x112] sm:$0xff]
  %v417 = vld [vmem:[#allocation2 + $0x122] sm:$0xff]
  %v418 = vld [vmem:[#allocation2 + $0x12a] sm:$0xff]
  %v419 = vld [vmem:[#allocation2 + $0x13a] sm:$0xff]
  %v420 = vld [vmem:[#allocation2 + $0x142] sm:$0xff]
  %v421 = vld [vmem:[#allocation2 + $0x152] sm:$0xff]
  %v422 = vld [vmem:[#allocation2 + $0x15a] sm:$0xff]
  %v423 = vld [vmem:[#allocation2 + $0x16a] sm:$0xff]
  %v424 = vld [vmem:[#allocation2 + $0x172] sm:$0xff]
  %v425 = vld [vmem:[#allocation2 + $0x1b2] sm:$0xff]
  %v426 = vld [vmem:[#allocation2 + $0x1ba] sm:$0xff]
  %v427 = vld [vmem:[#allocation2 + $0x1ca] sm:$0xff]
  %v428 = vld [vmem:[#allocation2 + $0x1d2] sm:$0xff]
  %v429 = vld [vmem:[#allocation2 + $0x1e2] sm:$0xff]
  %v430 = vld [vmem:[#allocation2 + $0x1ea] sm:$0xff]
  %v431 = vld [vmem:[#allocation2 + $0x1fa] sm:$0xff]
  %v432 = vld [vmem:[#allocation2 + $0x202] sm:$0xff]
  %v433 = vld [vmem:[#allocation2 + $0x212] sm:$0xff]
  %v434 = vld [vmem:[#allocation2 + $0x21a] sm:$0xff]
  %v435 = vld [vmem:[#allocation2 + $0x22a] sm:$0xff]
  %v436 = vld [vmem:[#allocation2 + $0x232] sm:$0xff]
  %v437 = vld [vmem:[#allocation2 + $0x242] sm:$0xff]
  %v438 = vld [vmem:[#allocation2 + $0x24a] sm:$0xff]
  %v439 = vld [vmem:[#allocation2 + $0x25a] sm:$0xff]
  %v440 = vld [vmem:[#allocation2 + $0x262] sm:$0xff]
  %v441 = vld [vmem:[#allocation2 + $0x272] sm:$0xff]
  %v442 = vld [vmem:[#allocation2 + $0x27a] sm:$0xff]
  %v443 = vld [vmem:[#allocation2 + $0x28a] sm:$0xff]
  %v444 = vld [vmem:[#allocation2 + $0x292] sm:$0xff]
  %v445 = vld [vmem:[#allocation2 + $0x2a2] sm:$0xff]
  %v446 = vld [vmem:[#allocation2 + $0x2aa] sm:$0xff]
  %v447 = vld [vmem:[#allocation2 + $0x2ba] sm:$0xff]
  %v448 = vld [vmem:[#allocation2 + $0x2c2] sm:$0xff]
  %v449 = vld [vmem:[#allocation2 + $0x2d2] sm:$0xff]
  %v450 = vld [vmem:[#allocation2 + $0x2da] sm:$0xff]
  %v451 = vld [vmem:[#allocation2 + $0x2ea] sm:$0xff]
  %v452 = vld [vmem:[#allocation2 + $0x2f2] sm:$0xff]
  %v453 = vld [vmem:[#allocation2 + $0x302] sm:$0xff]
  %v454 = vld [vmem:[#allocation2 + $0x30a] sm:$0xff]
  %v455 = vld [vmem:[#allocation2 + $0x31a] sm:$0xff]
  %v456 = vld [vmem:[#allocation2 + $0x322] sm:$0xff]
  %v457 = vld [vmem:[%s200] sm:$0xff]
  %v458 = vld [vmem:[%s200 + $0x8] sm:$0xff]
  %v459 = vld [vmem:[%s200 + $0x18] sm:$0xff]
  %v460 = vld [vmem:[%s200 + $0x20] sm:$0xff]
  %v461 = vld [vmem:[%s200 + $0x30] sm:$0xff]
  %v462 = vld [vmem:[%s200 + $0x38] sm:$0xff]
  %v463 = vld [vmem:[%s200 + $0x48] sm:$0xff]
  %v464 = vld [vmem:[%s200 + $0x50] sm:$0xff]
  %v465 = vld [vmem:[%s200 + $0x60] sm:$0xff]
  %v466 = vld [vmem:[%s200 + $0x68] sm:$0xff]
  %v467 = vld [vmem:[%s200 + $0x78] sm:$0xff]
  %v468 = vld [vmem:[%s200 + $0x80] sm:$0xff]
  %v469 = vld [vmem:[%s200 + $0x90] sm:$0xff]
  %v470 = vld [vmem:[%s200 + $0x98] sm:$0xff]
  %v471 = vld [vmem:[%s200 + $0xa8] sm:$0xff]
  %v472 = vld [vmem:[%s200 + $0xb0] sm:$0xff]
  %v473 = vld [vmem:[%s200 + $0xc0] sm:$0xff]
  %v474 = vld [vmem:[%s200 + $0xc8] sm:$0xff]
  %v475 = vld [vmem:[%s200 + $0xd8] sm:$0xff]
  %v476 = vld [vmem:[%s200 + $0xe0] sm:$0xff]
  %v477 = vld [vmem:[%s200 + $0xf0] sm:$0xff]
  %v478 = vld [vmem:[%s200 + $0xf8] sm:$0xff]
  %v479 = vld [vmem:[%s200 + $0x108] sm:$0xff]
  %v480 = vld [vmem:[%s200 + $0x110] sm:$0xff]
  %v481 = vld [vmem:[%s200 + $0x120] sm:$0xff]
  %v482 = vld [vmem:[%s200 + $0x128] sm:$0xff]
  %v483 = vld [vmem:[%s200 + $0x138] sm:$0xff]
  %v484 = vld [vmem:[%s200 + $0x140] sm:$0xff]
  %v485 = vld [vmem:[%s200 + $0x150] sm:$0xff]
  %v486 = vld [vmem:[%s200 + $0x158] sm:$0xff]
  %v487 = vld [vmem:[%s200 + $0x168] sm:$0xff]
  %v488 = vld [vmem:[%s200 + $0x170] sm:$0xff]
  %v489 = vld [vmem:[%s200 + $0x1b0] sm:$0xff]
  %v490 = vld [vmem:[%s200 + $0x1b8] sm:$0xff]
  %v491 = vld [vmem:[%s200 + $0x1c8] sm:$0xff]
  %v492 = vld [vmem:[%s200 + $0x1d0] sm:$0xff]
  %v493 = vld [vmem:[%s200 + $0x1e0] sm:$0xff]
  %v494 = vld [vmem:[%s200 + $0x1e8] sm:$0xff]
  %v495 = vld [vmem:[%s200 + $0x1f8] sm:$0xff]
  %v496 = vld [vmem:[%s200 + $0x200] sm:$0xff]
  %v497 = vld [vmem:[%s200 + $0x210] sm:$0xff]
  %v498 = vld [vmem:[%s200 + $0x218] sm:$0xff]
  %v499 = vld [vmem:[%s200 + $0x228] sm:$0xff]
  %v500 = vld [vmem:[%s200 + $0x230] sm:$0xff]
  %v501 = vld [vmem:[%s200 + $0x240] sm:$0xff]
  %v502 = vld [vmem:[%s200 + $0x248] sm:$0xff]
  %v503 = vld [vmem:[%s200 + $0x258] sm:$0xff]
  %v504 = vld [vmem:[%s200 + $0x260] sm:$0xff]
  %v505 = vld [vmem:[%s200 + $0x270] sm:$0xff]
  %v506 = vld [vmem:[%s200 + $0x278] sm:$0xff]
  %v507 = vld [vmem:[%s200 + $0x288] sm:$0xff]
  %v508 = vld [vmem:[%s200 + $0x290] sm:$0xff]
  %v509 = vld [vmem:[%s200 + $0x2a0] sm:$0xff]
  %v510 = vld [vmem:[%s200 + $0x2a8] sm:$0xff]
  %v511 = vld [vmem:[%s200 + $0x2b8] sm:$0xff]
  %v512 = vld [vmem:[%s200 + $0x2c0] sm:$0xff]
  %v513 = vld [vmem:[%s200 + $0x2d0] sm:$0xff]
  %v514 = vld [vmem:[%s200 + $0x2d8] sm:$0xff]
  %v515 = vld [vmem:[%s200 + $0x2e8] sm:$0xff]
  %v516 = vld [vmem:[%s200 + $0x2f0] sm:$0xff]
  %v517 = vld [vmem:[%s200 + $0x300] sm:$0xff]
  %v518 = vld [vmem:[%s200 + $0x308] sm:$0xff]
  %v519 = vld [vmem:[%s200 + $0x318] sm:$0xff]
  %v520 = vld [vmem:[%s200 + $0x320] sm:$0xff]
  %v521 = vld [vmem:[%s200 + $0x1] sm:$0xff]
  %v522 = vld [vmem:[%s200 + $0x9] sm:$0xff]
  %v523 = vld [vmem:[%s200 + $0x19] sm:$0xff]
  %v524 = vld [vmem:[%s200 + $0x21] sm:$0xff]
  %v525 = vld [vmem:[%s200 + $0x31] sm:$0xff]
  %v526 = vld [vmem:[%s200 + $0x39] sm:$0xff]
  %v527 = vld [vmem:[%s200 + $0x49] sm:$0xff]
  %v528 = vld [vmem:[%s200 + $0x51] sm:$0xff]
  %v529 = vld [vmem:[%s200 + $0x61] sm:$0xff]
  %v530 = vld [vmem:[%s200 + $0x69] sm:$0xff]
  %v531 = vld [vmem:[%s200 + $0x79] sm:$0xff]
  %v532 = vld [vmem:[%s200 + $0x81] sm:$0xff]
  %v533 = vld [vmem:[%s200 + $0x91] sm:$0xff]
  %v534 = vld [vmem:[%s200 + $0x99] sm:$0xff]
  %v535 = vld [vmem:[%s200 + $0xa9] sm:$0xff]
  %v536 = vld [vmem:[%s200 + $0xb1] sm:$0xff]
  %v537 = vld [vmem:[%s200 + $0xc1] sm:$0xff]
  %v538 = vld [vmem:[%s200 + $0xc9] sm:$0xff]
  %v539 = vld [vmem:[%s200 + $0xd9] sm:$0xff]
  %v540 = vld [vmem:[%s200 + $0xe1] sm:$0xff]
  %v541 = vld [vmem:[%s200 + $0xf1] sm:$0xff]
  %v542 = vld [vmem:[%s200 + $0xf9] sm:$0xff]
  %v543 = vld [vmem:[%s200 + $0x109] sm:$0xff]
  %v544 = vld [vmem:[%s200 + $0x111] sm:$0xff]
  %v545 = vld [vmem:[%s200 + $0x121] sm:$0xff]
  %v546 = vld [vmem:[%s200 + $0x129] sm:$0xff]
  %v547 = vld [vmem:[%s200 + $0x139] sm:$0xff]
  %v548 = vld [vmem:[%s200 + $0x141] sm:$0xff]
  %v549 = vld [vmem:[%s200 + $0x151] sm:$0xff]
  %v550 = vld [vmem:[%s200 + $0x159] sm:$0xff]
  %v551 = vld [vmem:[%s200 + $0x169] sm:$0xff]
  %v552 = vld [vmem:[%s200 + $0x171] sm:$0xff]
  %v553 = vld [vmem:[%s200 + $0x1b1] sm:$0xff]
  %v554 = vld [vmem:[%s200 + $0x1b9] sm:$0xff]
  %v555 = vld [vmem:[%s200 + $0x1c9] sm:$0xff]
  %v556 = vld [vmem:[%s200 + $0x1d1] sm:$0xff]
  %v557 = vld [vmem:[%s200 + $0x1e1] sm:$0xff]
  %v558 = vld [vmem:[%s200 + $0x1e9] sm:$0xff]
  %v559 = vld [vmem:[%s200 + $0x1f9] sm:$0xff]
  %v560 = vld [vmem:[%s200 + $0x201] sm:$0xff]
  %v561 = vld [vmem:[%s200 + $0x211] sm:$0xff]
  %v562 = vld [vmem:[%s200 + $0x219] sm:$0xff]
  %v563 = vld [vmem:[%s200 + $0x229] sm:$0xff]
  %v564 = vld [vmem:[%s200 + $0x231] sm:$0xff]
  %v565 = vld [vmem:[%s200 + $0x241] sm:$0xff]
  %v566 = vld [vmem:[%s200 + $0x249] sm:$0xff]
  %v567 = vld [vmem:[%s200 + $0x259] sm:$0xff]
  %v568 = vld [vmem:[%s200 + $0x261] sm:$0xff]
  %v569 = vld [vmem:[%s200 + $0x271] sm:$0xff]
  %v570 = vld [vmem:[%s200 + $0x279] sm:$0xff]
  %v571 = vld [vmem:[%s200 + $0x289] sm:$0xff]
  %v572 = vld [vmem:[%s200 + $0x291] sm:$0xff]
  %v573 = vld [vmem:[%s200 + $0x2a1] sm:$0xff]
  %v574 = vld [vmem:[%s200 + $0x2a9] sm:$0xff]
  %v575 = vld [vmem:[%s200 + $0x2b9] sm:$0xff]
  %v576 = vld [vmem:[%s200 + $0x2c1] sm:$0xff]
  %v577 = vld [vmem:[%s200 + $0x2d1] sm:$0xff]
  %v578 = vld [vmem:[%s200 + $0x2d9] sm:$0xff]
  %v579 = vld [vmem:[%s200 + $0x2e9] sm:$0xff]
  %v580 = vld [vmem:[%s200 + $0x2f1] sm:$0xff]
  %v581 = vld [vmem:[%s200 + $0x301] sm:$0xff]
  %v582 = vld [vmem:[%s200 + $0x309] sm:$0xff]
  %v583 = vld [vmem:[%s200 + $0x319] sm:$0xff]
  %v584 = vld [vmem:[%s200 + $0x321] sm:$0xff]
  %v585 = vld [vmem:[%s200 + $0x2] sm:$0xff]
  %v586 = vld [vmem:[%s200 + $0xa] sm:$0xff]
  %v587 = vld [vmem:[%s200 + $0x1a] sm:$0xff]
  %v588 = vld [vmem:[%s200 + $0x22] sm:$0xff]
  %v589 = vld [vmem:[%s200 + $0x32] sm:$0xff]
  %v590 = vld [vmem:[%s200 + $0x3a] sm:$0xff]
  %v591 = vld [vmem:[%s200 + $0x4a] sm:$0xff]
  %v592 = vld [vmem:[%s200 + $0x52] sm:$0xff]
  %v593 = vld [vmem:[%s200 + $0x62] sm:$0xff]
  %v594 = vld [vmem:[%s200 + $0x6a] sm:$0xff]
  %v595 = vld [vmem:[%s200 + $0x7a] sm:$0xff]
  %v596 = vld [vmem:[%s200 + $0x82] sm:$0xff]
  %v597 = vld [vmem:[%s200 + $0x92] sm:$0xff]
  %v598 = vld [vmem:[%s200 + $0x9a] sm:$0xff]
  %v599 = vld [vmem:[%s200 + $0xaa] sm:$0xff]
  %v600 = vld [vmem:[%s200 + $0xb2] sm:$0xff]
  %v601 = vld [vmem:[%s200 + $0xc2] sm:$0xff]
  %v602 = vld [vmem:[%s200 + $0xca] sm:$0xff]
  %v603 = vld [vmem:[%s200 + $0xda] sm:$0xff]
  %v604 = vld [vmem:[%s200 + $0xe2] sm:$0xff]
  %v605 = vld [vmem:[%s200 + $0xf2] sm:$0xff]
  %v606 = vld [vmem:[%s200 + $0xfa] sm:$0xff]
  %v607 = vld [vmem:[%s200 + $0x10a] sm:$0xff]
  %v608 = vld [vmem:[%s200 + $0x112] sm:$0xff]
  %v609 = vld [vmem:[%s200 + $0x122] sm:$0xff]
  %v610 = vld [vmem:[%s200 + $0x12a] sm:$0xff]
  %v611 = vld [vmem:[%s200 + $0x13a] sm:$0xff]
  %v612 = vld [vmem:[%s200 + $0x142] sm:$0xff]
  %v613 = vld [vmem:[%s200 + $0x152] sm:$0xff]
  %v614 = vld [vmem:[%s200 + $0x15a] sm:$0xff]
  %v615 = vld [vmem:[%s200 + $0x16a] sm:$0xff]
  %v616 = vld [vmem:[%s200 + $0x172] sm:$0xff]
  %v617 = vld [vmem:[%s200 + $0x1b2] sm:$0xff]
  %v618 = vld [vmem:[%s200 + $0x1ba] sm:$0xff]
  %v619 = vld [vmem:[%s200 + $0x1ca] sm:$0xff]
  %v620 = vld [vmem:[%s200 + $0x1d2] sm:$0xff]
  %v621 = vld [vmem:[%s200 + $0x1e2] sm:$0xff]
  %v622 = vld [vmem:[%s200 + $0x1ea] sm:$0xff]
  %v623 = vld [vmem:[%s200 + $0x1fa] sm:$0xff]
  %v624 = vld [vmem:[%s200 + $0x202] sm:$0xff]
  %v625 = vld [vmem:[%s200 + $0x212] sm:$0xff]
  %v626 = vld [vmem:[%s200 + $0x21a] sm:$0xff]
  %v627 = vld [vmem:[%s200 + $0x22a] sm:$0xff]
  %v628 = vld [vmem:[%s200 + $0x232] sm:$0xff]
  %v629 = vld [vmem:[%s200 + $0x242] sm:$0xff]
  %v630 = vld [vmem:[%s200 + $0x24a] sm:$0xff]
  %v631 = vld [vmem:[%s200 + $0x25a] sm:$0xff]
  %v632 = vld [vmem:[%s200 + $0x262] sm:$0xff]
  %v633 = vld [vmem:[%s200 + $0x272] sm:$0xff]
  %v634 = vld [vmem:[%s200 + $0x27a] sm:$0xff]
  %v635 = vld [vmem:[%s200 + $0x28a] sm:$0xff]
  %v636 = vld [vmem:[%s200 + $0x292] sm:$0xff]
  %v637 = vld [vmem:[%s200 + $0x2a2] sm:$0xff]
  %v638 = vld [vmem:[%s200 + $0x2aa] sm:$0xff]
  %v639 = vld [vmem:[%s200 + $0x2ba] sm:$0xff]
  %v640 = vld [vmem:[%s200 + $0x2c2] sm:$0xff]
  %v641 = vld [vmem:[%s200 + $0x2d2] sm:$0xff]
  %v642 = vld [vmem:[%s200 + $0x2da] sm:$0xff]
  %v643 = vld [vmem:[%s200 + $0x2ea] sm:$0xff]
  %v644 = vld [vmem:[%s200 + $0x2f2] sm:$0xff]
  %v645 = vld [vmem:[%s200 + $0x302] sm:$0xff]
  %v646 = vld [vmem:[%s200 + $0x30a] sm:$0xff]
  %v647 = vld [vmem:[%s200 + $0x31a] sm:$0xff]
  %v648 = vld [vmem:[%s200 + $0x322] sm:$0xff]
  %s649 = scalar_lea.vmem [#allocation2], 48
  %v650 = vld [vmem:[%s649] sm:$0xff]
  %v651 = vld [vmem:[%s649 + $0x8] sm:$0xff]
  %v652 = vld [vmem:[%s649 + $0x18] sm:$0xff]
  %v653 = vld [vmem:[%s649 + $0x20] sm:$0xff]
  %v654 = vld [vmem:[%s649 + $0x30] sm:$0xff]
  %v655 = vld [vmem:[%s649 + $0x38] sm:$0xff]
  %v656 = vld [vmem:[%s649 + $0x48] sm:$0xff]
  %v657 = vld [vmem:[%s649 + $0x50] sm:$0xff]
  %v658 = vld [vmem:[%s649 + $0x60] sm:$0xff]
  %v659 = vld [vmem:[%s649 + $0x68] sm:$0xff]
  %v660 = vld [vmem:[%s649 + $0x78] sm:$0xff]
  %v661 = vld [vmem:[%s649 + $0x80] sm:$0xff]
  %v662 = vld [vmem:[%s649 + $0x90] sm:$0xff]
  %v663 = vld [vmem:[%s649 + $0x98] sm:$0xff]
  %v664 = vld [vmem:[%s649 + $0xa8] sm:$0xff]
  %v665 = vld [vmem:[%s649 + $0xb0] sm:$0xff]
  %v666 = vld [vmem:[%s649 + $0xc0] sm:$0xff]
  %v667 = vld [vmem:[%s649 + $0xc8] sm:$0xff]
  %v668 = vld [vmem:[%s649 + $0xd8] sm:$0xff]
  %v669 = vld [vmem:[%s649 + $0xe0] sm:$0xff]
  %v670 = vld [vmem:[%s649 + $0xf0] sm:$0xff]
  %v671 = vld [vmem:[%s649 + $0xf8] sm:$0xff]
  %v672 = vld [vmem:[%s649 + $0x108] sm:$0xff]
  %v673 = vld [vmem:[%s649 + $0x110] sm:$0xff]
  %v674 = vld [vmem:[%s649 + $0x120] sm:$0xff]
  %v675 = vld [vmem:[%s649 + $0x128] sm:$0xff]
  %v676 = vld [vmem:[%s649 + $0x138] sm:$0xff]
  %v677 = vld [vmem:[%s649 + $0x140] sm:$0xff]
  %v678 = vld [vmem:[%s649 + $0x150] sm:$0xff]
  %v679 = vld [vmem:[%s649 + $0x158] sm:$0xff]
  %v680 = vld [vmem:[%s649 + $0x168] sm:$0xff]
  %v681 = vld [vmem:[%s649 + $0x170] sm:$0xff]
  %v682 = vld [vmem:[%s649 + $0x1b0] sm:$0xff]
  %v683 = vld [vmem:[%s649 + $0x1b8] sm:$0xff]
  %v684 = vld [vmem:[%s649 + $0x1c8] sm:$0xff]
  %v685 = vld [vmem:[%s649 + $0x1d0] sm:$0xff]
  %v686 = vld [vmem:[%s649 + $0x1e0] sm:$0xff]
  %v687 = vld [vmem:[%s649 + $0x1e8] sm:$0xff]
  %v688 = vld [vmem:[%s649 + $0x1f8] sm:$0xff]
  %v689 = vld [vmem:[%s649 + $0x200] sm:$0xff]
  %v690 = vld [vmem:[%s649 + $0x210] sm:$0xff]
  %v691 = vld [vmem:[%s649 + $0x218] sm:$0xff]
  %v692 = vld [vmem:[%s649 + $0x228] sm:$0xff]
  %v693 = vld [vmem:[%s649 + $0x230] sm:$0xff]
  %v694 = vld [vmem:[%s649 + $0x240] sm:$0xff]
  %v695 = vld [vmem:[%s649 + $0x248] sm:$0xff]
  %v696 = vld [vmem:[%s649 + $0x258] sm:$0xff]
  %v697 = vld [vmem:[%s649 + $0x260] sm:$0xff]
  %v698 = vld [vmem:[%s649 + $0x270] sm:$0xff]
  %v699 = vld [vmem:[%s649 + $0x278] sm:$0xff]
  %v700 = vld [vmem:[%s649 + $0x288] sm:$0xff]
  %v701 = vld [vmem:[%s649 + $0x290] sm:$0xff]
  %v702 = vld [vmem:[%s649 + $0x2a0] sm:$0xff]
  %v703 = vld [vmem:[%s649 + $0x2a8] sm:$0xff]
  %v704 = vld [vmem:[%s649 + $0x2b8] sm:$0xff]
  %v705 = vld [vmem:[%s649 + $0x2c0] sm:$0xff]
  %v706 = vld [vmem:[%s649 + $0x2d0] sm:$0xff]
  %v707 = vld [vmem:[%s649 + $0x2d8] sm:$0xff]
  %v708 = vld [vmem:[%s649 + $0x2e8] sm:$0xff]
  %v709 = vld [vmem:[%s649 + $0x2f0] sm:$0xff]
  %v710 = vld [vmem:[%s649 + $0x300] sm:$0xff]
  %v711 = vld [vmem:[%s649 + $0x308] sm:$0xff]
  %v712 = vld [vmem:[%s649 + $0x318] sm:$0xff]
  %v713 = vld [vmem:[%s649 + $0x320] sm:$0xff]
  %v714 = vld [vmem:[%s649 + $0x1] sm:$0xff]
  %v715 = vld [vmem:[%s649 + $0x9] sm:$0xff]
  %v716 = vld [vmem:[%s649 + $0x19] sm:$0xff]
  %v717 = vld [vmem:[%s649 + $0x21] sm:$0xff]
  %v718 = vld [vmem:[%s649 + $0x31] sm:$0xff]
  %v719 = vld [vmem:[%s649 + $0x39] sm:$0xff]
  %v720 = vld [vmem:[%s649 + $0x49] sm:$0xff]
  %v721 = vld [vmem:[%s649 + $0x51] sm:$0xff]
  %v722 = vld [vmem:[%s649 + $0x61] sm:$0xff]
  %v723 = vld [vmem:[%s649 + $0x69] sm:$0xff]
  %v724 = vld [vmem:[%s649 + $0x79] sm:$0xff]
  %v725 = vld [vmem:[%s649 + $0x81] sm:$0xff]
  %v726 = vld [vmem:[%s649 + $0x91] sm:$0xff]
  %v727 = vld [vmem:[%s649 + $0x99] sm:$0xff]
  %v728 = vld [vmem:[%s649 + $0xa9] sm:$0xff]
  %v729 = vld [vmem:[%s649 + $0xb1] sm:$0xff]
  %v730 = vld [vmem:[%s649 + $0xc1] sm:$0xff]
  %v731 = vld [vmem:[%s649 + $0xc9] sm:$0xff]
  %v732 = vld [vmem:[%s649 + $0xd9] sm:$0xff]
  %v733 = vld [vmem:[%s649 + $0xe1] sm:$0xff]
  %v734 = vld [vmem:[%s649 + $0xf1] sm:$0xff]
  %v735 = vld [vmem:[%s649 + $0xf9] sm:$0xff]
  %v736 = vld [vmem:[%s649 + $0x109] sm:$0xff]
  %v737 = vld [vmem:[%s649 + $0x111] sm:$0xff]
  %v738 = vld [vmem:[%s649 + $0x121] sm:$0xff]
  %v739 = vld [vmem:[%s649 + $0x129] sm:$0xff]
  %v740 = vld [vmem:[%s649 + $0x139] sm:$0xff]
  %v741 = vld [vmem:[%s649 + $0x141] sm:$0xff]
  %v742 = vld [vmem:[%s649 + $0x151] sm:$0xff]
  %v743 = vld [vmem:[%s649 + $0x159] sm:$0xff]
  %v744 = vld [vmem:[%s649 + $0x169] sm:$0xff]
  %v745 = vld [vmem:[%s649 + $0x171] sm:$0xff]
  %v746 = vld [vmem:[%s649 + $0x1b1] sm:$0xff]
  %v747 = vld [vmem:[%s649 + $0x1b9] sm:$0xff]
  %v748 = vld [vmem:[%s649 + $0x1c9] sm:$0xff]
  %v749 = vld [vmem:[%s649 + $0x1d1] sm:$0xff]
  %v750 = vld [vmem:[%s649 + $0x1e1] sm:$0xff]
  %v751 = vld [vmem:[%s649 + $0x1e9] sm:$0xff]
  %v752 = vld [vmem:[%s649 + $0x1f9] sm:$0xff]
  %v753 = vld [vmem:[%s649 + $0x201] sm:$0xff]
  %v754 = vld [vmem:[%s649 + $0x211] sm:$0xff]
  %v755 = vld [vmem:[%s649 + $0x219] sm:$0xff]
  %v756 = vld [vmem:[%s649 + $0x229] sm:$0xff]
  %v757 = vld [vmem:[%s649 + $0x231] sm:$0xff]
  %v758 = vld [vmem:[%s649 + $0x241] sm:$0xff]
  %v759 = vld [vmem:[%s649 + $0x249] sm:$0xff]
  %v760 = vld [vmem:[%s649 + $0x259] sm:$0xff]
  %v761 = vld [vmem:[%s649 + $0x261] sm:$0xff]
  %v762 = vld [vmem:[%s649 + $0x271] sm:$0xff]
  %v763 = vld [vmem:[%s649 + $0x279] sm:$0xff]
  %v764 = vld [vmem:[%s649 + $0x289] sm:$0xff]
  %v765 = vld [vmem:[%s649 + $0x291] sm:$0xff]
  %v766 = vld [vmem:[%s649 + $0x2a1] sm:$0xff]
  %v767 = vld [vmem:[%s649 + $0x2a9] sm:$0xff]
  %v768 = vld [vmem:[%s649 + $0x2b9] sm:$0xff]
  %v769 = vld [vmem:[%s649 + $0x2c1] sm:$0xff]
  %v770 = vld [vmem:[%s649 + $0x2d1] sm:$0xff]
  %v771 = vld [vmem:[%s649 + $0x2d9] sm:$0xff]
  %v772 = vld [vmem:[%s649 + $0x2e9] sm:$0xff]
  %v773 = vld [vmem:[%s649 + $0x2f1] sm:$0xff]
  %v774 = vld [vmem:[%s649 + $0x301] sm:$0xff]
  %v775 = vld [vmem:[%s649 + $0x309] sm:$0xff]
  %v776 = vld [vmem:[%s649 + $0x319] sm:$0xff]
  %v777 = vld [vmem:[%s649 + $0x321] sm:$0xff]
  %v778 = vld [vmem:[%s649 + $0x2] sm:$0xff]
  %v779 = vld [vmem:[%s649 + $0xa] sm:$0xff]
  %v780 = vld [vmem:[%s649 + $0x1a] sm:$0xff]
  %v781 = vld [vmem:[%s649 + $0x22] sm:$0xff]
  %v782 = vld [vmem:[%s649 + $0x32] sm:$0xff]
  %v783 = vld [vmem:[%s649 + $0x3a] sm:$0xff]
  %v784 = vld [vmem:[%s649 + $0x4a] sm:$0xff]
  %v785 = vld [vmem:[%s649 + $0x52] sm:$0xff]
  %v786 = vld [vmem:[%s649 + $0x62] sm:$0xff]
  %v787 = vld [vmem:[%s649 + $0x6a] sm:$0xff]
  %v788 = vld [vmem:[%s649 + $0x7a] sm:$0xff]
  %v789 = vld [vmem:[%s649 + $0x82] sm:$0xff]
  %v790 = vld [vmem:[%s649 + $0x92] sm:$0xff]
  %v791 = vld [vmem:[%s649 + $0x9a] sm:$0xff]
  %v792 = vld [vmem:[%s649 + $0xaa] sm:$0xff]
  %v793 = vld [vmem:[%s649 + $0xb2] sm:$0xff]
  %v794 = vld [vmem:[%s649 + $0xc2] sm:$0xff]
  %v795 = vld [vmem:[%s649 + $0xca] sm:$0xff]
  %v796 = vld [vmem:[%s649 + $0xda] sm:$0xff]
  %v797 = vld [vmem:[%s649 + $0xe2] sm:$0xff]
  %v798 = vld [vmem:[%s649 + $0xf2] sm:$0xff]
  %v799 = vld [vmem:[%s649 + $0xfa] sm:$0xff]
  %v800 = vld [vmem:[%s649 + $0x10a] sm:$0xff]
  %v801 = vld [vmem:[%s649 + $0x112] sm:$0xff]
  %v802 = vld [vmem:[%s649 + $0x122] sm:$0xff]
  %v803 = vld [vmem:[%s649 + $0x12a] sm:$0xff]
  %v804 = vld [vmem:[%s649 + $0x13a] sm:$0xff]
  %v805 = vld [vmem:[%s649 + $0x142] sm:$0xff]
  %v806 = vld [vmem:[%s649 + $0x152] sm:$0xff]
  %v807 = vld [vmem:[%s649 + $0x15a] sm:$0xff]
  %v808 = vld [vmem:[%s649 + $0x16a] sm:$0xff]
  %v809 = vld [vmem:[%s649 + $0x172] sm:$0xff]
  %v810 = vld [vmem:[%s649 + $0x1b2] sm:$0xff]
  %v811 = vld [vmem:[%s649 + $0x1ba] sm:$0xff]
  %v812 = vld [vmem:[%s649 + $0x1ca] sm:$0xff]
  %v813 = vld [vmem:[%s649 + $0x1d2] sm:$0xff]
  %v814 = vld [vmem:[%s649 + $0x1e2] sm:$0xff]
  %v815 = vld [vmem:[%s649 + $0x1ea] sm:$0xff]
  %v816 = vld [vmem:[%s649 + $0x1fa] sm:$0xff]
  %v817 = vld [vmem:[%s649 + $0x202] sm:$0xff]
  %v818 = vld [vmem:[%s649 + $0x212] sm:$0xff]
  %v819 = vld [vmem:[%s649 + $0x21a] sm:$0xff]
  %v820 = vld [vmem:[%s649 + $0x22a] sm:$0xff]
  %v821 = vld [vmem:[%s649 + $0x232] sm:$0xff]
  %v822 = vld [vmem:[%s649 + $0x242] sm:$0xff]
  %v823 = vld [vmem:[%s649 + $0x24a] sm:$0xff]
  %v824 = vld [vmem:[%s649 + $0x25a] sm:$0xff]
  %v825 = vld [vmem:[%s649 + $0x262] sm:$0xff]
  %v826 = vld [vmem:[%s649 + $0x272] sm:$0xff]
  %v827 = vld [vmem:[%s649 + $0x27a] sm:$0xff]
  %v828 = vld [vmem:[%s649 + $0x28a] sm:$0xff]
  %v829 = vld [vmem:[%s649 + $0x292] sm:$0xff]
  %v830 = vld [vmem:[%s649 + $0x2a2] sm:$0xff]
  %v831 = vld [vmem:[%s649 + $0x2aa] sm:$0xff]
  %v832 = vld [vmem:[%s649 + $0x2ba] sm:$0xff]
  %v833 = vld [vmem:[%s649 + $0x2c2] sm:$0xff]
  %v834 = vld [vmem:[%s649 + $0x2d2] sm:$0xff]
  %v835 = vld [vmem:[%s649 + $0x2da] sm:$0xff]
  %v836 = vld [vmem:[%s649 + $0x2ea] sm:$0xff]
  %v837 = vld [vmem:[%s649 + $0x2f2] sm:$0xff]
  %v838 = vld [vmem:[%s649 + $0x302] sm:$0xff]
  %v839 = vld [vmem:[%s649 + $0x30a] sm:$0xff]
  %v840 = vld [vmem:[%s649 + $0x31a] sm:$0xff]
  %v841 = vld [vmem:[%s649 + $0x322] sm:$0xff]
  %906 = vrot.lane.b32.xlu0 %v329, 8
  %v907 = vpop.permute.xlu0 %906
  %908 = vrot.lane.b32.xlu0 %v330, 8
  %v909 = vpop.permute.xlu0 %908
  %910 = vrot.lane.b32.xlu0 %v331, 8
  %v911 = vpop.permute.xlu0 %910
  %912 = vrot.lane.b32.xlu0 %v332, 8
  %v913 = vpop.permute.xlu0 %912
  %914 = vrot.lane.b32.xlu0 %v333, 8
  %v915 = vpop.permute.xlu0 %914
  %916 = vrot.lane.b32.xlu0 %v334, 8
  %v917 = vpop.permute.xlu0 %916
  %918 = vrot.lane.b32.xlu0 %v335, 8
  %v919 = vpop.permute.xlu0 %918
  %920 = vrot.lane.b32.xlu0 %v336, 8
  %v921 = vpop.permute.xlu0 %920
  %922 = vrot.lane.b32.xlu0 %v337, 8
  %v923 = vpop.permute.xlu0 %922
  %924 = vrot.lane.b32.xlu0 %v338, 8
  %v925 = vpop.permute.xlu0 %924
  %926 = vrot.lane.b32.xlu0 %v339, 8
  %v927 = vpop.permute.xlu0 %926
  %928 = vrot.lane.b32.xlu0 %v340, 8
  %v929 = vpop.permute.xlu0 %928
  %930 = vrot.lane.b32.xlu0 %v341, 8
  %v931 = vpop.permute.xlu0 %930
  %932 = vrot.lane.b32.xlu0 %v342, 8
  %v933 = vpop.permute.xlu0 %932
  %934 = vrot.lane.b32.xlu0 %v343, 8
  %v935 = vpop.permute.xlu0 %934
  %936 = vrot.lane.b32.xlu0 %v344, 8
  %v937 = vpop.permute.xlu0 %936
  %938 = vrot.lane.b32.xlu0 %v345, 8
  %v939 = vpop.permute.xlu0 %938
  %940 = vrot.lane.b32.xlu0 %v346, 8
  %v941 = vpop.permute.xlu0 %940
  %942 = vrot.lane.b32.xlu0 %v347, 8
  %v943 = vpop.permute.xlu0 %942
  %944 = vrot.lane.b32.xlu0 %v348, 8
  %v945 = vpop.permute.xlu0 %944
  %946 = vrot.lane.b32.xlu0 %v349, 8
  %v947 = vpop.permute.xlu0 %946
  %948 = vrot.lane.b32.xlu0 %v350, 8
  %v949 = vpop.permute.xlu0 %948
  %950 = vrot.lane.b32.xlu0 %v351, 8
  %v951 = vpop.permute.xlu0 %950
  %952 = vrot.lane.b32.xlu0 %v352, 8
  %v953 = vpop.permute.xlu0 %952
  %954 = vrot.lane.b32.xlu0 %v353, 8
  %v955 = vpop.permute.xlu0 %954
  %956 = vrot.lane.b32.xlu0 %v354, 8
  %v957 = vpop.permute.xlu0 %956
  %958 = vrot.lane.b32.xlu0 %v355, 8
  %v959 = vpop.permute.xlu0 %958
  %960 = vrot.lane.b32.xlu0 %v356, 8
  %v961 = vpop.permute.xlu0 %960
  %962 = vrot.lane.b32.xlu0 %v357, 8
  %v963 = vpop.permute.xlu0 %962
  %964 = vrot.lane.b32.xlu0 %v358, 8
  %v965 = vpop.permute.xlu0 %964
  %966 = vrot.lane.b32.xlu0 %v359, 8
  %v967 = vpop.permute.xlu0 %966
  %968 = vrot.lane.b32.xlu0 %v360, 8
  %v969 = vpop.permute.xlu0 %968
  %970 = vrot.lane.b32.xlu0 %v361, 8
  %v971 = vpop.permute.xlu0 %970
  %972 = vrot.lane.b32.xlu0 %v362, 8
  %v973 = vpop.permute.xlu0 %972
  %974 = vrot.lane.b32.xlu0 %v363, 8
  %v975 = vpop.permute.xlu0 %974
  %976 = vrot.lane.b32.xlu0 %v364, 8
  %v977 = vpop.permute.xlu0 %976
  %978 = vrot.lane.b32.xlu0 %v365, 8
  %v979 = vpop.permute.xlu0 %978
  %980 = vrot.lane.b32.xlu0 %v366, 8
  %v981 = vpop.permute.xlu0 %980
  %982 = vrot.lane.b32.xlu0 %v367, 8
  %v983 = vpop.permute.xlu0 %982
  %984 = vrot.lane.b32.xlu0 %v368, 8
  %v985 = vpop.permute.xlu0 %984
  %986 = vrot.lane.b32.xlu0 %v369, 8
  %v987 = vpop.permute.xlu0 %986
  %988 = vrot.lane.b32.xlu0 %v370, 8
  %v989 = vpop.permute.xlu0 %988
  %990 = vrot.lane.b32.xlu0 %v371, 8
  %v991 = vpop.permute.xlu0 %990
  %992 = vrot.lane.b32.xlu0 %v372, 8
  %v993 = vpop.permute.xlu0 %992
  %994 = vrot.lane.b32.xlu0 %v373, 8
  %v995 = vpop.permute.xlu0 %994
  %996 = vrot.lane.b32.xlu0 %v374, 8
  %v997 = vpop.permute.xlu0 %996
  %998 = vrot.lane.b32.xlu0 %v375, 8
  %v999 = vpop.permute.xlu0 %998
  %1000 = vrot.lane.b32.xlu0 %v376, 8
  %v1001 = vpop.permute.xlu0 %1000
  %1002 = vrot.lane.b32.xlu0 %v377, 8
  %v1003 = vpop.permute.xlu0 %1002
  %1004 = vrot.lane.b32.xlu0 %v378, 8
  %v1005 = vpop.permute.xlu0 %1004
  %1006 = vrot.lane.b32.xlu0 %v379, 8
  %v1007 = vpop.permute.xlu0 %1006
  %1008 = vrot.lane.b32.xlu0 %v380, 8
  %v1009 = vpop.permute.xlu0 %1008
  %1010 = vrot.lane.b32.xlu0 %v381, 8
  %v1011 = vpop.permute.xlu0 %1010
  %1012 = vrot.lane.b32.xlu0 %v382, 8
  %v1013 = vpop.permute.xlu0 %1012
  %1014 = vrot.lane.b32.xlu0 %v383, 8
  %v1015 = vpop.permute.xlu0 %1014
  %1016 = vrot.lane.b32.xlu0 %v384, 8
  %v1017 = vpop.permute.xlu0 %1016
  %1018 = vrot.lane.b32.xlu0 %v385, 8
  %v1019 = vpop.permute.xlu0 %1018
  %1020 = vrot.lane.b32.xlu0 %v386, 8
  %v1021 = vpop.permute.xlu0 %1020
  %1022 = vrot.lane.b32.xlu0 %v387, 8
  %v1023 = vpop.permute.xlu0 %1022
  %1024 = vrot.lane.b32.xlu0 %v388, 8
  %v1025 = vpop.permute.xlu0 %1024
  %1026 = vrot.lane.b32.xlu0 %v389, 8
  %v1027 = vpop.permute.xlu0 %1026
  %1028 = vrot.lane.b32.xlu0 %v390, 8
  %v1029 = vpop.permute.xlu0 %1028
  %1030 = vrot.lane.b32.xlu0 %v391, 8
  %v1031 = vpop.permute.xlu0 %1030
  %1032 = vrot.lane.b32.xlu0 %v392, 8
  %v1033 = vpop.permute.xlu0 %1032
  %1162 = vrot.lane.b32.xlu0 %v393, 16
  %v1163 = vpop.permute.xlu0 %1162
  %1164 = vrot.lane.b32.xlu0 %v394, 16
  %v1165 = vpop.permute.xlu0 %1164
  %1166 = vrot.lane.b32.xlu0 %v395, 16
  %v1167 = vpop.permute.xlu0 %1166
  %1168 = vrot.lane.b32.xlu0 %v396, 16
  %v1169 = vpop.permute.xlu0 %1168
  %1170 = vrot.lane.b32.xlu0 %v397, 16
  %v1171 = vpop.permute.xlu0 %1170
  %1172 = vrot.lane.b32.xlu0 %v398, 16
  %v1173 = vpop.permute.xlu0 %1172
  %1174 = vrot.lane.b32.xlu0 %v399, 16
  %v1175 = vpop.permute.xlu0 %1174
  %1176 = vrot.lane.b32.xlu0 %v400, 16
  %v1177 = vpop.permute.xlu0 %1176
  %1178 = vrot.lane.b32.xlu0 %v401, 16
  %v1179 = vpop.permute.xlu0 %1178
  %1180 = vrot.lane.b32.xlu0 %v402, 16
  %v1181 = vpop.permute.xlu0 %1180
  %1182 = vrot.lane.b32.xlu0 %v403, 16
  %v1183 = vpop.permute.xlu0 %1182
  %1184 = vrot.lane.b32.xlu0 %v404, 16
  %v1185 = vpop.permute.xlu0 %1184
  %1186 = vrot.lane.b32.xlu0 %v405, 16
  %v1187 = vpop.permute.xlu0 %1186
  %1188 = vrot.lane.b32.xlu0 %v406, 16
  %v1189 = vpop.permute.xlu0 %1188
  %1190 = vrot.lane.b32.xlu0 %v407, 16
  %v1191 = vpop.permute.xlu0 %1190
  %1192 = vrot.lane.b32.xlu0 %v408, 16
  %v1193 = vpop.permute.xlu0 %1192
  %1194 = vrot.lane.b32.xlu0 %v409, 16
  %v1195 = vpop.permute.xlu0 %1194
  %1196 = vrot.lane.b32.xlu0 %v410, 16
  %v1197 = vpop.permute.xlu0 %1196
  %1198 = vrot.lane.b32.xlu0 %v411, 16
  %v1199 = vpop.permute.xlu0 %1198
  %1200 = vrot.lane.b32.xlu0 %v412, 16
  %v1201 = vpop.permute.xlu0 %1200
  %1202 = vrot.lane.b32.xlu0 %v413, 16
  %v1203 = vpop.permute.xlu0 %1202
  %1204 = vrot.lane.b32.xlu0 %v414, 16
  %v1205 = vpop.permute.xlu0 %1204
  %1206 = vrot.lane.b32.xlu0 %v415, 16
  %v1207 = vpop.permute.xlu0 %1206
  %1208 = vrot.lane.b32.xlu0 %v416, 16
  %v1209 = vpop.permute.xlu0 %1208
  %1210 = vrot.lane.b32.xlu0 %v417, 16
  %v1211 = vpop.permute.xlu0 %1210
  %1212 = vrot.lane.b32.xlu0 %v418, 16
  %v1213 = vpop.permute.xlu0 %1212
  %1214 = vrot.lane.b32.xlu0 %v419, 16
  %v1215 = vpop.permute.xlu0 %1214
  %1216 = vrot.lane.b32.xlu0 %v420, 16
  %v1217 = vpop.permute.xlu0 %1216
  %1218 = vrot.lane.b32.xlu0 %v421, 16
  %v1219 = vpop.permute.xlu0 %1218
  %1220 = vrot.lane.b32.xlu0 %v422, 16
  %v1221 = vpop.permute.xlu0 %1220
  %1222 = vrot.lane.b32.xlu0 %v423, 16
  %v1223 = vpop.permute.xlu0 %1222
  %1224 = vrot.lane.b32.xlu0 %v424, 16
  %v1225 = vpop.permute.xlu0 %1224
  %1226 = vrot.lane.b32.xlu0 %v425, 16
  %v1227 = vpop.permute.xlu0 %1226
  %1228 = vrot.lane.b32.xlu0 %v426, 16
  %v1229 = vpop.permute.xlu0 %1228
  %1230 = vrot.lane.b32.xlu0 %v427, 16
  %v1231 = vpop.permute.xlu0 %1230
  %1232 = vrot.lane.b32.xlu0 %v428, 16
  %v1233 = vpop.permute.xlu0 %1232
  %1234 = vrot.lane.b32.xlu0 %v429, 16
  %v1235 = vpop.permute.xlu0 %1234
  %1236 = vrot.lane.b32.xlu0 %v430, 16
  %v1237 = vpop.permute.xlu0 %1236
  %1238 = vrot.lane.b32.xlu0 %v431, 16
  %v1239 = vpop.permute.xlu0 %1238
  %1240 = vrot.lane.b32.xlu0 %v432, 16
  %v1241 = vpop.permute.xlu0 %1240
  %1242 = vrot.lane.b32.xlu0 %v433, 16
  %v1243 = vpop.permute.xlu0 %1242
  %1244 = vrot.lane.b32.xlu0 %v434, 16
  %v1245 = vpop.permute.xlu0 %1244
  %1246 = vrot.lane.b32.xlu0 %v435, 16
  %v1247 = vpop.permute.xlu0 %1246
  %1248 = vrot.lane.b32.xlu0 %v436, 16
  %v1249 = vpop.permute.xlu0 %1248
  %1250 = vrot.lane.b32.xlu0 %v437, 16
  %v1251 = vpop.permute.xlu0 %1250
  %1252 = vrot.lane.b32.xlu0 %v438, 16
  %v1253 = vpop.permute.xlu0 %1252
  %1254 = vrot.lane.b32.xlu0 %v439, 16
  %v1255 = vpop.permute.xlu0 %1254
  %1256 = vrot.lane.b32.xlu0 %v440, 16
  %v1257 = vpop.permute.xlu0 %1256
  %1258 = vrot.lane.b32.xlu0 %v441, 16
  %v1259 = vpop.permute.xlu0 %1258
  %1260 = vrot.lane.b32.xlu0 %v442, 16
  %v1261 = vpop.permute.xlu0 %1260
  %1262 = vrot.lane.b32.xlu0 %v443, 16
  %v1263 = vpop.permute.xlu0 %1262
  %1264 = vrot.lane.b32.xlu0 %v444, 16
  %v1265 = vpop.permute.xlu0 %1264
  %1266 = vrot.lane.b32.xlu0 %v445, 16
  %v1267 = vpop.permute.xlu0 %1266
  %1268 = vrot.lane.b32.xlu0 %v446, 16
  %v1269 = vpop.permute.xlu0 %1268
  %1270 = vrot.lane.b32.xlu0 %v447, 16
  %v1271 = vpop.permute.xlu0 %1270
  %1272 = vrot.lane.b32.xlu0 %v448, 16
  %v1273 = vpop.permute.xlu0 %1272
  %1274 = vrot.lane.b32.xlu0 %v449, 16
  %v1275 = vpop.permute.xlu0 %1274
  %1276 = vrot.lane.b32.xlu0 %v450, 16
  %v1277 = vpop.permute.xlu0 %1276
  %1278 = vrot.lane.b32.xlu0 %v451, 16
  %v1279 = vpop.permute.xlu0 %1278
  %1280 = vrot.lane.b32.xlu0 %v452, 16
  %v1281 = vpop.permute.xlu0 %1280
  %1282 = vrot.lane.b32.xlu0 %v453, 16
  %v1283 = vpop.permute.xlu0 %1282
  %1284 = vrot.lane.b32.xlu0 %v454, 16
  %v1285 = vpop.permute.xlu0 %1284
  %1286 = vrot.lane.b32.xlu0 %v455, 16
  %v1287 = vpop.permute.xlu0 %1286
  %1288 = vrot.lane.b32.xlu0 %v456, 16
  %v1289 = vpop.permute.xlu0 %1288
  %1418 = vrot.lane.b32.xlu0 %v457, 24
  %v1419 = vpop.permute.xlu0 %1418
  %1420 = vrot.lane.b32.xlu0 %v458, 24
  %v1421 = vpop.permute.xlu0 %1420
  %1422 = vrot.lane.b32.xlu0 %v459, 24
  %v1423 = vpop.permute.xlu0 %1422
  %1424 = vrot.lane.b32.xlu0 %v460, 24
  %v1425 = vpop.permute.xlu0 %1424
  %1426 = vrot.lane.b32.xlu0 %v461, 24
  %v1427 = vpop.permute.xlu0 %1426
  %1428 = vrot.lane.b32.xlu0 %v462, 24
  %v1429 = vpop.permute.xlu0 %1428
  %1430 = vrot.lane.b32.xlu0 %v463, 24
  %v1431 = vpop.permute.xlu0 %1430
  %1432 = vrot.lane.b32.xlu0 %v464, 24
  %v1433 = vpop.permute.xlu0 %1432
  %1434 = vrot.lane.b32.xlu0 %v465, 24
  %v1435 = vpop.permute.xlu0 %1434
  %1436 = vrot.lane.b32.xlu0 %v466, 24
  %v1437 = vpop.permute.xlu0 %1436
  %1438 = vrot.lane.b32.xlu0 %v467, 24
  %v1439 = vpop.permute.xlu0 %1438
  %1440 = vrot.lane.b32.xlu0 %v468, 24
  %v1441 = vpop.permute.xlu0 %1440
  %1442 = vrot.lane.b32.xlu0 %v469, 24
  %v1443 = vpop.permute.xlu0 %1442
  %1444 = vrot.lane.b32.xlu0 %v470, 24
  %v1445 = vpop.permute.xlu0 %1444
  %1446 = vrot.lane.b32.xlu0 %v471, 24
  %v1447 = vpop.permute.xlu0 %1446
  %1448 = vrot.lane.b32.xlu0 %v472, 24
  %v1449 = vpop.permute.xlu0 %1448
  %1450 = vrot.lane.b32.xlu0 %v473, 24
  %v1451 = vpop.permute.xlu0 %1450
  %1452 = vrot.lane.b32.xlu0 %v474, 24
  %v1453 = vpop.permute.xlu0 %1452
  %1454 = vrot.lane.b32.xlu0 %v475, 24
  %v1455 = vpop.permute.xlu0 %1454
  %1456 = vrot.lane.b32.xlu0 %v476, 24
  %v1457 = vpop.permute.xlu0 %1456
  %1458 = vrot.lane.b32.xlu0 %v477, 24
  %v1459 = vpop.permute.xlu0 %1458
  %1460 = vrot.lane.b32.xlu0 %v478, 24
  %v1461 = vpop.permute.xlu0 %1460
  %1462 = vrot.lane.b32.xlu0 %v479, 24
  %v1463 = vpop.permute.xlu0 %1462
  %1464 = vrot.lane.b32.xlu0 %v480, 24
  %v1465 = vpop.permute.xlu0 %1464
  %1466 = vrot.lane.b32.xlu0 %v481, 24
  %v1467 = vpop.permute.xlu0 %1466
  %1468 = vrot.lane.b32.xlu0 %v482, 24
  %v1469 = vpop.permute.xlu0 %1468
  %1470 = vrot.lane.b32.xlu0 %v483, 24
  %v1471 = vpop.permute.xlu0 %1470
  %1472 = vrot.lane.b32.xlu0 %v484, 24
  %v1473 = vpop.permute.xlu0 %1472
  %1474 = vrot.lane.b32.xlu0 %v485, 24
  %v1475 = vpop.permute.xlu0 %1474
  %1476 = vrot.lane.b32.xlu0 %v486, 24
  %v1477 = vpop.permute.xlu0 %1476
  %1478 = vrot.lane.b32.xlu0 %v487, 24
  %v1479 = vpop.permute.xlu0 %1478
  %1480 = vrot.lane.b32.xlu0 %v488, 24
  %v1481 = vpop.permute.xlu0 %1480
  %1482 = vrot.lane.b32.xlu0 %v489, 24
  %v1483 = vpop.permute.xlu0 %1482
  %1484 = vrot.lane.b32.xlu0 %v490, 24
  %v1485 = vpop.permute.xlu0 %1484
  %1486 = vrot.lane.b32.xlu0 %v491, 24
  %v1487 = vpop.permute.xlu0 %1486
  %1488 = vrot.lane.b32.xlu0 %v492, 24
  %v1489 = vpop.permute.xlu0 %1488
  %1490 = vrot.lane.b32.xlu0 %v493, 24
  %v1491 = vpop.permute.xlu0 %1490
  %1492 = vrot.lane.b32.xlu0 %v494, 24
  %v1493 = vpop.permute.xlu0 %1492
  %1494 = vrot.lane.b32.xlu0 %v495, 24
  %v1495 = vpop.permute.xlu0 %1494
  %1496 = vrot.lane.b32.xlu0 %v496, 24
  %v1497 = vpop.permute.xlu0 %1496
  %1498 = vrot.lane.b32.xlu0 %v497, 24
  %v1499 = vpop.permute.xlu0 %1498
  %1500 = vrot.lane.b32.xlu0 %v498, 24
  %v1501 = vpop.permute.xlu0 %1500
  %1502 = vrot.lane.b32.xlu0 %v499, 24
  %v1503 = vpop.permute.xlu0 %1502
  %1504 = vrot.lane.b32.xlu0 %v500, 24
  %v1505 = vpop.permute.xlu0 %1504
  %1506 = vrot.lane.b32.xlu0 %v501, 24
  %v1507 = vpop.permute.xlu0 %1506
  %1508 = vrot.lane.b32.xlu0 %v502, 24
  %v1509 = vpop.permute.xlu0 %1508
  %1510 = vrot.lane.b32.xlu0 %v503, 24
  %v1511 = vpop.permute.xlu0 %1510
  %1512 = vrot.lane.b32.xlu0 %v504, 24
  %v1513 = vpop.permute.xlu0 %1512
  %1514 = vrot.lane.b32.xlu0 %v505, 24
  %v1515 = vpop.permute.xlu0 %1514
  %1516 = vrot.lane.b32.xlu0 %v506, 24
  %v1517 = vpop.permute.xlu0 %1516
  %1518 = vrot.lane.b32.xlu0 %v507, 24
  %v1519 = vpop.permute.xlu0 %1518
  %1520 = vrot.lane.b32.xlu0 %v508, 24
  %v1521 = vpop.permute.xlu0 %1520
  %1522 = vrot.lane.b32.xlu0 %v509, 24
  %v1523 = vpop.permute.xlu0 %1522
  %1524 = vrot.lane.b32.xlu0 %v510, 24
  %v1525 = vpop.permute.xlu0 %1524
  %1526 = vrot.lane.b32.xlu0 %v511, 24
  %v1527 = vpop.permute.xlu0 %1526
  %1528 = vrot.lane.b32.xlu0 %v512, 24
  %v1529 = vpop.permute.xlu0 %1528
  %1530 = vrot.lane.b32.xlu0 %v513, 24
  %v1531 = vpop.permute.xlu0 %1530
  %1532 = vrot.lane.b32.xlu0 %v514, 24
  %v1533 = vpop.permute.xlu0 %1532
  %1534 = vrot.lane.b32.xlu0 %v515, 24
  %v1535 = vpop.permute.xlu0 %1534
  %1536 = vrot.lane.b32.xlu0 %v516, 24
  %v1537 = vpop.permute.xlu0 %1536
  %1538 = vrot.lane.b32.xlu0 %v517, 24
  %v1539 = vpop.permute.xlu0 %1538
  %1540 = vrot.lane.b32.xlu0 %v518, 24
  %v1541 = vpop.permute.xlu0 %1540
  %1542 = vrot.lane.b32.xlu0 %v519, 24
  %v1543 = vpop.permute.xlu0 %1542
  %1544 = vrot.lane.b32.xlu0 %v520, 24
  %v1545 = vpop.permute.xlu0 %1544
  %1674 = vrot.lane.b32.xlu0 %v521, 32
  %v1675 = vpop.permute.xlu0 %1674
  %1676 = vrot.lane.b32.xlu0 %v522, 32
  %v1677 = vpop.permute.xlu0 %1676
  %1678 = vrot.lane.b32.xlu0 %v523, 32
  %v1679 = vpop.permute.xlu0 %1678
  %1680 = vrot.lane.b32.xlu0 %v524, 32
  %v1681 = vpop.permute.xlu0 %1680
  %1682 = vrot.lane.b32.xlu0 %v525, 32
  %v1683 = vpop.permute.xlu0 %1682
  %1684 = vrot.lane.b32.xlu0 %v526, 32
  %v1685 = vpop.permute.xlu0 %1684
  %1686 = vrot.lane.b32.xlu0 %v527, 32
  %v1687 = vpop.permute.xlu0 %1686
  %1688 = vrot.lane.b32.xlu0 %v528, 32
  %v1689 = vpop.permute.xlu0 %1688
  %1690 = vrot.lane.b32.xlu0 %v529, 32
  %v1691 = vpop.permute.xlu0 %1690
  %1692 = vrot.lane.b32.xlu0 %v530, 32
  %v1693 = vpop.permute.xlu0 %1692
  %1694 = vrot.lane.b32.xlu0 %v531, 32
  %v1695 = vpop.permute.xlu0 %1694
  %1696 = vrot.lane.b32.xlu0 %v532, 32
  %v1697 = vpop.permute.xlu0 %1696
  %1698 = vrot.lane.b32.xlu0 %v533, 32
  %v1699 = vpop.permute.xlu0 %1698
  %1700 = vrot.lane.b32.xlu0 %v534, 32
  %v1701 = vpop.permute.xlu0 %1700
  %1702 = vrot.lane.b32.xlu0 %v535, 32
  %v1703 = vpop.permute.xlu0 %1702
  %1704 = vrot.lane.b32.xlu0 %v536, 32
  %v1705 = vpop.permute.xlu0 %1704
  %1706 = vrot.lane.b32.xlu0 %v537, 32
  %v1707 = vpop.permute.xlu0 %1706
  %1708 = vrot.lane.b32.xlu0 %v538, 32
  %v1709 = vpop.permute.xlu0 %1708
  %1710 = vrot.lane.b32.xlu0 %v539, 32
  %v1711 = vpop.permute.xlu0 %1710
  %1712 = vrot.lane.b32.xlu0 %v540, 32
  %v1713 = vpop.permute.xlu0 %1712
  %1714 = vrot.lane.b32.xlu0 %v541, 32
  %v1715 = vpop.permute.xlu0 %1714
  %1716 = vrot.lane.b32.xlu0 %v542, 32
  %v1717 = vpop.permute.xlu0 %1716
  %1718 = vrot.lane.b32.xlu0 %v543, 32
  %v1719 = vpop.permute.xlu0 %1718
  %1720 = vrot.lane.b32.xlu0 %v544, 32
  %v1721 = vpop.permute.xlu0 %1720
  %1722 = vrot.lane.b32.xlu0 %v545, 32
  %v1723 = vpop.permute.xlu0 %1722
  %1724 = vrot.lane.b32.xlu0 %v546, 32
  %v1725 = vpop.permute.xlu0 %1724
  %1726 = vrot.lane.b32.xlu0 %v547, 32
  %v1727 = vpop.permute.xlu0 %1726
  %1728 = vrot.lane.b32.xlu0 %v548, 32
  %v1729 = vpop.permute.xlu0 %1728
  %1730 = vrot.lane.b32.xlu0 %v549, 32
  %v1731 = vpop.permute.xlu0 %1730
  %1732 = vrot.lane.b32.xlu0 %v550, 32
  %v1733 = vpop.permute.xlu0 %1732
  %1734 = vrot.lane.b32.xlu0 %v551, 32
  %v1735 = vpop.permute.xlu0 %1734
  %1736 = vrot.lane.b32.xlu0 %v552, 32
  %v1737 = vpop.permute.xlu0 %1736
  %1738 = vrot.lane.b32.xlu0 %v553, 32
  %v1739 = vpop.permute.xlu0 %1738
  %1740 = vrot.lane.b32.xlu0 %v554, 32
  %v1741 = vpop.permute.xlu0 %1740
  %1742 = vrot.lane.b32.xlu0 %v555, 32
  %v1743 = vpop.permute.xlu0 %1742
  %1744 = vrot.lane.b32.xlu0 %v556, 32
  %v1745 = vpop.permute.xlu0 %1744
  %1746 = vrot.lane.b32.xlu0 %v557, 32
  %v1747 = vpop.permute.xlu0 %1746
  %1748 = vrot.lane.b32.xlu0 %v558, 32
  %v1749 = vpop.permute.xlu0 %1748
  %1750 = vrot.lane.b32.xlu0 %v559, 32
  %v1751 = vpop.permute.xlu0 %1750
  %1752 = vrot.lane.b32.xlu0 %v560, 32
  %v1753 = vpop.permute.xlu0 %1752
  %1754 = vrot.lane.b32.xlu0 %v561, 32
  %v1755 = vpop.permute.xlu0 %1754
  %1756 = vrot.lane.b32.xlu0 %v562, 32
  %v1757 = vpop.permute.xlu0 %1756
  %1758 = vrot.lane.b32.xlu0 %v563, 32
  %v1759 = vpop.permute.xlu0 %1758
  %1760 = vrot.lane.b32.xlu0 %v564, 32
  %v1761 = vpop.permute.xlu0 %1760
  %1762 = vrot.lane.b32.xlu0 %v565, 32
  %v1763 = vpop.permute.xlu0 %1762
  %1764 = vrot.lane.b32.xlu0 %v566, 32
  %v1765 = vpop.permute.xlu0 %1764
  %1766 = vrot.lane.b32.xlu0 %v567, 32
  %v1767 = vpop.permute.xlu0 %1766
  %1768 = vrot.lane.b32.xlu0 %v568, 32
  %v1769 = vpop.permute.xlu0 %1768
  %1770 = vrot.lane.b32.xlu0 %v569, 32
  %v1771 = vpop.permute.xlu0 %1770
  %1772 = vrot.lane.b32.xlu0 %v570, 32
  %v1773 = vpop.permute.xlu0 %1772
  %1774 = vrot.lane.b32.xlu0 %v571, 32
  %v1775 = vpop.permute.xlu0 %1774
  %1776 = vrot.lane.b32.xlu0 %v572, 32
  %v1777 = vpop.permute.xlu0 %1776
  %1778 = vrot.lane.b32.xlu0 %v573, 32
  %v1779 = vpop.permute.xlu0 %1778
  %1780 = vrot.lane.b32.xlu0 %v574, 32
  %v1781 = vpop.permute.xlu0 %1780
  %1782 = vrot.lane.b32.xlu0 %v575, 32
  %v1783 = vpop.permute.xlu0 %1782
  %1784 = vrot.lane.b32.xlu0 %v576, 32
  %v1785 = vpop.permute.xlu0 %1784
  %1786 = vrot.lane.b32.xlu0 %v577, 32
  %v1787 = vpop.permute.xlu0 %1786
  %1788 = vrot.lane.b32.xlu0 %v578, 32
  %v1789 = vpop.permute.xlu0 %1788
  %1790 = vrot.lane.b32.xlu0 %v579, 32
  %v1791 = vpop.permute.xlu0 %1790
  %1792 = vrot.lane.b32.xlu0 %v580, 32
  %v1793 = vpop.permute.xlu0 %1792
  %1794 = vrot.lane.b32.xlu0 %v581, 32
  %v1795 = vpop.permute.xlu0 %1794
  %1796 = vrot.lane.b32.xlu0 %v582, 32
  %v1797 = vpop.permute.xlu0 %1796
  %1798 = vrot.lane.b32.xlu0 %v583, 32
  %v1799 = vpop.permute.xlu0 %1798
  %1800 = vrot.lane.b32.xlu0 %v584, 32
  %v1801 = vpop.permute.xlu0 %1800
  %1930 = vrot.lane.b32.xlu0 %v585, 40
  %v1931 = vpop.permute.xlu0 %1930
  %1932 = vrot.lane.b32.xlu0 %v586, 40
  %v1933 = vpop.permute.xlu0 %1932
  %1934 = vrot.lane.b32.xlu0 %v587, 40
  %v1935 = vpop.permute.xlu0 %1934
  %1936 = vrot.lane.b32.xlu0 %v588, 40
  %v1937 = vpop.permute.xlu0 %1936
  %1938 = vrot.lane.b32.xlu0 %v589, 40
  %v1939 = vpop.permute.xlu0 %1938
  %1940 = vrot.lane.b32.xlu0 %v590, 40
  %v1941 = vpop.permute.xlu0 %1940
  %1942 = vrot.lane.b32.xlu0 %v591, 40
  %v1943 = vpop.permute.xlu0 %1942
  %1944 = vrot.lane.b32.xlu0 %v592, 40
  %v1945 = vpop.permute.xlu0 %1944
  %1946 = vrot.lane.b32.xlu0 %v593, 40
  %v1947 = vpop.permute.xlu0 %1946
  %1948 = vrot.lane.b32.xlu0 %v594, 40
  %v1949 = vpop.permute.xlu0 %1948
  %1950 = vrot.lane.b32.xlu0 %v595, 40
  %v1951 = vpop.permute.xlu0 %1950
  %1952 = vrot.lane.b32.xlu0 %v596, 40
  %v1953 = vpop.permute.xlu0 %1952
  %1954 = vrot.lane.b32.xlu0 %v597, 40
  %v1955 = vpop.permute.xlu0 %1954
  %1956 = vrot.lane.b32.xlu0 %v598, 40
  %v1957 = vpop.permute.xlu0 %1956
  %1958 = vrot.lane.b32.xlu0 %v599, 40
  %v1959 = vpop.permute.xlu0 %1958
  %1960 = vrot.lane.b32.xlu0 %v600, 40
  %v1961 = vpop.permute.xlu0 %1960
  %1962 = vrot.lane.b32.xlu0 %v601, 40
  %v1963 = vpop.permute.xlu0 %1962
  %1964 = vrot.lane.b32.xlu0 %v602, 40
  %v1965 = vpop.permute.xlu0 %1964
  %1966 = vrot.lane.b32.xlu0 %v603, 40
  %v1967 = vpop.permute.xlu0 %1966
  %1968 = vrot.lane.b32.xlu0 %v604, 40
  %v1969 = vpop.permute.xlu0 %1968
  %1970 = vrot.lane.b32.xlu0 %v605, 40
  %v1971 = vpop.permute.xlu0 %1970
  %1972 = vrot.lane.b32.xlu0 %v606, 40
  %v1973 = vpop.permute.xlu0 %1972
  %1974 = vrot.lane.b32.xlu0 %v607, 40
  %v1975 = vpop.permute.xlu0 %1974
  %1976 = vrot.lane.b32.xlu0 %v608, 40
  %v1977 = vpop.permute.xlu0 %1976
  %1978 = vrot.lane.b32.xlu0 %v609, 40
  %v1979 = vpop.permute.xlu0 %1978
  %1980 = vrot.lane.b32.xlu0 %v610, 40
  %v1981 = vpop.permute.xlu0 %1980
  %1982 = vrot.lane.b32.xlu0 %v611, 40
  %v1983 = vpop.permute.xlu0 %1982
  %1984 = vrot.lane.b32.xlu0 %v612, 40
  %v1985 = vpop.permute.xlu0 %1984
  %1986 = vrot.lane.b32.xlu0 %v613, 40
  %v1987 = vpop.permute.xlu0 %1986
  %1988 = vrot.lane.b32.xlu0 %v614, 40
  %v1989 = vpop.permute.xlu0 %1988
  %1990 = vrot.lane.b32.xlu0 %v615, 40
  %v1991 = vpop.permute.xlu0 %1990
  %1992 = vrot.lane.b32.xlu0 %v616, 40
  %v1993 = vpop.permute.xlu0 %1992
  %1994 = vrot.lane.b32.xlu0 %v617, 40
  %v1995 = vpop.permute.xlu0 %1994
  %1996 = vrot.lane.b32.xlu0 %v618, 40
  %v1997 = vpop.permute.xlu0 %1996
  %1998 = vrot.lane.b32.xlu0 %v619, 40
  %v1999 = vpop.permute.xlu0 %1998
  %2000 = vrot.lane.b32.xlu0 %v620, 40
  %v2001 = vpop.permute.xlu0 %2000
  %2002 = vrot.lane.b32.xlu0 %v621, 40
  %v2003 = vpop.permute.xlu0 %2002
  %2004 = vrot.lane.b32.xlu0 %v622, 40
  %v2005 = vpop.permute.xlu0 %2004
  %2006 = vrot.lane.b32.xlu0 %v623, 40
  %v2007 = vpop.permute.xlu0 %2006
  %2008 = vrot.lane.b32.xlu0 %v624, 40
  %v2009 = vpop.permute.xlu0 %2008
  %2010 = vrot.lane.b32.xlu0 %v625, 40
  %v2011 = vpop.permute.xlu0 %2010
  %2012 = vrot.lane.b32.xlu0 %v626, 40
  %v2013 = vpop.permute.xlu0 %2012
  %2014 = vrot.lane.b32.xlu0 %v627, 40
  %v2015 = vpop.permute.xlu0 %2014
  %2016 = vrot.lane.b32.xlu0 %v628, 40
  %v2017 = vpop.permute.xlu0 %2016
  %2018 = vrot.lane.b32.xlu0 %v629, 40
  %v2019 = vpop.permute.xlu0 %2018
  %2020 = vrot.lane.b32.xlu0 %v630, 40
  %v2021 = vpop.permute.xlu0 %2020
  %2022 = vrot.lane.b32.xlu0 %v631, 40
  %v2023 = vpop.permute.xlu0 %2022
  %2024 = vrot.lane.b32.xlu0 %v632, 40
  %v2025 = vpop.permute.xlu0 %2024
  %2026 = vrot.lane.b32.xlu0 %v633, 40
  %v2027 = vpop.permute.xlu0 %2026
  %2028 = vrot.lane.b32.xlu0 %v634, 40
  %v2029 = vpop.permute.xlu0 %2028
  %2030 = vrot.lane.b32.xlu0 %v635, 40
  %v2031 = vpop.permute.xlu0 %2030
  %2032 = vrot.lane.b32.xlu0 %v636, 40
  %v2033 = vpop.permute.xlu0 %2032
  %2034 = vrot.lane.b32.xlu0 %v637, 40
  %v2035 = vpop.permute.xlu0 %2034
  %2036 = vrot.lane.b32.xlu0 %v638, 40
  %v2037 = vpop.permute.xlu0 %2036
  %2038 = vrot.lane.b32.xlu0 %v639, 40
  %v2039 = vpop.permute.xlu0 %2038
  %2040 = vrot.lane.b32.xlu0 %v640, 40
  %v2041 = vpop.permute.xlu0 %2040
  %2042 = vrot.lane.b32.xlu0 %v641, 40
  %v2043 = vpop.permute.xlu0 %2042
  %2044 = vrot.lane.b32.xlu0 %v642, 40
  %v2045 = vpop.permute.xlu0 %2044
  %2046 = vrot.lane.b32.xlu0 %v643, 40
  %v2047 = vpop.permute.xlu0 %2046
  %2048 = vrot.lane.b32.xlu0 %v644, 40
  %v2049 = vpop.permute.xlu0 %2048
  %2050 = vrot.lane.b32.xlu0 %v645, 40
  %v2051 = vpop.permute.xlu0 %2050
  %2052 = vrot.lane.b32.xlu0 %v646, 40
  %v2053 = vpop.permute.xlu0 %2052
  %2054 = vrot.lane.b32.xlu0 %v647, 40
  %v2055 = vpop.permute.xlu0 %2054
  %2056 = vrot.lane.b32.xlu0 %v648, 40
  %v2057 = vpop.permute.xlu0 %2056
  %2186 = vrot.lane.b32.xlu0 %v650, 48
  %v2187 = vpop.permute.xlu0 %2186
  %2188 = vrot.lane.b32.xlu0 %v651, 48
  %v2189 = vpop.permute.xlu0 %2188
  %2190 = vrot.lane.b32.xlu0 %v652, 48
  %v2191 = vpop.permute.xlu0 %2190
  %2192 = vrot.lane.b32.xlu0 %v653, 48
  %v2193 = vpop.permute.xlu0 %2192
  %2194 = vrot.lane.b32.xlu0 %v654, 48
  %v2195 = vpop.permute.xlu0 %2194
  %2196 = vrot.lane.b32.xlu0 %v655, 48
  %v2197 = vpop.permute.xlu0 %2196
  %2198 = vrot.lane.b32.xlu0 %v656, 48
  %v2199 = vpop.permute.xlu0 %2198
  %2200 = vrot.lane.b32.xlu0 %v657, 48
  %v2201 = vpop.permute.xlu0 %2200
  %2202 = vrot.lane.b32.xlu0 %v658, 48
  %v2203 = vpop.permute.xlu0 %2202
  %2204 = vrot.lane.b32.xlu0 %v659, 48
  %v2205 = vpop.permute.xlu0 %2204
  %2206 = vrot.lane.b32.xlu0 %v660, 48
  %v2207 = vpop.permute.xlu0 %2206
  %2208 = vrot.lane.b32.xlu0 %v661, 48
  %v2209 = vpop.permute.xlu0 %2208
  %2210 = vrot.lane.b32.xlu0 %v662, 48
  %v2211 = vpop.permute.xlu0 %2210
  %2212 = vrot.lane.b32.xlu0 %v663, 48
  %v2213 = vpop.permute.xlu0 %2212
  %2214 = vrot.lane.b32.xlu0 %v664, 48
  %v2215 = vpop.permute.xlu0 %2214
  %2216 = vrot.lane.b32.xlu0 %v665, 48
  %v2217 = vpop.permute.xlu0 %2216
  %2218 = vrot.lane.b32.xlu0 %v666, 48
  %v2219 = vpop.permute.xlu0 %2218
  %2220 = vrot.lane.b32.xlu0 %v667, 48
  %v2221 = vpop.permute.xlu0 %2220
  %2222 = vrot.lane.b32.xlu0 %v668, 48
  %v2223 = vpop.permute.xlu0 %2222
  %2224 = vrot.lane.b32.xlu0 %v669, 48
  %v2225 = vpop.permute.xlu0 %2224
  %2226 = vrot.lane.b32.xlu0 %v670, 48
  %v2227 = vpop.permute.xlu0 %2226
  %2228 = vrot.lane.b32.xlu0 %v671, 48
  %v2229 = vpop.permute.xlu0 %2228
  %2230 = vrot.lane.b32.xlu0 %v672, 48
  %v2231 = vpop.permute.xlu0 %2230
  %2232 = vrot.lane.b32.xlu0 %v673, 48
  %v2233 = vpop.permute.xlu0 %2232
  %2234 = vrot.lane.b32.xlu0 %v674, 48
  %v2235 = vpop.permute.xlu0 %2234
  %2236 = vrot.lane.b32.xlu0 %v675, 48
  %v2237 = vpop.permute.xlu0 %2236
  %2238 = vrot.lane.b32.xlu0 %v676, 48
  %v2239 = vpop.permute.xlu0 %2238
  %2240 = vrot.lane.b32.xlu0 %v677, 48
  %v2241 = vpop.permute.xlu0 %2240
  %2242 = vrot.lane.b32.xlu0 %v678, 48
  %v2243 = vpop.permute.xlu0 %2242
  %2244 = vrot.lane.b32.xlu0 %v679, 48
  %v2245 = vpop.permute.xlu0 %2244
  %2246 = vrot.lane.b32.xlu0 %v680, 48
  %v2247 = vpop.permute.xlu0 %2246
  %2248 = vrot.lane.b32.xlu0 %v681, 48
  %v2249 = vpop.permute.xlu0 %2248
  %2250 = vrot.lane.b32.xlu0 %v682, 48
  %v2251 = vpop.permute.xlu0 %2250
  %2252 = vrot.lane.b32.xlu0 %v683, 48
  %v2253 = vpop.permute.xlu0 %2252
  %2254 = vrot.lane.b32.xlu0 %v684, 48
  %v2255 = vpop.permute.xlu0 %2254
  %2256 = vrot.lane.b32.xlu0 %v685, 48
  %v2257 = vpop.permute.xlu0 %2256
  %2258 = vrot.lane.b32.xlu0 %v686, 48
  %v2259 = vpop.permute.xlu0 %2258
  %2260 = vrot.lane.b32.xlu0 %v687, 48
  %v2261 = vpop.permute.xlu0 %2260
  %2262 = vrot.lane.b32.xlu0 %v688, 48
  %v2263 = vpop.permute.xlu0 %2262
  %2264 = vrot.lane.b32.xlu0 %v689, 48
  %v2265 = vpop.permute.xlu0 %2264
  %2266 = vrot.lane.b32.xlu0 %v690, 48
  %v2267 = vpop.permute.xlu0 %2266
  %2268 = vrot.lane.b32.xlu0 %v691, 48
  %v2269 = vpop.permute.xlu0 %2268
  %2270 = vrot.lane.b32.xlu0 %v692, 48
  %v2271 = vpop.permute.xlu0 %2270
  %2272 = vrot.lane.b32.xlu0 %v693, 48
  %v2273 = vpop.permute.xlu0 %2272
  %2274 = vrot.lane.b32.xlu0 %v694, 48
  %v2275 = vpop.permute.xlu0 %2274
  %2276 = vrot.lane.b32.xlu0 %v695, 48
  %v2277 = vpop.permute.xlu0 %2276
  %2278 = vrot.lane.b32.xlu0 %v696, 48
  %v2279 = vpop.permute.xlu0 %2278
  %2280 = vrot.lane.b32.xlu0 %v697, 48
  %v2281 = vpop.permute.xlu0 %2280
  %2282 = vrot.lane.b32.xlu0 %v698, 48
  %v2283 = vpop.permute.xlu0 %2282
  %2284 = vrot.lane.b32.xlu0 %v699, 48
  %v2285 = vpop.permute.xlu0 %2284
  %2286 = vrot.lane.b32.xlu0 %v700, 48
  %v2287 = vpop.permute.xlu0 %2286
  %2288 = vrot.lane.b32.xlu0 %v701, 48
  %v2289 = vpop.permute.xlu0 %2288
  %2290 = vrot.lane.b32.xlu0 %v702, 48
  %v2291 = vpop.permute.xlu0 %2290
  %2292 = vrot.lane.b32.xlu0 %v703, 48
  %v2293 = vpop.permute.xlu0 %2292
  %2294 = vrot.lane.b32.xlu0 %v704, 48
  %v2295 = vpop.permute.xlu0 %2294
  %2296 = vrot.lane.b32.xlu0 %v705, 48
  %v2297 = vpop.permute.xlu0 %2296
  %2298 = vrot.lane.b32.xlu0 %v706, 48
  %v2299 = vpop.permute.xlu0 %2298
  %2300 = vrot.lane.b32.xlu0 %v707, 48
  %v2301 = vpop.permute.xlu0 %2300
  %2302 = vrot.lane.b32.xlu0 %v708, 48
  %v2303 = vpop.permute.xlu0 %2302
  %2304 = vrot.lane.b32.xlu0 %v709, 48
  %v2305 = vpop.permute.xlu0 %2304
  %2306 = vrot.lane.b32.xlu0 %v710, 48
  %v2307 = vpop.permute.xlu0 %2306
  %2308 = vrot.lane.b32.xlu0 %v711, 48
  %v2309 = vpop.permute.xlu0 %2308
  %2310 = vrot.lane.b32.xlu0 %v712, 48
  %v2311 = vpop.permute.xlu0 %2310
  %2312 = vrot.lane.b32.xlu0 %v713, 48
  %v2313 = vpop.permute.xlu0 %2312
  %2442 = vrot.lane.b32.xlu0 %v714, 56
  %v2443 = vpop.permute.xlu0 %2442
  %2444 = vrot.lane.b32.xlu0 %v715, 56
  %v2445 = vpop.permute.xlu0 %2444
  %2446 = vrot.lane.b32.xlu0 %v716, 56
  %v2447 = vpop.permute.xlu0 %2446
  %2448 = vrot.lane.b32.xlu0 %v717, 56
  %v2449 = vpop.permute.xlu0 %2448
  %2450 = vrot.lane.b32.xlu0 %v718, 56
  %v2451 = vpop.permute.xlu0 %2450
  %2452 = vrot.lane.b32.xlu0 %v719, 56
  %v2453 = vpop.permute.xlu0 %2452
  %2454 = vrot.lane.b32.xlu0 %v720, 56
  %v2455 = vpop.permute.xlu0 %2454
  %2456 = vrot.lane.b32.xlu0 %v721, 56
  %v2457 = vpop.permute.xlu0 %2456
  %2458 = vrot.lane.b32.xlu0 %v722, 56
  %v2459 = vpop.permute.xlu0 %2458
  %2460 = vrot.lane.b32.xlu0 %v723, 56
  %v2461 = vpop.permute.xlu0 %2460
  %2462 = vrot.lane.b32.xlu0 %v724, 56
  %v2463 = vpop.permute.xlu0 %2462
  %2464 = vrot.lane.b32.xlu0 %v725, 56
  %v2465 = vpop.permute.xlu0 %2464
  %2466 = vrot.lane.b32.xlu0 %v726, 56
  %v2467 = vpop.permute.xlu0 %2466
  %2468 = vrot.lane.b32.xlu0 %v727, 56
  %v2469 = vpop.permute.xlu0 %2468
  %2470 = vrot.lane.b32.xlu0 %v728, 56
  %v2471 = vpop.permute.xlu0 %2470
  %2472 = vrot.lane.b32.xlu0 %v729, 56
  %v2473 = vpop.permute.xlu0 %2472
  %2474 = vrot.lane.b32.xlu0 %v730, 56
  %v2475 = vpop.permute.xlu0 %2474
  %2476 = vrot.lane.b32.xlu0 %v731, 56
  %v2477 = vpop.permute.xlu0 %2476
  %2478 = vrot.lane.b32.xlu0 %v732, 56
  %v2479 = vpop.permute.xlu0 %2478
  %2480 = vrot.lane.b32.xlu0 %v733, 56
  %v2481 = vpop.permute.xlu0 %2480
  %2482 = vrot.lane.b32.xlu0 %v734, 56
  %v2483 = vpop.permute.xlu0 %2482
  %2484 = vrot.lane.b32.xlu0 %v735, 56
  %v2485 = vpop.permute.xlu0 %2484
  %2486 = vrot.lane.b32.xlu0 %v736, 56
  %v2487 = vpop.permute.xlu0 %2486
  %2488 = vrot.lane.b32.xlu0 %v737, 56
  %v2489 = vpop.permute.xlu0 %2488
  %2490 = vrot.lane.b32.xlu0 %v738, 56
  %v2491 = vpop.permute.xlu0 %2490
  %2492 = vrot.lane.b32.xlu0 %v739, 56
  %v2493 = vpop.permute.xlu0 %2492
  %2494 = vrot.lane.b32.xlu0 %v740, 56
  %v2495 = vpop.permute.xlu0 %2494
  %2496 = vrot.lane.b32.xlu0 %v741, 56
  %v2497 = vpop.permute.xlu0 %2496
  %2498 = vrot.lane.b32.xlu0 %v742, 56
  %v2499 = vpop.permute.xlu0 %2498
  %2500 = vrot.lane.b32.xlu0 %v743, 56
  %v2501 = vpop.permute.xlu0 %2500
  %2502 = vrot.lane.b32.xlu0 %v744, 56
  %v2503 = vpop.permute.xlu0 %2502
  %2504 = vrot.lane.b32.xlu0 %v745, 56
  %v2505 = vpop.permute.xlu0 %2504
  %2506 = vrot.lane.b32.xlu0 %v746, 56
  %v2507 = vpop.permute.xlu0 %2506
  %2508 = vrot.lane.b32.xlu0 %v747, 56
  %v2509 = vpop.permute.xlu0 %2508
  %2510 = vrot.lane.b32.xlu0 %v748, 56
  %v2511 = vpop.permute.xlu0 %2510
  %2512 = vrot.lane.b32.xlu0 %v749, 56
  %v2513 = vpop.permute.xlu0 %2512
  %2514 = vrot.lane.b32.xlu0 %v750, 56
  %v2515 = vpop.permute.xlu0 %2514
  %2516 = vrot.lane.b32.xlu0 %v751, 56
  %v2517 = vpop.permute.xlu0 %2516
  %2518 = vrot.lane.b32.xlu0 %v752, 56
  %v2519 = vpop.permute.xlu0 %2518
  %2520 = vrot.lane.b32.xlu0 %v753, 56
  %v2521 = vpop.permute.xlu0 %2520
  %2522 = vrot.lane.b32.xlu0 %v754, 56
  %v2523 = vpop.permute.xlu0 %2522
  %2524 = vrot.lane.b32.xlu0 %v755, 56
  %v2525 = vpop.permute.xlu0 %2524
  %2526 = vrot.lane.b32.xlu0 %v756, 56
  %v2527 = vpop.permute.xlu0 %2526
  %2528 = vrot.lane.b32.xlu0 %v757, 56
  %v2529 = vpop.permute.xlu0 %2528
  %2530 = vrot.lane.b32.xlu0 %v758, 56
  %v2531 = vpop.permute.xlu0 %2530
  %2532 = vrot.lane.b32.xlu0 %v759, 56
  %v2533 = vpop.permute.xlu0 %2532
  %2534 = vrot.lane.b32.xlu0 %v760, 56
  %v2535 = vpop.permute.xlu0 %2534
  %2536 = vrot.lane.b32.xlu0 %v761, 56
  %v2537 = vpop.permute.xlu0 %2536
  %2538 = vrot.lane.b32.xlu0 %v762, 56
  %v2539 = vpop.permute.xlu0 %2538
  %2540 = vrot.lane.b32.xlu0 %v763, 56
  %v2541 = vpop.permute.xlu0 %2540
  %2542 = vrot.lane.b32.xlu0 %v764, 56
  %v2543 = vpop.permute.xlu0 %2542
  %2544 = vrot.lane.b32.xlu0 %v765, 56
  %v2545 = vpop.permute.xlu0 %2544
  %2546 = vrot.lane.b32.xlu0 %v766, 56
  %v2547 = vpop.permute.xlu0 %2546
  %2548 = vrot.lane.b32.xlu0 %v767, 56
  %v2549 = vpop.permute.xlu0 %2548
  %2550 = vrot.lane.b32.xlu0 %v768, 56
  %v2551 = vpop.permute.xlu0 %2550
  %2552 = vrot.lane.b32.xlu0 %v769, 56
  %v2553 = vpop.permute.xlu0 %2552
  %2554 = vrot.lane.b32.xlu0 %v770, 56
  %v2555 = vpop.permute.xlu0 %2554
  %2556 = vrot.lane.b32.xlu0 %v771, 56
  %v2557 = vpop.permute.xlu0 %2556
  %2558 = vrot.lane.b32.xlu0 %v772, 56
  %v2559 = vpop.permute.xlu0 %2558
  %2560 = vrot.lane.b32.xlu0 %v773, 56
  %v2561 = vpop.permute.xlu0 %2560
  %2562 = vrot.lane.b32.xlu0 %v774, 56
  %v2563 = vpop.permute.xlu0 %2562
  %2564 = vrot.lane.b32.xlu0 %v775, 56
  %v2565 = vpop.permute.xlu0 %2564
  %2566 = vrot.lane.b32.xlu0 %v776, 56
  %v2567 = vpop.permute.xlu0 %2566
  %2568 = vrot.lane.b32.xlu0 %v777, 56
  %v2569 = vpop.permute.xlu0 %2568
  %2698 = vrot.lane.b32.xlu0 %v778, 64
  %v2699 = vpop.permute.xlu0 %2698
  %2700 = vrot.lane.b32.xlu0 %v779, 64
  %v2701 = vpop.permute.xlu0 %2700
  %2702 = vrot.lane.b32.xlu0 %v780, 64
  %v2703 = vpop.permute.xlu0 %2702
  %2704 = vrot.lane.b32.xlu0 %v781, 64
  %v2705 = vpop.permute.xlu0 %2704
  %2706 = vrot.lane.b32.xlu0 %v782, 64
  %v2707 = vpop.permute.xlu0 %2706
  %2708 = vrot.lane.b32.xlu0 %v783, 64
  %v2709 = vpop.permute.xlu0 %2708
  %2710 = vrot.lane.b32.xlu0 %v784, 64
  %v2711 = vpop.permute.xlu0 %2710
  %2712 = vrot.lane.b32.xlu0 %v785, 64
  %v2713 = vpop.permute.xlu0 %2712
  %2714 = vrot.lane.b32.xlu0 %v786, 64
  %v2715 = vpop.permute.xlu0 %2714
  %2716 = vrot.lane.b32.xlu0 %v787, 64
  %v2717 = vpop.permute.xlu0 %2716
  %2718 = vrot.lane.b32.xlu0 %v788, 64
  %v2719 = vpop.permute.xlu0 %2718
  %2720 = vrot.lane.b32.xlu0 %v789, 64
  %v2721 = vpop.permute.xlu0 %2720
  %2722 = vrot.lane.b32.xlu0 %v790, 64
  %v2723 = vpop.permute.xlu0 %2722
  %2724 = vrot.lane.b32.xlu0 %v791, 64
  %v2725 = vpop.permute.xlu0 %2724
  %2726 = vrot.lane.b32.xlu0 %v792, 64
  %v2727 = vpop.permute.xlu0 %2726
  %2728 = vrot.lane.b32.xlu0 %v793, 64
  %v2729 = vpop.permute.xlu0 %2728
  %2730 = vrot.lane.b32.xlu0 %v794, 64
  %v2731 = vpop.permute.xlu0 %2730
  %2732 = vrot.lane.b32.xlu0 %v795, 64
  %v2733 = vpop.permute.xlu0 %2732
  %2734 = vrot.lane.b32.xlu0 %v796, 64
  %v2735 = vpop.permute.xlu0 %2734
  %2736 = vrot.lane.b32.xlu0 %v797, 64
  %v2737 = vpop.permute.xlu0 %2736
  %2738 = vrot.lane.b32.xlu0 %v798, 64
  %v2739 = vpop.permute.xlu0 %2738
  %2740 = vrot.lane.b32.xlu0 %v799, 64
  %v2741 = vpop.permute.xlu0 %2740
  %2742 = vrot.lane.b32.xlu0 %v800, 64
  %v2743 = vpop.permute.xlu0 %2742
  %2744 = vrot.lane.b32.xlu0 %v801, 64
  %v2745 = vpop.permute.xlu0 %2744
  %2746 = vrot.lane.b32.xlu0 %v802, 64
  %v2747 = vpop.permute.xlu0 %2746
  %2748 = vrot.lane.b32.xlu0 %v803, 64
  %v2749 = vpop.permute.xlu0 %2748
  %2750 = vrot.lane.b32.xlu0 %v804, 64
  %v2751 = vpop.permute.xlu0 %2750
  %2752 = vrot.lane.b32.xlu0 %v805, 64
  %v2753 = vpop.permute.xlu0 %2752
  %2754 = vrot.lane.b32.xlu0 %v806, 64
  %v2755 = vpop.permute.xlu0 %2754
  %2756 = vrot.lane.b32.xlu0 %v807, 64
  %v2757 = vpop.permute.xlu0 %2756
  %2758 = vrot.lane.b32.xlu0 %v808, 64
  %v2759 = vpop.permute.xlu0 %2758
  %2760 = vrot.lane.b32.xlu0 %v809, 64
  %v2761 = vpop.permute.xlu0 %2760
  %2762 = vrot.lane.b32.xlu0 %v810, 64
  %v2763 = vpop.permute.xlu0 %2762
  %2764 = vrot.lane.b32.xlu0 %v811, 64
  %v2765 = vpop.permute.xlu0 %2764
  %2766 = vrot.lane.b32.xlu0 %v812, 64
  %v2767 = vpop.permute.xlu0 %2766
  %2768 = vrot.lane.b32.xlu0 %v813, 64
  %v2769 = vpop.permute.xlu0 %2768
  %2770 = vrot.lane.b32.xlu0 %v814, 64
  %v2771 = vpop.permute.xlu0 %2770
  %2772 = vrot.lane.b32.xlu0 %v815, 64
  %v2773 = vpop.permute.xlu0 %2772
  %2774 = vrot.lane.b32.xlu0 %v816, 64
  %v2775 = vpop.permute.xlu0 %2774
  %2776 = vrot.lane.b32.xlu0 %v817, 64
  %v2777 = vpop.permute.xlu0 %2776
  %2778 = vrot.lane.b32.xlu0 %v818, 64
  %v2779 = vpop.permute.xlu0 %2778
  %2780 = vrot.lane.b32.xlu0 %v819, 64
  %v2781 = vpop.permute.xlu0 %2780
  %2782 = vrot.lane.b32.xlu0 %v820, 64
  %v2783 = vpop.permute.xlu0 %2782
  %2784 = vrot.lane.b32.xlu0 %v821, 64
  %v2785 = vpop.permute.xlu0 %2784
  %2786 = vrot.lane.b32.xlu0 %v822, 64
  %v2787 = vpop.permute.xlu0 %2786
  %2788 = vrot.lane.b32.xlu0 %v823, 64
  %v2789 = vpop.permute.xlu0 %2788
  %2790 = vrot.lane.b32.xlu0 %v824, 64
  %v2791 = vpop.permute.xlu0 %2790
  %2792 = vrot.lane.b32.xlu0 %v825, 64
  %v2793 = vpop.permute.xlu0 %2792
  %2794 = vrot.lane.b32.xlu0 %v826, 64
  %v2795 = vpop.permute.xlu0 %2794
  %2796 = vrot.lane.b32.xlu0 %v827, 64
  %v2797 = vpop.permute.xlu0 %2796
  %2798 = vrot.lane.b32.xlu0 %v828, 64
  %v2799 = vpop.permute.xlu0 %2798
  %2800 = vrot.lane.b32.xlu0 %v829, 64
  %v2801 = vpop.permute.xlu0 %2800
  %2802 = vrot.lane.b32.xlu0 %v830, 64
  %v2803 = vpop.permute.xlu0 %2802
  %2804 = vrot.lane.b32.xlu0 %v831, 64
  %v2805 = vpop.permute.xlu0 %2804
  %2806 = vrot.lane.b32.xlu0 %v832, 64
  %v2807 = vpop.permute.xlu0 %2806
  %2808 = vrot.lane.b32.xlu0 %v833, 64
  %v2809 = vpop.permute.xlu0 %2808
  %2810 = vrot.lane.b32.xlu0 %v834, 64
  %v2811 = vpop.permute.xlu0 %2810
  %2812 = vrot.lane.b32.xlu0 %v835, 64
  %v2813 = vpop.permute.xlu0 %2812
  %2814 = vrot.lane.b32.xlu0 %v836, 64
  %v2815 = vpop.permute.xlu0 %2814
  %2816 = vrot.lane.b32.xlu0 %v837, 64
  %v2817 = vpop.permute.xlu0 %2816
  %2818 = vrot.lane.b32.xlu0 %v838, 64
  %v2819 = vpop.permute.xlu0 %2818
  %2820 = vrot.lane.b32.xlu0 %v839, 64
  %v2821 = vpop.permute.xlu0 %2820
  %2822 = vrot.lane.b32.xlu0 %v840, 64
  %v2823 = vpop.permute.xlu0 %2822
  %2824 = vrot.lane.b32.xlu0 %v841, 64
  %v2825 = vpop.permute.xlu0 %2824
  %v2890 = vsel %vm26, %v265, %v907
  %v2891 = vsel %vm26, %v266, %v909
  %v2892 = vsel %vm26, %v267, %v911
  %v2893 = vsel %vm26, %v268, %v913
  %v2894 = vsel %vm26, %v269, %v915
  %v2895 = vsel %vm26, %v270, %v917
  %v2896 = vsel %vm26, %v271, %v919
  %v2897 = vsel %vm26, %v272, %v921
  %v2898 = vsel %vm26, %v273, %v923
  %v2899 = vsel %vm26, %v274, %v925
  %v2900 = vsel %vm26, %v275, %v927
  %v2901 = vsel %vm26, %v276, %v929
  %v2902 = vsel %vm26, %v277, %v931
  %v2903 = vsel %vm26, %v278, %v933
  %v2904 = vsel %vm26, %v279, %v935
  %v2905 = vsel %vm26, %v280, %v937
  %v2906 = vsel %vm26, %v281, %v939
  %v2907 = vsel %vm26, %v282, %v941
  %v2908 = vsel %vm26, %v283, %v943
  %v2909 = vsel %vm26, %v284, %v945
  %v2910 = vsel %vm26, %v285, %v947
  %v2911 = vsel %vm26, %v286, %v949
  %v2912 = vsel %vm26, %v287, %v951
  %v2913 = vsel %vm26, %v288, %v953
  %v2914 = vsel %vm26, %v289, %v955
  %v2915 = vsel %vm26, %v290, %v957
  %v2916 = vsel %vm26, %v291, %v959
  %v2917 = vsel %vm26, %v292, %v961
  %v2918 = vsel %vm26, %v293, %v963
  %v2919 = vsel %vm26, %v294, %v965
  %v2920 = vsel %vm26, %v295, %v967
  %v2921 = vsel %vm26, %v296, %v969
  %v2922 = vsel %vm26, %v297, %v971
  %v2923 = vsel %vm26, %v298, %v973
  %v2924 = vsel %vm26, %v299, %v975
  %v2925 = vsel %vm26, %v300, %v977
  %v2926 = vsel %vm26, %v301, %v979
  %v2927 = vsel %vm26, %v302, %v981
  %v2928 = vsel %vm26, %v303, %v983
  %v2929 = vsel %vm26, %v304, %v985
  %v2930 = vsel %vm26, %v305, %v987
  %v2931 = vsel %vm26, %v306, %v989
  %v2932 = vsel %vm26, %v307, %v991
  %v2933 = vsel %vm26, %v308, %v993
  %v2934 = vsel %vm26, %v309, %v995
  %v2935 = vsel %vm26, %v310, %v997
  %v2936 = vsel %vm26, %v311, %v999
  %v2937 = vsel %vm26, %v312, %v1001
  %v2938 = vsel %vm26, %v313, %v1003
  %v2939 = vsel %vm26, %v314, %v1005
  %v2940 = vsel %vm26, %v315, %v1007
  %v2941 = vsel %vm26, %v316, %v1009
  %v2942 = vsel %vm26, %v317, %v1011
  %v2943 = vsel %vm26, %v318, %v1013
  %v2944 = vsel %vm26, %v319, %v1015
  %v2945 = vsel %vm26, %v320, %v1017
  %v2946 = vsel %vm26, %v321, %v1019
  %v2947 = vsel %vm26, %v322, %v1021
  %v2948 = vsel %vm26, %v323, %v1023
  %v2949 = vsel %vm26, %v324, %v1025
  %v2950 = vsel %vm26, %v325, %v1027
  %v2951 = vsel %vm26, %v326, %v1029
  %v2952 = vsel %vm26, %v327, %v1031
  %v2953 = vsel %vm26, %v328, %v1033
  %vm2954 = vcmask 130048
  %v2955 = vsel %vm2954, %v2890, %v1163
  %v2956 = vsel %vm2954, %v2891, %v1165
  %v2957 = vsel %vm2954, %v2892, %v1167
  %v2958 = vsel %vm2954, %v2893, %v1169
  %v2959 = vsel %vm2954, %v2894, %v1171
  %v2960 = vsel %vm2954, %v2895, %v1173
  %v2961 = vsel %vm2954, %v2896, %v1175
  %v2962 = vsel %vm2954, %v2897, %v1177
  %v2963 = vsel %vm2954, %v2898, %v1179
  %v2964 = vsel %vm2954, %v2899, %v1181
  %v2965 = vsel %vm2954, %v2900, %v1183
  %v2966 = vsel %vm2954, %v2901, %v1185
  %v2967 = vsel %vm2954, %v2902, %v1187
  %v2968 = vsel %vm2954, %v2903, %v1189
  %v2969 = vsel %vm2954, %v2904, %v1191
  %v2970 = vsel %vm2954, %v2905, %v1193
  %v2971 = vsel %vm2954, %v2906, %v1195
  %v2972 = vsel %vm2954, %v2907, %v1197
  %v2973 = vsel %vm2954, %v2908, %v1199
  %v2974 = vsel %vm2954, %v2909, %v1201
  %v2975 = vsel %vm2954, %v2910, %v1203
  %v2976 = vsel %vm2954, %v2911, %v1205
  %v2977 = vsel %vm2954, %v2912, %v1207
  %v2978 = vsel %vm2954, %v2913, %v1209
  %v2979 = vsel %vm2954, %v2914, %v1211
  %v2980 = vsel %vm2954, %v2915, %v1213
  %v2981 = vsel %vm2954, %v2916, %v1215
  %v2982 = vsel %vm2954, %v2917, %v1217
  %v2983 = vsel %vm2954, %v2918, %v1219
  %v2984 = vsel %vm2954, %v2919, %v1221
  %v2985 = vsel %vm2954, %v2920, %v1223
  %v2986 = vsel %vm2954, %v2921, %v1225
  %v2987 = vsel %vm2954, %v2922, %v1227
  %v2988 = vsel %vm2954, %v2923, %v1229
  %v2989 = vsel %vm2954, %v2924, %v1231
  %v2990 = vsel %vm2954, %v2925, %v1233
  %v2991 = vsel %vm2954, %v2926, %v1235
  %v2992 = vsel %vm2954, %v2927, %v1237
  %v2993 = vsel %vm2954, %v2928, %v1239
  %v2994 = vsel %vm2954, %v2929, %v1241
  %v2995 = vsel %vm2954, %v2930, %v1243
  %v2996 = vsel %vm2954, %v2931, %v1245
  %v2997 = vsel %vm2954, %v2932, %v1247
  %v2998 = vsel %vm2954, %v2933, %v1249
  %v2999 = vsel %vm2954, %v2934, %v1251
  %v3000 = vsel %vm2954, %v2935, %v1253
  %v3001 = vsel %vm2954, %v2936, %v1255
  %v3002 = vsel %vm2954, %v2937, %v1257
  %v3003 = vsel %vm2954, %v2938, %v1259
  %v3004 = vsel %vm2954, %v2939, %v1261
  %v3005 = vsel %vm2954, %v2940, %v1263
  %v3006 = vsel %vm2954, %v2941, %v1265
  %v3007 = vsel %vm2954, %v2942, %v1267
  %v3008 = vsel %vm2954, %v2943, %v1269
  %v3009 = vsel %vm2954, %v2944, %v1271
  %v3010 = vsel %vm2954, %v2945, %v1273
  %v3011 = vsel %vm2954, %v2946, %v1275
  %v3012 = vsel %vm2954, %v2947, %v1277
  %v3013 = vsel %vm2954, %v2948, %v1279
  %v3014 = vsel %vm2954, %v2949, %v1281
  %v3015 = vsel %vm2954, %v2950, %v1283
  %v3016 = vsel %vm2954, %v2951, %v1285
  %v3017 = vsel %vm2954, %v2952, %v1287
  %v3018 = vsel %vm2954, %v2953, %v1289
  %vm3019 = vcmask 195584
  %v3020 = vsel %vm3019, %v2955, %v1419
  %v3021 = vsel %vm3019, %v2956, %v1421
  %v3022 = vsel %vm3019, %v2957, %v1423
  %v3023 = vsel %vm3019, %v2958, %v1425
  %v3024 = vsel %vm3019, %v2959, %v1427
  %v3025 = vsel %vm3019, %v2960, %v1429
  %v3026 = vsel %vm3019, %v2961, %v1431
  %v3027 = vsel %vm3019, %v2962, %v1433
  %v3028 = vsel %vm3019, %v2963, %v1435
  %v3029 = vsel %vm3019, %v2964, %v1437
  %v3030 = vsel %vm3019, %v2965, %v1439
  %v3031 = vsel %vm3019, %v2966, %v1441
  %v3032 = vsel %vm3019, %v2967, %v1443
  %v3033 = vsel %vm3019, %v2968, %v1445
  %v3034 = vsel %vm3019, %v2969, %v1447
  %v3035 = vsel %vm3019, %v2970, %v1449
  %v3036 = vsel %vm3019, %v2971, %v1451
  %v3037 = vsel %vm3019, %v2972, %v1453
  %v3038 = vsel %vm3019, %v2973, %v1455
  %v3039 = vsel %vm3019, %v2974, %v1457
  %v3040 = vsel %vm3019, %v2975, %v1459
  %v3041 = vsel %vm3019, %v2976, %v1461
  %v3042 = vsel %vm3019, %v2977, %v1463
  %v3043 = vsel %vm3019, %v2978, %v1465
  %v3044 = vsel %vm3019, %v2979, %v1467
  %v3045 = vsel %vm3019, %v2980, %v1469
  %v3046 = vsel %vm3019, %v2981, %v1471
  %v3047 = vsel %vm3019, %v2982, %v1473
  %v3048 = vsel %vm3019, %v2983, %v1475
  %v3049 = vsel %vm3019, %v2984, %v1477
  %v3050 = vsel %vm3019, %v2985, %v1479
  %v3051 = vsel %vm3019, %v2986, %v1481
  %v3052 = vsel %vm3019, %v2987, %v1483
  %v3053 = vsel %vm3019, %v2988, %v1485
  %v3054 = vsel %vm3019, %v2989, %v1487
  %v3055 = vsel %vm3019, %v2990, %v1489
  %v3056 = vsel %vm3019, %v2991, %v1491
  %v3057 = vsel %vm3019, %v2992, %v1493
  %v3058 = vsel %vm3019, %v2993, %v1495
  %v3059 = vsel %vm3019, %v2994, %v1497
  %v3060 = vsel %vm3019, %v2995, %v1499
  %v3061 = vsel %vm3019, %v2996, %v1501
  %v3062 = vsel %vm3019, %v2997, %v1503
  %v3063 = vsel %vm3019, %v2998, %v1505
  %v3064 = vsel %vm3019, %v2999, %v1507
  %v3065 = vsel %vm3019, %v3000, %v1509
  %v3066 = vsel %vm3019, %v3001, %v1511
  %v3067 = vsel %vm3019, %v3002, %v1513
  %v3068 = vsel %vm3019, %v3003, %v1515
  %v3069 = vsel %vm3019, %v3004, %v1517
  %v3070 = vsel %vm3019, %v3005, %v1519
  %v3071 = vsel %vm3019, %v3006, %v1521
  %v3072 = vsel %vm3019, %v3007, %v1523
  %v3073 = vsel %vm3019, %v3008, %v1525
  %v3074 = vsel %vm3019, %v3009, %v1527
  %v3075 = vsel %vm3019, %v3010, %v1529
  %v3076 = vsel %vm3019, %v3011, %v1531
  %v3077 = vsel %vm3019, %v3012, %v1533
  %v3078 = vsel %vm3019, %v3013, %v1535
  %v3079 = vsel %vm3019, %v3014, %v1537
  %v3080 = vsel %vm3019, %v3015, %v1539
  %v3081 = vsel %vm3019, %v3016, %v1541
  %v3082 = vsel %vm3019, %v3017, %v1543
  %v3083 = vsel %vm3019, %v3018, %v1545
  %vm3084 = vcmask 261120
  %v3085 = vsel %vm3084, %v3020, %v1675
  %v3086 = vsel %vm3084, %v3021, %v1677
  %v3087 = vsel %vm3084, %v3022, %v1679
  %v3088 = vsel %vm3084, %v3023, %v1681
  %v3089 = vsel %vm3084, %v3024, %v1683
  %v3090 = vsel %vm3084, %v3025, %v1685
  %v3091 = vsel %vm3084, %v3026, %v1687
  %v3092 = vsel %vm3084, %v3027, %v1689
  %v3093 = vsel %vm3084, %v3028, %v1691
  %v3094 = vsel %vm3084, %v3029, %v1693
  %v3095 = vsel %vm3084, %v3030, %v1695
  %v3096 = vsel %vm3084, %v3031, %v1697
  %v3097 = vsel %vm3084, %v3032, %v1699
  %v3098 = vsel %vm3084, %v3033, %v1701
  %v3099 = vsel %vm3084, %v3034, %v1703
  %v3100 = vsel %vm3084, %v3035, %v1705
  %v3101 = vsel %vm3084, %v3036, %v1707
  %v3102 = vsel %vm3084, %v3037, %v1709
  %v3103 = vsel %vm3084, %v3038, %v1711
  %v3104 = vsel %vm3084, %v3039, %v1713
  %v3105 = vsel %vm3084, %v3040, %v1715
  %v3106 = vsel %vm3084, %v3041, %v1717
  %v3107 = vsel %vm3084, %v3042, %v1719
  %v3108 = vsel %vm3084, %v3043, %v1721
  %v3109 = vsel %vm3084, %v3044, %v1723
  %v3110 = vsel %vm3084, %v3045, %v1725
  %v3111 = vsel %vm3084, %v3046, %v1727
  %v3112 = vsel %vm3084, %v3047, %v1729
  %v3113 = vsel %vm3084, %v3048, %v1731
  %v3114 = vsel %vm3084, %v3049, %v1733
  %v3115 = vsel %vm3084, %v3050, %v1735
  %v3116 = vsel %vm3084, %v3051, %v1737
  %v3117 = vsel %vm3084, %v3052, %v1739
  %v3118 = vsel %vm3084, %v3053, %v1741
  %v3119 = vsel %vm3084, %v3054, %v1743
  %v3120 = vsel %vm3084, %v3055, %v1745
  %v3121 = vsel %vm3084, %v3056, %v1747
  %v3122 = vsel %vm3084, %v3057, %v1749
  %v3123 = vsel %vm3084, %v3058, %v1751
  %v3124 = vsel %vm3084, %v3059, %v1753
  %v3125 = vsel %vm3084, %v3060, %v1755
  %v3126 = vsel %vm3084, %v3061, %v1757
  %v3127 = vsel %vm3084, %v3062, %v1759
  %v3128 = vsel %vm3084, %v3063, %v1761
  %v3129 = vsel %vm3084, %v3064, %v1763
  %v3130 = vsel %vm3084, %v3065, %v1765
  %v3131 = vsel %vm3084, %v3066, %v1767
  %v3132 = vsel %vm3084, %v3067, %v1769
  %v3133 = vsel %vm3084, %v3068, %v1771
  %v3134 = vsel %vm3084, %v3069, %v1773
  %v3135 = vsel %vm3084, %v3070, %v1775
  %v3136 = vsel %vm3084, %v3071, %v1777
  %v3137 = vsel %vm3084, %v3072, %v1779
  %v3138 = vsel %vm3084, %v3073, %v1781
  %v3139 = vsel %vm3084, %v3074, %v1783
  %v3140 = vsel %vm3084, %v3075, %v1785
  %v3141 = vsel %vm3084, %v3076, %v1787
  %v3142 = vsel %vm3084, %v3077, %v1789
  %v3143 = vsel %vm3084, %v3078, %v1791
  %v3144 = vsel %vm3084, %v3079, %v1793
  %v3145 = vsel %vm3084, %v3080, %v1795
  %v3146 = vsel %vm3084, %v3081, %v1797
  %v3147 = vsel %vm3084, %v3082, %v1799
  %v3148 = vsel %vm3084, %v3083, %v1801
  %vm3149 = vcmask 326656
  %v3150 = vsel %vm3149, %v3085, %v1931
  %v3151 = vsel %vm3149, %v3086, %v1933
  %v3152 = vsel %vm3149, %v3087, %v1935
  %v3153 = vsel %vm3149, %v3088, %v1937
  %v3154 = vsel %vm3149, %v3089, %v1939
  %v3155 = vsel %vm3149, %v3090, %v1941
  %v3156 = vsel %vm3149, %v3091, %v1943
  %v3157 = vsel %vm3149, %v3092, %v1945
  %v3158 = vsel %vm3149, %v3093, %v1947
  %v3159 = vsel %vm3149, %v3094, %v1949
  %v3160 = vsel %vm3149, %v3095, %v1951
  %v3161 = vsel %vm3149, %v3096, %v1953
  %v3162 = vsel %vm3149, %v3097, %v1955
  %v3163 = vsel %vm3149, %v3098, %v1957
  %v3164 = vsel %vm3149, %v3099, %v1959
  %v3165 = vsel %vm3149, %v3100, %v1961
  %v3166 = vsel %vm3149, %v3101, %v1963
  %v3167 = vsel %vm3149, %v3102, %v1965
  %v3168 = vsel %vm3149, %v3103, %v1967
  %v3169 = vsel %vm3149, %v3104, %v1969
  %v3170 = vsel %vm3149, %v3105, %v1971
  %v3171 = vsel %vm3149, %v3106, %v1973
  %v3172 = vsel %vm3149, %v3107, %v1975
  %v3173 = vsel %vm3149, %v3108, %v1977
  %v3174 = vsel %vm3149, %v3109, %v1979
  %v3175 = vsel %vm3149, %v3110, %v1981
  %v3176 = vsel %vm3149, %v3111, %v1983
  %v3177 = vsel %vm3149, %v3112, %v1985
  %v3178 = vsel %vm3149, %v3113, %v1987
  %v3179 = vsel %vm3149, %v3114, %v1989
  %v3180 = vsel %vm3149, %v3115, %v1991
  %v3181 = vsel %vm3149, %v3116, %v1993
  %v3182 = vsel %vm3149, %v3117, %v1995
  %v3183 = vsel %vm3149, %v3118, %v1997
  %v3184 = vsel %vm3149, %v3119, %v1999
  %v3185 = vsel %vm3149, %v3120, %v2001
  %v3186 = vsel %vm3149, %v3121, %v2003
  %v3187 = vsel %vm3149, %v3122, %v2005
  %v3188 = vsel %vm3149, %v3123, %v2007
  %v3189 = vsel %vm3149, %v3124, %v2009
  %v3190 = vsel %vm3149, %v3125, %v2011
  %v3191 = vsel %vm3149, %v3126, %v2013
  %v3192 = vsel %vm3149, %v3127, %v2015
  %v3193 = vsel %vm3149, %v3128, %v2017
  %v3194 = vsel %vm3149, %v3129, %v2019
  %v3195 = vsel %vm3149, %v3130, %v2021
  %v3196 = vsel %vm3149, %v3131, %v2023
  %v3197 = vsel %vm3149, %v3132, %v2025
  %v3198 = vsel %vm3149, %v3133, %v2027
  %v3199 = vsel %vm3149, %v3134, %v2029
  %v3200 = vsel %vm3149, %v3135, %v2031
  %v3201 = vsel %vm3149, %v3136, %v2033
  %v3202 = vsel %vm3149, %v3137, %v2035
  %v3203 = vsel %vm3149, %v3138, %v2037
  %v3204 = vsel %vm3149, %v3139, %v2039
  %v3205 = vsel %vm3149, %v3140, %v2041
  %v3206 = vsel %vm3149, %v3141, %v2043
  %v3207 = vsel %vm3149, %v3142, %v2045
  %v3208 = vsel %vm3149, %v3143, %v2047
  %v3209 = vsel %vm3149, %v3144, %v2049
  %v3210 = vsel %vm3149, %v3145, %v2051
  %v3211 = vsel %vm3149, %v3146, %v2053
  %v3212 = vsel %vm3149, %v3147, %v2055
  %v3213 = vsel %vm3149, %v3148, %v2057
  %vm3214 = vcmask 392192
  %v3215 = vsel %vm3214, %v3150, %v2187
  %v3216 = vsel %vm3214, %v3151, %v2189
  %v3217 = vsel %vm3214, %v3152, %v2191
  %v3218 = vsel %vm3214, %v3153, %v2193
  %v3219 = vsel %vm3214, %v3154, %v2195
  %v3220 = vsel %vm3214, %v3155, %v2197
  %v3221 = vsel %vm3214, %v3156, %v2199
  %v3222 = vsel %vm3214, %v3157, %v2201
  %v3223 = vsel %vm3214, %v3158, %v2203
  %v3224 = vsel %vm3214, %v3159, %v2205
  %v3225 = vsel %vm3214, %v3160, %v2207
  %v3226 = vsel %vm3214, %v3161, %v2209
  %v3227 = vsel %vm3214, %v3162, %v2211
  %v3228 = vsel %vm3214, %v3163, %v2213
  %v3229 = vsel %vm3214, %v3164, %v2215
  %v3230 = vsel %vm3214, %v3165, %v2217
  %v3231 = vsel %vm3214, %v3166, %v2219
  %v3232 = vsel %vm3214, %v3167, %v2221
  %v3233 = vsel %vm3214, %v3168, %v2223
  %v3234 = vsel %vm3214, %v3169, %v2225
  %v3235 = vsel %vm3214, %v3170, %v2227
  %v3236 = vsel %vm3214, %v3171, %v2229
  %v3237 = vsel %vm3214, %v3172, %v2231
  %v3238 = vsel %vm3214, %v3173, %v2233
  %v3239 = vsel %vm3214, %v3174, %v2235
  %v3240 = vsel %vm3214, %v3175, %v2237
  %v3241 = vsel %vm3214, %v3176, %v2239
  %v3242 = vsel %vm3214, %v3177, %v2241
  %v3243 = vsel %vm3214, %v3178, %v2243
  %v3244 = vsel %vm3214, %v3179, %v2245
  %v3245 = vsel %vm3214, %v3180, %v2247
  %v3246 = vsel %vm3214, %v3181, %v2249
  %v3247 = vsel %vm3214, %v3182, %v2251
  %v3248 = vsel %vm3214, %v3183, %v2253
  %v3249 = vsel %vm3214, %v3184, %v2255
  %v3250 = vsel %vm3214, %v3185, %v2257
  %v3251 = vsel %vm3214, %v3186, %v2259
  %v3252 = vsel %vm3214, %v3187, %v2261
  %v3253 = vsel %vm3214, %v3188, %v2263
  %v3254 = vsel %vm3214, %v3189, %v2265
  %v3255 = vsel %vm3214, %v3190, %v2267
  %v3256 = vsel %vm3214, %v3191, %v2269
  %v3257 = vsel %vm3214, %v3192, %v2271
  %v3258 = vsel %vm3214, %v3193, %v2273
  %v3259 = vsel %vm3214, %v3194, %v2275
  %v3260 = vsel %vm3214, %v3195, %v2277
  %v3261 = vsel %vm3214, %v3196, %v2279
  %v3262 = vsel %vm3214, %v3197, %v2281
  %v3263 = vsel %vm3214, %v3198, %v2283
  %v3264 = vsel %vm3214, %v3199, %v2285
  %v3265 = vsel %vm3214, %v3200, %v2287
  %v3266 = vsel %vm3214, %v3201, %v2289
  %v3267 = vsel %vm3214, %v3202, %v2291
  %v3268 = vsel %vm3214, %v3203, %v2293
  %v3269 = vsel %vm3214, %v3204, %v2295
  %v3270 = vsel %vm3214, %v3205, %v2297
  %v3271 = vsel %vm3214, %v3206, %v2299
  %v3272 = vsel %vm3214, %v3207, %v2301
  %v3273 = vsel %vm3214, %v3208, %v2303
  %v3274 = vsel %vm3214, %v3209, %v2305
  %v3275 = vsel %vm3214, %v3210, %v2307
  %v3276 = vsel %vm3214, %v3211, %v2309
  %v3277 = vsel %vm3214, %v3212, %v2311
  %v3278 = vsel %vm3214, %v3213, %v2313
  %vm3279 = vcmask 457728
  %v3280 = vsel %vm3279, %v3215, %v2443
  %v3281 = vsel %vm3279, %v3216, %v2445
  %v3282 = vsel %vm3279, %v3217, %v2447
  %v3283 = vsel %vm3279, %v3218, %v2449
  %v3284 = vsel %vm3279, %v3219, %v2451
  %v3285 = vsel %vm3279, %v3220, %v2453
  %v3286 = vsel %vm3279, %v3221, %v2455
  %v3287 = vsel %vm3279, %v3222, %v2457
  %v3288 = vsel %vm3279, %v3223, %v2459
  %v3289 = vsel %vm3279, %v3224, %v2461
  %v3290 = vsel %vm3279, %v3225, %v2463
  %v3291 = vsel %vm3279, %v3226, %v2465
  %v3292 = vsel %vm3279, %v3227, %v2467
  %v3293 = vsel %vm3279, %v3228, %v2469
  %v3294 = vsel %vm3279, %v3229, %v2471
  %v3295 = vsel %vm3279, %v3230, %v2473
  %v3296 = vsel %vm3279, %v3231, %v2475
  %v3297 = vsel %vm3279, %v3232, %v2477
  %v3298 = vsel %vm3279, %v3233, %v2479
  %v3299 = vsel %vm3279, %v3234, %v2481
  %v3300 = vsel %vm3279, %v3235, %v2483
  %v3301 = vsel %vm3279, %v3236, %v2485
  %v3302 = vsel %vm3279, %v3237, %v2487
  %v3303 = vsel %vm3279, %v3238, %v2489
  %v3304 = vsel %vm3279, %v3239, %v2491
  %v3305 = vsel %vm3279, %v3240, %v2493
  %v3306 = vsel %vm3279, %v3241, %v2495
  %v3307 = vsel %vm3279, %v3242, %v2497
  %v3308 = vsel %vm3279, %v3243, %v2499
  %v3309 = vsel %vm3279, %v3244, %v2501
  %v3310 = vsel %vm3279, %v3245, %v2503
  %v3311 = vsel %vm3279, %v3246, %v2505
  %v3312 = vsel %vm3279, %v3247, %v2507
  %v3313 = vsel %vm3279, %v3248, %v2509
  %v3314 = vsel %vm3279, %v3249, %v2511
  %v3315 = vsel %vm3279, %v3250, %v2513
  %v3316 = vsel %vm3279, %v3251, %v2515
  %v3317 = vsel %vm3279, %v3252, %v2517
  %v3318 = vsel %vm3279, %v3253, %v2519
  %v3319 = vsel %vm3279, %v3254, %v2521
  %v3320 = vsel %vm3279, %v3255, %v2523
  %v3321 = vsel %vm3279, %v3256, %v2525
  %v3322 = vsel %vm3279, %v3257, %v2527
  %v3323 = vsel %vm3279, %v3258, %v2529
  %v3324 = vsel %vm3279, %v3259, %v2531
  %v3325 = vsel %vm3279, %v3260, %v2533
  %v3326 = vsel %vm3279, %v3261, %v2535
  %v3327 = vsel %vm3279, %v3262, %v2537
  %v3328 = vsel %vm3279, %v3263, %v2539
  %v3329 = vsel %vm3279, %v3264, %v2541
  %v3330 = vsel %vm3279, %v3265, %v2543
  %v3331 = vsel %vm3279, %v3266, %v2545
  %v3332 = vsel %vm3279, %v3267, %v2547
  %v3333 = vsel %vm3279, %v3268, %v2549
  %v3334 = vsel %vm3279, %v3269, %v2551
  %v3335 = vsel %vm3279, %v3270, %v2553
  %v3336 = vsel %vm3279, %v3271, %v2555
  %v3337 = vsel %vm3279, %v3272, %v2557
  %v3338 = vsel %vm3279, %v3273, %v2559
  %v3339 = vsel %vm3279, %v3274, %v2561
  %v3340 = vsel %vm3279, %v3275, %v2563
  %v3341 = vsel %vm3279, %v3276, %v2565
  %v3342 = vsel %vm3279, %v3277, %v2567
  %v3343 = vsel %vm3279, %v3278, %v2569
  %vm3344 = vcmask 523264
  %v3345 = vsel %vm3344, %v3280, %v2699
  %v3346 = vsel %vm3344, %v3281, %v2701
  %v3347 = vsel %vm3344, %v3282, %v2703
  %v3348 = vsel %vm3344, %v3283, %v2705
  %v3349 = vsel %vm3344, %v3284, %v2707
  %v3350 = vsel %vm3344, %v3285, %v2709
  %v3351 = vsel %vm3344, %v3286, %v2711
  %v3352 = vsel %vm3344, %v3287, %v2713
  %v3353 = vsel %vm3344, %v3288, %v2715
  %v3354 = vsel %vm3344, %v3289, %v2717
  %v3355 = vsel %vm3344, %v3290, %v2719
  %v3356 = vsel %vm3344, %v3291, %v2721
  %v3357 = vsel %vm3344, %v3292, %v2723
  %v3358 = vsel %vm3344, %v3293, %v2725
  %v3359 = vsel %vm3344, %v3294, %v2727
  %v3360 = vsel %vm3344, %v3295, %v2729
  %v3361 = vsel %vm3344, %v3296, %v2731
  %v3362 = vsel %vm3344, %v3297, %v2733
  %v3363 = vsel %vm3344, %v3298, %v2735
  %v3364 = vsel %vm3344, %v3299, %v2737
  %v3365 = vsel %vm3344, %v3300, %v2739
  %v3366 = vsel %vm3344, %v3301, %v2741
  %v3367 = vsel %vm3344, %v3302, %v2743
  %v3368 = vsel %vm3344, %v3303, %v2745
  %v3369 = vsel %vm3344, %v3304, %v2747
  %v3370 = vsel %vm3344, %v3305, %v2749
  %v3371 = vsel %vm3344, %v3306, %v2751
  %v3372 = vsel %vm3344, %v3307, %v2753
  %v3373 = vsel %vm3344, %v3308, %v2755
  %v3374 = vsel %vm3344, %v3309, %v2757
  %v3375 = vsel %vm3344, %v3310, %v2759
  %v3376 = vsel %vm3344, %v3311, %v2761
  %v3377 = vsel %vm3344, %v3312, %v2763
  %v3378 = vsel %vm3344, %v3313, %v2765
  %v3379 = vsel %vm3344, %v3314, %v2767
  %v3380 = vsel %vm3344, %v3315, %v2769
  %v3381 = vsel %vm3344, %v3316, %v2771
  %v3382 = vsel %vm3344, %v3317, %v2773
  %v3383 = vsel %vm3344, %v3318, %v2775
  %v3384 = vsel %vm3344, %v3319, %v2777
  %v3385 = vsel %vm3344, %v3320, %v2779
  %v3386 = vsel %vm3344, %v3321, %v2781
  %v3387 = vsel %vm3344, %v3322, %v2783
  %v3388 = vsel %vm3344, %v3323, %v2785
  %v3389 = vsel %vm3344, %v3324, %v2787
  %v3390 = vsel %vm3344, %v3325, %v2789
  %v3391 = vsel %vm3344, %v3326, %v2791
  %v3392 = vsel %vm3344, %v3327, %v2793
  %v3393 = vsel %vm3344, %v3328, %v2795
  %v3394 = vsel %vm3344, %v3329, %v2797
  %v3395 = vsel %vm3344, %v3330, %v2799
  %v3396 = vsel %vm3344, %v3331, %v2801
  %v3397 = vsel %vm3344, %v3332, %v2803
  %v3398 = vsel %vm3344, %v3333, %v2805
  %v3399 = vsel %vm3344, %v3334, %v2807
  %v3400 = vsel %vm3344, %v3335, %v2809
  %v3401 = vsel %vm3344, %v3336, %v2811
  %v3402 = vsel %vm3344, %v3337, %v2813
  %v3403 = vsel %vm3344, %v3338, %v2815
  %v3404 = vsel %vm3344, %v3339, %v2817
  %v3405 = vsel %vm3344, %v3340, %v2819
  %v3406 = vsel %vm3344, %v3341, %v2821
  %v3407 = vsel %vm3344, %v3342, %v2823
  %v3408 = vsel %vm3344, %v3343, %v2825
  %v3409 = vld [vmem:[%s1] sm:$0xff]
  %v3410 = vld [vmem:[%s1 + $0x8] sm:$0xff]
  %v3411 = vld [vmem:[%s1 + $0x10] sm:$0xff]
  %v3412 = vld [vmem:[%s1 + $0x18] sm:$0xff]
  %v3413 = vld [vmem:[%s1 + $0x20] sm:$0xff]
  %v3414 = vld [vmem:[%s1 + $0x28] sm:$0xff]
  %v3415 = vld [vmem:[%s1 + $0x30] sm:$0xff]
  %v3416 = vld [vmem:[%s1 + $0x38] sm:$0xff]
  %v3417 = vld [vmem:[%s1 + $0x40] sm:$0xff]
  %vm3418 = vcmask 588800
  %v3420 = vsel %vm3418, %v3345, 0
  %v3423 = vsel %vm3418, %v3346, 0
  %v3426 = vsel %vm3418, %v3347, 0
  %v3429 = vsel %vm3418, %v3348, 0
  %v3432 = vsel %vm3418, %v3349, 0
  %v3435 = vsel %vm3418, %v3350, 0
  %v3438 = vsel %vm3418, %v3351, 0
  %v3441 = vsel %vm3418, %v3352, 0
  %v3444 = vsel %vm3418, %v3353, 0
  %v3447 = vsel %vm3418, %v3354, 0
  %v3450 = vsel %vm3418, %v3355, 0
  %v3453 = vsel %vm3418, %v3356, 0
  %v3456 = vsel %vm3418, %v3357, 0
  %v3459 = vsel %vm3418, %v3358, 0
  %v3462 = vsel %vm3418, %v3359, 0
  %v3465 = vsel %vm3418, %v3360, 0
  %v3468 = vsel %vm3418, %v3361, 0
  %v3471 = vsel %vm3418, %v3362, 0
  %v3474 = vsel %vm3418, %v3363, 0
  %v3477 = vsel %vm3418, %v3364, 0
  %v3480 = vsel %vm3418, %v3365, 0
  %v3483 = vsel %vm3418, %v3366, 0
  %v3486 = vsel %vm3418, %v3367, 0
  %v3489 = vsel %vm3418, %v3368, 0
  %v3492 = vsel %vm3418, %v3369, 0
  %v3495 = vsel %vm3418, %v3370, 0
  %v3498 = vsel %vm3418, %v3371, 0
  %v3501 = vsel %vm3418, %v3372, 0
  %v3504 = vsel %vm3418, %v3373, 0
  %v3507 = vsel %vm3418, %v3374, 0
  %v3510 = vsel %vm3418, %v3375, 0
  %v3513 = vsel %vm3418, %v3376, 0
  %v3516 = vsel %vm3418, %v3377, 0
  %v3519 = vsel %vm3418, %v3378, 0
  %v3522 = vsel %vm3418, %v3379, 0
  %v3525 = vsel %vm3418, %v3380, 0
  %v3528 = vsel %vm3418, %v3381, 0
  %v3531 = vsel %vm3418, %v3382, 0
  %v3534 = vsel %vm3418, %v3383, 0
  %v3537 = vsel %vm3418, %v3384, 0
  %v3540 = vsel %vm3418, %v3385, 0
  %v3543 = vsel %vm3418, %v3386, 0
  %v3546 = vsel %vm3418, %v3387, 0
  %v3549 = vsel %vm3418, %v3388, 0
  %v3552 = vsel %vm3418, %v3389, 0
  %v3555 = vsel %vm3418, %v3390, 0
  %v3558 = vsel %vm3418, %v3391, 0
  %v3561 = vsel %vm3418, %v3392, 0
  %v3564 = vsel %vm3418, %v3393, 0
  %v3567 = vsel %vm3418, %v3394, 0
  %v3570 = vsel %vm3418, %v3395, 0
  %v3573 = vsel %vm3418, %v3396, 0
  %v3576 = vsel %vm3418, %v3397, 0
  %v3579 = vsel %vm3418, %v3398, 0
  %v3582 = vsel %vm3418, %v3399, 0
  %v3585 = vsel %vm3418, %v3400, 0
  %v3588 = vsel %vm3418, %v3401, 0
  %v3591 = vsel %vm3418, %v3402, 0
  %v3594 = vsel %vm3418, %v3403, 0
  %v3597 = vsel %vm3418, %v3404, 0
  %v3600 = vsel %vm3418, %v3405, 0
  %v3603 = vsel %vm3418, %v3406, 0
  %v3606 = vsel %vm3418, %v3407, 0
  %v3609 = vsel %vm3418, %v3408, 0
  %3611 = vmatpush.msra.mxu0 0.0
  %3612 = vmatpush.msra.mxu0 0.0
  %3613 = vmatpush.msra.mxu0 0.0
  %3614 = vmatpush.msra.mxu0 0.0
  %3615 = vmatpush.msra.mxu0 0.0
  %3616 = vmatpush.msra.mxu0 0.0
  %3617 = vmatpush.msra.mxu0 0.0
  %3618 = vmatpush.msra.mxu0 %v3417
  %3619 = vmatpush.msra.mxu0 %v3416
  %3620 = vmatpush.msra.mxu0 %v3415
  %3621 = vmatpush.msra.mxu0 %v3414
  %3622 = vmatpush.msra.mxu0 %v3413
  %3623 = vmatpush.msra.mxu0 %v3412
  %3624 = vmatpush.msra.mxu0 %v3411
  %3625 = vmatpush.msra.mxu0 %v3410
  %3626 = vmatpush.msra.mxu0 %v3409
  %3627 = vmatmul.f32.gmra.mxu0 %v3420
  %v3628 = vpop.f32.mrf.mxu0
  %v3629 = vadd.f32 0.0, %v3628
  %3630 = vmatmul.f32.gmra.mxu0 %v3423
  %v3631 = vpop.f32.mrf.mxu0
  %v3632 = vadd.f32 0.0, %v3631
  %3633 = vmatmul.f32.gmra.mxu0 %v3426
  %v3634 = vpop.f32.mrf.mxu0
  %v3635 = vadd.f32 0.0, %v3634
  %3636 = vmatmul.f32.gmra.mxu0 %v3429
  %v3637 = vpop.f32.mrf.mxu0
  %v3638 = vadd.f32 0.0, %v3637
  %3639 = vmatmul.f32.gmra.mxu0 %v3432
  %v3640 = vpop.f32.mrf.mxu0
  %v3641 = vadd.f32 0.0, %v3640
  %3642 = vmatmul.f32.gmra.mxu0 %v3435
  %v3643 = vpop.f32.mrf.mxu0
  %v3644 = vadd.f32 0.0, %v3643
  %3645 = vmatmul.f32.gmra.mxu0 %v3438
  %v3646 = vpop.f32.mrf.mxu0
  %v3647 = vadd.f32 0.0, %v3646
  %3648 = vmatmul.f32.gmra.mxu0 %v3441
  %v3649 = vpop.f32.mrf.mxu0
  %v3650 = vadd.f32 0.0, %v3649
  %3651 = vmatmul.f32.gmra.mxu0 %v3444
  %v3652 = vpop.f32.mrf.mxu0
  %v3653 = vadd.f32 0.0, %v3652
  %3654 = vmatmul.f32.gmra.mxu0 %v3447
  %v3655 = vpop.f32.mrf.mxu0
  %v3656 = vadd.f32 0.0, %v3655
  %3657 = vmatmul.f32.gmra.mxu0 %v3450
  %v3658 = vpop.f32.mrf.mxu0
  %v3659 = vadd.f32 0.0, %v3658
  %3660 = vmatmul.f32.gmra.mxu0 %v3453
  %v3661 = vpop.f32.mrf.mxu0
  %v3662 = vadd.f32 0.0, %v3661
  %3663 = vmatmul.f32.gmra.mxu0 %v3456
  %v3664 = vpop.f32.mrf.mxu0
  %v3665 = vadd.f32 0.0, %v3664
  %3666 = vmatmul.f32.gmra.mxu0 %v3459
  %v3667 = vpop.f32.mrf.mxu0
  %v3668 = vadd.f32 0.0, %v3667
  %3669 = vmatmul.f32.gmra.mxu0 %v3462
  %v3670 = vpop.f32.mrf.mxu0
  %v3671 = vadd.f32 0.0, %v3670
  %3672 = vmatmul.f32.gmra.mxu0 %v3465
  %v3673 = vpop.f32.mrf.mxu0
  %v3674 = vadd.f32 0.0, %v3673
  %3675 = vmatmul.f32.gmra.mxu0 %v3468
  %v3676 = vpop.f32.mrf.mxu0
  %v3677 = vadd.f32 0.0, %v3676
  %3678 = vmatmul.f32.gmra.mxu0 %v3471
  %v3679 = vpop.f32.mrf.mxu0
  %v3680 = vadd.f32 0.0, %v3679
  %3681 = vmatmul.f32.gmra.mxu0 %v3474
  %v3682 = vpop.f32.mrf.mxu0
  %v3683 = vadd.f32 0.0, %v3682
  %3684 = vmatmul.f32.gmra.mxu0 %v3477
  %v3685 = vpop.f32.mrf.mxu0
  %v3686 = vadd.f32 0.0, %v3685
  %3687 = vmatmul.f32.gmra.mxu0 %v3480
  %v3688 = vpop.f32.mrf.mxu0
  %v3689 = vadd.f32 0.0, %v3688
  %3690 = vmatmul.f32.gmra.mxu0 %v3483
  %v3691 = vpop.f32.mrf.mxu0
  %v3692 = vadd.f32 0.0, %v3691
  %3693 = vmatmul.f32.gmra.mxu0 %v3486
  %v3694 = vpop.f32.mrf.mxu0
  %v3695 = vadd.f32 0.0, %v3694
  %3696 = vmatmul.f32.gmra.mxu0 %v3489
  %v3697 = vpop.f32.mrf.mxu0
  %v3698 = vadd.f32 0.0, %v3697
  %3699 = vmatmul.f32.gmra.mxu0 %v3492
  %v3700 = vpop.f32.mrf.mxu0
  %v3701 = vadd.f32 0.0, %v3700
  %3702 = vmatmul.f32.gmra.mxu0 %v3495
  %v3703 = vpop.f32.mrf.mxu0
  %v3704 = vadd.f32 0.0, %v3703
  %3705 = vmatmul.f32.gmra.mxu0 %v3498
  %v3706 = vpop.f32.mrf.mxu0
  %v3707 = vadd.f32 0.0, %v3706
  %3708 = vmatmul.f32.gmra.mxu0 %v3501
  %v3709 = vpop.f32.mrf.mxu0
  %v3710 = vadd.f32 0.0, %v3709
  %3711 = vmatmul.f32.gmra.mxu0 %v3504
  %v3712 = vpop.f32.mrf.mxu0
  %v3713 = vadd.f32 0.0, %v3712
  %3714 = vmatmul.f32.gmra.mxu0 %v3507
  %v3715 = vpop.f32.mrf.mxu0
  %v3716 = vadd.f32 0.0, %v3715
  %3717 = vmatmul.f32.gmra.mxu0 %v3510
  %v3718 = vpop.f32.mrf.mxu0
  %v3719 = vadd.f32 0.0, %v3718
  %3720 = vmatmul.f32.gmra.mxu0 %v3513
  %v3721 = vpop.f32.mrf.mxu0
  %v3722 = vadd.f32 0.0, %v3721
  %3723 = vmatmul.f32.gmra.mxu0 %v3516
  %v3724 = vpop.f32.mrf.mxu0
  %v3725 = vadd.f32 0.0, %v3724
  %3726 = vmatmul.f32.gmra.mxu0 %v3519
  %v3727 = vpop.f32.mrf.mxu0
  %v3728 = vadd.f32 0.0, %v3727
  %3729 = vmatmul.f32.gmra.mxu0 %v3522
  %v3730 = vpop.f32.mrf.mxu0
  %v3731 = vadd.f32 0.0, %v3730
  %3732 = vmatmul.f32.gmra.mxu0 %v3525
  %v3733 = vpop.f32.mrf.mxu0
  %v3734 = vadd.f32 0.0, %v3733
  %3735 = vmatmul.f32.gmra.mxu0 %v3528
  %v3736 = vpop.f32.mrf.mxu0
  %v3737 = vadd.f32 0.0, %v3736
  %3738 = vmatmul.f32.gmra.mxu0 %v3531
  %v3739 = vpop.f32.mrf.mxu0
  %v3740 = vadd.f32 0.0, %v3739
  %3741 = vmatmul.f32.gmra.mxu0 %v3534
  %v3742 = vpop.f32.mrf.mxu0
  %v3743 = vadd.f32 0.0, %v3742
  %3744 = vmatmul.f32.gmra.mxu0 %v3537
  %v3745 = vpop.f32.mrf.mxu0
  %v3746 = vadd.f32 0.0, %v3745
  %3747 = vmatmul.f32.gmra.mxu0 %v3540
  %v3748 = vpop.f32.mrf.mxu0
  %v3749 = vadd.f32 0.0, %v3748
  %3750 = vmatmul.f32.gmra.mxu0 %v3543
  %v3751 = vpop.f32.mrf.mxu0
  %v3752 = vadd.f32 0.0, %v3751
  %3753 = vmatmul.f32.gmra.mxu0 %v3546
  %v3754 = vpop.f32.mrf.mxu0
  %v3755 = vadd.f32 0.0, %v3754
  %3756 = vmatmul.f32.gmra.mxu0 %v3549
  %v3757 = vpop.f32.mrf.mxu0
  %v3758 = vadd.f32 0.0, %v3757
  %3759 = vmatmul.f32.gmra.mxu0 %v3552
  %v3760 = vpop.f32.mrf.mxu0
  %v3761 = vadd.f32 0.0, %v3760
  %3762 = vmatmul.f32.gmra.mxu0 %v3555
  %v3763 = vpop.f32.mrf.mxu0
  %v3764 = vadd.f32 0.0, %v3763
  %3765 = vmatmul.f32.gmra.mxu0 %v3558
  %v3766 = vpop.f32.mrf.mxu0
  %v3767 = vadd.f32 0.0, %v3766
  %3768 = vmatmul.f32.gmra.mxu0 %v3561
  %v3769 = vpop.f32.mrf.mxu0
  %v3770 = vadd.f32 0.0, %v3769
  %3771 = vmatmul.f32.gmra.mxu0 %v3564
  %v3772 = vpop.f32.mrf.mxu0
  %v3773 = vadd.f32 0.0, %v3772
  %3774 = vmatmul.f32.gmra.mxu0 %v3567
  %v3775 = vpop.f32.mrf.mxu0
  %v3776 = vadd.f32 0.0, %v3775
  %3777 = vmatmul.f32.gmra.mxu0 %v3570
  %v3778 = vpop.f32.mrf.mxu0
  %v3779 = vadd.f32 0.0, %v3778
  %3780 = vmatmul.f32.gmra.mxu0 %v3573
  %v3781 = vpop.f32.mrf.mxu0
  %v3782 = vadd.f32 0.0, %v3781
  %3783 = vmatmul.f32.gmra.mxu0 %v3576
  %v3784 = vpop.f32.mrf.mxu0
  %v3785 = vadd.f32 0.0, %v3784
  %3786 = vmatmul.f32.gmra.mxu0 %v3579
  %v3787 = vpop.f32.mrf.mxu0
  %v3788 = vadd.f32 0.0, %v3787
  %3789 = vmatmul.f32.gmra.mxu0 %v3582
  %v3790 = vpop.f32.mrf.mxu0
  %v3791 = vadd.f32 0.0, %v3790
  %3792 = vmatmul.f32.gmra.mxu0 %v3585
  %v3793 = vpop.f32.mrf.mxu0
  %v3794 = vadd.f32 0.0, %v3793
  %3795 = vmatmul.f32.gmra.mxu0 %v3588
  %v3796 = vpop.f32.mrf.mxu0
  %v3797 = vadd.f32 0.0, %v3796
  %3798 = vmatmul.f32.gmra.mxu0 %v3591
  %v3799 = vpop.f32.mrf.mxu0
  %v3800 = vadd.f32 0.0, %v3799
  %3801 = vmatmul.f32.gmra.mxu0 %v3594
  %v3802 = vpop.f32.mrf.mxu0
  %v3803 = vadd.f32 0.0, %v3802
  %3804 = vmatmul.f32.gmra.mxu0 %v3597
  %v3805 = vpop.f32.mrf.mxu0
  %v3806 = vadd.f32 0.0, %v3805
  %3807 = vmatmul.f32.gmra.mxu0 %v3600
  %v3808 = vpop.f32.mrf.mxu0
  %v3809 = vadd.f32 0.0, %v3808
  %3810 = vmatmul.f32.gmra.mxu0 %v3603
  %v3811 = vpop.f32.mrf.mxu0
  %v3812 = vadd.f32 0.0, %v3811
  %3813 = vmatmul.f32.gmra.mxu0 %v3606
  %v3814 = vpop.f32.mrf.mxu0
  %v3815 = vadd.f32 0.0, %v3814
  %3816 = vmatmul.f32.gmra.mxu0 %v3609
  %v3817 = vpop.f32.mrf.mxu0
  %v3818 = vadd.f32 0.0, %v3817
  %3819 = vdwg.mxu0
  %v3820 = vsel %vm26, %v3629, 0.0
  %v3821 = vsel %vm26, %v3632, 0.0
  %v3822 = vadd.f32 %v3820, %v3821
  %v3823 = vsel %vm26, %v3635, 0.0
  %v3824 = vadd.f32 %v3822, %v3823
  %v3825 = vsel %vm26, %v3638, 0.0
  %v3826 = vadd.f32 %v3824, %v3825
  %v3827 = vsel %vm26, %v3641, 0.0
  %v3828 = vadd.f32 %v3826, %v3827
  %v3829 = vsel %vm26, %v3644, 0.0
  %v3830 = vadd.f32 %v3828, %v3829
  %v3831 = vsel %vm26, %v3647, 0.0
  %v3832 = vadd.f32 %v3830, %v3831
  %v3833 = vsel %vm26, %v3650, 0.0
  %v3834 = vadd.f32 %v3832, %v3833
  %v3835 = vsel %vm26, %v3653, 0.0
  %v3836 = vadd.f32 %v3834, %v3835
  %v3837 = vsel %vm26, %v3656, 0.0
  %v3838 = vadd.f32 %v3836, %v3837
  %v3839 = vsel %vm26, %v3659, 0.0
  %v3840 = vadd.f32 %v3838, %v3839
  %v3841 = vsel %vm26, %v3662, 0.0
  %v3842 = vadd.f32 %v3840, %v3841
  %v3843 = vsel %vm26, %v3665, 0.0
  %v3844 = vadd.f32 %v3842, %v3843
  %v3845 = vsel %vm26, %v3668, 0.0
  %v3846 = vadd.f32 %v3844, %v3845
  %v3847 = vsel %vm26, %v3671, 0.0
  %v3848 = vadd.f32 %v3846, %v3847
  %v3849 = vsel %vm26, %v3674, 0.0
  %v3850 = vadd.f32 %v3848, %v3849
  %v3851 = vsel %vm26, %v3677, 0.0
  %v3852 = vadd.f32 %v3850, %v3851
  %v3853 = vsel %vm26, %v3680, 0.0
  %v3854 = vadd.f32 %v3852, %v3853
  %v3855 = vsel %vm26, %v3683, 0.0
  %v3856 = vadd.f32 %v3854, %v3855
  %v3857 = vsel %vm26, %v3686, 0.0
  %v3858 = vadd.f32 %v3856, %v3857
  %v3859 = vsel %vm26, %v3689, 0.0
  %v3860 = vadd.f32 %v3858, %v3859
  %v3861 = vsel %vm26, %v3692, 0.0
  %v3862 = vadd.f32 %v3860, %v3861
  %v3863 = vsel %vm26, %v3695, 0.0
  %v3864 = vadd.f32 %v3862, %v3863
  %v3865 = vsel %vm26, %v3698, 0.0
  %v3866 = vadd.f32 %v3864, %v3865
  %v3867 = vsel %vm26, %v3701, 0.0
  %v3868 = vadd.f32 %v3866, %v3867
  %v3869 = vsel %vm26, %v3704, 0.0
  %v3870 = vadd.f32 %v3868, %v3869
  %v3871 = vsel %vm26, %v3707, 0.0
  %v3872 = vadd.f32 %v3870, %v3871
  %v3873 = vsel %vm26, %v3710, 0.0
  %v3874 = vadd.f32 %v3872, %v3873
  %v3875 = vsel %vm26, %v3713, 0.0
  %v3876 = vadd.f32 %v3874, %v3875
  %v3877 = vsel %vm26, %v3716, 0.0
  %v3878 = vadd.f32 %v3876, %v3877
  %v3879 = vsel %vm26, %v3719, 0.0
  %v3880 = vadd.f32 %v3878, %v3879
  %v3881 = vsel %vm26, %v3722, 0.0
  %v3882 = vadd.f32 %v3880, %v3881
  %v3883 = vsel %vm26, %v3725, 0.0
  %v3884 = vadd.f32 %v3882, %v3883
  %v3885 = vsel %vm26, %v3728, 0.0
  %v3886 = vadd.f32 %v3884, %v3885
  %v3887 = vsel %vm26, %v3731, 0.0
  %v3888 = vadd.f32 %v3886, %v3887
  %v3889 = vsel %vm26, %v3734, 0.0
  %v3890 = vadd.f32 %v3888, %v3889
  %v3891 = vsel %vm26, %v3737, 0.0
  %v3892 = vadd.f32 %v3890, %v3891
  %v3893 = vsel %vm26, %v3740, 0.0
  %v3894 = vadd.f32 %v3892, %v3893
  %v3895 = vsel %vm26, %v3743, 0.0
  %v3896 = vadd.f32 %v3894, %v3895
  %v3897 = vsel %vm26, %v3746, 0.0
  %v3898 = vadd.f32 %v3896, %v3897
  %v3899 = vsel %vm26, %v3749, 0.0
  %v3900 = vadd.f32 %v3898, %v3899
  %v3901 = vsel %vm26, %v3752, 0.0
  %v3902 = vadd.f32 %v3900, %v3901
  %v3903 = vsel %vm26, %v3755, 0.0
  %v3904 = vadd.f32 %v3902, %v3903
  %v3905 = vsel %vm26, %v3758, 0.0
  %v3906 = vadd.f32 %v3904, %v3905
  %v3907 = vsel %vm26, %v3761, 0.0
  %v3908 = vadd.f32 %v3906, %v3907
  %v3909 = vsel %vm26, %v3764, 0.0
  %v3910 = vadd.f32 %v3908, %v3909
  %v3911 = vsel %vm26, %v3767, 0.0
  %v3912 = vadd.f32 %v3910, %v3911
  %v3913 = vsel %vm26, %v3770, 0.0
  %v3914 = vadd.f32 %v3912, %v3913
  %v3915 = vsel %vm26, %v3773, 0.0
  %v3916 = vadd.f32 %v3914, %v3915
  %v3917 = vsel %vm26, %v3776, 0.0
  %v3918 = vadd.f32 %v3916, %v3917
  %v3919 = vsel %vm26, %v3779, 0.0
  %v3920 = vadd.f32 %v3918, %v3919
  %v3921 = vsel %vm26, %v3782, 0.0
  %v3922 = vadd.f32 %v3920, %v3921
  %v3923 = vsel %vm26, %v3785, 0.0
  %v3924 = vadd.f32 %v3922, %v3923
  %v3925 = vsel %vm26, %v3788, 0.0
  %v3926 = vadd.f32 %v3924, %v3925
  %v3927 = vsel %vm26, %v3791, 0.0
  %v3928 = vadd.f32 %v3926, %v3927
  %v3929 = vsel %vm26, %v3794, 0.0
  %v3930 = vadd.f32 %v3928, %v3929
  %v3931 = vsel %vm26, %v3797, 0.0
  %v3932 = vadd.f32 %v3930, %v3931
  %v3933 = vsel %vm26, %v3800, 0.0
  %v3934 = vadd.f32 %v3932, %v3933
  %v3935 = vsel %vm26, %v3803, 0.0
  %v3936 = vadd.f32 %v3934, %v3935
  %v3937 = vsel %vm26, %v3806, 0.0
  %v3938 = vadd.f32 %v3936, %v3937
  %v3939 = vsel %vm26, %v3809, 0.0
  %v3940 = vadd.f32 %v3938, %v3939
  %v3941 = vsel %vm26, %v3812, 0.0
  %v3942 = vadd.f32 %v3940, %v3941
  %v3943 = vsel %vm26, %v3815, 0.0
  %v3944 = vadd.f32 %v3942, %v3943
  %v3945 = vsel %vm26, %v3818, 0.0
  %v3946 = vadd.f32 %v3944, %v3945
  %v3947 = vrot.slane %v3946, 4
  %v3948 = vadd.f32 %v3946, %v3947
  %v3949 = vrot.slane %v3948, 2
  %v3950 = vadd.f32 %v3948, %v3949
  %v3951 = vrot.slane %v3950, 1
  %v3952 = vadd.f32 %v3950, %v3951
  %v3953 = vmul.f32 %v3629, %v3629
  %v3954 = vmul.f32 %v3632, %v3632
  %v3955 = vmul.f32 %v3635, %v3635
  %v3956 = vmul.f32 %v3638, %v3638
  %v3957 = vmul.f32 %v3641, %v3641
  %v3958 = vmul.f32 %v3644, %v3644
  %v3959 = vmul.f32 %v3647, %v3647
  %v3960 = vmul.f32 %v3650, %v3650
  %v3961 = vmul.f32 %v3653, %v3653
  %v3962 = vmul.f32 %v3656, %v3656
  %v3963 = vmul.f32 %v3659, %v3659
  %v3964 = vmul.f32 %v3662, %v3662
  %v3965 = vmul.f32 %v3665, %v3665
  %v3966 = vmul.f32 %v3668, %v3668
  %v3967 = vmul.f32 %v3671, %v3671
  %v3968 = vmul.f32 %v3674, %v3674
  %v3969 = vmul.f32 %v3677, %v3677
  %v3970 = vmul.f32 %v3680, %v3680
  %v3971 = vmul.f32 %v3683, %v3683
  %v3972 = vmul.f32 %v3686, %v3686
  %v3973 = vmul.f32 %v3689, %v3689
  %v3974 = vmul.f32 %v3692, %v3692
  %v3975 = vmul.f32 %v3695, %v3695
  %v3976 = vmul.f32 %v3698, %v3698
  %v3977 = vmul.f32 %v3701, %v3701
  %v3978 = vmul.f32 %v3704, %v3704
  %v3979 = vmul.f32 %v3707, %v3707
  %v3980 = vmul.f32 %v3710, %v3710
  %v3981 = vmul.f32 %v3713, %v3713
  %v3982 = vmul.f32 %v3716, %v3716
  %v3983 = vmul.f32 %v3719, %v3719
  %v3984 = vmul.f32 %v3722, %v3722
  %v3985 = vmul.f32 %v3725, %v3725
  %v3986 = vmul.f32 %v3728, %v3728
  %v3987 = vmul.f32 %v3731, %v3731
  %v3988 = vmul.f32 %v3734, %v3734
  %v3989 = vmul.f32 %v3737, %v3737
  %v3990 = vmul.f32 %v3740, %v3740
  %v3991 = vmul.f32 %v3743, %v3743
  %v3992 = vmul.f32 %v3746, %v3746
  %v3993 = vmul.f32 %v3749, %v3749
  %v3994 = vmul.f32 %v3752, %v3752
  %v3995 = vmul.f32 %v3755, %v3755
  %v3996 = vmul.f32 %v3758, %v3758
  %v3997 = vmul.f32 %v3761, %v3761
  %v3998 = vmul.f32 %v3764, %v3764
  %v3999 = vmul.f32 %v3767, %v3767
  %v4000 = vmul.f32 %v3770, %v3770
  %v4001 = vmul.f32 %v3773, %v3773
  %v4002 = vmul.f32 %v3776, %v3776
  %v4003 = vmul.f32 %v3779, %v3779
  %v4004 = vmul.f32 %v3782, %v3782
  %v4005 = vmul.f32 %v3785, %v3785
  %v4006 = vmul.f32 %v3788, %v3788
  %v4007 = vmul.f32 %v3791, %v3791
  %v4008 = vmul.f32 %v3794, %v3794
  %v4009 = vmul.f32 %v3797, %v3797
  %v4010 = vmul.f32 %v3800, %v3800
  %v4011 = vmul.f32 %v3803, %v3803
  %v4012 = vmul.f32 %v3806, %v3806
  %v4013 = vmul.f32 %v3809, %v3809
  %v4014 = vmul.f32 %v3812, %v3812
  %v4015 = vmul.f32 %v3815, %v3815
  %v4016 = vmul.f32 %v3818, %v3818
  %v4017 = vsel %vm26, %v3953, 0.0
  %v4018 = vsel %vm26, %v3954, 0.0
  %v4019 = vadd.f32 %v4017, %v4018
  %v4020 = vsel %vm26, %v3955, 0.0
  %v4021 = vadd.f32 %v4019, %v4020
  %v4022 = vsel %vm26, %v3956, 0.0
  %v4023 = vadd.f32 %v4021, %v4022
  %v4024 = vsel %vm26, %v3957, 0.0
  %v4025 = vadd.f32 %v4023, %v4024
  %v4026 = vsel %vm26, %v3958, 0.0
  %v4027 = vadd.f32 %v4025, %v4026
  %v4028 = vsel %vm26, %v3959, 0.0
  %v4029 = vadd.f32 %v4027, %v4028
  %v4030 = vsel %vm26, %v3960, 0.0
  %v4031 = vadd.f32 %v4029, %v4030
  %v4032 = vsel %vm26, %v3961, 0.0
  %v4033 = vadd.f32 %v4031, %v4032
  %v4034 = vsel %vm26, %v3962, 0.0
  %v4035 = vadd.f32 %v4033, %v4034
  %v4036 = vsel %vm26, %v3963, 0.0
  %v4037 = vadd.f32 %v4035, %v4036
  %v4038 = vsel %vm26, %v3964, 0.0
  %v4039 = vadd.f32 %v4037, %v4038
  %v4040 = vsel %vm26, %v3965, 0.0
  %v4041 = vadd.f32 %v4039, %v4040
  %v4042 = vsel %vm26, %v3966, 0.0
  %v4043 = vadd.f32 %v4041, %v4042
  %v4044 = vsel %vm26, %v3967, 0.0
  %v4045 = vadd.f32 %v4043, %v4044
  %v4046 = vsel %vm26, %v3968, 0.0
  %v4047 = vadd.f32 %v4045, %v4046
  %v4048 = vsel %vm26, %v3969, 0.0
  %v4049 = vadd.f32 %v4047, %v4048
  %v4050 = vsel %vm26, %v3970, 0.0
  %v4051 = vadd.f32 %v4049, %v4050
  %v4052 = vsel %vm26, %v3971, 0.0
  %v4053 = vadd.f32 %v4051, %v4052
  %v4054 = vsel %vm26, %v3972, 0.0
  %v4055 = vadd.f32 %v4053, %v4054
  %v4056 = vsel %vm26, %v3973, 0.0
  %v4057 = vadd.f32 %v4055, %v4056
  %v4058 = vsel %vm26, %v3974, 0.0
  %v4059 = vadd.f32 %v4057, %v4058
  %v4060 = vsel %vm26, %v3975, 0.0
  %v4061 = vadd.f32 %v4059, %v4060
  %v4062 = vsel %vm26, %v3976, 0.0
  %v4063 = vadd.f32 %v4061, %v4062
  %v4064 = vsel %vm26, %v3977, 0.0
  %v4065 = vadd.f32 %v4063, %v4064
  %v4066 = vsel %vm26, %v3978, 0.0
  %v4067 = vadd.f32 %v4065, %v4066
  %v4068 = vsel %vm26, %v3979, 0.0
  %v4069 = vadd.f32 %v4067, %v4068
  %v4070 = vsel %vm26, %v3980, 0.0
  %v4071 = vadd.f32 %v4069, %v4070
  %v4072 = vsel %vm26, %v3981, 0.0
  %v4073 = vadd.f32 %v4071, %v4072
  %v4074 = vsel %vm26, %v3982, 0.0
  %v4075 = vadd.f32 %v4073, %v4074
  %v4076 = vsel %vm26, %v3983, 0.0
  %v4077 = vadd.f32 %v4075, %v4076
  %v4078 = vsel %vm26, %v3984, 0.0
  %v4079 = vadd.f32 %v4077, %v4078
  %v4080 = vsel %vm26, %v3985, 0.0
  %v4081 = vadd.f32 %v4079, %v4080
  %v4082 = vsel %vm26, %v3986, 0.0
  %v4083 = vadd.f32 %v4081, %v4082
  %v4084 = vsel %vm26, %v3987, 0.0
  %v4085 = vadd.f32 %v4083, %v4084
  %v4086 = vsel %vm26, %v3988, 0.0
  %v4087 = vadd.f32 %v4085, %v4086
  %v4088 = vsel %vm26, %v3989, 0.0
  %v4089 = vadd.f32 %v4087, %v4088
  %v4090 = vsel %vm26, %v3990, 0.0
  %v4091 = vadd.f32 %v4089, %v4090
  %v4092 = vsel %vm26, %v3991, 0.0
  %v4093 = vadd.f32 %v4091, %v4092
  %v4094 = vsel %vm26, %v3992, 0.0
  %v4095 = vadd.f32 %v4093, %v4094
  %v4096 = vsel %vm26, %v3993, 0.0
  %v4097 = vadd.f32 %v4095, %v4096
  %v4098 = vsel %vm26, %v3994, 0.0
  %v4099 = vadd.f32 %v4097, %v4098
  %v4100 = vsel %vm26, %v3995, 0.0
  %v4101 = vadd.f32 %v4099, %v4100
  %v4102 = vsel %vm26, %v3996, 0.0
  %v4103 = vadd.f32 %v4101, %v4102
  %v4104 = vsel %vm26, %v3997, 0.0
  %v4105 = vadd.f32 %v4103, %v4104
  %v4106 = vsel %vm26, %v3998, 0.0
  %v4107 = vadd.f32 %v4105, %v4106
  %v4108 = vsel %vm26, %v3999, 0.0
  %v4109 = vadd.f32 %v4107, %v4108
  %v4110 = vsel %vm26, %v4000, 0.0
  %v4111 = vadd.f32 %v4109, %v4110
  %v4112 = vsel %vm26, %v4001, 0.0
  %v4113 = vadd.f32 %v4111, %v4112
  %v4114 = vsel %vm26, %v4002, 0.0
  %v4115 = vadd.f32 %v4113, %v4114
  %v4116 = vsel %vm26, %v4003, 0.0
  %v4117 = vadd.f32 %v4115, %v4116
  %v4118 = vsel %vm26, %v4004, 0.0
  %v4119 = vadd.f32 %v4117, %v4118
  %v4120 = vsel %vm26, %v4005, 0.0
  %v4121 = vadd.f32 %v4119, %v4120
  %v4122 = vsel %vm26, %v4006, 0.0
  %v4123 = vadd.f32 %v4121, %v4122
  %v4124 = vsel %vm26, %v4007, 0.0
  %v4125 = vadd.f32 %v4123, %v4124
  %v4126 = vsel %vm26, %v4008, 0.0
  %v4127 = vadd.f32 %v4125, %v4126
  %v4128 = vsel %vm26, %v4009, 0.0
  %v4129 = vadd.f32 %v4127, %v4128
  %v4130 = vsel %vm26, %v4010, 0.0
  %v4131 = vadd.f32 %v4129, %v4130
  %v4132 = vsel %vm26, %v4011, 0.0
  %v4133 = vadd.f32 %v4131, %v4132
  %v4134 = vsel %vm26, %v4012, 0.0
  %v4135 = vadd.f32 %v4133, %v4134
  %v4136 = vsel %vm26, %v4013, 0.0
  %v4137 = vadd.f32 %v4135, %v4136
  %v4138 = vsel %vm26, %v4014, 0.0
  %v4139 = vadd.f32 %v4137, %v4138
  %v4140 = vsel %vm26, %v4015, 0.0
  %v4141 = vadd.f32 %v4139, %v4140
  %v4142 = vsel %vm26, %v4016, 0.0
  %v4143 = vadd.f32 %v4141, %v4142
  %v4144 = vrot.slane %v4143, 4
  %v4145 = vadd.f32 %v4143, %v4144
  %v4146 = vrot.slane %v4145, 2
  %v4147 = vadd.f32 %v4145, %v4146
  %v4148 = vrot.slane %v4147, 1
  %v4149 = vadd.f32 %v4147, %v4148
  %v4150 = vmul.f32 %v3952, 0.001953125
  %v4151 = vmul.f32 %v4149, 0.001953125
  %v4152 = vmul.f32 %v4150, %v4150
  %v4153 = vsub.f32 %v4151, %v4152
  %v4154 = vld [vmem:[%s2] sm:$0x1]
  %v4155 = vadd.f32 %v4153, 1e-05
  %v4156 = vrsqrt.pop %v4155
  %v4157 = vmul.f32 %v4156, %v4155
  %v4158 = vmul.f32 %v4157, %v4156
  %v4159 = vmul.f32 0.5, %v4158
  %v4160 = vsub.f32 1.5, %v4159
  %v4161 = vmul.f32 %v4156, %v4160
  %vm4162 = vweird.f32 %v4155
  %vm4163 = vweird.f32 %v4156
  %vm4164 = vmor %vm4162, %vm4163
  %v4165 = vsel %vm4164, %v4156, %v4161
  %v4166 = vmul.f32 %v4154, %v4165
  %v4167 = vld [vmem:[%s3] sm:$0x1]
  %v4168 = vmul.f32 %v4150, %v4166
  %v4169 = vsub.f32 %v4167, %v4168
  %v4171 = vperm.slane %v4166, 0
  %v4173 = vmul.f32 %v3629, %v4171
  %v4174 = vmul.f32 %v3632, %v4171
  %v4175 = vmul.f32 %v3635, %v4171
  %v4176 = vmul.f32 %v3638, %v4171
  %v4177 = vmul.f32 %v3641, %v4171
  %v4178 = vmul.f32 %v3644, %v4171
  %v4179 = vmul.f32 %v3647, %v4171
  %v4180 = vmul.f32 %v3650, %v4171
  %v4181 = vmul.f32 %v3653, %v4171
  %v4182 = vmul.f32 %v3656, %v4171
  %v4183 = vmul.f32 %v3659, %v4171
  %v4184 = vmul.f32 %v3662, %v4171
  %v4185 = vmul.f32 %v3665, %v4171
  %v4186 = vmul.f32 %v3668, %v4171
  %v4187 = vmul.f32 %v3671, %v4171
  %v4188 = vmul.f32 %v3674, %v4171
  %v4189 = vmul.f32 %v3677, %v4171
  %v4190 = vmul.f32 %v3680, %v4171
  %v4191 = vmul.f32 %v3683, %v4171
  %v4192 = vmul.f32 %v3686, %v4171
  %v4193 = vmul.f32 %v3689, %v4171
  %v4194 = vmul.f32 %v3692, %v4171
  %v4195 = vmul.f32 %v3695, %v4171
  %v4196 = vmul.f32 %v3698, %v4171
  %v4197 = vmul.f32 %v3701, %v4171
  %v4198 = vmul.f32 %v3704, %v4171
  %v4199 = vmul.f32 %v3707, %v4171
  %v4200 = vmul.f32 %v3710, %v4171
  %v4201 = vmul.f32 %v3713, %v4171
  %v4202 = vmul.f32 %v3716, %v4171
  %v4203 = vmul.f32 %v3719, %v4171
  %v4204 = vmul.f32 %v3722, %v4171
  %v4205 = vmul.f32 %v3725, %v4171
  %v4206 = vmul.f32 %v3728, %v4171
  %v4207 = vmul.f32 %v3731, %v4171
  %v4208 = vmul.f32 %v3734, %v4171
  %v4209 = vmul.f32 %v3737, %v4171
  %v4210 = vmul.f32 %v3740, %v4171
  %v4211 = vmul.f32 %v3743, %v4171
  %v4212 = vmul.f32 %v3746, %v4171
  %v4213 = vmul.f32 %v3749, %v4171
  %v4214 = vmul.f32 %v3752, %v4171
  %v4215 = vmul.f32 %v3755, %v4171
  %v4216 = vmul.f32 %v3758, %v4171
  %v4217 = vmul.f32 %v3761, %v4171
  %v4218 = vmul.f32 %v3764, %v4171
  %v4219 = vmul.f32 %v3767, %v4171
  %v4220 = vmul.f32 %v3770, %v4171
  %v4221 = vmul.f32 %v3773, %v4171
  %v4222 = vmul.f32 %v3776, %v4171
  %v4223 = vmul.f32 %v3779, %v4171
  %v4224 = vmul.f32 %v3782, %v4171
  %v4225 = vmul.f32 %v3785, %v4171
  %v4226 = vmul.f32 %v3788, %v4171
  %v4227 = vmul.f32 %v3791, %v4171
  %v4228 = vmul.f32 %v3794, %v4171
  %v4229 = vmul.f32 %v3797, %v4171
  %v4230 = vmul.f32 %v3800, %v4171
  %v4231 = vmul.f32 %v3803, %v4171
  %v4232 = vmul.f32 %v3806, %v4171
  %v4233 = vmul.f32 %v3809, %v4171
  %v4234 = vmul.f32 %v3812, %v4171
  %v4235 = vmul.f32 %v3815, %v4171
  %v4236 = vmul.f32 %v3818, %v4171
  %v4238 = vperm.slane %v4169, 0
  %v4240 = vadd.f32 %v4173, %v4238
  %v4241 = vadd.f32 %v4174, %v4238
  %v4242 = vadd.f32 %v4175, %v4238
  %v4243 = vadd.f32 %v4176, %v4238
  %v4244 = vadd.f32 %v4177, %v4238
  %v4245 = vadd.f32 %v4178, %v4238
  %v4246 = vadd.f32 %v4179, %v4238
  %v4247 = vadd.f32 %v4180, %v4238
  %v4248 = vadd.f32 %v4181, %v4238
  %v4249 = vadd.f32 %v4182, %v4238
  %v4250 = vadd.f32 %v4183, %v4238
  %v4251 = vadd.f32 %v4184, %v4238
  %v4252 = vadd.f32 %v4185, %v4238
  %v4253 = vadd.f32 %v4186, %v4238
  %v4254 = vadd.f32 %v4187, %v4238
  %v4255 = vadd.f32 %v4188, %v4238
  %v4256 = vadd.f32 %v4189, %v4238
  %v4257 = vadd.f32 %v4190, %v4238
  %v4258 = vadd.f32 %v4191, %v4238
  %v4259 = vadd.f32 %v4192, %v4238
  %v4260 = vadd.f32 %v4193, %v4238
  %v4261 = vadd.f32 %v4194, %v4238
  %v4262 = vadd.f32 %v4195, %v4238
  %v4263 = vadd.f32 %v4196, %v4238
  %v4264 = vadd.f32 %v4197, %v4238
  %v4265 = vadd.f32 %v4198, %v4238
  %v4266 = vadd.f32 %v4199, %v4238
  %v4267 = vadd.f32 %v4200, %v4238
  %v4268 = vadd.f32 %v4201, %v4238
  %v4269 = vadd.f32 %v4202, %v4238
  %v4270 = vadd.f32 %v4203, %v4238
  %v4271 = vadd.f32 %v4204, %v4238
  %v4272 = vadd.f32 %v4205, %v4238
  %v4273 = vadd.f32 %v4206, %v4238
  %v4274 = vadd.f32 %v4207, %v4238
  %v4275 = vadd.f32 %v4208, %v4238
  %v4276 = vadd.f32 %v4209, %v4238
  %v4277 = vadd.f32 %v4210, %v4238
  %v4278 = vadd.f32 %v4211, %v4238
  %v4279 = vadd.f32 %v4212, %v4238
  %v4280 = vadd.f32 %v4213, %v4238
  %v4281 = vadd.f32 %v4214, %v4238
  %v4282 = vadd.f32 %v4215, %v4238
  %v4283 = vadd.f32 %v4216, %v4238
  %v4284 = vadd.f32 %v4217, %v4238
  %v4285 = vadd.f32 %v4218, %v4238
  %v4286 = vadd.f32 %v4219, %v4238
  %v4287 = vadd.f32 %v4220, %v4238
  %v4288 = vadd.f32 %v4221, %v4238
  %v4289 = vadd.f32 %v4222, %v4238
  %v4290 = vadd.f32 %v4223, %v4238
  %v4291 = vadd.f32 %v4224, %v4238
  %v4292 = vadd.f32 %v4225, %v4238
  %v4293 = vadd.f32 %v4226, %v4238
  %v4294 = vadd.f32 %v4227, %v4238
  %v4295 = vadd.f32 %v4228, %v4238
  %v4296 = vadd.f32 %v4229, %v4238
  %v4297 = vadd.f32 %v4230, %v4238
  %v4298 = vadd.f32 %v4231, %v4238
  %v4299 = vadd.f32 %v4232, %v4238
  %v4300 = vadd.f32 %v4233, %v4238
  %v4301 = vadd.f32 %v4234, %v4238
  %v4302 = vadd.f32 %v4235, %v4238
  %v4303 = vadd.f32 %v4236, %v4238
  %v4304 = vmax.f32 %v4240, 0.0
  %v4305 = vmax.f32 %v4241, 0.0
  %v4306 = vmax.f32 %v4242, 0.0
  %v4307 = vmax.f32 %v4243, 0.0
  %v4308 = vmax.f32 %v4244, 0.0
  %v4309 = vmax.f32 %v4245, 0.0
  %v4310 = vmax.f32 %v4246, 0.0
  %v4311 = vmax.f32 %v4247, 0.0
  %v4312 = vmax.f32 %v4248, 0.0
  %v4313 = vmax.f32 %v4249, 0.0
  %v4314 = vmax.f32 %v4250, 0.0
  %v4315 = vmax.f32 %v4251, 0.0
  %v4316 = vmax.f32 %v4252, 0.0
  %v4317 = vmax.f32 %v4253, 0.0
  %v4318 = vmax.f32 %v4254, 0.0
  %v4319 = vmax.f32 %v4255, 0.0
  %v4320 = vmax.f32 %v4256, 0.0
  %v4321 = vmax.f32 %v4257, 0.0
  %v4322 = vmax.f32 %v4258, 0.0
  %v4323 = vmax.f32 %v4259, 0.0
  %v4324 = vmax.f32 %v4260, 0.0
  %v4325 = vmax.f32 %v4261, 0.0
  %v4326 = vmax.f32 %v4262, 0.0
  %v4327 = vmax.f32 %v4263, 0.0
  %v4328 = vmax.f32 %v4264, 0.0
  %v4329 = vmax.f32 %v4265, 0.0
  %v4330 = vmax.f32 %v4266, 0.0
  %v4331 = vmax.f32 %v4267, 0.0
  %v4332 = vmax.f32 %v4268, 0.0
  %v4333 = vmax.f32 %v4269, 0.0
  %v4334 = vmax.f32 %v4270, 0.0
  %v4335 = vmax.f32 %v4271, 0.0
  %v4336 = vmax.f32 %v4272, 0.0
  %v4337 = vmax.f32 %v4273, 0.0
  %v4338 = vmax.f32 %v4274, 0.0
  %v4339 = vmax.f32 %v4275, 0.0
  %v4340 = vmax.f32 %v4276, 0.0
  %v4341 = vmax.f32 %v4277, 0.0
  %v4342 = vmax.f32 %v4278, 0.0
  %v4343 = vmax.f32 %v4279, 0.0
  %v4344 = vmax.f32 %v4280, 0.0
  %v4345 = vmax.f32 %v4281, 0.0
  %v4346 = vmax.f32 %v4282, 0.0
  %v4347 = vmax.f32 %v4283, 0.0
  %v4348 = vmax.f32 %v4284, 0.0
  %v4349 = vmax.f32 %v4285, 0.0
  %v4350 = vmax.f32 %v4286, 0.0
  %v4351 = vmax.f32 %v4287, 0.0
  %v4352 = vmax.f32 %v4288, 0.0
  %v4353 = vmax.f32 %v4289, 0.0
  %v4354 = vmax.f32 %v4290, 0.0
  %v4355 = vmax.f32 %v4291, 0.0
  %v4356 = vmax.f32 %v4292, 0.0
  %v4357 = vmax.f32 %v4293, 0.0
  %v4358 = vmax.f32 %v4294, 0.0
  %v4359 = vmax.f32 %v4295, 0.0
  %v4360 = vmax.f32 %v4296, 0.0
  %v4361 = vmax.f32 %v4297, 0.0
  %v4362 = vmax.f32 %v4298, 0.0
  %v4363 = vmax.f32 %v4299, 0.0
  %v4364 = vmax.f32 %v4300, 0.0
  %v4365 = vmax.f32 %v4301, 0.0
  %v4366 = vmax.f32 %v4302, 0.0
  %v4367 = vmax.f32 %v4303, 0.0
  %4368 = vst.msk [vmem:[%s200 + $0x1] sm:$0xff] %vm26, %v4304
  %4369 = vst.msk [vmem:[%s200 + $0x9] sm:$0xff] %vm26, %v4305
  %4370 = vst.msk [vmem:[%s200 + $0x19] sm:$0xff] %vm26, %v4306
  %4371 = vst.msk [vmem:[%s200 + $0x21] sm:$0xff] %vm26, %v4307
  %4372 = vst.msk [vmem:[%s200 + $0x31] sm:$0xff] %vm26, %v4308
  %4373 = vst.msk [vmem:[%s200 + $0x39] sm:$0xff] %vm26, %v4309
  %4374 = vst.msk [vmem:[%s200 + $0x49] sm:$0xff] %vm26, %v4310
  %4375 = vst.msk [vmem:[%s200 + $0x51] sm:$0xff] %vm26, %v4311
  %4376 = vst.msk [vmem:[%s200 + $0x61] sm:$0xff] %vm26, %v4312
  %4377 = vst.msk [vmem:[%s200 + $0x69] sm:$0xff] %vm26, %v4313
  %4378 = vst.msk [vmem:[%s200 + $0x79] sm:$0xff] %vm26, %v4314
  %4379 = vst.msk [vmem:[%s200 + $0x81] sm:$0xff] %vm26, %v4315
  %4380 = vst.msk [vmem:[%s200 + $0x91] sm:$0xff] %vm26, %v4316
  %4381 = vst.msk [vmem:[%s200 + $0x99] sm:$0xff] %vm26, %v4317
  %4382 = vst.msk [vmem:[%s200 + $0xa9] sm:$0xff] %vm26, %v4318
  %4383 = vst.msk [vmem:[%s200 + $0xb1] sm:$0xff] %vm26, %v4319
  %4384 = vst.msk [vmem:[%s200 + $0xc1] sm:$0xff] %vm26, %v4320
  %4385 = vst.msk [vmem:[%s200 + $0xc9] sm:$0xff] %vm26, %v4321
  %4386 = vst.msk [vmem:[%s200 + $0xd9] sm:$0xff] %vm26, %v4322
  %4387 = vst.msk [vmem:[%s200 + $0xe1] sm:$0xff] %vm26, %v4323
  %4388 = vst.msk [vmem:[%s200 + $0xf1] sm:$0xff] %vm26, %v4324
  %4389 = vst.msk [vmem:[%s200 + $0xf9] sm:$0xff] %vm26, %v4325
  %4390 = vst.msk [vmem:[%s200 + $0x109] sm:$0xff] %vm26, %v4326
  %4391 = vst.msk [vmem:[%s200 + $0x111] sm:$0xff] %vm26, %v4327
  %4392 = vst.msk [vmem:[%s200 + $0x121] sm:$0xff] %vm26, %v4328
  %4393 = vst.msk [vmem:[%s200 + $0x129] sm:$0xff] %vm26, %v4329
  %4394 = vst.msk [vmem:[%s200 + $0x139] sm:$0xff] %vm26, %v4330
  %4395 = vst.msk [vmem:[%s200 + $0x141] sm:$0xff] %vm26, %v4331
  %4396 = vst.msk [vmem:[%s200 + $0x151] sm:$0xff] %vm26, %v4332
  %4397 = vst.msk [vmem:[%s200 + $0x159] sm:$0xff] %vm26, %v4333
  %4398 = vst.msk [vmem:[%s200 + $0x169] sm:$0xff] %vm26, %v4334
  %4399 = vst.msk [vmem:[%s200 + $0x171] sm:$0xff] %vm26, %v4335
  %4400 = vst.msk [vmem:[%s200 + $0x1b1] sm:$0xff] %vm26, %v4336
  %4401 = vst.msk [vmem:[%s200 + $0x1b9] sm:$0xff] %vm26, %v4337
  %4402 = vst.msk [vmem:[%s200 + $0x1c9] sm:$0xff] %vm26, %v4338
  %4403 = vst.msk [vmem:[%s200 + $0x1d1] sm:$0xff] %vm26, %v4339
  %4404 = vst.msk [vmem:[%s200 + $0x1e1] sm:$0xff] %vm26, %v4340
  %4405 = vst.msk [vmem:[%s200 + $0x1e9] sm:$0xff] %vm26, %v4341
  %4406 = vst.msk [vmem:[%s200 + $0x1f9] sm:$0xff] %vm26, %v4342
  %4407 = vst.msk [vmem:[%s200 + $0x201] sm:$0xff] %vm26, %v4343
  %4408 = vst.msk [vmem:[%s200 + $0x211] sm:$0xff] %vm26, %v4344
  %4409 = vst.msk [vmem:[%s200 + $0x219] sm:$0xff] %vm26, %v4345
  %4410 = vst.msk [vmem:[%s200 + $0x229] sm:$0xff] %vm26, %v4346
  %4411 = vst.msk [vmem:[%s200 + $0x231] sm:$0xff] %vm26, %v4347
  %4412 = vst.msk [vmem:[%s200 + $0x241] sm:$0xff] %vm26, %v4348
  %4413 = vst.msk [vmem:[%s200 + $0x249] sm:$0xff] %vm26, %v4349
  %4414 = vst.msk [vmem:[%s200 + $0x259] sm:$0xff] %vm26, %v4350
  %4415 = vst.msk [vmem:[%s200 + $0x261] sm:$0xff] %vm26, %v4351
  %4416 = vst.msk [vmem:[%s200 + $0x271] sm:$0xff] %vm26, %v4352
  %4417 = vst.msk [vmem:[%s200 + $0x279] sm:$0xff] %vm26, %v4353
  %4418 = vst.msk [vmem:[%s200 + $0x289] sm:$0xff] %vm26, %v4354
  %4419 = vst.msk [vmem:[%s200 + $0x291] sm:$0xff] %vm26, %v4355
  %4420 = vst.msk [vmem:[%s200 + $0x2a1] sm:$0xff] %vm26, %v4356
  %4421 = vst.msk [vmem:[%s200 + $0x2a9] sm:$0xff] %vm26, %v4357
  %4422 = vst.msk [vmem:[%s200 + $0x2b9] sm:$0xff] %vm26, %v4358
  %4423 = vst.msk [vmem:[%s200 + $0x2c1] sm:$0xff] %vm26, %v4359
  %4424 = vst.msk [vmem:[%s200 + $0x2d1] sm:$0xff] %vm26, %v4360
  %4425 = vst.msk [vmem:[%s200 + $0x2d9] sm:$0xff] %vm26, %v4361
  %4426 = vst.msk [vmem:[%s200 + $0x2e9] sm:$0xff] %vm26, %v4362
  %4427 = vst.msk [vmem:[%s200 + $0x2f1] sm:$0xff] %vm26, %v4363
  %4428 = vst.msk [vmem:[%s200 + $0x301] sm:$0xff] %vm26, %v4364
  %4429 = vst.msk [vmem:[%s200 + $0x309] sm:$0xff] %vm26, %v4365
  %4430 = vst.msk [vmem:[%s200 + $0x319] sm:$0xff] %vm26, %v4366
  %4431 = vst.msk [vmem:[%s200 + $0x321] sm:$0xff] %vm26, %v4367
  %v4432 = vld [vmem:[#allocation2] sm:$0xff]
  %v4433 = vld [vmem:[#allocation2 + $0x8] sm:$0xff]
  %v4434 = vld [vmem:[#allocation2 + $0x18] sm:$0xff]
  %v4435 = vld [vmem:[#allocation2 + $0x20] sm:$0xff]
  %v4436 = vld [vmem:[#allocation2 + $0x30] sm:$0xff]
  %v4437 = vld [vmem:[#allocation2 + $0x38] sm:$0xff]
  %v4438 = vld [vmem:[#allocation2 + $0x48] sm:$0xff]
  %v4439 = vld [vmem:[#allocation2 + $0x50] sm:$0xff]
  %v4440 = vld [vmem:[#allocation2 + $0x60] sm:$0xff]
  %v4441 = vld [vmem:[#allocation2 + $0x68] sm:$0xff]
  %v4442 = vld [vmem:[#allocation2 + $0x78] sm:$0xff]
  %v4443 = vld [vmem:[#allocation2 + $0x80] sm:$0xff]
  %v4444 = vld [vmem:[#allocation2 + $0x90] sm:$0xff]
  %v4445 = vld [vmem:[#allocation2 + $0x98] sm:$0xff]
  %v4446 = vld [vmem:[#allocation2 + $0xa8] sm:$0xff]
  %v4447 = vld [vmem:[#allocation2 + $0xb0] sm:$0xff]
  %v4448 = vld [vmem:[#allocation2 + $0xc0] sm:$0xff]
  %v4449 = vld [vmem:[#allocation2 + $0xc8] sm:$0xff]
  %v4450 = vld [vmem:[#allocation2 + $0xd8] sm:$0xff]
  %v4451 = vld [vmem:[#allocation2 + $0xe0] sm:$0xff]
  %v4452 = vld [vmem:[#allocation2 + $0xf0] sm:$0xff]
  %v4453 = vld [vmem:[#allocation2 + $0xf8] sm:$0xff]
  %v4454 = vld [vmem:[#allocation2 + $0x108] sm:$0xff]
  %v4455 = vld [vmem:[#allocation2 + $0x110] sm:$0xff]
  %v4456 = vld [vmem:[#allocation2 + $0x120] sm:$0xff]
  %v4457 = vld [vmem:[#allocation2 + $0x128] sm:$0xff]
  %v4458 = vld [vmem:[#allocation2 + $0x138] sm:$0xff]
  %v4459 = vld [vmem:[#allocation2 + $0x140] sm:$0xff]
  %v4460 = vld [vmem:[#allocation2 + $0x150] sm:$0xff]
  %v4461 = vld [vmem:[#allocation2 + $0x158] sm:$0xff]
  %v4462 = vld [vmem:[#allocation2 + $0x168] sm:$0xff]
  %v4463 = vld [vmem:[#allocation2 + $0x170] sm:$0xff]
  %v4464 = vld [vmem:[#allocation2 + $0x1b0] sm:$0xff]
  %v4465 = vld [vmem:[#allocation2 + $0x1b8] sm:$0xff]
  %v4466 = vld [vmem:[#allocation2 + $0x1c8] sm:$0xff]
  %v4467 = vld [vmem:[#allocation2 + $0x1d0] sm:$0xff]
  %v4468 = vld [vmem:[#allocation2 + $0x1e0] sm:$0xff]
  %v4469 = vld [vmem:[#allocation2 + $0x1e8] sm:$0xff]
  %v4470 = vld [vmem:[#allocation2 + $0x1f8] sm:$0xff]
  %v4471 = vld [vmem:[#allocation2 + $0x200] sm:$0xff]
  %v4472 = vld [vmem:[#allocation2 + $0x210] sm:$0xff]
  %v4473 = vld [vmem:[#allocation2 + $0x218] sm:$0xff]
  %v4474 = vld [vmem:[#allocation2 + $0x228] sm:$0xff]
  %v4475 = vld [vmem:[#allocation2 + $0x230] sm:$0xff]
  %v4476 = vld [vmem:[#allocation2 + $0x240] sm:$0xff]
  %v4477 = vld [vmem:[#allocation2 + $0x248] sm:$0xff]
  %v4478 = vld [vmem:[#allocation2 + $0x258] sm:$0xff]
  %v4479 = vld [vmem:[#allocation2 + $0x260] sm:$0xff]
  %v4480 = vld [vmem:[#allocation2 + $0x270] sm:$0xff]
  %v4481 = vld [vmem:[#allocation2 + $0x278] sm:$0xff]
  %v4482 = vld [vmem:[#allocation2 + $0x288] sm:$0xff]
  %v4483 = vld [vmem:[#allocation2 + $0x290] sm:$0xff]
  %v4484 = vld [vmem:[#allocation2 + $0x2a0] sm:$0xff]
  %v4485 = vld [vmem:[#allocation2 + $0x2a8] sm:$0xff]
  %v4486 = vld [vmem:[#allocation2 + $0x2b8] sm:$0xff]
  %v4487 = vld [vmem:[#allocation2 + $0x2c0] sm:$0xff]
  %v4488 = vld [vmem:[#allocation2 + $0x2d0] sm:$0xff]
  %v4489 = vld [vmem:[#allocation2 + $0x2d8] sm:$0xff]
  %v4490 = vld [vmem:[#allocation2 + $0x2e8] sm:$0xff]
  %v4491 = vld [vmem:[#allocation2 + $0x2f0] sm:$0xff]
  %v4492 = vld [vmem:[#allocation2 + $0x300] sm:$0xff]
  %v4493 = vld [vmem:[#allocation2 + $0x308] sm:$0xff]
  %v4494 = vld [vmem:[#allocation2 + $0x318] sm:$0xff]
  %v4495 = vld [vmem:[#allocation2 + $0x320] sm:$0xff]
  %v4496 = vld [vmem:[#allocation2 + $0x1] sm:$0xff]
  %v4497 = vld [vmem:[#allocation2 + $0x9] sm:$0xff]
  %v4498 = vld [vmem:[#allocation2 + $0x19] sm:$0xff]
  %v4499 = vld [vmem:[#allocation2 + $0x21] sm:$0xff]
  %v4500 = vld [vmem:[#allocation2 + $0x31] sm:$0xff]
  %v4501 = vld [vmem:[#allocation2 + $0x39] sm:$0xff]
  %v4502 = vld [vmem:[#allocation2 + $0x49] sm:$0xff]
  %v4503 = vld [vmem:[#allocation2 + $0x51] sm:$0xff]
  %v4504 = vld [vmem:[#allocation2 + $0x61] sm:$0xff]
  %v4505 = vld [vmem:[#allocation2 + $0x69] sm:$0xff]
  %v4506 = vld [vmem:[#allocation2 + $0x79] sm:$0xff]
  %v4507 = vld [vmem:[#allocation2 + $0x81] sm:$0xff]
  %v4508 = vld [vmem:[#allocation2 + $0x91] sm:$0xff]
  %v4509 = vld [vmem:[#allocation2 + $0x99] sm:$0xff]
  %v4510 = vld [vmem:[#allocation2 + $0xa9] sm:$0xff]
  %v4511 = vld [vmem:[#allocation2 + $0xb1] sm:$0xff]
  %v4512 = vld [vmem:[#allocation2 + $0xc1] sm:$0xff]
  %v4513 = vld [vmem:[#allocation2 + $0xc9] sm:$0xff]
  %v4514 = vld [vmem:[#allocation2 + $0xd9] sm:$0xff]
  %v4515 = vld [vmem:[#allocation2 + $0xe1] sm:$0xff]
  %v4516 = vld [vmem:[#allocation2 + $0xf1] sm:$0xff]
  %v4517 = vld [vmem:[#allocation2 + $0xf9] sm:$0xff]
  %v4518 = vld [vmem:[#allocation2 + $0x109] sm:$0xff]
  %v4519 = vld [vmem:[#allocation2 + $0x111] sm:$0xff]
  %v4520 = vld [vmem:[#allocation2 + $0x121] sm:$0xff]
  %v4521 = vld [vmem:[#allocation2 + $0x129] sm:$0xff]
  %v4522 = vld [vmem:[#allocation2 + $0x139] sm:$0xff]
  %v4523 = vld [vmem:[#allocation2 + $0x141] sm:$0xff]
  %v4524 = vld [vmem:[#allocation2 + $0x151] sm:$0xff]
  %v4525 = vld [vmem:[#allocation2 + $0x159] sm:$0xff]
  %v4526 = vld [vmem:[#allocation2 + $0x169] sm:$0xff]
  %v4527 = vld [vmem:[#allocation2 + $0x171] sm:$0xff]
  %v4528 = vld [vmem:[#allocation2 + $0x1b1] sm:$0xff]
  %v4529 = vld [vmem:[#allocation2 + $0x1b9] sm:$0xff]
  %v4530 = vld [vmem:[#allocation2 + $0x1c9] sm:$0xff]
  %v4531 = vld [vmem:[#allocation2 + $0x1d1] sm:$0xff]
  %v4532 = vld [vmem:[#allocation2 + $0x1e1] sm:$0xff]
  %v4533 = vld [vmem:[#allocation2 + $0x1e9] sm:$0xff]
  %v4534 = vld [vmem:[#allocation2 + $0x1f9] sm:$0xff]
  %v4535 = vld [vmem:[#allocation2 + $0x201] sm:$0xff]
  %v4536 = vld [vmem:[#allocation2 + $0x211] sm:$0xff]
  %v4537 = vld [vmem:[#allocation2 + $0x219] sm:$0xff]
  %v4538 = vld [vmem:[#allocation2 + $0x229] sm:$0xff]
  %v4539 = vld [vmem:[#allocation2 + $0x231] sm:$0xff]
  %v4540 = vld [vmem:[#allocation2 + $0x241] sm:$0xff]
  %v4541 = vld [vmem:[#allocation2 + $0x249] sm:$0xff]
  %v4542 = vld [vmem:[#allocation2 + $0x259] sm:$0xff]
  %v4543 = vld [vmem:[#allocation2 + $0x261] sm:$0xff]
  %v4544 = vld [vmem:[#allocation2 + $0x271] sm:$0xff]
  %v4545 = vld [vmem:[#allocation2 + $0x279] sm:$0xff]
  %v4546 = vld [vmem:[#allocation2 + $0x289] sm:$0xff]
  %v4547 = vld [vmem:[#allocation2 + $0x291] sm:$0xff]
  %v4548 = vld [vmem:[#allocation2 + $0x2a1] sm:$0xff]
  %v4549 = vld [vmem:[#allocation2 + $0x2a9] sm:$0xff]
  %v4550 = vld [vmem:[#allocation2 + $0x2b9] sm:$0xff]
  %v4551 = vld [vmem:[#allocation2 + $0x2c1] sm:$0xff]
  %v4552 = vld [vmem:[#allocation2 + $0x2d1] sm:$0xff]
  %v4553 = vld [vmem:[#allocation2 + $0x2d9] sm:$0xff]
  %v4554 = vld [vmem:[#allocation2 + $0x2e9] sm:$0xff]
  %v4555 = vld [vmem:[#allocation2 + $0x2f1] sm:$0xff]
  %v4556 = vld [vmem:[#allocation2 + $0x301] sm:$0xff]
  %v4557 = vld [vmem:[#allocation2 + $0x309] sm:$0xff]
  %v4558 = vld [vmem:[#allocation2 + $0x319] sm:$0xff]
  %v4559 = vld [vmem:[#allocation2 + $0x321] sm:$0xff]
  %v4560 = vld [vmem:[#allocation2 + $0x2] sm:$0xff]
  %v4561 = vld [vmem:[#allocation2 + $0xa] sm:$0xff]
  %v4562 = vld [vmem:[#allocation2 + $0x1a] sm:$0xff]
  %v4563 = vld [vmem:[#allocation2 + $0x22] sm:$0xff]
  %v4564 = vld [vmem:[#allocation2 + $0x32] sm:$0xff]
  %v4565 = vld [vmem:[#allocation2 + $0x3a] sm:$0xff]
  %v4566 = vld [vmem:[#allocation2 + $0x4a] sm:$0xff]
  %v4567 = vld [vmem:[#allocation2 + $0x52] sm:$0xff]
  %v4568 = vld [vmem:[#allocation2 + $0x62] sm:$0xff]
  %v4569 = vld [vmem:[#allocation2 + $0x6a] sm:$0xff]
  %v4570 = vld [vmem:[#allocation2 + $0x7a] sm:$0xff]
  %v4571 = vld [vmem:[#allocation2 + $0x82] sm:$0xff]
  %v4572 = vld [vmem:[#allocation2 + $0x92] sm:$0xff]
  %v4573 = vld [vmem:[#allocation2 + $0x9a] sm:$0xff]
  %v4574 = vld [vmem:[#allocation2 + $0xaa] sm:$0xff]
  %v4575 = vld [vmem:[#allocation2 + $0xb2] sm:$0xff]
  %v4576 = vld [vmem:[#allocation2 + $0xc2] sm:$0xff]
  %v4577 = vld [vmem:[#allocation2 + $0xca] sm:$0xff]
  %v4578 = vld [vmem:[#allocation2 + $0xda] sm:$0xff]
  %v4579 = vld [vmem:[#allocation2 + $0xe2] sm:$0xff]
  %v4580 = vld [vmem:[#allocation2 + $0xf2] sm:$0xff]
  %v4581 = vld [vmem:[#allocation2 + $0xfa] sm:$0xff]
  %v4582 = vld [vmem:[#allocation2 + $0x10a] sm:$0xff]
  %v4583 = vld [vmem:[#allocation2 + $0x112] sm:$0xff]
  %v4584 = vld [vmem:[#allocation2 + $0x122] sm:$0xff]
  %v4585 = vld [vmem:[#allocation2 + $0x12a] sm:$0xff]
  %v4586 = vld [vmem:[#allocation2 + $0x13a] sm:$0xff]
  %v4587 = vld [vmem:[#allocation2 + $0x142] sm:$0xff]
  %v4588 = vld [vmem:[#allocation2 + $0x152] sm:$0xff]
  %v4589 = vld [vmem:[#allocation2 + $0x15a] sm:$0xff]
  %v4590 = vld [vmem:[#allocation2 + $0x16a] sm:$0xff]
  %v4591 = vld [vmem:[#allocation2 + $0x172] sm:$0xff]
  %v4592 = vld [vmem:[#allocation2 + $0x1b2] sm:$0xff]
  %v4593 = vld [vmem:[#allocation2 + $0x1ba] sm:$0xff]
  %v4594 = vld [vmem:[#allocation2 + $0x1ca] sm:$0xff]
  %v4595 = vld [vmem:[#allocation2 + $0x1d2] sm:$0xff]
  %v4596 = vld [vmem:[#allocation2 + $0x1e2] sm:$0xff]
  %v4597 = vld [vmem:[#allocation2 + $0x1ea] sm:$0xff]
  %v4598 = vld [vmem:[#allocation2 + $0x1fa] sm:$0xff]
  %v4599 = vld [vmem:[#allocation2 + $0x202] sm:$0xff]
  %v4600 = vld [vmem:[#allocation2 + $0x212] sm:$0xff]
  %v4601 = vld [vmem:[#allocation2 + $0x21a] sm:$0xff]
  %v4602 = vld [vmem:[#allocation2 + $0x22a] sm:$0xff]
  %v4603 = vld [vmem:[#allocation2 + $0x232] sm:$0xff]
  %v4604 = vld [vmem:[#allocation2 + $0x242] sm:$0xff]
  %v4605 = vld [vmem:[#allocation2 + $0x24a] sm:$0xff]
  %v4606 = vld [vmem:[#allocation2 + $0x25a] sm:$0xff]
  %v4607 = vld [vmem:[#allocation2 + $0x262] sm:$0xff]
  %v4608 = vld [vmem:[#allocation2 + $0x272] sm:$0xff]
  %v4609 = vld [vmem:[#allocation2 + $0x27a] sm:$0xff]
  %v4610 = vld [vmem:[#allocation2 + $0x28a] sm:$0xff]
  %v4611 = vld [vmem:[#allocation2 + $0x292] sm:$0xff]
  %v4612 = vld [vmem:[#allocation2 + $0x2a2] sm:$0xff]
  %v4613 = vld [vmem:[#allocation2 + $0x2aa] sm:$0xff]
  %v4614 = vld [vmem:[#allocation2 + $0x2ba] sm:$0xff]
  %v4615 = vld [vmem:[#allocation2 + $0x2c2] sm:$0xff]
  %v4616 = vld [vmem:[#allocation2 + $0x2d2] sm:$0xff]
  %v4617 = vld [vmem:[#allocation2 + $0x2da] sm:$0xff]
  %v4618 = vld [vmem:[#allocation2 + $0x2ea] sm:$0xff]
  %v4619 = vld [vmem:[#allocation2 + $0x2f2] sm:$0xff]
  %v4620 = vld [vmem:[#allocation2 + $0x302] sm:$0xff]
  %v4621 = vld [vmem:[#allocation2 + $0x30a] sm:$0xff]
  %v4622 = vld [vmem:[#allocation2 + $0x31a] sm:$0xff]
  %v4623 = vld [vmem:[#allocation2 + $0x322] sm:$0xff]
  %v4624 = vld [vmem:[%s200] sm:$0xff]
  %v4625 = vld [vmem:[%s200 + $0x8] sm:$0xff]
  %v4626 = vld [vmem:[%s200 + $0x18] sm:$0xff]
  %v4627 = vld [vmem:[%s200 + $0x20] sm:$0xff]
  %v4628 = vld [vmem:[%s200 + $0x30] sm:$0xff]
  %v4629 = vld [vmem:[%s200 + $0x38] sm:$0xff]
  %v4630 = vld [vmem:[%s200 + $0x48] sm:$0xff]
  %v4631 = vld [vmem:[%s200 + $0x50] sm:$0xff]
  %v4632 = vld [vmem:[%s200 + $0x60] sm:$0xff]
  %v4633 = vld [vmem:[%s200 + $0x68] sm:$0xff]
  %v4634 = vld [vmem:[%s200 + $0x78] sm:$0xff]
  %v4635 = vld [vmem:[%s200 + $0x80] sm:$0xff]
  %v4636 = vld [vmem:[%s200 + $0x90] sm:$0xff]
  %v4637 = vld [vmem:[%s200 + $0x98] sm:$0xff]
  %v4638 = vld [vmem:[%s200 + $0xa8] sm:$0xff]
  %v4639 = vld [vmem:[%s200 + $0xb0] sm:$0xff]
  %v4640 = vld [vmem:[%s200 + $0xc0] sm:$0xff]
  %v4641 = vld [vmem:[%s200 + $0xc8] sm:$0xff]
  %v4642 = vld [vmem:[%s200 + $0xd8] sm:$0xff]
  %v4643 = vld [vmem:[%s200 + $0xe0] sm:$0xff]
  %v4644 = vld [vmem:[%s200 + $0xf0] sm:$0xff]
  %v4645 = vld [vmem:[%s200 + $0xf8] sm:$0xff]
  %v4646 = vld [vmem:[%s200 + $0x108] sm:$0xff]
  %v4647 = vld [vmem:[%s200 + $0x110] sm:$0xff]
  %v4648 = vld [vmem:[%s200 + $0x120] sm:$0xff]
  %v4649 = vld [vmem:[%s200 + $0x128] sm:$0xff]
  %v4650 = vld [vmem:[%s200 + $0x138] sm:$0xff]
  %v4651 = vld [vmem:[%s200 + $0x140] sm:$0xff]
  %v4652 = vld [vmem:[%s200 + $0x150] sm:$0xff]
  %v4653 = vld [vmem:[%s200 + $0x158] sm:$0xff]
  %v4654 = vld [vmem:[%s200 + $0x168] sm:$0xff]
  %v4655 = vld [vmem:[%s200 + $0x170] sm:$0xff]
  %v4656 = vld [vmem:[%s200 + $0x1b0] sm:$0xff]
  %v4657 = vld [vmem:[%s200 + $0x1b8] sm:$0xff]
  %v4658 = vld [vmem:[%s200 + $0x1c8] sm:$0xff]
  %v4659 = vld [vmem:[%s200 + $0x1d0] sm:$0xff]
  %v4660 = vld [vmem:[%s200 + $0x1e0] sm:$0xff]
  %v4661 = vld [vmem:[%s200 + $0x1e8] sm:$0xff]
  %v4662 = vld [vmem:[%s200 + $0x1f8] sm:$0xff]
  %v4663 = vld [vmem:[%s200 + $0x200] sm:$0xff]
  %v4664 = vld [vmem:[%s200 + $0x210] sm:$0xff]
  %v4665 = vld [vmem:[%s200 + $0x218] sm:$0xff]
  %v4666 = vld [vmem:[%s200 + $0x228] sm:$0xff]
  %v4667 = vld [vmem:[%s200 + $0x230] sm:$0xff]
  %v4668 = vld [vmem:[%s200 + $0x240] sm:$0xff]
  %v4669 = vld [vmem:[%s200 + $0x248] sm:$0xff]
  %v4670 = vld [vmem:[%s200 + $0x258] sm:$0xff]
  %v4671 = vld [vmem:[%s200 + $0x260] sm:$0xff]
  %v4672 = vld [vmem:[%s200 + $0x270] sm:$0xff]
  %v4673 = vld [vmem:[%s200 + $0x278] sm:$0xff]
  %v4674 = vld [vmem:[%s200 + $0x288] sm:$0xff]
  %v4675 = vld [vmem:[%s200 + $0x290] sm:$0xff]
  %v4676 = vld [vmem:[%s200 + $0x2a0] sm:$0xff]
  %v4677 = vld [vmem:[%s200 + $0x2a8] sm:$0xff]
  %v4678 = vld [vmem:[%s200 + $0x2b8] sm:$0xff]
  %v4679 = vld [vmem:[%s200 + $0x2c0] sm:$0xff]
  %v4680 = vld [vmem:[%s200 + $0x2d0] sm:$0xff]
  %v4681 = vld [vmem:[%s200 + $0x2d8] sm:$0xff]
  %v4682 = vld [vmem:[%s200 + $0x2e8] sm:$0xff]
  %v4683 = vld [vmem:[%s200 + $0x2f0] sm:$0xff]
  %v4684 = vld [vmem:[%s200 + $0x300] sm:$0xff]
  %v4685 = vld [vmem:[%s200 + $0x308] sm:$0xff]
  %v4686 = vld [vmem:[%s200 + $0x318] sm:$0xff]
  %v4687 = vld [vmem:[%s200 + $0x320] sm:$0xff]
  %v4688 = vld [vmem:[%s200 + $0x1] sm:$0xff]
  %v4689 = vld [vmem:[%s200 + $0x9] sm:$0xff]
  %v4690 = vld [vmem:[%s200 + $0x19] sm:$0xff]
  %v4691 = vld [vmem:[%s200 + $0x21] sm:$0xff]
  %v4692 = vld [vmem:[%s200 + $0x31] sm:$0xff]
  %v4693 = vld [vmem:[%s200 + $0x39] sm:$0xff]
  %v4694 = vld [vmem:[%s200 + $0x49] sm:$0xff]
  %v4695 = vld [vmem:[%s200 + $0x51] sm:$0xff]
  %v4696 = vld [vmem:[%s200 + $0x61] sm:$0xff]
  %v4697 = vld [vmem:[%s200 + $0x69] sm:$0xff]
  %v4698 = vld [vmem:[%s200 + $0x79] sm:$0xff]
  %v4699 = vld [vmem:[%s200 + $0x81] sm:$0xff]
  %v4700 = vld [vmem:[%s200 + $0x91] sm:$0xff]
  %v4701 = vld [vmem:[%s200 + $0x99] sm:$0xff]
  %v4702 = vld [vmem:[%s200 + $0xa9] sm:$0xff]
  %v4703 = vld [vmem:[%s200 + $0xb1] sm:$0xff]
  %v4704 = vld [vmem:[%s200 + $0xc1] sm:$0xff]
  %v4705 = vld [vmem:[%s200 + $0xc9] sm:$0xff]
  %v4706 = vld [vmem:[%s200 + $0xd9] sm:$0xff]
  %v4707 = vld [vmem:[%s200 + $0xe1] sm:$0xff]
  %v4708 = vld [vmem:[%s200 + $0xf1] sm:$0xff]
  %v4709 = vld [vmem:[%s200 + $0xf9] sm:$0xff]
  %v4710 = vld [vmem:[%s200 + $0x109] sm:$0xff]
  %v4711 = vld [vmem:[%s200 + $0x111] sm:$0xff]
  %v4712 = vld [vmem:[%s200 + $0x121] sm:$0xff]
  %v4713 = vld [vmem:[%s200 + $0x129] sm:$0xff]
  %v4714 = vld [vmem:[%s200 + $0x139] sm:$0xff]
  %v4715 = vld [vmem:[%s200 + $0x141] sm:$0xff]
  %v4716 = vld [vmem:[%s200 + $0x151] sm:$0xff]
  %v4717 = vld [vmem:[%s200 + $0x159] sm:$0xff]
  %v4718 = vld [vmem:[%s200 + $0x169] sm:$0xff]
  %v4719 = vld [vmem:[%s200 + $0x171] sm:$0xff]
  %v4720 = vld [vmem:[%s200 + $0x1b1] sm:$0xff]
  %v4721 = vld [vmem:[%s200 + $0x1b9] sm:$0xff]
  %v4722 = vld [vmem:[%s200 + $0x1c9] sm:$0xff]
  %v4723 = vld [vmem:[%s200 + $0x1d1] sm:$0xff]
  %v4724 = vld [vmem:[%s200 + $0x1e1] sm:$0xff]
  %v4725 = vld [vmem:[%s200 + $0x1e9] sm:$0xff]
  %v4726 = vld [vmem:[%s200 + $0x1f9] sm:$0xff]
  %v4727 = vld [vmem:[%s200 + $0x201] sm:$0xff]
  %v4728 = vld [vmem:[%s200 + $0x211] sm:$0xff]
  %v4729 = vld [vmem:[%s200 + $0x219] sm:$0xff]
  %v4730 = vld [vmem:[%s200 + $0x229] sm:$0xff]
  %v4731 = vld [vmem:[%s200 + $0x231] sm:$0xff]
  %v4732 = vld [vmem:[%s200 + $0x241] sm:$0xff]
  %v4733 = vld [vmem:[%s200 + $0x249] sm:$0xff]
  %v4734 = vld [vmem:[%s200 + $0x259] sm:$0xff]
  %v4735 = vld [vmem:[%s200 + $0x261] sm:$0xff]
  %v4736 = vld [vmem:[%s200 + $0x271] sm:$0xff]
  %v4737 = vld [vmem:[%s200 + $0x279] sm:$0xff]
  %v4738 = vld [vmem:[%s200 + $0x289] sm:$0xff]
  %v4739 = vld [vmem:[%s200 + $0x291] sm:$0xff]
  %v4740 = vld [vmem:[%s200 + $0x2a1] sm:$0xff]
  %v4741 = vld [vmem:[%s200 + $0x2a9] sm:$0xff]
  %v4742 = vld [vmem:[%s200 + $0x2b9] sm:$0xff]
  %v4743 = vld [vmem:[%s200 + $0x2c1] sm:$0xff]
  %v4744 = vld [vmem:[%s200 + $0x2d1] sm:$0xff]
  %v4745 = vld [vmem:[%s200 + $0x2d9] sm:$0xff]
  %v4746 = vld [vmem:[%s200 + $0x2e9] sm:$0xff]
  %v4747 = vld [vmem:[%s200 + $0x2f1] sm:$0xff]
  %v4748 = vld [vmem:[%s200 + $0x301] sm:$0xff]
  %v4749 = vld [vmem:[%s200 + $0x309] sm:$0xff]
  %v4750 = vld [vmem:[%s200 + $0x319] sm:$0xff]
  %v4751 = vld [vmem:[%s200 + $0x321] sm:$0xff]
  %v4752 = vld [vmem:[%s200 + $0x2] sm:$0xff]
  %v4753 = vld [vmem:[%s200 + $0xa] sm:$0xff]
  %v4754 = vld [vmem:[%s200 + $0x1a] sm:$0xff]
  %v4755 = vld [vmem:[%s200 + $0x22] sm:$0xff]
  %v4756 = vld [vmem:[%s200 + $0x32] sm:$0xff]
  %v4757 = vld [vmem:[%s200 + $0x3a] sm:$0xff]
  %v4758 = vld [vmem:[%s200 + $0x4a] sm:$0xff]
  %v4759 = vld [vmem:[%s200 + $0x52] sm:$0xff]
  %v4760 = vld [vmem:[%s200 + $0x62] sm:$0xff]
  %v4761 = vld [vmem:[%s200 + $0x6a] sm:$0xff]
  %v4762 = vld [vmem:[%s200 + $0x7a] sm:$0xff]
  %v4763 = vld [vmem:[%s200 + $0x82] sm:$0xff]
  %v4764 = vld [vmem:[%s200 + $0x92] sm:$0xff]
  %v4765 = vld [vmem:[%s200 + $0x9a] sm:$0xff]
  %v4766 = vld [vmem:[%s200 + $0xaa] sm:$0xff]
  %v4767 = vld [vmem:[%s200 + $0xb2] sm:$0xff]
  %v4768 = vld [vmem:[%s200 + $0xc2] sm:$0xff]
  %v4769 = vld [vmem:[%s200 + $0xca] sm:$0xff]
  %v4770 = vld [vmem:[%s200 + $0xda] sm:$0xff]
  %v4771 = vld [vmem:[%s200 + $0xe2] sm:$0xff]
  %v4772 = vld [vmem:[%s200 + $0xf2] sm:$0xff]
  %v4773 = vld [vmem:[%s200 + $0xfa] sm:$0xff]
  %v4774 = vld [vmem:[%s200 + $0x10a] sm:$0xff]
  %v4775 = vld [vmem:[%s200 + $0x112] sm:$0xff]
  %v4776 = vld [vmem:[%s200 + $0x122] sm:$0xff]
  %v4777 = vld [vmem:[%s200 + $0x12a] sm:$0xff]
  %v4778 = vld [vmem:[%s200 + $0x13a] sm:$0xff]
  %v4779 = vld [vmem:[%s200 + $0x142] sm:$0xff]
  %v4780 = vld [vmem:[%s200 + $0x152] sm:$0xff]
  %v4781 = vld [vmem:[%s200 + $0x15a] sm:$0xff]
  %v4782 = vld [vmem:[%s200 + $0x16a] sm:$0xff]
  %v4783 = vld [vmem:[%s200 + $0x172] sm:$0xff]
  %v4784 = vld [vmem:[%s200 + $0x1b2] sm:$0xff]
  %v4785 = vld [vmem:[%s200 + $0x1ba] sm:$0xff]
  %v4786 = vld [vmem:[%s200 + $0x1ca] sm:$0xff]
  %v4787 = vld [vmem:[%s200 + $0x1d2] sm:$0xff]
  %v4788 = vld [vmem:[%s200 + $0x1e2] sm:$0xff]
  %v4789 = vld [vmem:[%s200 + $0x1ea] sm:$0xff]
  %v4790 = vld [vmem:[%s200 + $0x1fa] sm:$0xff]
  %v4791 = vld [vmem:[%s200 + $0x202] sm:$0xff]
  %v4792 = vld [vmem:[%s200 + $0x212] sm:$0xff]
  %v4793 = vld [vmem:[%s200 + $0x21a] sm:$0xff]
  %v4794 = vld [vmem:[%s200 + $0x22a] sm:$0xff]
  %v4795 = vld [vmem:[%s200 + $0x232] sm:$0xff]
  %v4796 = vld [vmem:[%s200 + $0x242] sm:$0xff]
  %v4797 = vld [vmem:[%s200 + $0x24a] sm:$0xff]
  %v4798 = vld [vmem:[%s200 + $0x25a] sm:$0xff]
  %v4799 = vld [vmem:[%s200 + $0x262] sm:$0xff]
  %v4800 = vld [vmem:[%s200 + $0x272] sm:$0xff]
  %v4801 = vld [vmem:[%s200 + $0x27a] sm:$0xff]
  %v4802 = vld [vmem:[%s200 + $0x28a] sm:$0xff]
  %v4803 = vld [vmem:[%s200 + $0x292] sm:$0xff]
  %v4804 = vld [vmem:[%s200 + $0x2a2] sm:$0xff]
  %v4805 = vld [vmem:[%s200 + $0x2aa] sm:$0xff]
  %v4806 = vld [vmem:[%s200 + $0x2ba] sm:$0xff]
  %v4807 = vld [vmem:[%s200 + $0x2c2] sm:$0xff]
  %v4808 = vld [vmem:[%s200 + $0x2d2] sm:$0xff]
  %v4809 = vld [vmem:[%s200 + $0x2da] sm:$0xff]
  %v4810 = vld [vmem:[%s200 + $0x2ea] sm:$0xff]
  %v4811 = vld [vmem:[%s200 + $0x2f2] sm:$0xff]
  %v4812 = vld [vmem:[%s200 + $0x302] sm:$0xff]
  %v4813 = vld [vmem:[%s200 + $0x30a] sm:$0xff]
  %v4814 = vld [vmem:[%s200 + $0x31a] sm:$0xff]
  %v4815 = vld [vmem:[%s200 + $0x322] sm:$0xff]
  %v4816 = vld [vmem:[%s649] sm:$0xff]
  %v4817 = vld [vmem:[%s649 + $0x8] sm:$0xff]
  %v4818 = vld [vmem:[%s649 + $0x18] sm:$0xff]
  %v4819 = vld [vmem:[%s649 + $0x20] sm:$0xff]
  %v4820 = vld [vmem:[%s649 + $0x30] sm:$0xff]
  %v4821 = vld [vmem:[%s649 + $0x38] sm:$0xff]
  %v4822 = vld [vmem:[%s649 + $0x48] sm:$0xff]
  %v4823 = vld [vmem:[%s649 + $0x50] sm:$0xff]
  %v4824 = vld [vmem:[%s649 + $0x60] sm:$0xff]
  %v4825 = vld [vmem:[%s649 + $0x68] sm:$0xff]
  %v4826 = vld [vmem:[%s649 + $0x78] sm:$0xff]
  %v4827 = vld [vmem:[%s649 + $0x80] sm:$0xff]
  %v4828 = vld [vmem:[%s649 + $0x90] sm:$0xff]
  %v4829 = vld [vmem:[%s649 + $0x98] sm:$0xff]
  %v4830 = vld [vmem:[%s649 + $0xa8] sm:$0xff]
  %v4831 = vld [vmem:[%s649 + $0xb0] sm:$0xff]
  %v4832 = vld [vmem:[%s649 + $0xc0] sm:$0xff]
  %v4833 = vld [vmem:[%s649 + $0xc8] sm:$0xff]
  %v4834 = vld [vmem:[%s649 + $0xd8] sm:$0xff]
  %v4835 = vld [vmem:[%s649 + $0xe0] sm:$0xff]
  %v4836 = vld [vmem:[%s649 + $0xf0] sm:$0xff]
  %v4837 = vld [vmem:[%s649 + $0xf8] sm:$0xff]
  %v4838 = vld [vmem:[%s649 + $0x108] sm:$0xff]
  %v4839 = vld [vmem:[%s649 + $0x110] sm:$0xff]
  %v4840 = vld [vmem:[%s649 + $0x120] sm:$0xff]
  %v4841 = vld [vmem:[%s649 + $0x128] sm:$0xff]
  %v4842 = vld [vmem:[%s649 + $0x138] sm:$0xff]
  %v4843 = vld [vmem:[%s649 + $0x140] sm:$0xff]
  %v4844 = vld [vmem:[%s649 + $0x150] sm:$0xff]
  %v4845 = vld [vmem:[%s649 + $0x158] sm:$0xff]
  %v4846 = vld [vmem:[%s649 + $0x168] sm:$0xff]
  %v4847 = vld [vmem:[%s649 + $0x170] sm:$0xff]
  %v4848 = vld [vmem:[%s649 + $0x1b0] sm:$0xff]
  %v4849 = vld [vmem:[%s649 + $0x1b8] sm:$0xff]
  %v4850 = vld [vmem:[%s649 + $0x1c8] sm:$0xff]
  %v4851 = vld [vmem:[%s649 + $0x1d0] sm:$0xff]
  %v4852 = vld [vmem:[%s649 + $0x1e0] sm:$0xff]
  %v4853 = vld [vmem:[%s649 + $0x1e8] sm:$0xff]
  %v4854 = vld [vmem:[%s649 + $0x1f8] sm:$0xff]
  %v4855 = vld [vmem:[%s649 + $0x200] sm:$0xff]
  %v4856 = vld [vmem:[%s649 + $0x210] sm:$0xff]
  %v4857 = vld [vmem:[%s649 + $0x218] sm:$0xff]
  %v4858 = vld [vmem:[%s649 + $0x228] sm:$0xff]
  %v4859 = vld [vmem:[%s649 + $0x230] sm:$0xff]
  %v4860 = vld [vmem:[%s649 + $0x240] sm:$0xff]
  %v4861 = vld [vmem:[%s649 + $0x248] sm:$0xff]
  %v4862 = vld [vmem:[%s649 + $0x258] sm:$0xff]
  %v4863 = vld [vmem:[%s649 + $0x260] sm:$0xff]
  %v4864 = vld [vmem:[%s649 + $0x270] sm:$0xff]
  %v4865 = vld [vmem:[%s649 + $0x278] sm:$0xff]
  %v4866 = vld [vmem:[%s649 + $0x288] sm:$0xff]
  %v4867 = vld [vmem:[%s649 + $0x290] sm:$0xff]
  %v4868 = vld [vmem:[%s649 + $0x2a0] sm:$0xff]
  %v4869 = vld [vmem:[%s649 + $0x2a8] sm:$0xff]
  %v4870 = vld [vmem:[%s649 + $0x2b8] sm:$0xff]
  %v4871 = vld [vmem:[%s649 + $0x2c0] sm:$0xff]
  %v4872 = vld [vmem:[%s649 + $0x2d0] sm:$0xff]
  %v4873 = vld [vmem:[%s649 + $0x2d8] sm:$0xff]
  %v4874 = vld [vmem:[%s649 + $0x2e8] sm:$0xff]
  %v4875 = vld [vmem:[%s649 + $0x2f0] sm:$0xff]
  %v4876 = vld [vmem:[%s649 + $0x300] sm:$0xff]
  %v4877 = vld [vmem:[%s649 + $0x308] sm:$0xff]
  %v4878 = vld [vmem:[%s649 + $0x318] sm:$0xff]
  %v4879 = vld [vmem:[%s649 + $0x320] sm:$0xff]
  %v4880 = vld [vmem:[%s649 + $0x1] sm:$0xff]
  %v4881 = vld [vmem:[%s649 + $0x9] sm:$0xff]
  %v4882 = vld [vmem:[%s649 + $0x19] sm:$0xff]
  %v4883 = vld [vmem:[%s649 + $0x21] sm:$0xff]
  %v4884 = vld [vmem:[%s649 + $0x31] sm:$0xff]
  %v4885 = vld [vmem:[%s649 + $0x39] sm:$0xff]
  %v4886 = vld [vmem:[%s649 + $0x49] sm:$0xff]
  %v4887 = vld [vmem:[%s649 + $0x51] sm:$0xff]
  %v4888 = vld [vmem:[%s649 + $0x61] sm:$0xff]
  %v4889 = vld [vmem:[%s649 + $0x69] sm:$0xff]
  %v4890 = vld [vmem:[%s649 + $0x79] sm:$0xff]
  %v4891 = vld [vmem:[%s649 + $0x81] sm:$0xff]
  %v4892 = vld [vmem:[%s649 + $0x91] sm:$0xff]
  %v4893 = vld [vmem:[%s649 + $0x99] sm:$0xff]
  %v4894 = vld [vmem:[%s649 + $0xa9] sm:$0xff]
  %v4895 = vld [vmem:[%s649 + $0xb1] sm:$0xff]
  %v4896 = vld [vmem:[%s649 + $0xc1] sm:$0xff]
  %v4897 = vld [vmem:[%s649 + $0xc9] sm:$0xff]
  %v4898 = vld [vmem:[%s649 + $0xd9] sm:$0xff]
  %v4899 = vld [vmem:[%s649 + $0xe1] sm:$0xff]
  %v4900 = vld [vmem:[%s649 + $0xf1] sm:$0xff]
  %v4901 = vld [vmem:[%s649 + $0xf9] sm:$0xff]
  %v4902 = vld [vmem:[%s649 + $0x109] sm:$0xff]
  %v4903 = vld [vmem:[%s649 + $0x111] sm:$0xff]
  %v4904 = vld [vmem:[%s649 + $0x121] sm:$0xff]
  %v4905 = vld [vmem:[%s649 + $0x129] sm:$0xff]
  %v4906 = vld [vmem:[%s649 + $0x139] sm:$0xff]
  %v4907 = vld [vmem:[%s649 + $0x141] sm:$0xff]
  %v4908 = vld [vmem:[%s649 + $0x151] sm:$0xff]
  %v4909 = vld [vmem:[%s649 + $0x159] sm:$0xff]
  %v4910 = vld [vmem:[%s649 + $0x169] sm:$0xff]
  %v4911 = vld [vmem:[%s649 + $0x171] sm:$0xff]
  %v4912 = vld [vmem:[%s649 + $0x1b1] sm:$0xff]
  %v4913 = vld [vmem:[%s649 + $0x1b9] sm:$0xff]
  %v4914 = vld [vmem:[%s649 + $0x1c9] sm:$0xff]
  %v4915 = vld [vmem:[%s649 + $0x1d1] sm:$0xff]
  %v4916 = vld [vmem:[%s649 + $0x1e1] sm:$0xff]
  %v4917 = vld [vmem:[%s649 + $0x1e9] sm:$0xff]
  %v4918 = vld [vmem:[%s649 + $0x1f9] sm:$0xff]
  %v4919 = vld [vmem:[%s649 + $0x201] sm:$0xff]
  %v4920 = vld [vmem:[%s649 + $0x211] sm:$0xff]
  %v4921 = vld [vmem:[%s649 + $0x219] sm:$0xff]
  %v4922 = vld [vmem:[%s649 + $0x229] sm:$0xff]
  %v4923 = vld [vmem:[%s649 + $0x231] sm:$0xff]
  %v4924 = vld [vmem:[%s649 + $0x241] sm:$0xff]
  %v4925 = vld [vmem:[%s649 + $0x249] sm:$0xff]
  %v4926 = vld [vmem:[%s649 + $0x259] sm:$0xff]
  %v4927 = vld [vmem:[%s649 + $0x261] sm:$0xff]
  %v4928 = vld [vmem:[%s649 + $0x271] sm:$0xff]
  %v4929 = vld [vmem:[%s649 + $0x279] sm:$0xff]
  %v4930 = vld [vmem:[%s649 + $0x289] sm:$0xff]
  %v4931 = vld [vmem:[%s649 + $0x291] sm:$0xff]
  %v4932 = vld [vmem:[%s649 + $0x2a1] sm:$0xff]
  %v4933 = vld [vmem:[%s649 + $0x2a9] sm:$0xff]
  %v4934 = vld [vmem:[%s649 + $0x2b9] sm:$0xff]
  %v4935 = vld [vmem:[%s649 + $0x2c1] sm:$0xff]
  %v4936 = vld [vmem:[%s649 + $0x2d1] sm:$0xff]
  %v4937 = vld [vmem:[%s649 + $0x2d9] sm:$0xff]
  %v4938 = vld [vmem:[%s649 + $0x2e9] sm:$0xff]
  %v4939 = vld [vmem:[%s649 + $0x2f1] sm:$0xff]
  %v4940 = vld [vmem:[%s649 + $0x301] sm:$0xff]
  %v4941 = vld [vmem:[%s649 + $0x309] sm:$0xff]
  %v4942 = vld [vmem:[%s649 + $0x319] sm:$0xff]
  %v4943 = vld [vmem:[%s649 + $0x321] sm:$0xff]
  %v4944 = vld [vmem:[%s649 + $0x2] sm:$0xff]
  %v4945 = vld [vmem:[%s649 + $0xa] sm:$0xff]
  %v4946 = vld [vmem:[%s649 + $0x1a] sm:$0xff]
  %v4947 = vld [vmem:[%s649 + $0x22] sm:$0xff]
  %v4948 = vld [vmem:[%s649 + $0x32] sm:$0xff]
  %v4949 = vld [vmem:[%s649 + $0x3a] sm:$0xff]
  %v4950 = vld [vmem:[%s649 + $0x4a] sm:$0xff]
  %v4951 = vld [vmem:[%s649 + $0x52] sm:$0xff]
  %v4952 = vld [vmem:[%s649 + $0x62] sm:$0xff]
  %v4953 = vld [vmem:[%s649 + $0x6a] sm:$0xff]
  %v4954 = vld [vmem:[%s649 + $0x7a] sm:$0xff]
  %v4955 = vld [vmem:[%s649 + $0x82] sm:$0xff]
  %v4956 = vld [vmem:[%s649 + $0x92] sm:$0xff]
  %v4957 = vld [vmem:[%s649 + $0x9a] sm:$0xff]
  %v4958 = vld [vmem:[%s649 + $0xaa] sm:$0xff]
  %v4959 = vld [vmem:[%s649 + $0xb2] sm:$0xff]
  %v4960 = vld [vmem:[%s649 + $0xc2] sm:$0xff]
  %v4961 = vld [vmem:[%s649 + $0xca] sm:$0xff]
  %v4962 = vld [vmem:[%s649 + $0xda] sm:$0xff]
  %v4963 = vld [vmem:[%s649 + $0xe2] sm:$0xff]
  %v4964 = vld [vmem:[%s649 + $0xf2] sm:$0xff]
  %v4965 = vld [vmem:[%s649 + $0xfa] sm:$0xff]
  %v4966 = vld [vmem:[%s649 + $0x10a] sm:$0xff]
  %v4967 = vld [vmem:[%s649 + $0x112] sm:$0xff]
  %v4968 = vld [vmem:[%s649 + $0x122] sm:$0xff]
  %v4969 = vld [vmem:[%s649 + $0x12a] sm:$0xff]
  %v4970 = vld [vmem:[%s649 + $0x13a] sm:$0xff]
  %v4971 = vld [vmem:[%s649 + $0x142] sm:$0xff]
  %v4972 = vld [vmem:[%s649 + $0x152] sm:$0xff]
  %v4973 = vld [vmem:[%s649 + $0x15a] sm:$0xff]
  %v4974 = vld [vmem:[%s649 + $0x16a] sm:$0xff]
  %v4975 = vld [vmem:[%s649 + $0x172] sm:$0xff]
  %v4976 = vld [vmem:[%s649 + $0x1b2] sm:$0xff]
  %v4977 = vld [vmem:[%s649 + $0x1ba] sm:$0xff]
  %v4978 = vld [vmem:[%s649 + $0x1ca] sm:$0xff]
  %v4979 = vld [vmem:[%s649 + $0x1d2] sm:$0xff]
  %v4980 = vld [vmem:[%s649 + $0x1e2] sm:$0xff]
  %v4981 = vld [vmem:[%s649 + $0x1ea] sm:$0xff]
  %v4982 = vld [vmem:[%s649 + $0x1fa] sm:$0xff]
  %v4983 = vld [vmem:[%s649 + $0x202] sm:$0xff]
  %v4984 = vld [vmem:[%s649 + $0x212] sm:$0xff]
  %v4985 = vld [vmem:[%s649 + $0x21a] sm:$0xff]
  %v4986 = vld [vmem:[%s649 + $0x22a] sm:$0xff]
  %v4987 = vld [vmem:[%s649 + $0x232] sm:$0xff]
  %v4988 = vld [vmem:[%s649 + $0x242] sm:$0xff]
  %v4989 = vld [vmem:[%s649 + $0x24a] sm:$0xff]
  %v4990 = vld [vmem:[%s649 + $0x25a] sm:$0xff]
  %v4991 = vld [vmem:[%s649 + $0x262] sm:$0xff]
  %v4992 = vld [vmem:[%s649 + $0x272] sm:$0xff]
  %v4993 = vld [vmem:[%s649 + $0x27a] sm:$0xff]
  %v4994 = vld [vmem:[%s649 + $0x28a] sm:$0xff]
  %v4995 = vld [vmem:[%s649 + $0x292] sm:$0xff]
  %v4996 = vld [vmem:[%s649 + $0x2a2] sm:$0xff]
  %v4997 = vld [vmem:[%s649 + $0x2aa] sm:$0xff]
  %v4998 = vld [vmem:[%s649 + $0x2ba] sm:$0xff]
  %v4999 = vld [vmem:[%s649 + $0x2c2] sm:$0xff]
  %v5000 = vld [vmem:[%s649 + $0x2d2] sm:$0xff]
  %v5001 = vld [vmem:[%s649 + $0x2da] sm:$0xff]
  %v5002 = vld [vmem:[%s649 + $0x2ea] sm:$0xff]
  %v5003 = vld [vmem:[%s649 + $0x2f2] sm:$0xff]
  %v5004 = vld [vmem:[%s649 + $0x302] sm:$0xff]
  %v5005 = vld [vmem:[%s649 + $0x30a] sm:$0xff]
  %v5006 = vld [vmem:[%s649 + $0x31a] sm:$0xff]
  %v5007 = vld [vmem:[%s649 + $0x322] sm:$0xff]
  %5072 = vrot.lane.b32.xlu0 %v4496, 8
  %v5073 = vpop.permute.xlu0 %5072
  %5074 = vrot.lane.b32.xlu0 %v4497, 8
  %v5075 = vpop.permute.xlu0 %5074
  %5076 = vrot.lane.b32.xlu0 %v4498, 8
  %v5077 = vpop.permute.xlu0 %5076
  %5078 = vrot.lane.b32.xlu0 %v4499, 8
  %v5079 = vpop.permute.xlu0 %5078
  %5080 = vrot.lane.b32.xlu0 %v4500, 8
  %v5081 = vpop.permute.xlu0 %5080
  %5082 = vrot.lane.b32.xlu0 %v4501, 8
  %v5083 = vpop.permute.xlu0 %5082
  %5084 = vrot.lane.b32.xlu0 %v4502, 8
  %v5085 = vpop.permute.xlu0 %5084
  %5086 = vrot.lane.b32.xlu0 %v4503, 8
  %v5087 = vpop.permute.xlu0 %5086
  %5088 = vrot.lane.b32.xlu0 %v4504, 8
  %v5089 = vpop.permute.xlu0 %5088
  %5090 = vrot.lane.b32.xlu0 %v4505, 8
  %v5091 = vpop.permute.xlu0 %5090
  %5092 = vrot.lane.b32.xlu0 %v4506, 8
  %v5093 = vpop.permute.xlu0 %5092
  %5094 = vrot.lane.b32.xlu0 %v4507, 8
  %v5095 = vpop.permute.xlu0 %5094
  %5096 = vrot.lane.b32.xlu0 %v4508, 8
  %v5097 = vpop.permute.xlu0 %5096
  %5098 = vrot.lane.b32.xlu0 %v4509, 8
  %v5099 = vpop.permute.xlu0 %5098
  %5100 = vrot.lane.b32.xlu0 %v4510, 8
  %v5101 = vpop.permute.xlu0 %5100
  %5102 = vrot.lane.b32.xlu0 %v4511, 8
  %v5103 = vpop.permute.xlu0 %5102
  %5104 = vrot.lane.b32.xlu0 %v4512, 8
  %v5105 = vpop.permute.xlu0 %5104
  %5106 = vrot.lane.b32.xlu0 %v4513, 8
  %v5107 = vpop.permute.xlu0 %5106
  %5108 = vrot.lane.b32.xlu0 %v4514, 8
  %v5109 = vpop.permute.xlu0 %5108
  %5110 = vrot.lane.b32.xlu0 %v4515, 8
  %v5111 = vpop.permute.xlu0 %5110
  %5112 = vrot.lane.b32.xlu0 %v4516, 8
  %v5113 = vpop.permute.xlu0 %5112
  %5114 = vrot.lane.b32.xlu0 %v4517, 8
  %v5115 = vpop.permute.xlu0 %5114
  %5116 = vrot.lane.b32.xlu0 %v4518, 8
  %v5117 = vpop.permute.xlu0 %5116
  %5118 = vrot.lane.b32.xlu0 %v4519, 8
  %v5119 = vpop.permute.xlu0 %5118
  %5120 = vrot.lane.b32.xlu0 %v4520, 8
  %v5121 = vpop.permute.xlu0 %5120
  %5122 = vrot.lane.b32.xlu0 %v4521, 8
  %v5123 = vpop.permute.xlu0 %5122
  %5124 = vrot.lane.b32.xlu0 %v4522, 8
  %v5125 = vpop.permute.xlu0 %5124
  %5126 = vrot.lane.b32.xlu0 %v4523, 8
  %v5127 = vpop.permute.xlu0 %5126
  %5128 = vrot.lane.b32.xlu0 %v4524, 8
  %v5129 = vpop.permute.xlu0 %5128
  %5130 = vrot.lane.b32.xlu0 %v4525, 8
  %v5131 = vpop.permute.xlu0 %5130
  %5132 = vrot.lane.b32.xlu0 %v4526, 8
  %v5133 = vpop.permute.xlu0 %5132
  %5134 = vrot.lane.b32.xlu0 %v4527, 8
  %v5135 = vpop.permute.xlu0 %5134
  %5136 = vrot.lane.b32.xlu0 %v4528, 8
  %v5137 = vpop.permute.xlu0 %5136
  %5138 = vrot.lane.b32.xlu0 %v4529, 8
  %v5139 = vpop.permute.xlu0 %5138
  %5140 = vrot.lane.b32.xlu0 %v4530, 8
  %v5141 = vpop.permute.xlu0 %5140
  %5142 = vrot.lane.b32.xlu0 %v4531, 8
  %v5143 = vpop.permute.xlu0 %5142
  %5144 = vrot.lane.b32.xlu0 %v4532, 8
  %v5145 = vpop.permute.xlu0 %5144
  %5146 = vrot.lane.b32.xlu0 %v4533, 8
  %v5147 = vpop.permute.xlu0 %5146
  %5148 = vrot.lane.b32.xlu0 %v4534, 8
  %v5149 = vpop.permute.xlu0 %5148
  %5150 = vrot.lane.b32.xlu0 %v4535, 8
  %v5151 = vpop.permute.xlu0 %5150
  %5152 = vrot.lane.b32.xlu0 %v4536, 8
  %v5153 = vpop.permute.xlu0 %5152
  %5154 = vrot.lane.b32.xlu0 %v4537, 8
  %v5155 = vpop.permute.xlu0 %5154
  %5156 = vrot.lane.b32.xlu0 %v4538, 8
  %v5157 = vpop.permute.xlu0 %5156
  %5158 = vrot.lane.b32.xlu0 %v4539, 8
  %v5159 = vpop.permute.xlu0 %5158
  %5160 = vrot.lane.b32.xlu0 %v4540, 8
  %v5161 = vpop.permute.xlu0 %5160
  %5162 = vrot.lane.b32.xlu0 %v4541, 8
  %v5163 = vpop.permute.xlu0 %5162
  %5164 = vrot.lane.b32.xlu0 %v4542, 8
  %v5165 = vpop.permute.xlu0 %5164
  %5166 = vrot.lane.b32.xlu0 %v4543, 8
  %v5167 = vpop.permute.xlu0 %5166
  %5168 = vrot.lane.b32.xlu0 %v4544, 8
  %v5169 = vpop.permute.xlu0 %5168
  %5170 = vrot.lane.b32.xlu0 %v4545, 8
  %v5171 = vpop.permute.xlu0 %5170
  %5172 = vrot.lane.b32.xlu0 %v4546, 8
  %v5173 = vpop.permute.xlu0 %5172
  %5174 = vrot.lane.b32.xlu0 %v4547, 8
  %v5175 = vpop.permute.xlu0 %5174
  %5176 = vrot.lane.b32.xlu0 %v4548, 8
  %v5177 = vpop.permute.xlu0 %5176
  %5178 = vrot.lane.b32.xlu0 %v4549, 8
  %v5179 = vpop.permute.xlu0 %5178
  %5180 = vrot.lane.b32.xlu0 %v4550, 8
  %v5181 = vpop.permute.xlu0 %5180
  %5182 = vrot.lane.b32.xlu0 %v4551, 8
  %v5183 = vpop.permute.xlu0 %5182
  %5184 = vrot.lane.b32.xlu0 %v4552, 8
  %v5185 = vpop.permute.xlu0 %5184
  %5186 = vrot.lane.b32.xlu0 %v4553, 8
  %v5187 = vpop.permute.xlu0 %5186
  %5188 = vrot.lane.b32.xlu0 %v4554, 8
  %v5189 = vpop.permute.xlu0 %5188
  %5190 = vrot.lane.b32.xlu0 %v4555, 8
  %v5191 = vpop.permute.xlu0 %5190
  %5192 = vrot.lane.b32.xlu0 %v4556, 8
  %v5193 = vpop.permute.xlu0 %5192
  %5194 = vrot.lane.b32.xlu0 %v4557, 8
  %v5195 = vpop.permute.xlu0 %5194
  %5196 = vrot.lane.b32.xlu0 %v4558, 8
  %v5197 = vpop.permute.xlu0 %5196
  %5198 = vrot.lane.b32.xlu0 %v4559, 8
  %v5199 = vpop.permute.xlu0 %5198
  %5328 = vrot.lane.b32.xlu0 %v4560, 16
  %v5329 = vpop.permute.xlu0 %5328
  %5330 = vrot.lane.b32.xlu0 %v4561, 16
  %v5331 = vpop.permute.xlu0 %5330
  %5332 = vrot.lane.b32.xlu0 %v4562, 16
  %v5333 = vpop.permute.xlu0 %5332
  %5334 = vrot.lane.b32.xlu0 %v4563, 16
  %v5335 = vpop.permute.xlu0 %5334
  %5336 = vrot.lane.b32.xlu0 %v4564, 16
  %v5337 = vpop.permute.xlu0 %5336
  %5338 = vrot.lane.b32.xlu0 %v4565, 16
  %v5339 = vpop.permute.xlu0 %5338
  %5340 = vrot.lane.b32.xlu0 %v4566, 16
  %v5341 = vpop.permute.xlu0 %5340
  %5342 = vrot.lane.b32.xlu0 %v4567, 16
  %v5343 = vpop.permute.xlu0 %5342
  %5344 = vrot.lane.b32.xlu0 %v4568, 16
  %v5345 = vpop.permute.xlu0 %5344
  %5346 = vrot.lane.b32.xlu0 %v4569, 16
  %v5347 = vpop.permute.xlu0 %5346
  %5348 = vrot.lane.b32.xlu0 %v4570, 16
  %v5349 = vpop.permute.xlu0 %5348
  %5350 = vrot.lane.b32.xlu0 %v4571, 16
  %v5351 = vpop.permute.xlu0 %5350
  %5352 = vrot.lane.b32.xlu0 %v4572, 16
  %v5353 = vpop.permute.xlu0 %5352
  %5354 = vrot.lane.b32.xlu0 %v4573, 16
  %v5355 = vpop.permute.xlu0 %5354
  %5356 = vrot.lane.b32.xlu0 %v4574, 16
  %v5357 = vpop.permute.xlu0 %5356
  %5358 = vrot.lane.b32.xlu0 %v4575, 16
  %v5359 = vpop.permute.xlu0 %5358
  %5360 = vrot.lane.b32.xlu0 %v4576, 16
  %v5361 = vpop.permute.xlu0 %5360
  %5362 = vrot.lane.b32.xlu0 %v4577, 16
  %v5363 = vpop.permute.xlu0 %5362
  %5364 = vrot.lane.b32.xlu0 %v4578, 16
  %v5365 = vpop.permute.xlu0 %5364
  %5366 = vrot.lane.b32.xlu0 %v4579, 16
  %v5367 = vpop.permute.xlu0 %5366
  %5368 = vrot.lane.b32.xlu0 %v4580, 16
  %v5369 = vpop.permute.xlu0 %5368
  %5370 = vrot.lane.b32.xlu0 %v4581, 16
  %v5371 = vpop.permute.xlu0 %5370
  %5372 = vrot.lane.b32.xlu0 %v4582, 16
  %v5373 = vpop.permute.xlu0 %5372
  %5374 = vrot.lane.b32.xlu0 %v4583, 16
  %v5375 = vpop.permute.xlu0 %5374
  %5376 = vrot.lane.b32.xlu0 %v4584, 16
  %v5377 = vpop.permute.xlu0 %5376
  %5378 = vrot.lane.b32.xlu0 %v4585, 16
  %v5379 = vpop.permute.xlu0 %5378
  %5380 = vrot.lane.b32.xlu0 %v4586, 16
  %v5381 = vpop.permute.xlu0 %5380
  %5382 = vrot.lane.b32.xlu0 %v4587, 16
  %v5383 = vpop.permute.xlu0 %5382
  %5384 = vrot.lane.b32.xlu0 %v4588, 16
  %v5385 = vpop.permute.xlu0 %5384
  %5386 = vrot.lane.b32.xlu0 %v4589, 16
  %v5387 = vpop.permute.xlu0 %5386
  %5388 = vrot.lane.b32.xlu0 %v4590, 16
  %v5389 = vpop.permute.xlu0 %5388
  %5390 = vrot.lane.b32.xlu0 %v4591, 16
  %v5391 = vpop.permute.xlu0 %5390
  %5392 = vrot.lane.b32.xlu0 %v4592, 16
  %v5393 = vpop.permute.xlu0 %5392
  %5394 = vrot.lane.b32.xlu0 %v4593, 16
  %v5395 = vpop.permute.xlu0 %5394
  %5396 = vrot.lane.b32.xlu0 %v4594, 16
  %v5397 = vpop.permute.xlu0 %5396
  %5398 = vrot.lane.b32.xlu0 %v4595, 16
  %v5399 = vpop.permute.xlu0 %5398
  %5400 = vrot.lane.b32.xlu0 %v4596, 16
  %v5401 = vpop.permute.xlu0 %5400
  %5402 = vrot.lane.b32.xlu0 %v4597, 16
  %v5403 = vpop.permute.xlu0 %5402
  %5404 = vrot.lane.b32.xlu0 %v4598, 16
  %v5405 = vpop.permute.xlu0 %5404
  %5406 = vrot.lane.b32.xlu0 %v4599, 16
  %v5407 = vpop.permute.xlu0 %5406
  %5408 = vrot.lane.b32.xlu0 %v4600, 16
  %v5409 = vpop.permute.xlu0 %5408
  %5410 = vrot.lane.b32.xlu0 %v4601, 16
  %v5411 = vpop.permute.xlu0 %5410
  %5412 = vrot.lane.b32.xlu0 %v4602, 16
  %v5413 = vpop.permute.xlu0 %5412
  %5414 = vrot.lane.b32.xlu0 %v4603, 16
  %v5415 = vpop.permute.xlu0 %5414
  %5416 = vrot.lane.b32.xlu0 %v4604, 16
  %v5417 = vpop.permute.xlu0 %5416
  %5418 = vrot.lane.b32.xlu0 %v4605, 16
  %v5419 = vpop.permute.xlu0 %5418
  %5420 = vrot.lane.b32.xlu0 %v4606, 16
  %v5421 = vpop.permute.xlu0 %5420
  %5422 = vrot.lane.b32.xlu0 %v4607, 16
  %v5423 = vpop.permute.xlu0 %5422
  %5424 = vrot.lane.b32.xlu0 %v4608, 16
  %v5425 = vpop.permute.xlu0 %5424
  %5426 = vrot.lane.b32.xlu0 %v4609, 16
  %v5427 = vpop.permute.xlu0 %5426
  %5428 = vrot.lane.b32.xlu0 %v4610, 16
  %v5429 = vpop.permute.xlu0 %5428
  %5430 = vrot.lane.b32.xlu0 %v4611, 16
  %v5431 = vpop.permute.xlu0 %5430
  %5432 = vrot.lane.b32.xlu0 %v4612, 16
  %v5433 = vpop.permute.xlu0 %5432
  %5434 = vrot.lane.b32.xlu0 %v4613, 16
  %v5435 = vpop.permute.xlu0 %5434
  %5436 = vrot.lane.b32.xlu0 %v4614, 16
  %v5437 = vpop.permute.xlu0 %5436
  %5438 = vrot.lane.b32.xlu0 %v4615, 16
  %v5439 = vpop.permute.xlu0 %5438
  %5440 = vrot.lane.b32.xlu0 %v4616, 16
  %v5441 = vpop.permute.xlu0 %5440
  %5442 = vrot.lane.b32.xlu0 %v4617, 16
  %v5443 = vpop.permute.xlu0 %5442
  %5444 = vrot.lane.b32.xlu0 %v4618, 16
  %v5445 = vpop.permute.xlu0 %5444
  %5446 = vrot.lane.b32.xlu0 %v4619, 16
  %v5447 = vpop.permute.xlu0 %5446
  %5448 = vrot.lane.b32.xlu0 %v4620, 16
  %v5449 = vpop.permute.xlu0 %5448
  %5450 = vrot.lane.b32.xlu0 %v4621, 16
  %v5451 = vpop.permute.xlu0 %5450
  %5452 = vrot.lane.b32.xlu0 %v4622, 16
  %v5453 = vpop.permute.xlu0 %5452
  %5454 = vrot.lane.b32.xlu0 %v4623, 16
  %v5455 = vpop.permute.xlu0 %5454
  %5584 = vrot.lane.b32.xlu0 %v4624, 24
  %v5585 = vpop.permute.xlu0 %5584
  %5586 = vrot.lane.b32.xlu0 %v4625, 24
  %v5587 = vpop.permute.xlu0 %5586
  %5588 = vrot.lane.b32.xlu0 %v4626, 24
  %v5589 = vpop.permute.xlu0 %5588
  %5590 = vrot.lane.b32.xlu0 %v4627, 24
  %v5591 = vpop.permute.xlu0 %5590
  %5592 = vrot.lane.b32.xlu0 %v4628, 24
  %v5593 = vpop.permute.xlu0 %5592
  %5594 = vrot.lane.b32.xlu0 %v4629, 24
  %v5595 = vpop.permute.xlu0 %5594
  %5596 = vrot.lane.b32.xlu0 %v4630, 24
  %v5597 = vpop.permute.xlu0 %5596
  %5598 = vrot.lane.b32.xlu0 %v4631, 24
  %v5599 = vpop.permute.xlu0 %5598
  %5600 = vrot.lane.b32.xlu0 %v4632, 24
  %v5601 = vpop.permute.xlu0 %5600
  %5602 = vrot.lane.b32.xlu0 %v4633, 24
  %v5603 = vpop.permute.xlu0 %5602
  %5604 = vrot.lane.b32.xlu0 %v4634, 24
  %v5605 = vpop.permute.xlu0 %5604
  %5606 = vrot.lane.b32.xlu0 %v4635, 24
  %v5607 = vpop.permute.xlu0 %5606
  %5608 = vrot.lane.b32.xlu0 %v4636, 24
  %v5609 = vpop.permute.xlu0 %5608
  %5610 = vrot.lane.b32.xlu0 %v4637, 24
  %v5611 = vpop.permute.xlu0 %5610
  %5612 = vrot.lane.b32.xlu0 %v4638, 24
  %v5613 = vpop.permute.xlu0 %5612
  %5614 = vrot.lane.b32.xlu0 %v4639, 24
  %v5615 = vpop.permute.xlu0 %5614
  %5616 = vrot.lane.b32.xlu0 %v4640, 24
  %v5617 = vpop.permute.xlu0 %5616
  %5618 = vrot.lane.b32.xlu0 %v4641, 24
  %v5619 = vpop.permute.xlu0 %5618
  %5620 = vrot.lane.b32.xlu0 %v4642, 24
  %v5621 = vpop.permute.xlu0 %5620
  %5622 = vrot.lane.b32.xlu0 %v4643, 24
  %v5623 = vpop.permute.xlu0 %5622
  %5624 = vrot.lane.b32.xlu0 %v4644, 24
  %v5625 = vpop.permute.xlu0 %5624
  %5626 = vrot.lane.b32.xlu0 %v4645, 24
  %v5627 = vpop.permute.xlu0 %5626
  %5628 = vrot.lane.b32.xlu0 %v4646, 24
  %v5629 = vpop.permute.xlu0 %5628
  %5630 = vrot.lane.b32.xlu0 %v4647, 24
  %v5631 = vpop.permute.xlu0 %5630
  %5632 = vrot.lane.b32.xlu0 %v4648, 24
  %v5633 = vpop.permute.xlu0 %5632
  %5634 = vrot.lane.b32.xlu0 %v4649, 24
  %v5635 = vpop.permute.xlu0 %5634
  %5636 = vrot.lane.b32.xlu0 %v4650, 24
  %v5637 = vpop.permute.xlu0 %5636
  %5638 = vrot.lane.b32.xlu0 %v4651, 24
  %v5639 = vpop.permute.xlu0 %5638
  %5640 = vrot.lane.b32.xlu0 %v4652, 24
  %v5641 = vpop.permute.xlu0 %5640
  %5642 = vrot.lane.b32.xlu0 %v4653, 24
  %v5643 = vpop.permute.xlu0 %5642
  %5644 = vrot.lane.b32.xlu0 %v4654, 24
  %v5645 = vpop.permute.xlu0 %5644
  %5646 = vrot.lane.b32.xlu0 %v4655, 24
  %v5647 = vpop.permute.xlu0 %5646
  %5648 = vrot.lane.b32.xlu0 %v4656, 24
  %v5649 = vpop.permute.xlu0 %5648
  %5650 = vrot.lane.b32.xlu0 %v4657, 24
  %v5651 = vpop.permute.xlu0 %5650
  %5652 = vrot.lane.b32.xlu0 %v4658, 24
  %v5653 = vpop.permute.xlu0 %5652
  %5654 = vrot.lane.b32.xlu0 %v4659, 24
  %v5655 = vpop.permute.xlu0 %5654
  %5656 = vrot.lane.b32.xlu0 %v4660, 24
  %v5657 = vpop.permute.xlu0 %5656
  %5658 = vrot.lane.b32.xlu0 %v4661, 24
  %v5659 = vpop.permute.xlu0 %5658
  %5660 = vrot.lane.b32.xlu0 %v4662, 24
  %v5661 = vpop.permute.xlu0 %5660
  %5662 = vrot.lane.b32.xlu0 %v4663, 24
  %v5663 = vpop.permute.xlu0 %5662
  %5664 = vrot.lane.b32.xlu0 %v4664, 24
  %v5665 = vpop.permute.xlu0 %5664
  %5666 = vrot.lane.b32.xlu0 %v4665, 24
  %v5667 = vpop.permute.xlu0 %5666
  %5668 = vrot.lane.b32.xlu0 %v4666, 24
  %v5669 = vpop.permute.xlu0 %5668
  %5670 = vrot.lane.b32.xlu0 %v4667, 24
  %v5671 = vpop.permute.xlu0 %5670
  %5672 = vrot.lane.b32.xlu0 %v4668, 24
  %v5673 = vpop.permute.xlu0 %5672
  %5674 = vrot.lane.b32.xlu0 %v4669, 24
  %v5675 = vpop.permute.xlu0 %5674
  %5676 = vrot.lane.b32.xlu0 %v4670, 24
  %v5677 = vpop.permute.xlu0 %5676
  %5678 = vrot.lane.b32.xlu0 %v4671, 24
  %v5679 = vpop.permute.xlu0 %5678
  %5680 = vrot.lane.b32.xlu0 %v4672, 24
  %v5681 = vpop.permute.xlu0 %5680
  %5682 = vrot.lane.b32.xlu0 %v4673, 24
  %v5683 = vpop.permute.xlu0 %5682
  %5684 = vrot.lane.b32.xlu0 %v4674, 24
  %v5685 = vpop.permute.xlu0 %5684
  %5686 = vrot.lane.b32.xlu0 %v4675, 24
  %v5687 = vpop.permute.xlu0 %5686
  %5688 = vrot.lane.b32.xlu0 %v4676, 24
  %v5689 = vpop.permute.xlu0 %5688
  %5690 = vrot.lane.b32.xlu0 %v4677, 24
  %v5691 = vpop.permute.xlu0 %5690
  %5692 = vrot.lane.b32.xlu0 %v4678, 24
  %v5693 = vpop.permute.xlu0 %5692
  %5694 = vrot.lane.b32.xlu0 %v4679, 24
  %v5695 = vpop.permute.xlu0 %5694
  %5696 = vrot.lane.b32.xlu0 %v4680, 24
  %v5697 = vpop.permute.xlu0 %5696
  %5698 = vrot.lane.b32.xlu0 %v4681, 24
  %v5699 = vpop.permute.xlu0 %5698
  %5700 = vrot.lane.b32.xlu0 %v4682, 24
  %v5701 = vpop.permute.xlu0 %5700
  %5702 = vrot.lane.b32.xlu0 %v4683, 24
  %v5703 = vpop.permute.xlu0 %5702
  %5704 = vrot.lane.b32.xlu0 %v4684, 24
  %v5705 = vpop.permute.xlu0 %5704
  %5706 = vrot.lane.b32.xlu0 %v4685, 24
  %v5707 = vpop.permute.xlu0 %5706
  %5708 = vrot.lane.b32.xlu0 %v4686, 24
  %v5709 = vpop.permute.xlu0 %5708
  %5710 = vrot.lane.b32.xlu0 %v4687, 24
  %v5711 = vpop.permute.xlu0 %5710
  %5840 = vrot.lane.b32.xlu0 %v4688, 32
  %v5841 = vpop.permute.xlu0 %5840
  %5842 = vrot.lane.b32.xlu0 %v4689, 32
  %v5843 = vpop.permute.xlu0 %5842
  %5844 = vrot.lane.b32.xlu0 %v4690, 32
  %v5845 = vpop.permute.xlu0 %5844
  %5846 = vrot.lane.b32.xlu0 %v4691, 32
  %v5847 = vpop.permute.xlu0 %5846
  %5848 = vrot.lane.b32.xlu0 %v4692, 32
  %v5849 = vpop.permute.xlu0 %5848
  %5850 = vrot.lane.b32.xlu0 %v4693, 32
  %v5851 = vpop.permute.xlu0 %5850
  %5852 = vrot.lane.b32.xlu0 %v4694, 32
  %v5853 = vpop.permute.xlu0 %5852
  %5854 = vrot.lane.b32.xlu0 %v4695, 32
  %v5855 = vpop.permute.xlu0 %5854
  %5856 = vrot.lane.b32.xlu0 %v4696, 32
  %v5857 = vpop.permute.xlu0 %5856
  %5858 = vrot.lane.b32.xlu0 %v4697, 32
  %v5859 = vpop.permute.xlu0 %5858
  %5860 = vrot.lane.b32.xlu0 %v4698, 32
  %v5861 = vpop.permute.xlu0 %5860
  %5862 = vrot.lane.b32.xlu0 %v4699, 32
  %v5863 = vpop.permute.xlu0 %5862
  %5864 = vrot.lane.b32.xlu0 %v4700, 32
  %v5865 = vpop.permute.xlu0 %5864
  %5866 = vrot.lane.b32.xlu0 %v4701, 32
  %v5867 = vpop.permute.xlu0 %5866
  %5868 = vrot.lane.b32.xlu0 %v4702, 32
  %v5869 = vpop.permute.xlu0 %5868
  %5870 = vrot.lane.b32.xlu0 %v4703, 32
  %v5871 = vpop.permute.xlu0 %5870
  %5872 = vrot.lane.b32.xlu0 %v4704, 32
  %v5873 = vpop.permute.xlu0 %5872
  %5874 = vrot.lane.b32.xlu0 %v4705, 32
  %v5875 = vpop.permute.xlu0 %5874
  %5876 = vrot.lane.b32.xlu0 %v4706, 32
  %v5877 = vpop.permute.xlu0 %5876
  %5878 = vrot.lane.b32.xlu0 %v4707, 32
  %v5879 = vpop.permute.xlu0 %5878
  %5880 = vrot.lane.b32.xlu0 %v4708, 32
  %v5881 = vpop.permute.xlu0 %5880
  %5882 = vrot.lane.b32.xlu0 %v4709, 32
  %v5883 = vpop.permute.xlu0 %5882
  %5884 = vrot.lane.b32.xlu0 %v4710, 32
  %v5885 = vpop.permute.xlu0 %5884
  %5886 = vrot.lane.b32.xlu0 %v4711, 32
  %v5887 = vpop.permute.xlu0 %5886
  %5888 = vrot.lane.b32.xlu0 %v4712, 32
  %v5889 = vpop.permute.xlu0 %5888
  %5890 = vrot.lane.b32.xlu0 %v4713, 32
  %v5891 = vpop.permute.xlu0 %5890
  %5892 = vrot.lane.b32.xlu0 %v4714, 32
  %v5893 = vpop.permute.xlu0 %5892
  %5894 = vrot.lane.b32.xlu0 %v4715, 32
  %v5895 = vpop.permute.xlu0 %5894
  %5896 = vrot.lane.b32.xlu0 %v4716, 32
  %v5897 = vpop.permute.xlu0 %5896
  %5898 = vrot.lane.b32.xlu0 %v4717, 32
  %v5899 = vpop.permute.xlu0 %5898
  %5900 = vrot.lane.b32.xlu0 %v4718, 32
  %v5901 = vpop.permute.xlu0 %5900
  %5902 = vrot.lane.b32.xlu0 %v4719, 32
  %v5903 = vpop.permute.xlu0 %5902
  %5904 = vrot.lane.b32.xlu0 %v4720, 32
  %v5905 = vpop.permute.xlu0 %5904
  %5906 = vrot.lane.b32.xlu0 %v4721, 32
  %v5907 = vpop.permute.xlu0 %5906
  %5908 = vrot.lane.b32.xlu0 %v4722, 32
  %v5909 = vpop.permute.xlu0 %5908
  %5910 = vrot.lane.b32.xlu0 %v4723, 32
  %v5911 = vpop.permute.xlu0 %5910
  %5912 = vrot.lane.b32.xlu0 %v4724, 32
  %v5913 = vpop.permute.xlu0 %5912
  %5914 = vrot.lane.b32.xlu0 %v4725, 32
  %v5915 = vpop.permute.xlu0 %5914
  %5916 = vrot.lane.b32.xlu0 %v4726, 32
  %v5917 = vpop.permute.xlu0 %5916
  %5918 = vrot.lane.b32.xlu0 %v4727, 32
  %v5919 = vpop.permute.xlu0 %5918
  %5920 = vrot.lane.b32.xlu0 %v4728, 32
  %v5921 = vpop.permute.xlu0 %5920
  %5922 = vrot.lane.b32.xlu0 %v4729, 32
  %v5923 = vpop.permute.xlu0 %5922
  %5924 = vrot.lane.b32.xlu0 %v4730, 32
  %v5925 = vpop.permute.xlu0 %5924
  %5926 = vrot.lane.b32.xlu0 %v4731, 32
  %v5927 = vpop.permute.xlu0 %5926
  %5928 = vrot.lane.b32.xlu0 %v4732, 32
  %v5929 = vpop.permute.xlu0 %5928
  %5930 = vrot.lane.b32.xlu0 %v4733, 32
  %v5931 = vpop.permute.xlu0 %5930
  %5932 = vrot.lane.b32.xlu0 %v4734, 32
  %v5933 = vpop.permute.xlu0 %5932
  %5934 = vrot.lane.b32.xlu0 %v4735, 32
  %v5935 = vpop.permute.xlu0 %5934
  %5936 = vrot.lane.b32.xlu0 %v4736, 32
  %v5937 = vpop.permute.xlu0 %5936
  %5938 = vrot.lane.b32.xlu0 %v4737, 32
  %v5939 = vpop.permute.xlu0 %5938
  %5940 = vrot.lane.b32.xlu0 %v4738, 32
  %v5941 = vpop.permute.xlu0 %5940
  %5942 = vrot.lane.b32.xlu0 %v4739, 32
  %v5943 = vpop.permute.xlu0 %5942
  %5944 = vrot.lane.b32.xlu0 %v4740, 32
  %v5945 = vpop.permute.xlu0 %5944
  %5946 = vrot.lane.b32.xlu0 %v4741, 32
  %v5947 = vpop.permute.xlu0 %5946
  %5948 = vrot.lane.b32.xlu0 %v4742, 32
  %v5949 = vpop.permute.xlu0 %5948
  %5950 = vrot.lane.b32.xlu0 %v4743, 32
  %v5951 = vpop.permute.xlu0 %5950
  %5952 = vrot.lane.b32.xlu0 %v4744, 32
  %v5953 = vpop.permute.xlu0 %5952
  %5954 = vrot.lane.b32.xlu0 %v4745, 32
  %v5955 = vpop.permute.xlu0 %5954
  %5956 = vrot.lane.b32.xlu0 %v4746, 32
  %v5957 = vpop.permute.xlu0 %5956
  %5958 = vrot.lane.b32.xlu0 %v4747, 32
  %v5959 = vpop.permute.xlu0 %5958
  %5960 = vrot.lane.b32.xlu0 %v4748, 32
  %v5961 = vpop.permute.xlu0 %5960
  %5962 = vrot.lane.b32.xlu0 %v4749, 32
  %v5963 = vpop.permute.xlu0 %5962
  %5964 = vrot.lane.b32.xlu0 %v4750, 32
  %v5965 = vpop.permute.xlu0 %5964
  %5966 = vrot.lane.b32.xlu0 %v4751, 32
  %v5967 = vpop.permute.xlu0 %5966
  %6096 = vrot.lane.b32.xlu0 %v4752, 40
  %v6097 = vpop.permute.xlu0 %6096
  %6098 = vrot.lane.b32.xlu0 %v4753, 40
  %v6099 = vpop.permute.xlu0 %6098
  %6100 = vrot.lane.b32.xlu0 %v4754, 40
  %v6101 = vpop.permute.xlu0 %6100
  %6102 = vrot.lane.b32.xlu0 %v4755, 40
  %v6103 = vpop.permute.xlu0 %6102
  %6104 = vrot.lane.b32.xlu0 %v4756, 40
  %v6105 = vpop.permute.xlu0 %6104
  %6106 = vrot.lane.b32.xlu0 %v4757, 40
  %v6107 = vpop.permute.xlu0 %6106
  %6108 = vrot.lane.b32.xlu0 %v4758, 40
  %v6109 = vpop.permute.xlu0 %6108
  %6110 = vrot.lane.b32.xlu0 %v4759, 40
  %v6111 = vpop.permute.xlu0 %6110
  %6112 = vrot.lane.b32.xlu0 %v4760, 40
  %v6113 = vpop.permute.xlu0 %6112
  %6114 = vrot.lane.b32.xlu0 %v4761, 40
  %v6115 = vpop.permute.xlu0 %6114
  %6116 = vrot.lane.b32.xlu0 %v4762, 40
  %v6117 = vpop.permute.xlu0 %6116
  %6118 = vrot.lane.b32.xlu0 %v4763, 40
  %v6119 = vpop.permute.xlu0 %6118
  %6120 = vrot.lane.b32.xlu0 %v4764, 40
  %v6121 = vpop.permute.xlu0 %6120
  %6122 = vrot.lane.b32.xlu0 %v4765, 40
  %v6123 = vpop.permute.xlu0 %6122
  %6124 = vrot.lane.b32.xlu0 %v4766, 40
  %v6125 = vpop.permute.xlu0 %6124
  %6126 = vrot.lane.b32.xlu0 %v4767, 40
  %v6127 = vpop.permute.xlu0 %6126
  %6128 = vrot.lane.b32.xlu0 %v4768, 40
  %v6129 = vpop.permute.xlu0 %6128
  %6130 = vrot.lane.b32.xlu0 %v4769, 40
  %v6131 = vpop.permute.xlu0 %6130
  %6132 = vrot.lane.b32.xlu0 %v4770, 40
  %v6133 = vpop.permute.xlu0 %6132
  %6134 = vrot.lane.b32.xlu0 %v4771, 40
  %v6135 = vpop.permute.xlu0 %6134
  %6136 = vrot.lane.b32.xlu0 %v4772, 40
  %v6137 = vpop.permute.xlu0 %6136
  %6138 = vrot.lane.b32.xlu0 %v4773, 40
  %v6139 = vpop.permute.xlu0 %6138
  %6140 = vrot.lane.b32.xlu0 %v4774, 40
  %v6141 = vpop.permute.xlu0 %6140
  %6142 = vrot.lane.b32.xlu0 %v4775, 40
  %v6143 = vpop.permute.xlu0 %6142
  %6144 = vrot.lane.b32.xlu0 %v4776, 40
  %v6145 = vpop.permute.xlu0 %6144
  %6146 = vrot.lane.b32.xlu0 %v4777, 40
  %v6147 = vpop.permute.xlu0 %6146
  %6148 = vrot.lane.b32.xlu0 %v4778, 40
  %v6149 = vpop.permute.xlu0 %6148
  %6150 = vrot.lane.b32.xlu0 %v4779, 40
  %v6151 = vpop.permute.xlu0 %6150
  %6152 = vrot.lane.b32.xlu0 %v4780, 40
  %v6153 = vpop.permute.xlu0 %6152
  %6154 = vrot.lane.b32.xlu0 %v4781, 40
  %v6155 = vpop.permute.xlu0 %6154
  %6156 = vrot.lane.b32.xlu0 %v4782, 40
  %v6157 = vpop.permute.xlu0 %6156
  %6158 = vrot.lane.b32.xlu0 %v4783, 40
  %v6159 = vpop.permute.xlu0 %6158
  %6160 = vrot.lane.b32.xlu0 %v4784, 40
  %v6161 = vpop.permute.xlu0 %6160
  %6162 = vrot.lane.b32.xlu0 %v4785, 40
  %v6163 = vpop.permute.xlu0 %6162
  %6164 = vrot.lane.b32.xlu0 %v4786, 40
  %v6165 = vpop.permute.xlu0 %6164
  %6166 = vrot.lane.b32.xlu0 %v4787, 40
  %v6167 = vpop.permute.xlu0 %6166
  %6168 = vrot.lane.b32.xlu0 %v4788, 40
  %v6169 = vpop.permute.xlu0 %6168
  %6170 = vrot.lane.b32.xlu0 %v4789, 40
  %v6171 = vpop.permute.xlu0 %6170
  %6172 = vrot.lane.b32.xlu0 %v4790, 40
  %v6173 = vpop.permute.xlu0 %6172
  %6174 = vrot.lane.b32.xlu0 %v4791, 40
  %v6175 = vpop.permute.xlu0 %6174
  %6176 = vrot.lane.b32.xlu0 %v4792, 40
  %v6177 = vpop.permute.xlu0 %6176
  %6178 = vrot.lane.b32.xlu0 %v4793, 40
  %v6179 = vpop.permute.xlu0 %6178
  %6180 = vrot.lane.b32.xlu0 %v4794, 40
  %v6181 = vpop.permute.xlu0 %6180
  %6182 = vrot.lane.b32.xlu0 %v4795, 40
  %v6183 = vpop.permute.xlu0 %6182
  %6184 = vrot.lane.b32.xlu0 %v4796, 40
  %v6185 = vpop.permute.xlu0 %6184
  %6186 = vrot.lane.b32.xlu0 %v4797, 40
  %v6187 = vpop.permute.xlu0 %6186
  %6188 = vrot.lane.b32.xlu0 %v4798, 40
  %v6189 = vpop.permute.xlu0 %6188
  %6190 = vrot.lane.b32.xlu0 %v4799, 40
  %v6191 = vpop.permute.xlu0 %6190
  %6192 = vrot.lane.b32.xlu0 %v4800, 40
  %v6193 = vpop.permute.xlu0 %6192
  %6194 = vrot.lane.b32.xlu0 %v4801, 40
  %v6195 = vpop.permute.xlu0 %6194
  %6196 = vrot.lane.b32.xlu0 %v4802, 40
  %v6197 = vpop.permute.xlu0 %6196
  %6198 = vrot.lane.b32.xlu0 %v4803, 40
  %v6199 = vpop.permute.xlu0 %6198
  %6200 = vrot.lane.b32.xlu0 %v4804, 40
  %v6201 = vpop.permute.xlu0 %6200
  %6202 = vrot.lane.b32.xlu0 %v4805, 40
  %v6203 = vpop.permute.xlu0 %6202
  %6204 = vrot.lane.b32.xlu0 %v4806, 40
  %v6205 = vpop.permute.xlu0 %6204
  %6206 = vrot.lane.b32.xlu0 %v4807, 40
  %v6207 = vpop.permute.xlu0 %6206
  %6208 = vrot.lane.b32.xlu0 %v4808, 40
  %v6209 = vpop.permute.xlu0 %6208
  %6210 = vrot.lane.b32.xlu0 %v4809, 40
  %v6211 = vpop.permute.xlu0 %6210
  %6212 = vrot.lane.b32.xlu0 %v4810, 40
  %v6213 = vpop.permute.xlu0 %6212
  %6214 = vrot.lane.b32.xlu0 %v4811, 40
  %v6215 = vpop.permute.xlu0 %6214
  %6216 = vrot.lane.b32.xlu0 %v4812, 40
  %v6217 = vpop.permute.xlu0 %6216
  %6218 = vrot.lane.b32.xlu0 %v4813, 40
  %v6219 = vpop.permute.xlu0 %6218
  %6220 = vrot.lane.b32.xlu0 %v4814, 40
  %v6221 = vpop.permute.xlu0 %6220
  %6222 = vrot.lane.b32.xlu0 %v4815, 40
  %v6223 = vpop.permute.xlu0 %6222
  %6352 = vrot.lane.b32.xlu0 %v4816, 48
  %v6353 = vpop.permute.xlu0 %6352
  %6354 = vrot.lane.b32.xlu0 %v4817, 48
  %v6355 = vpop.permute.xlu0 %6354
  %6356 = vrot.lane.b32.xlu0 %v4818, 48
  %v6357 = vpop.permute.xlu0 %6356
  %6358 = vrot.lane.b32.xlu0 %v4819, 48
  %v6359 = vpop.permute.xlu0 %6358
  %6360 = vrot.lane.b32.xlu0 %v4820, 48
  %v6361 = vpop.permute.xlu0 %6360
  %6362 = vrot.lane.b32.xlu0 %v4821, 48
  %v6363 = vpop.permute.xlu0 %6362
  %6364 = vrot.lane.b32.xlu0 %v4822, 48
  %v6365 = vpop.permute.xlu0 %6364
  %6366 = vrot.lane.b32.xlu0 %v4823, 48
  %v6367 = vpop.permute.xlu0 %6366
  %6368 = vrot.lane.b32.xlu0 %v4824, 48
  %v6369 = vpop.permute.xlu0 %6368
  %6370 = vrot.lane.b32.xlu0 %v4825, 48
  %v6371 = vpop.permute.xlu0 %6370
  %6372 = vrot.lane.b32.xlu0 %v4826, 48
  %v6373 = vpop.permute.xlu0 %6372
  %6374 = vrot.lane.b32.xlu0 %v4827, 48
  %v6375 = vpop.permute.xlu0 %6374
  %6376 = vrot.lane.b32.xlu0 %v4828, 48
  %v6377 = vpop.permute.xlu0 %6376
  %6378 = vrot.lane.b32.xlu0 %v4829, 48
  %v6379 = vpop.permute.xlu0 %6378
  %6380 = vrot.lane.b32.xlu0 %v4830, 48
  %v6381 = vpop.permute.xlu0 %6380
  %6382 = vrot.lane.b32.xlu0 %v4831, 48
  %v6383 = vpop.permute.xlu0 %6382
  %6384 = vrot.lane.b32.xlu0 %v4832, 48
  %v6385 = vpop.permute.xlu0 %6384
  %6386 = vrot.lane.b32.xlu0 %v4833, 48
  %v6387 = vpop.permute.xlu0 %6386
  %6388 = vrot.lane.b32.xlu0 %v4834, 48
  %v6389 = vpop.permute.xlu0 %6388
  %6390 = vrot.lane.b32.xlu0 %v4835, 48
  %v6391 = vpop.permute.xlu0 %6390
  %6392 = vrot.lane.b32.xlu0 %v4836, 48
  %v6393 = vpop.permute.xlu0 %6392
  %6394 = vrot.lane.b32.xlu0 %v4837, 48
  %v6395 = vpop.permute.xlu0 %6394
  %6396 = vrot.lane.b32.xlu0 %v4838, 48
  %v6397 = vpop.permute.xlu0 %6396
  %6398 = vrot.lane.b32.xlu0 %v4839, 48
  %v6399 = vpop.permute.xlu0 %6398
  %6400 = vrot.lane.b32.xlu0 %v4840, 48
  %v6401 = vpop.permute.xlu0 %6400
  %6402 = vrot.lane.b32.xlu0 %v4841, 48
  %v6403 = vpop.permute.xlu0 %6402
  %6404 = vrot.lane.b32.xlu0 %v4842, 48
  %v6405 = vpop.permute.xlu0 %6404
  %6406 = vrot.lane.b32.xlu0 %v4843, 48
  %v6407 = vpop.permute.xlu0 %6406
  %6408 = vrot.lane.b32.xlu0 %v4844, 48
  %v6409 = vpop.permute.xlu0 %6408
  %6410 = vrot.lane.b32.xlu0 %v4845, 48
  %v6411 = vpop.permute.xlu0 %6410
  %6412 = vrot.lane.b32.xlu0 %v4846, 48
  %v6413 = vpop.permute.xlu0 %6412
  %6414 = vrot.lane.b32.xlu0 %v4847, 48
  %v6415 = vpop.permute.xlu0 %6414
  %6416 = vrot.lane.b32.xlu0 %v4848, 48
  %v6417 = vpop.permute.xlu0 %6416
  %6418 = vrot.lane.b32.xlu0 %v4849, 48
  %v6419 = vpop.permute.xlu0 %6418
  %6420 = vrot.lane.b32.xlu0 %v4850, 48
  %v6421 = vpop.permute.xlu0 %6420
  %6422 = vrot.lane.b32.xlu0 %v4851, 48
  %v6423 = vpop.permute.xlu0 %6422
  %6424 = vrot.lane.b32.xlu0 %v4852, 48
  %v6425 = vpop.permute.xlu0 %6424
  %6426 = vrot.lane.b32.xlu0 %v4853, 48
  %v6427 = vpop.permute.xlu0 %6426
  %6428 = vrot.lane.b32.xlu0 %v4854, 48
  %v6429 = vpop.permute.xlu0 %6428
  %6430 = vrot.lane.b32.xlu0 %v4855, 48
  %v6431 = vpop.permute.xlu0 %6430
  %6432 = vrot.lane.b32.xlu0 %v4856, 48
  %v6433 = vpop.permute.xlu0 %6432
  %6434 = vrot.lane.b32.xlu0 %v4857, 48
  %v6435 = vpop.permute.xlu0 %6434
  %6436 = vrot.lane.b32.xlu0 %v4858, 48
  %v6437 = vpop.permute.xlu0 %6436
  %6438 = vrot.lane.b32.xlu0 %v4859, 48
  %v6439 = vpop.permute.xlu0 %6438
  %6440 = vrot.lane.b32.xlu0 %v4860, 48
  %v6441 = vpop.permute.xlu0 %6440
  %6442 = vrot.lane.b32.xlu0 %v4861, 48
  %v6443 = vpop.permute.xlu0 %6442
  %6444 = vrot.lane.b32.xlu0 %v4862, 48
  %v6445 = vpop.permute.xlu0 %6444
  %6446 = vrot.lane.b32.xlu0 %v4863, 48
  %v6447 = vpop.permute.xlu0 %6446
  %6448 = vrot.lane.b32.xlu0 %v4864, 48
  %v6449 = vpop.permute.xlu0 %6448
  %6450 = vrot.lane.b32.xlu0 %v4865, 48
  %v6451 = vpop.permute.xlu0 %6450
  %6452 = vrot.lane.b32.xlu0 %v4866, 48
  %v6453 = vpop.permute.xlu0 %6452
  %6454 = vrot.lane.b32.xlu0 %v4867, 48
  %v6455 = vpop.permute.xlu0 %6454
  %6456 = vrot.lane.b32.xlu0 %v4868, 48
  %v6457 = vpop.permute.xlu0 %6456
  %6458 = vrot.lane.b32.xlu0 %v4869, 48
  %v6459 = vpop.permute.xlu0 %6458
  %6460 = vrot.lane.b32.xlu0 %v4870, 48
  %v6461 = vpop.permute.xlu0 %6460
  %6462 = vrot.lane.b32.xlu0 %v4871, 48
  %v6463 = vpop.permute.xlu0 %6462
  %6464 = vrot.lane.b32.xlu0 %v4872, 48
  %v6465 = vpop.permute.xlu0 %6464
  %6466 = vrot.lane.b32.xlu0 %v4873, 48
  %v6467 = vpop.permute.xlu0 %6466
  %6468 = vrot.lane.b32.xlu0 %v4874, 48
  %v6469 = vpop.permute.xlu0 %6468
  %6470 = vrot.lane.b32.xlu0 %v4875, 48
  %v6471 = vpop.permute.xlu0 %6470
  %6472 = vrot.lane.b32.xlu0 %v4876, 48
  %v6473 = vpop.permute.xlu0 %6472
  %6474 = vrot.lane.b32.xlu0 %v4877, 48
  %v6475 = vpop.permute.xlu0 %6474
  %6476 = vrot.lane.b32.xlu0 %v4878, 48
  %v6477 = vpop.permute.xlu0 %6476
  %6478 = vrot.lane.b32.xlu0 %v4879, 48
  %v6479 = vpop.permute.xlu0 %6478
  %6608 = vrot.lane.b32.xlu0 %v4880, 56
  %v6609 = vpop.permute.xlu0 %6608
  %6610 = vrot.lane.b32.xlu0 %v4881, 56
  %v6611 = vpop.permute.xlu0 %6610
  %6612 = vrot.lane.b32.xlu0 %v4882, 56
  %v6613 = vpop.permute.xlu0 %6612
  %6614 = vrot.lane.b32.xlu0 %v4883, 56
  %v6615 = vpop.permute.xlu0 %6614
  %6616 = vrot.lane.b32.xlu0 %v4884, 56
  %v6617 = vpop.permute.xlu0 %6616
  %6618 = vrot.lane.b32.xlu0 %v4885, 56
  %v6619 = vpop.permute.xlu0 %6618
  %6620 = vrot.lane.b32.xlu0 %v4886, 56
  %v6621 = vpop.permute.xlu0 %6620
  %6622 = vrot.lane.b32.xlu0 %v4887, 56
  %v6623 = vpop.permute.xlu0 %6622
  %6624 = vrot.lane.b32.xlu0 %v4888, 56
  %v6625 = vpop.permute.xlu0 %6624
  %6626 = vrot.lane.b32.xlu0 %v4889, 56
  %v6627 = vpop.permute.xlu0 %6626
  %6628 = vrot.lane.b32.xlu0 %v4890, 56
  %v6629 = vpop.permute.xlu0 %6628
  %6630 = vrot.lane.b32.xlu0 %v4891, 56
  %v6631 = vpop.permute.xlu0 %6630
  %6632 = vrot.lane.b32.xlu0 %v4892, 56
  %v6633 = vpop.permute.xlu0 %6632
  %6634 = vrot.lane.b32.xlu0 %v4893, 56
  %v6635 = vpop.permute.xlu0 %6634
  %6636 = vrot.lane.b32.xlu0 %v4894, 56
  %v6637 = vpop.permute.xlu0 %6636
  %6638 = vrot.lane.b32.xlu0 %v4895, 56
  %v6639 = vpop.permute.xlu0 %6638
  %6640 = vrot.lane.b32.xlu0 %v4896, 56
  %v6641 = vpop.permute.xlu0 %6640
  %6642 = vrot.lane.b32.xlu0 %v4897, 56
  %v6643 = vpop.permute.xlu0 %6642
  %6644 = vrot.lane.b32.xlu0 %v4898, 56
  %v6645 = vpop.permute.xlu0 %6644
  %6646 = vrot.lane.b32.xlu0 %v4899, 56
  %v6647 = vpop.permute.xlu0 %6646
  %6648 = vrot.lane.b32.xlu0 %v4900, 56
  %v6649 = vpop.permute.xlu0 %6648
  %6650 = vrot.lane.b32.xlu0 %v4901, 56
  %v6651 = vpop.permute.xlu0 %6650
  %6652 = vrot.lane.b32.xlu0 %v4902, 56
  %v6653 = vpop.permute.xlu0 %6652
  %6654 = vrot.lane.b32.xlu0 %v4903, 56
  %v6655 = vpop.permute.xlu0 %6654
  %6656 = vrot.lane.b32.xlu0 %v4904, 56
  %v6657 = vpop.permute.xlu0 %6656
  %6658 = vrot.lane.b32.xlu0 %v4905, 56
  %v6659 = vpop.permute.xlu0 %6658
  %6660 = vrot.lane.b32.xlu0 %v4906, 56
  %v6661 = vpop.permute.xlu0 %6660
  %6662 = vrot.lane.b32.xlu0 %v4907, 56
  %v6663 = vpop.permute.xlu0 %6662
  %6664 = vrot.lane.b32.xlu0 %v4908, 56
  %v6665 = vpop.permute.xlu0 %6664
  %6666 = vrot.lane.b32.xlu0 %v4909, 56
  %v6667 = vpop.permute.xlu0 %6666
  %6668 = vrot.lane.b32.xlu0 %v4910, 56
  %v6669 = vpop.permute.xlu0 %6668
  %6670 = vrot.lane.b32.xlu0 %v4911, 56
  %v6671 = vpop.permute.xlu0 %6670
  %6672 = vrot.lane.b32.xlu0 %v4912, 56
  %v6673 = vpop.permute.xlu0 %6672
  %6674 = vrot.lane.b32.xlu0 %v4913, 56
  %v6675 = vpop.permute.xlu0 %6674
  %6676 = vrot.lane.b32.xlu0 %v4914, 56
  %v6677 = vpop.permute.xlu0 %6676
  %6678 = vrot.lane.b32.xlu0 %v4915, 56
  %v6679 = vpop.permute.xlu0 %6678
  %6680 = vrot.lane.b32.xlu0 %v4916, 56
  %v6681 = vpop.permute.xlu0 %6680
  %6682 = vrot.lane.b32.xlu0 %v4917, 56
  %v6683 = vpop.permute.xlu0 %6682
  %6684 = vrot.lane.b32.xlu0 %v4918, 56
  %v6685 = vpop.permute.xlu0 %6684
  %6686 = vrot.lane.b32.xlu0 %v4919, 56
  %v6687 = vpop.permute.xlu0 %6686
  %6688 = vrot.lane.b32.xlu0 %v4920, 56
  %v6689 = vpop.permute.xlu0 %6688
  %6690 = vrot.lane.b32.xlu0 %v4921, 56
  %v6691 = vpop.permute.xlu0 %6690
  %6692 = vrot.lane.b32.xlu0 %v4922, 56
  %v6693 = vpop.permute.xlu0 %6692
  %6694 = vrot.lane.b32.xlu0 %v4923, 56
  %v6695 = vpop.permute.xlu0 %6694
  %6696 = vrot.lane.b32.xlu0 %v4924, 56
  %v6697 = vpop.permute.xlu0 %6696
  %6698 = vrot.lane.b32.xlu0 %v4925, 56
  %v6699 = vpop.permute.xlu0 %6698
  %6700 = vrot.lane.b32.xlu0 %v4926, 56
  %v6701 = vpop.permute.xlu0 %6700
  %6702 = vrot.lane.b32.xlu0 %v4927, 56
  %v6703 = vpop.permute.xlu0 %6702
  %6704 = vrot.lane.b32.xlu0 %v4928, 56
  %v6705 = vpop.permute.xlu0 %6704
  %6706 = vrot.lane.b32.xlu0 %v4929, 56
  %v6707 = vpop.permute.xlu0 %6706
  %6708 = vrot.lane.b32.xlu0 %v4930, 56
  %v6709 = vpop.permute.xlu0 %6708
  %6710 = vrot.lane.b32.xlu0 %v4931, 56
  %v6711 = vpop.permute.xlu0 %6710
  %6712 = vrot.lane.b32.xlu0 %v4932, 56
  %v6713 = vpop.permute.xlu0 %6712
  %6714 = vrot.lane.b32.xlu0 %v4933, 56
  %v6715 = vpop.permute.xlu0 %6714
  %6716 = vrot.lane.b32.xlu0 %v4934, 56
  %v6717 = vpop.permute.xlu0 %6716
  %6718 = vrot.lane.b32.xlu0 %v4935, 56
  %v6719 = vpop.permute.xlu0 %6718
  %6720 = vrot.lane.b32.xlu0 %v4936, 56
  %v6721 = vpop.permute.xlu0 %6720
  %6722 = vrot.lane.b32.xlu0 %v4937, 56
  %v6723 = vpop.permute.xlu0 %6722
  %6724 = vrot.lane.b32.xlu0 %v4938, 56
  %v6725 = vpop.permute.xlu0 %6724
  %6726 = vrot.lane.b32.xlu0 %v4939, 56
  %v6727 = vpop.permute.xlu0 %6726
  %6728 = vrot.lane.b32.xlu0 %v4940, 56
  %v6729 = vpop.permute.xlu0 %6728
  %6730 = vrot.lane.b32.xlu0 %v4941, 56
  %v6731 = vpop.permute.xlu0 %6730
  %6732 = vrot.lane.b32.xlu0 %v4942, 56
  %v6733 = vpop.permute.xlu0 %6732
  %6734 = vrot.lane.b32.xlu0 %v4943, 56
  %v6735 = vpop.permute.xlu0 %6734
  %6864 = vrot.lane.b32.xlu0 %v4944, 64
  %v6865 = vpop.permute.xlu0 %6864
  %6866 = vrot.lane.b32.xlu0 %v4945, 64
  %v6867 = vpop.permute.xlu0 %6866
  %6868 = vrot.lane.b32.xlu0 %v4946, 64
  %v6869 = vpop.permute.xlu0 %6868
  %6870 = vrot.lane.b32.xlu0 %v4947, 64
  %v6871 = vpop.permute.xlu0 %6870
  %6872 = vrot.lane.b32.xlu0 %v4948, 64
  %v6873 = vpop.permute.xlu0 %6872
  %6874 = vrot.lane.b32.xlu0 %v4949, 64
  %v6875 = vpop.permute.xlu0 %6874
  %6876 = vrot.lane.b32.xlu0 %v4950, 64
  %v6877 = vpop.permute.xlu0 %6876
  %6878 = vrot.lane.b32.xlu0 %v4951, 64
  %v6879 = vpop.permute.xlu0 %6878
  %6880 = vrot.lane.b32.xlu0 %v4952, 64
  %v6881 = vpop.permute.xlu0 %6880
  %6882 = vrot.lane.b32.xlu0 %v4953, 64
  %v6883 = vpop.permute.xlu0 %6882
  %6884 = vrot.lane.b32.xlu0 %v4954, 64
  %v6885 = vpop.permute.xlu0 %6884
  %6886 = vrot.lane.b32.xlu0 %v4955, 64
  %v6887 = vpop.permute.xlu0 %6886
  %6888 = vrot.lane.b32.xlu0 %v4956, 64
  %v6889 = vpop.permute.xlu0 %6888
  %6890 = vrot.lane.b32.xlu0 %v4957, 64
  %v6891 = vpop.permute.xlu0 %6890
  %6892 = vrot.lane.b32.xlu0 %v4958, 64
  %v6893 = vpop.permute.xlu0 %6892
  %6894 = vrot.lane.b32.xlu0 %v4959, 64
  %v6895 = vpop.permute.xlu0 %6894
  %6896 = vrot.lane.b32.xlu0 %v4960, 64
  %v6897 = vpop.permute.xlu0 %6896
  %6898 = vrot.lane.b32.xlu0 %v4961, 64
  %v6899 = vpop.permute.xlu0 %6898
  %6900 = vrot.lane.b32.xlu0 %v4962, 64
  %v6901 = vpop.permute.xlu0 %6900
  %6902 = vrot.lane.b32.xlu0 %v4963, 64
  %v6903 = vpop.permute.xlu0 %6902
  %6904 = vrot.lane.b32.xlu0 %v4964, 64
  %v6905 = vpop.permute.xlu0 %6904
  %6906 = vrot.lane.b32.xlu0 %v4965, 64
  %v6907 = vpop.permute.xlu0 %6906
  %6908 = vrot.lane.b32.xlu0 %v4966, 64
  %v6909 = vpop.permute.xlu0 %6908
  %6910 = vrot.lane.b32.xlu0 %v4967, 64
  %v6911 = vpop.permute.xlu0 %6910
  %6912 = vrot.lane.b32.xlu0 %v4968, 64
  %v6913 = vpop.permute.xlu0 %6912
  %6914 = vrot.lane.b32.xlu0 %v4969, 64
  %v6915 = vpop.permute.xlu0 %6914
  %6916 = vrot.lane.b32.xlu0 %v4970, 64
  %v6917 = vpop.permute.xlu0 %6916
  %6918 = vrot.lane.b32.xlu0 %v4971, 64
  %v6919 = vpop.permute.xlu0 %6918
  %6920 = vrot.lane.b32.xlu0 %v4972, 64
  %v6921 = vpop.permute.xlu0 %6920
  %6922 = vrot.lane.b32.xlu0 %v4973, 64
  %v6923 = vpop.permute.xlu0 %6922
  %6924 = vrot.lane.b32.xlu0 %v4974, 64
  %v6925 = vpop.permute.xlu0 %6924
  %6926 = vrot.lane.b32.xlu0 %v4975, 64
  %v6927 = vpop.permute.xlu0 %6926
  %6928 = vrot.lane.b32.xlu0 %v4976, 64
  %v6929 = vpop.permute.xlu0 %6928
  %6930 = vrot.lane.b32.xlu0 %v4977, 64
  %v6931 = vpop.permute.xlu0 %6930
  %6932 = vrot.lane.b32.xlu0 %v4978, 64
  %v6933 = vpop.permute.xlu0 %6932
  %6934 = vrot.lane.b32.xlu0 %v4979, 64
  %v6935 = vpop.permute.xlu0 %6934
  %6936 = vrot.lane.b32.xlu0 %v4980, 64
  %v6937 = vpop.permute.xlu0 %6936
  %6938 = vrot.lane.b32.xlu0 %v4981, 64
  %v6939 = vpop.permute.xlu0 %6938
  %6940 = vrot.lane.b32.xlu0 %v4982, 64
  %v6941 = vpop.permute.xlu0 %6940
  %6942 = vrot.lane.b32.xlu0 %v4983, 64
  %v6943 = vpop.permute.xlu0 %6942
  %6944 = vrot.lane.b32.xlu0 %v4984, 64
  %v6945 = vpop.permute.xlu0 %6944
  %6946 = vrot.lane.b32.xlu0 %v4985, 64
  %v6947 = vpop.permute.xlu0 %6946
  %6948 = vrot.lane.b32.xlu0 %v4986, 64
  %v6949 = vpop.permute.xlu0 %6948
  %6950 = vrot.lane.b32.xlu0 %v4987, 64
  %v6951 = vpop.permute.xlu0 %6950
  %6952 = vrot.lane.b32.xlu0 %v4988, 64
  %v6953 = vpop.permute.xlu0 %6952
  %6954 = vrot.lane.b32.xlu0 %v4989, 64
  %v6955 = vpop.permute.xlu0 %6954
  %6956 = vrot.lane.b32.xlu0 %v4990, 64
  %v6957 = vpop.permute.xlu0 %6956
  %6958 = vrot.lane.b32.xlu0 %v4991, 64
  %v6959 = vpop.permute.xlu0 %6958
  %6960 = vrot.lane.b32.xlu0 %v4992, 64
  %v6961 = vpop.permute.xlu0 %6960
  %6962 = vrot.lane.b32.xlu0 %v4993, 64
  %v6963 = vpop.permute.xlu0 %6962
  %6964 = vrot.lane.b32.xlu0 %v4994, 64
  %v6965 = vpop.permute.xlu0 %6964
  %6966 = vrot.lane.b32.xlu0 %v4995, 64
  %v6967 = vpop.permute.xlu0 %6966
  %6968 = vrot.lane.b32.xlu0 %v4996, 64
  %v6969 = vpop.permute.xlu0 %6968
  %6970 = vrot.lane.b32.xlu0 %v4997, 64
  %v6971 = vpop.permute.xlu0 %6970
  %6972 = vrot.lane.b32.xlu0 %v4998, 64
  %v6973 = vpop.permute.xlu0 %6972
  %6974 = vrot.lane.b32.xlu0 %v4999, 64
  %v6975 = vpop.permute.xlu0 %6974
  %6976 = vrot.lane.b32.xlu0 %v5000, 64
  %v6977 = vpop.permute.xlu0 %6976
  %6978 = vrot.lane.b32.xlu0 %v5001, 64
  %v6979 = vpop.permute.xlu0 %6978
  %6980 = vrot.lane.b32.xlu0 %v5002, 64
  %v6981 = vpop.permute.xlu0 %6980
  %6982 = vrot.lane.b32.xlu0 %v5003, 64
  %v6983 = vpop.permute.xlu0 %6982
  %6984 = vrot.lane.b32.xlu0 %v5004, 64
  %v6985 = vpop.permute.xlu0 %6984
  %6986 = vrot.lane.b32.xlu0 %v5005, 64
  %v6987 = vpop.permute.xlu0 %6986
  %6988 = vrot.lane.b32.xlu0 %v5006, 64
  %v6989 = vpop.permute.xlu0 %6988
  %6990 = vrot.lane.b32.xlu0 %v5007, 64
  %v6991 = vpop.permute.xlu0 %6990
  %v7056 = vsel %vm26, %v4432, %v5073
  %v7057 = vsel %vm26, %v4433, %v5075
  %v7058 = vsel %vm26, %v4434, %v5077
  %v7059 = vsel %vm26, %v4435, %v5079
  %v7060 = vsel %vm26, %v4436, %v5081
  %v7061 = vsel %vm26, %v4437, %v5083
  %v7062 = vsel %vm26, %v4438, %v5085
  %v7063 = vsel %vm26, %v4439, %v5087
  %v7064 = vsel %vm26, %v4440, %v5089
  %v7065 = vsel %vm26, %v4441, %v5091
  %v7066 = vsel %vm26, %v4442, %v5093
  %v7067 = vsel %vm26, %v4443, %v5095
  %v7068 = vsel %vm26, %v4444, %v5097
  %v7069 = vsel %vm26, %v4445, %v5099
  %v7070 = vsel %vm26, %v4446, %v5101
  %v7071 = vsel %vm26, %v4447, %v5103
  %v7072 = vsel %vm26, %v4448, %v5105
  %v7073 = vsel %vm26, %v4449, %v5107
  %v7074 = vsel %vm26, %v4450, %v5109
  %v7075 = vsel %vm26, %v4451, %v5111
  %v7076 = vsel %vm26, %v4452, %v5113
  %v7077 = vsel %vm26, %v4453, %v5115
  %v7078 = vsel %vm26, %v4454, %v5117
  %v7079 = vsel %vm26, %v4455, %v5119
  %v7080 = vsel %vm26, %v4456, %v5121
  %v7081 = vsel %vm26, %v4457, %v5123
  %v7082 = vsel %vm26, %v4458, %v5125
  %v7083 = vsel %vm26, %v4459, %v5127
  %v7084 = vsel %vm26, %v4460, %v5129
  %v7085 = vsel %vm26, %v4461, %v5131
  %v7086 = vsel %vm26, %v4462, %v5133
  %v7087 = vsel %vm26, %v4463, %v5135
  %v7088 = vsel %vm26, %v4464, %v5137
  %v7089 = vsel %vm26, %v4465, %v5139
  %v7090 = vsel %vm26, %v4466, %v5141
  %v7091 = vsel %vm26, %v4467, %v5143
  %v7092 = vsel %vm26, %v4468, %v5145
  %v7093 = vsel %vm26, %v4469, %v5147
  %v7094 = vsel %vm26, %v4470, %v5149
  %v7095 = vsel %vm26, %v4471, %v5151
  %v7096 = vsel %vm26, %v4472, %v5153
  %v7097 = vsel %vm26, %v4473, %v5155
  %v7098 = vsel %vm26, %v4474, %v5157
  %v7099 = vsel %vm26, %v4475, %v5159
  %v7100 = vsel %vm26, %v4476, %v5161
  %v7101 = vsel %vm26, %v4477, %v5163
  %v7102 = vsel %vm26, %v4478, %v5165
  %v7103 = vsel %vm26, %v4479, %v5167
  %v7104 = vsel %vm26, %v4480, %v5169
  %v7105 = vsel %vm26, %v4481, %v5171
  %v7106 = vsel %vm26, %v4482, %v5173
  %v7107 = vsel %vm26, %v4483, %v5175
  %v7108 = vsel %vm26, %v4484, %v5177
  %v7109 = vsel %vm26, %v4485, %v5179
  %v7110 = vsel %vm26, %v4486, %v5181
  %v7111 = vsel %vm26, %v4487, %v5183
  %v7112 = vsel %vm26, %v4488, %v5185
  %v7113 = vsel %vm26, %v4489, %v5187
  %v7114 = vsel %vm26, %v4490, %v5189
  %v7115 = vsel %vm26, %v4491, %v5191
  %v7116 = vsel %vm26, %v4492, %v5193
  %v7117 = vsel %vm26, %v4493, %v5195
  %v7118 = vsel %vm26, %v4494, %v5197
  %v7119 = vsel %vm26, %v4495, %v5199
  %v7120 = vsel %vm2954, %v7056, %v5329
  %v7121 = vsel %vm2954, %v7057, %v5331
  %v7122 = vsel %vm2954, %v7058, %v5333
  %v7123 = vsel %vm2954, %v7059, %v5335
  %v7124 = vsel %vm2954, %v7060, %v5337
  %v7125 = vsel %vm2954, %v7061, %v5339
  %v7126 = vsel %vm2954, %v7062, %v5341
  %v7127 = vsel %vm2954, %v7063, %v5343
  %v7128 = vsel %vm2954, %v7064, %v5345
  %v7129 = vsel %vm2954, %v7065, %v5347
  %v7130 = vsel %vm2954, %v7066, %v5349
  %v7131 = vsel %vm2954, %v7067, %v5351
  %v7132 = vsel %vm2954, %v7068, %v5353
  %v7133 = vsel %vm2954, %v7069, %v5355
  %v7134 = vsel %vm2954, %v7070, %v5357
  %v7135 = vsel %vm2954, %v7071, %v5359
  %v7136 = vsel %vm2954, %v7072, %v5361
  %v7137 = vsel %vm2954, %v7073, %v5363
  %v7138 = vsel %vm2954, %v7074, %v5365
  %v7139 = vsel %vm2954, %v7075, %v5367
  %v7140 = vsel %vm2954, %v7076, %v5369
  %v7141 = vsel %vm2954, %v7077, %v5371
  %v7142 = vsel %vm2954, %v7078, %v5373
  %v7143 = vsel %vm2954, %v7079, %v5375
  %v7144 = vsel %vm2954, %v7080, %v5377
  %v7145 = vsel %vm2954, %v7081, %v5379
  %v7146 = vsel %vm2954, %v7082, %v5381
  %v7147 = vsel %vm2954, %v7083, %v5383
  %v7148 = vsel %vm2954, %v7084, %v5385
  %v7149 = vsel %vm2954, %v7085, %v5387
  %v7150 = vsel %vm2954, %v7086, %v5389
  %v7151 = vsel %vm2954, %v7087, %v5391
  %v7152 = vsel %vm2954, %v7088, %v5393
  %v7153 = vsel %vm2954, %v7089, %v5395
  %v7154 = vsel %vm2954, %v7090, %v5397
  %v7155 = vsel %vm2954, %v7091, %v5399
  %v7156 = vsel %vm2954, %v7092, %v5401
  %v7157 = vsel %vm2954, %v7093, %v5403
  %v7158 = vsel %vm2954, %v7094, %v5405
  %v7159 = vsel %vm2954, %v7095, %v5407
  %v7160 = vsel %vm2954, %v7096, %v5409
  %v7161 = vsel %vm2954, %v7097, %v5411
  %v7162 = vsel %vm2954, %v7098, %v5413
  %v7163 = vsel %vm2954, %v7099, %v5415
  %v7164 = vsel %vm2954, %v7100, %v5417
  %v7165 = vsel %vm2954, %v7101, %v5419
  %v7166 = vsel %vm2954, %v7102, %v5421
  %v7167 = vsel %vm2954, %v7103, %v5423
  %v7168 = vsel %vm2954, %v7104, %v5425
  %v7169 = vsel %vm2954, %v7105, %v5427
  %v7170 = vsel %vm2954, %v7106, %v5429
  %v7171 = vsel %vm2954, %v7107, %v5431
  %v7172 = vsel %vm2954, %v7108, %v5433
  %v7173 = vsel %vm2954, %v7109, %v5435
  %v7174 = vsel %vm2954, %v7110, %v5437
  %v7175 = vsel %vm2954, %v7111, %v5439
  %v7176 = vsel %vm2954, %v7112, %v5441
  %v7177 = vsel %vm2954, %v7113, %v5443
  %v7178 = vsel %vm2954, %v7114, %v5445
  %v7179 = vsel %vm2954, %v7115, %v5447
  %v7180 = vsel %vm2954, %v7116, %v5449
  %v7181 = vsel %vm2954, %v7117, %v5451
  %v7182 = vsel %vm2954, %v7118, %v5453
  %v7183 = vsel %vm2954, %v7119, %v5455
  %v7184 = vsel %vm3019, %v7120, %v5585
  %v7185 = vsel %vm3019, %v7121, %v5587
  %v7186 = vsel %vm3019, %v7122, %v5589
  %v7187 = vsel %vm3019, %v7123, %v5591
  %v7188 = vsel %vm3019, %v7124, %v5593
  %v7189 = vsel %vm3019, %v7125, %v5595
  %v7190 = vsel %vm3019, %v7126, %v5597
  %v7191 = vsel %vm3019, %v7127, %v5599
  %v7192 = vsel %vm3019, %v7128, %v5601
  %v7193 = vsel %vm3019, %v7129, %v5603
  %v7194 = vsel %vm3019, %v7130, %v5605
  %v7195 = vsel %vm3019, %v7131, %v5607
  %v7196 = vsel %vm3019, %v7132, %v5609
  %v7197 = vsel %vm3019, %v7133, %v5611
  %v7198 = vsel %vm3019, %v7134, %v5613
  %v7199 = vsel %vm3019, %v7135, %v5615
  %v7200 = vsel %vm3019, %v7136, %v5617
  %v7201 = vsel %vm3019, %v7137, %v5619
  %v7202 = vsel %vm3019, %v7138, %v5621
  %v7203 = vsel %vm3019, %v7139, %v5623
  %v7204 = vsel %vm3019, %v7140, %v5625
  %v7205 = vsel %vm3019, %v7141, %v5627
  %v7206 = vsel %vm3019, %v7142, %v5629
  %v7207 = vsel %vm3019, %v7143, %v5631
  %v7208 = vsel %vm3019, %v7144, %v5633
  %v7209 = vsel %vm3019, %v7145, %v5635
  %v7210 = vsel %vm3019, %v7146, %v5637
  %v7211 = vsel %vm3019, %v7147, %v5639
  %v7212 = vsel %vm3019, %v7148, %v5641
  %v7213 = vsel %vm3019, %v7149, %v5643
  %v7214 = vsel %vm3019, %v7150, %v5645
  %v7215 = vsel %vm3019, %v7151, %v5647
  %v7216 = vsel %vm3019, %v7152, %v5649
  %v7217 = vsel %vm3019, %v7153, %v5651
  %v7218 = vsel %vm3019, %v7154, %v5653
  %v7219 = vsel %vm3019, %v7155, %v5655
  %v7220 = vsel %vm3019, %v7156, %v5657
  %v7221 = vsel %vm3019, %v7157, %v5659
  %v7222 = vsel %vm3019, %v7158, %v5661
  %v7223 = vsel %vm3019, %v7159, %v5663
  %v7224 = vsel %vm3019, %v7160, %v5665
  %v7225 = vsel %vm3019, %v7161, %v5667
  %v7226 = vsel %vm3019, %v7162, %v5669
  %v7227 = vsel %vm3019, %v7163, %v5671
  %v7228 = vsel %vm3019, %v7164, %v5673
  %v7229 = vsel %vm3019, %v7165, %v5675
  %v7230 = vsel %vm3019, %v7166, %v5677
  %v7231 = vsel %vm3019, %v7167, %v5679
  %v7232 = vsel %vm3019, %v7168, %v5681
  %v7233 = vsel %vm3019, %v7169, %v5683
  %v7234 = vsel %vm3019, %v7170, %v5685
  %v7235 = vsel %vm3019, %v7171, %v5687
  %v7236 = vsel %vm3019, %v7172, %v5689
  %v7237 = vsel %vm3019, %v7173, %v5691
  %v7238 = vsel %vm3019, %v7174, %v5693
  %v7239 = vsel %vm3019, %v7175, %v5695
  %v7240 = vsel %vm3019, %v7176, %v5697
  %v7241 = vsel %vm3019, %v7177, %v5699
  %v7242 = vsel %vm3019, %v7178, %v5701
  %v7243 = vsel %vm3019, %v7179, %v5703
  %v7244 = vsel %vm3019, %v7180, %v5705
  %v7245 = vsel %vm3019, %v7181, %v5707
  %v7246 = vsel %vm3019, %v7182, %v5709
  %v7247 = vsel %vm3019, %v7183, %v5711
  %v7248 = vsel %vm3084, %v7184, %v5841
  %v7249 = vsel %vm3084, %v7185, %v5843
  %v7250 = vsel %vm3084, %v7186, %v5845
  %v7251 = vsel %vm3084, %v7187, %v5847
  %v7252 = vsel %vm3084, %v7188, %v5849
  %v7253 = vsel %vm3084, %v7189, %v5851
  %v7254 = vsel %vm3084, %v7190, %v5853
  %v7255 = vsel %vm3084, %v7191, %v5855
  %v7256 = vsel %vm3084, %v7192, %v5857
  %v7257 = vsel %vm3084, %v7193, %v5859
  %v7258 = vsel %vm3084, %v7194, %v5861
  %v7259 = vsel %vm3084, %v7195, %v5863
  %v7260 = vsel %vm3084, %v7196, %v5865
  %v7261 = vsel %vm3084, %v7197, %v5867
  %v7262 = vsel %vm3084, %v7198, %v5869
  %v7263 = vsel %vm3084, %v7199, %v5871
  %v7264 = vsel %vm3084, %v7200, %v5873
  %v7265 = vsel %vm3084, %v7201, %v5875
  %v7266 = vsel %vm3084, %v7202, %v5877
  %v7267 = vsel %vm3084, %v7203, %v5879
  %v7268 = vsel %vm3084, %v7204, %v5881
  %v7269 = vsel %vm3084, %v7205, %v5883
  %v7270 = vsel %vm3084, %v7206, %v5885
  %v7271 = vsel %vm3084, %v7207, %v5887
  %v7272 = vsel %vm3084, %v7208, %v5889
  %v7273 = vsel %vm3084, %v7209, %v5891
  %v7274 = vsel %vm3084, %v7210, %v5893
  %v7275 = vsel %vm3084, %v7211, %v5895
  %v7276 = vsel %vm3084, %v7212, %v5897
  %v7277 = vsel %vm3084, %v7213, %v5899
  %v7278 = vsel %vm3084, %v7214, %v5901
  %v7279 = vsel %vm3084, %v7215, %v5903
  %v7280 = vsel %vm3084, %v7216, %v5905
  %v7281 = vsel %vm3084, %v7217, %v5907
  %v7282 = vsel %vm3084, %v7218, %v5909
  %v7283 = vsel %vm3084, %v7219, %v5911
  %v7284 = vsel %vm3084, %v7220, %v5913
  %v7285 = vsel %vm3084, %v7221, %v5915
  %v7286 = vsel %vm3084, %v7222, %v5917
  %v7287 = vsel %vm3084, %v7223, %v5919
  %v7288 = vsel %vm3084, %v7224, %v5921
  %v7289 = vsel %vm3084, %v7225, %v5923
  %v7290 = vsel %vm3084, %v7226, %v5925
  %v7291 = vsel %vm3084, %v7227, %v5927
  %v7292 = vsel %vm3084, %v7228, %v5929
  %v7293 = vsel %vm3084, %v7229, %v5931
  %v7294 = vsel %vm3084, %v7230, %v5933
  %v7295 = vsel %vm3084, %v7231, %v5935
  %v7296 = vsel %vm3084, %v7232, %v5937
  %v7297 = vsel %vm3084, %v7233, %v5939
  %v7298 = vsel %vm3084, %v7234, %v5941
  %v7299 = vsel %vm3084, %v7235, %v5943
  %v7300 = vsel %vm3084, %v7236, %v5945
  %v7301 = vsel %vm3084, %v7237, %v5947
  %v7302 = vsel %vm3084, %v7238, %v5949
  %v7303 = vsel %vm3084, %v7239, %v5951
  %v7304 = vsel %vm3084, %v7240, %v5953
  %v7305 = vsel %vm3084, %v7241, %v5955
  %v7306 = vsel %vm3084, %v7242, %v5957
  %v7307 = vsel %vm3084, %v7243, %v5959
  %v7308 = vsel %vm3084, %v7244, %v5961
  %v7309 = vsel %vm3084, %v7245, %v5963
  %v7310 = vsel %vm3084, %v7246, %v5965
  %v7311 = vsel %vm3084, %v7247, %v5967
  %v7312 = vsel %vm3149, %v7248, %v6097
  %v7313 = vsel %vm3149, %v7249, %v6099
  %v7314 = vsel %vm3149, %v7250, %v6101
  %v7315 = vsel %vm3149, %v7251, %v6103
  %v7316 = vsel %vm3149, %v7252, %v6105
  %v7317 = vsel %vm3149, %v7253, %v6107
  %v7318 = vsel %vm3149, %v7254, %v6109
  %v7319 = vsel %vm3149, %v7255, %v6111
  %v7320 = vsel %vm3149, %v7256, %v6113
  %v7321 = vsel %vm3149, %v7257, %v6115
  %v7322 = vsel %vm3149, %v7258, %v6117
  %v7323 = vsel %vm3149, %v7259, %v6119
  %v7324 = vsel %vm3149, %v7260, %v6121
  %v7325 = vsel %vm3149, %v7261, %v6123
  %v7326 = vsel %vm3149, %v7262, %v6125
  %v7327 = vsel %vm3149, %v7263, %v6127
  %v7328 = vsel %vm3149, %v7264, %v6129
  %v7329 = vsel %vm3149, %v7265, %v6131
  %v7330 = vsel %vm3149, %v7266, %v6133
  %v7331 = vsel %vm3149, %v7267, %v6135
  %v7332 = vsel %vm3149, %v7268, %v6137
  %v7333 = vsel %vm3149, %v7269, %v6139
  %v7334 = vsel %vm3149, %v7270, %v6141
  %v7335 = vsel %vm3149, %v7271, %v6143
  %v7336 = vsel %vm3149, %v7272, %v6145
  %v7337 = vsel %vm3149, %v7273, %v6147
  %v7338 = vsel %vm3149, %v7274, %v6149
  %v7339 = vsel %vm3149, %v7275, %v6151
  %v7340 = vsel %vm3149, %v7276, %v6153
  %v7341 = vsel %vm3149, %v7277, %v6155
  %v7342 = vsel %vm3149, %v7278, %v6157
  %v7343 = vsel %vm3149, %v7279, %v6159
  %v7344 = vsel %vm3149, %v7280, %v6161
  %v7345 = vsel %vm3149, %v7281, %v6163
  %v7346 = vsel %vm3149, %v7282, %v6165
  %v7347 = vsel %vm3149, %v7283, %v6167
  %v7348 = vsel %vm3149, %v7284, %v6169
  %v7349 = vsel %vm3149, %v7285, %v6171
  %v7350 = vsel %vm3149, %v7286, %v6173
  %v7351 = vsel %vm3149, %v7287, %v6175
  %v7352 = vsel %vm3149, %v7288, %v6177
  %v7353 = vsel %vm3149, %v7289, %v6179
  %v7354 = vsel %vm3149, %v7290, %v6181
  %v7355 = vsel %vm3149, %v7291, %v6183
  %v7356 = vsel %vm3149, %v7292, %v6185
  %v7357 = vsel %vm3149, %v7293, %v6187
  %v7358 = vsel %vm3149, %v7294, %v6189
  %v7359 = vsel %vm3149, %v7295, %v6191
  %v7360 = vsel %vm3149, %v7296, %v6193
  %v7361 = vsel %vm3149, %v7297, %v6195
  %v7362 = vsel %vm3149, %v7298, %v6197
  %v7363 = vsel %vm3149, %v7299, %v6199
  %v7364 = vsel %vm3149, %v7300, %v6201
  %v7365 = vsel %vm3149, %v7301, %v6203
  %v7366 = vsel %vm3149, %v7302, %v6205
  %v7367 = vsel %vm3149, %v7303, %v6207
  %v7368 = vsel %vm3149, %v7304, %v6209
  %v7369 = vsel %vm3149, %v7305, %v6211
  %v7370 = vsel %vm3149, %v7306, %v6213
  %v7371 = vsel %vm3149, %v7307, %v6215
  %v7372 = vsel %vm3149, %v7308, %v6217
  %v7373 = vsel %vm3149, %v7309, %v6219
  %v7374 = vsel %vm3149, %v7310, %v6221
  %v7375 = vsel %vm3149, %v7311, %v6223
  %v7376 = vsel %vm3214, %v7312, %v6353
  %v7377 = vsel %vm3214, %v7313, %v6355
  %v7378 = vsel %vm3214, %v7314, %v6357
  %v7379 = vsel %vm3214, %v7315, %v6359
  %v7380 = vsel %vm3214, %v7316, %v6361
  %v7381 = vsel %vm3214, %v7317, %v6363
  %v7382 = vsel %vm3214, %v7318, %v6365
  %v7383 = vsel %vm3214, %v7319, %v6367
  %v7384 = vsel %vm3214, %v7320, %v6369
  %v7385 = vsel %vm3214, %v7321, %v6371
  %v7386 = vsel %vm3214, %v7322, %v6373
  %v7387 = vsel %vm3214, %v7323, %v6375
  %v7388 = vsel %vm3214, %v7324, %v6377
  %v7389 = vsel %vm3214, %v7325, %v6379
  %v7390 = vsel %vm3214, %v7326, %v6381
  %v7391 = vsel %vm3214, %v7327, %v6383
  %v7392 = vsel %vm3214, %v7328, %v6385
  %v7393 = vsel %vm3214, %v7329, %v6387
  %v7394 = vsel %vm3214, %v7330, %v6389
  %v7395 = vsel %vm3214, %v7331, %v6391
  %v7396 = vsel %vm3214, %v7332, %v6393
  %v7397 = vsel %vm3214, %v7333, %v6395
  %v7398 = vsel %vm3214, %v7334, %v6397
  %v7399 = vsel %vm3214, %v7335, %v6399
  %v7400 = vsel %vm3214, %v7336, %v6401
  %v7401 = vsel %vm3214, %v7337, %v6403
  %v7402 = vsel %vm3214, %v7338, %v6405
  %v7403 = vsel %vm3214, %v7339, %v6407
  %v7404 = vsel %vm3214, %v7340, %v6409
  %v7405 = vsel %vm3214, %v7341, %v6411
  %v7406 = vsel %vm3214, %v7342, %v6413
  %v7407 = vsel %vm3214, %v7343, %v6415
  %v7408 = vsel %vm3214, %v7344, %v6417
  %v7409 = vsel %vm3214, %v7345, %v6419
  %v7410 = vsel %vm3214, %v7346, %v6421
  %v7411 = vsel %vm3214, %v7347, %v6423
  %v7412 = vsel %vm3214, %v7348, %v6425
  %v7413 = vsel %vm3214, %v7349, %v6427
  %v7414 = vsel %vm3214, %v7350, %v6429
  %v7415 = vsel %vm3214, %v7351, %v6431
  %v7416 = vsel %vm3214, %v7352, %v6433
  %v7417 = vsel %vm3214, %v7353, %v6435
  %v7418 = vsel %vm3214, %v7354, %v6437
  %v7419 = vsel %vm3214, %v7355, %v6439
  %v7420 = vsel %vm3214, %v7356, %v6441
  %v7421 = vsel %vm3214, %v7357, %v6443
  %v7422 = vsel %vm3214, %v7358, %v6445
  %v7423 = vsel %vm3214, %v7359, %v6447
  %v7424 = vsel %vm3214, %v7360, %v6449
  %v7425 = vsel %vm3214, %v7361, %v6451
  %v7426 = vsel %vm3214, %v7362, %v6453
  %v7427 = vsel %vm3214, %v7363, %v6455
  %v7428 = vsel %vm3214, %v7364, %v6457
  %v7429 = vsel %vm3214, %v7365, %v6459
  %v7430 = vsel %vm3214, %v7366, %v6461
  %v7431 = vsel %vm3214, %v7367, %v6463
  %v7432 = vsel %vm3214, %v7368, %v6465
  %v7433 = vsel %vm3214, %v7369, %v6467
  %v7434 = vsel %vm3214, %v7370, %v6469
  %v7435 = vsel %vm3214, %v7371, %v6471
  %v7436 = vsel %vm3214, %v7372, %v6473
  %v7437 = vsel %vm3214, %v7373, %v6475
  %v7438 = vsel %vm3214, %v7374, %v6477
  %v7439 = vsel %vm3214, %v7375, %v6479
  %v7440 = vsel %vm3279, %v7376, %v6609
  %v7441 = vsel %vm3279, %v7377, %v6611
  %v7442 = vsel %vm3279, %v7378, %v6613
  %v7443 = vsel %vm3279, %v7379, %v6615
  %v7444 = vsel %vm3279, %v7380, %v6617
  %v7445 = vsel %vm3279, %v7381, %v6619
  %v7446 = vsel %vm3279, %v7382, %v6621
  %v7447 = vsel %vm3279, %v7383, %v6623
  %v7448 = vsel %vm3279, %v7384, %v6625
  %v7449 = vsel %vm3279, %v7385, %v6627
  %v7450 = vsel %vm3279, %v7386, %v6629
  %v7451 = vsel %vm3279, %v7387, %v6631
  %v7452 = vsel %vm3279, %v7388, %v6633
  %v7453 = vsel %vm3279, %v7389, %v6635
  %v7454 = vsel %vm3279, %v7390, %v6637
  %v7455 = vsel %vm3279, %v7391, %v6639
  %v7456 = vsel %vm3279, %v7392, %v6641
  %v7457 = vsel %vm3279, %v7393, %v6643
  %v7458 = vsel %vm3279, %v7394, %v6645
  %v7459 = vsel %vm3279, %v7395, %v6647
  %v7460 = vsel %vm3279, %v7396, %v6649
  %v7461 = vsel %vm3279, %v7397, %v6651
  %v7462 = vsel %vm3279, %v7398, %v6653
  %v7463 = vsel %vm3279, %v7399, %v6655
  %v7464 = vsel %vm3279, %v7400, %v6657
  %v7465 = vsel %vm3279, %v7401, %v6659
  %v7466 = vsel %vm3279, %v7402, %v6661
  %v7467 = vsel %vm3279, %v7403, %v6663
  %v7468 = vsel %vm3279, %v7404, %v6665
  %v7469 = vsel %vm3279, %v7405, %v6667
  %v7470 = vsel %vm3279, %v7406, %v6669
  %v7471 = vsel %vm3279, %v7407, %v6671
  %v7472 = vsel %vm3279, %v7408, %v6673
  %v7473 = vsel %vm3279, %v7409, %v6675
  %v7474 = vsel %vm3279, %v7410, %v6677
  %v7475 = vsel %vm3279, %v7411, %v6679
  %v7476 = vsel %vm3279, %v7412, %v6681
  %v7477 = vsel %vm3279, %v7413, %v6683
  %v7478 = vsel %vm3279, %v7414, %v6685
  %v7479 = vsel %vm3279, %v7415, %v6687
  %v7480 = vsel %vm3279, %v7416, %v6689
  %v7481 = vsel %vm3279, %v7417, %v6691
  %v7482 = vsel %vm3279, %v7418, %v6693
  %v7483 = vsel %vm3279, %v7419, %v6695
  %v7484 = vsel %vm3279, %v7420, %v6697
  %v7485 = vsel %vm3279, %v7421, %v6699
  %v7486 = vsel %vm3279, %v7422, %v6701
  %v7487 = vsel %vm3279, %v7423, %v6703
  %v7488 = vsel %vm3279, %v7424, %v6705
  %v7489 = vsel %vm3279, %v7425, %v6707
  %v7490 = vsel %vm3279, %v7426, %v6709
  %v7491 = vsel %vm3279, %v7427, %v6711
  %v7492 = vsel %vm3279, %v7428, %v6713
  %v7493 = vsel %vm3279, %v7429, %v6715
  %v7494 = vsel %vm3279, %v7430, %v6717
  %v7495 = vsel %vm3279, %v7431, %v6719
  %v7496 = vsel %vm3279, %v7432, %v6721
  %v7497 = vsel %vm3279, %v7433, %v6723
  %v7498 = vsel %vm3279, %v7434, %v6725
  %v7499 = vsel %vm3279, %v7435, %v6727
  %v7500 = vsel %vm3279, %v7436, %v6729
  %v7501 = vsel %vm3279, %v7437, %v6731
  %v7502 = vsel %vm3279, %v7438, %v6733
  %v7503 = vsel %vm3279, %v7439, %v6735
  %v7504 = vsel %vm3344, %v7440, %v6865
  %v7505 = vsel %vm3344, %v7441, %v6867
  %v7506 = vsel %vm3344, %v7442, %v6869
  %v7507 = vsel %vm3344, %v7443, %v6871
  %v7508 = vsel %vm3344, %v7444, %v6873
  %v7509 = vsel %vm3344, %v7445, %v6875
  %v7510 = vsel %vm3344, %v7446, %v6877
  %v7511 = vsel %vm3344, %v7447, %v6879
  %v7512 = vsel %vm3344, %v7448, %v6881
  %v7513 = vsel %vm3344, %v7449, %v6883
  %v7514 = vsel %vm3344, %v7450, %v6885
  %v7515 = vsel %vm3344, %v7451, %v6887
  %v7516 = vsel %vm3344, %v7452, %v6889
  %v7517 = vsel %vm3344, %v7453, %v6891
  %v7518 = vsel %vm3344, %v7454, %v6893
  %v7519 = vsel %vm3344, %v7455, %v6895
  %v7520 = vsel %vm3344, %v7456, %v6897
  %v7521 = vsel %vm3344, %v7457, %v6899
  %v7522 = vsel %vm3344, %v7458, %v6901
  %v7523 = vsel %vm3344, %v7459, %v6903
  %v7524 = vsel %vm3344, %v7460, %v6905
  %v7525 = vsel %vm3344, %v7461, %v6907
  %v7526 = vsel %vm3344, %v7462, %v6909
  %v7527 = vsel %vm3344, %v7463, %v6911
  %v7528 = vsel %vm3344, %v7464, %v6913
  %v7529 = vsel %vm3344, %v7465, %v6915
  %v7530 = vsel %vm3344, %v7466, %v6917
  %v7531 = vsel %vm3344, %v7467, %v6919
  %v7532 = vsel %vm3344, %v7468, %v6921
  %v7533 = vsel %vm3344, %v7469, %v6923
  %v7534 = vsel %vm3344, %v7470, %v6925
  %v7535 = vsel %vm3344, %v7471, %v6927
  %v7536 = vsel %vm3344, %v7472, %v6929
  %v7537 = vsel %vm3344, %v7473, %v6931
  %v7538 = vsel %vm3344, %v7474, %v6933
  %v7539 = vsel %vm3344, %v7475, %v6935
  %v7540 = vsel %vm3344, %v7476, %v6937
  %v7541 = vsel %vm3344, %v7477, %v6939
  %v7542 = vsel %vm3344, %v7478, %v6941
  %v7543 = vsel %vm3344, %v7479, %v6943
  %v7544 = vsel %vm3344, %v7480, %v6945
  %v7545 = vsel %vm3344, %v7481, %v6947
  %v7546 = vsel %vm3344, %v7482, %v6949
  %v7547 = vsel %vm3344, %v7483, %v6951
  %v7548 = vsel %vm3344, %v7484, %v6953
  %v7549 = vsel %vm3344, %v7485, %v6955
  %v7550 = vsel %vm3344, %v7486, %v6957
  %v7551 = vsel %vm3344, %v7487, %v6959
  %v7552 = vsel %vm3344, %v7488, %v6961
  %v7553 = vsel %vm3344, %v7489, %v6963
  %v7554 = vsel %vm3344, %v7490, %v6965
  %v7555 = vsel %vm3344, %v7491, %v6967
  %v7556 = vsel %vm3344, %v7492, %v6969
  %v7557 = vsel %vm3344, %v7493, %v6971
  %v7558 = vsel %vm3344, %v7494, %v6973
  %v7559 = vsel %vm3344, %v7495, %v6975
  %v7560 = vsel %vm3344, %v7496, %v6977
  %v7561 = vsel %vm3344, %v7497, %v6979
  %v7562 = vsel %vm3344, %v7498, %v6981
  %v7563 = vsel %vm3344, %v7499, %v6983
  %v7564 = vsel %vm3344, %v7500, %v6985
  %v7565 = vsel %vm3344, %v7501, %v6987
  %v7566 = vsel %vm3344, %v7502, %v6989
  %v7567 = vsel %vm3344, %v7503, %v6991
  %v7568 = vld [vmem:[%s4] sm:$0xff]
  %v7569 = vld [vmem:[%s4 + $0x8] sm:$0xff]
  %v7570 = vld [vmem:[%s4 + $0x10] sm:$0xff]
  %v7571 = vld [vmem:[%s4 + $0x18] sm:$0xff]
  %v7572 = vld [vmem:[%s4 + $0x20] sm:$0xff]
  %v7573 = vld [vmem:[%s4 + $0x28] sm:$0xff]
  %v7574 = vld [vmem:[%s4 + $0x30] sm:$0xff]
  %v7575 = vld [vmem:[%s4 + $0x38] sm:$0xff]
  %v7576 = vld [vmem:[%s4 + $0x40] sm:$0xff]
  %v7578 = vsel %vm3418, %v7504, 0
  %v7581 = vsel %vm3418, %v7505, 0
  %v7584 = vsel %vm3418, %v7506, 0
  %v7587 = vsel %vm3418, %v7507, 0
  %v7590 = vsel %vm3418, %v7508, 0
  %v7593 = vsel %vm3418, %v7509, 0
  %v7596 = vsel %vm3418, %v7510, 0
  %v7599 = vsel %vm3418, %v7511, 0
  %v7602 = vsel %vm3418, %v7512, 0
  %v7605 = vsel %vm3418, %v7513, 0
  %v7608 = vsel %vm3418, %v7514, 0
  %v7611 = vsel %vm3418, %v7515, 0
  %v7614 = vsel %vm3418, %v7516, 0
  %v7617 = vsel %vm3418, %v7517, 0
  %v7620 = vsel %vm3418, %v7518, 0
  %v7623 = vsel %vm3418, %v7519, 0
  %v7626 = vsel %vm3418, %v7520, 0
  %v7629 = vsel %vm3418, %v7521, 0
  %v7632 = vsel %vm3418, %v7522, 0
  %v7635 = vsel %vm3418, %v7523, 0
  %v7638 = vsel %vm3418, %v7524, 0
  %v7641 = vsel %vm3418, %v7525, 0
  %v7644 = vsel %vm3418, %v7526, 0
  %v7647 = vsel %vm3418, %v7527, 0
  %v7650 = vsel %vm3418, %v7528, 0
  %v7653 = vsel %vm3418, %v7529, 0
  %v7656 = vsel %vm3418, %v7530, 0
  %v7659 = vsel %vm3418, %v7531, 0
  %v7662 = vsel %vm3418, %v7532, 0
  %v7665 = vsel %vm3418, %v7533, 0
  %v7668 = vsel %vm3418, %v7534, 0
  %v7671 = vsel %vm3418, %v7535, 0
  %v7674 = vsel %vm3418, %v7536, 0
  %v7677 = vsel %vm3418, %v7537, 0
  %v7680 = vsel %vm3418, %v7538, 0
  %v7683 = vsel %vm3418, %v7539, 0
  %v7686 = vsel %vm3418, %v7540, 0
  %v7689 = vsel %vm3418, %v7541, 0
  %v7692 = vsel %vm3418, %v7542, 0
  %v7695 = vsel %vm3418, %v7543, 0
  %v7698 = vsel %vm3418, %v7544, 0
  %v7701 = vsel %vm3418, %v7545, 0
  %v7704 = vsel %vm3418, %v7546, 0
  %v7707 = vsel %vm3418, %v7547, 0
  %v7710 = vsel %vm3418, %v7548, 0
  %v7713 = vsel %vm3418, %v7549, 0
  %v7716 = vsel %vm3418, %v7550, 0
  %v7719 = vsel %vm3418, %v7551, 0
  %v7722 = vsel %vm3418, %v7552, 0
  %v7725 = vsel %vm3418, %v7553, 0
  %v7728 = vsel %vm3418, %v7554, 0
  %v7731 = vsel %vm3418, %v7555, 0
  %v7734 = vsel %vm3418, %v7556, 0
  %v7737 = vsel %vm3418, %v7557, 0
  %v7740 = vsel %vm3418, %v7558, 0
  %v7743 = vsel %vm3418, %v7559, 0
  %v7746 = vsel %vm3418, %v7560, 0
  %v7749 = vsel %vm3418, %v7561, 0
  %v7752 = vsel %vm3418, %v7562, 0
  %v7755 = vsel %vm3418, %v7563, 0
  %v7758 = vsel %vm3418, %v7564, 0
  %v7761 = vsel %vm3418, %v7565, 0
  %v7764 = vsel %vm3418, %v7566, 0
  %v7767 = vsel %vm3418, %v7567, 0
  %7769 = vmatpush.msra.mxu0 0.0
  %7770 = vmatpush.msra.mxu0 0.0
  %7771 = vmatpush.msra.mxu0 0.0
  %7772 = vmatpush.msra.mxu0 0.0
  %7773 = vmatpush.msra.mxu0 0.0
  %7774 = vmatpush.msra.mxu0 0.0
  %7775 = vmatpush.msra.mxu0 0.0
  %7776 = vmatpush.msra.mxu0 %v7576
  %7777 = vmatpush.msra.mxu0 %v7575
  %7778 = vmatpush.msra.mxu0 %v7574
  %7779 = vmatpush.msra.mxu0 %v7573
  %7780 = vmatpush.msra.mxu0 %v7572
  %7781 = vmatpush.msra.mxu0 %v7571
  %7782 = vmatpush.msra.mxu0 %v7570
  %7783 = vmatpush.msra.mxu0 %v7569
  %7784 = vmatpush.msra.mxu0 %v7568
  %7785 = vmatmul.f32.gmra.mxu0 %v7578
  %v7786 = vpop.f32.mrf.mxu0
  %v7787 = vadd.f32 0.0, %v7786
  %7788 = vmatmul.f32.gmra.mxu0 %v7581
  %v7789 = vpop.f32.mrf.mxu0
  %v7790 = vadd.f32 0.0, %v7789
  %7791 = vmatmul.f32.gmra.mxu0 %v7584
  %v7792 = vpop.f32.mrf.mxu0
  %v7793 = vadd.f32 0.0, %v7792
  %7794 = vmatmul.f32.gmra.mxu0 %v7587
  %v7795 = vpop.f32.mrf.mxu0
  %v7796 = vadd.f32 0.0, %v7795
  %7797 = vmatmul.f32.gmra.mxu0 %v7590
  %v7798 = vpop.f32.mrf.mxu0
  %v7799 = vadd.f32 0.0, %v7798
  %7800 = vmatmul.f32.gmra.mxu0 %v7593
  %v7801 = vpop.f32.mrf.mxu0
  %v7802 = vadd.f32 0.0, %v7801
  %7803 = vmatmul.f32.gmra.mxu0 %v7596
  %v7804 = vpop.f32.mrf.mxu0
  %v7805 = vadd.f32 0.0, %v7804
  %7806 = vmatmul.f32.gmra.mxu0 %v7599
  %v7807 = vpop.f32.mrf.mxu0
  %v7808 = vadd.f32 0.0, %v7807
  %7809 = vmatmul.f32.gmra.mxu0 %v7602
  %v7810 = vpop.f32.mrf.mxu0
  %v7811 = vadd.f32 0.0, %v7810
  %7812 = vmatmul.f32.gmra.mxu0 %v7605
  %v7813 = vpop.f32.mrf.mxu0
  %v7814 = vadd.f32 0.0, %v7813
  %7815 = vmatmul.f32.gmra.mxu0 %v7608
  %v7816 = vpop.f32.mrf.mxu0
  %v7817 = vadd.f32 0.0, %v7816
  %7818 = vmatmul.f32.gmra.mxu0 %v7611
  %v7819 = vpop.f32.mrf.mxu0
  %v7820 = vadd.f32 0.0, %v7819
  %7821 = vmatmul.f32.gmra.mxu0 %v7614
  %v7822 = vpop.f32.mrf.mxu0
  %v7823 = vadd.f32 0.0, %v7822
  %7824 = vmatmul.f32.gmra.mxu0 %v7617
  %v7825 = vpop.f32.mrf.mxu0
  %v7826 = vadd.f32 0.0, %v7825
  %7827 = vmatmul.f32.gmra.mxu0 %v7620
  %v7828 = vpop.f32.mrf.mxu0
  %v7829 = vadd.f32 0.0, %v7828
  %7830 = vmatmul.f32.gmra.mxu0 %v7623
  %v7831 = vpop.f32.mrf.mxu0
  %v7832 = vadd.f32 0.0, %v7831
  %7833 = vmatmul.f32.gmra.mxu0 %v7626
  %v7834 = vpop.f32.mrf.mxu0
  %v7835 = vadd.f32 0.0, %v7834
  %7836 = vmatmul.f32.gmra.mxu0 %v7629
  %v7837 = vpop.f32.mrf.mxu0
  %v7838 = vadd.f32 0.0, %v7837
  %7839 = vmatmul.f32.gmra.mxu0 %v7632
  %v7840 = vpop.f32.mrf.mxu0
  %v7841 = vadd.f32 0.0, %v7840
  %7842 = vmatmul.f32.gmra.mxu0 %v7635
  %v7843 = vpop.f32.mrf.mxu0
  %v7844 = vadd.f32 0.0, %v7843
  %7845 = vmatmul.f32.gmra.mxu0 %v7638
  %v7846 = vpop.f32.mrf.mxu0
  %v7847 = vadd.f32 0.0, %v7846
  %7848 = vmatmul.f32.gmra.mxu0 %v7641
  %v7849 = vpop.f32.mrf.mxu0
  %v7850 = vadd.f32 0.0, %v7849
  %7851 = vmatmul.f32.gmra.mxu0 %v7644
  %v7852 = vpop.f32.mrf.mxu0
  %v7853 = vadd.f32 0.0, %v7852
  %7854 = vmatmul.f32.gmra.mxu0 %v7647
  %v7855 = vpop.f32.mrf.mxu0
  %v7856 = vadd.f32 0.0, %v7855
  %7857 = vmatmul.f32.gmra.mxu0 %v7650
  %v7858 = vpop.f32.mrf.mxu0
  %v7859 = vadd.f32 0.0, %v7858
  %7860 = vmatmul.f32.gmra.mxu0 %v7653
  %v7861 = vpop.f32.mrf.mxu0
  %v7862 = vadd.f32 0.0, %v7861
  %7863 = vmatmul.f32.gmra.mxu0 %v7656
  %v7864 = vpop.f32.mrf.mxu0
  %v7865 = vadd.f32 0.0, %v7864
  %7866 = vmatmul.f32.gmra.mxu0 %v7659
  %v7867 = vpop.f32.mrf.mxu0
  %v7868 = vadd.f32 0.0, %v7867
  %7869 = vmatmul.f32.gmra.mxu0 %v7662
  %v7870 = vpop.f32.mrf.mxu0
  %v7871 = vadd.f32 0.0, %v7870
  %7872 = vmatmul.f32.gmra.mxu0 %v7665
  %v7873 = vpop.f32.mrf.mxu0
  %v7874 = vadd.f32 0.0, %v7873
  %7875 = vmatmul.f32.gmra.mxu0 %v7668
  %v7876 = vpop.f32.mrf.mxu0
  %v7877 = vadd.f32 0.0, %v7876
  %7878 = vmatmul.f32.gmra.mxu0 %v7671
  %v7879 = vpop.f32.mrf.mxu0
  %v7880 = vadd.f32 0.0, %v7879
  %7881 = vmatmul.f32.gmra.mxu0 %v7674
  %v7882 = vpop.f32.mrf.mxu0
  %v7883 = vadd.f32 0.0, %v7882
  %7884 = vmatmul.f32.gmra.mxu0 %v7677
  %v7885 = vpop.f32.mrf.mxu0
  %v7886 = vadd.f32 0.0, %v7885
  %7887 = vmatmul.f32.gmra.mxu0 %v7680
  %v7888 = vpop.f32.mrf.mxu0
  %v7889 = vadd.f32 0.0, %v7888
  %7890 = vmatmul.f32.gmra.mxu0 %v7683
  %v7891 = vpop.f32.mrf.mxu0
  %v7892 = vadd.f32 0.0, %v7891
  %7893 = vmatmul.f32.gmra.mxu0 %v7686
  %v7894 = vpop.f32.mrf.mxu0
  %v7895 = vadd.f32 0.0, %v7894
  %7896 = vmatmul.f32.gmra.mxu0 %v7689
  %v7897 = vpop.f32.mrf.mxu0
  %v7898 = vadd.f32 0.0, %v7897
  %7899 = vmatmul.f32.gmra.mxu0 %v7692
  %v7900 = vpop.f32.mrf.mxu0
  %v7901 = vadd.f32 0.0, %v7900
  %7902 = vmatmul.f32.gmra.mxu0 %v7695
  %v7903 = vpop.f32.mrf.mxu0
  %v7904 = vadd.f32 0.0, %v7903
  %7905 = vmatmul.f32.gmra.mxu0 %v7698
  %v7906 = vpop.f32.mrf.mxu0
  %v7907 = vadd.f32 0.0, %v7906
  %7908 = vmatmul.f32.gmra.mxu0 %v7701
  %v7909 = vpop.f32.mrf.mxu0
  %v7910 = vadd.f32 0.0, %v7909
  %7911 = vmatmul.f32.gmra.mxu0 %v7704
  %v7912 = vpop.f32.mrf.mxu0
  %v7913 = vadd.f32 0.0, %v7912
  %7914 = vmatmul.f32.gmra.mxu0 %v7707
  %v7915 = vpop.f32.mrf.mxu0
  %v7916 = vadd.f32 0.0, %v7915
  %7917 = vmatmul.f32.gmra.mxu0 %v7710
  %v7918 = vpop.f32.mrf.mxu0
  %v7919 = vadd.f32 0.0, %v7918
  %7920 = vmatmul.f32.gmra.mxu0 %v7713
  %v7921 = vpop.f32.mrf.mxu0
  %v7922 = vadd.f32 0.0, %v7921
  %7923 = vmatmul.f32.gmra.mxu0 %v7716
  %v7924 = vpop.f32.mrf.mxu0
  %v7925 = vadd.f32 0.0, %v7924
  %7926 = vmatmul.f32.gmra.mxu0 %v7719
  %v7927 = vpop.f32.mrf.mxu0
  %v7928 = vadd.f32 0.0, %v7927
  %7929 = vmatmul.f32.gmra.mxu0 %v7722
  %v7930 = vpop.f32.mrf.mxu0
  %v7931 = vadd.f32 0.0, %v7930
  %7932 = vmatmul.f32.gmra.mxu0 %v7725
  %v7933 = vpop.f32.mrf.mxu0
  %v7934 = vadd.f32 0.0, %v7933
  %7935 = vmatmul.f32.gmra.mxu0 %v7728
  %v7936 = vpop.f32.mrf.mxu0
  %v7937 = vadd.f32 0.0, %v7936
  %7938 = vmatmul.f32.gmra.mxu0 %v7731
  %v7939 = vpop.f32.mrf.mxu0
  %v7940 = vadd.f32 0.0, %v7939
  %7941 = vmatmul.f32.gmra.mxu0 %v7734
  %v7942 = vpop.f32.mrf.mxu0
  %v7943 = vadd.f32 0.0, %v7942
  %7944 = vmatmul.f32.gmra.mxu0 %v7737
  %v7945 = vpop.f32.mrf.mxu0
  %v7946 = vadd.f32 0.0, %v7945
  %7947 = vmatmul.f32.gmra.mxu0 %v7740
  %v7948 = vpop.f32.mrf.mxu0
  %v7949 = vadd.f32 0.0, %v7948
  %7950 = vmatmul.f32.gmra.mxu0 %v7743
  %v7951 = vpop.f32.mrf.mxu0
  %v7952 = vadd.f32 0.0, %v7951
  %7953 = vmatmul.f32.gmra.mxu0 %v7746
  %v7954 = vpop.f32.mrf.mxu0
  %v7955 = vadd.f32 0.0, %v7954
  %7956 = vmatmul.f32.gmra.mxu0 %v7749
  %v7957 = vpop.f32.mrf.mxu0
  %v7958 = vadd.f32 0.0, %v7957
  %7959 = vmatmul.f32.gmra.mxu0 %v7752
  %v7960 = vpop.f32.mrf.mxu0
  %v7961 = vadd.f32 0.0, %v7960
  %7962 = vmatmul.f32.gmra.mxu0 %v7755
  %v7963 = vpop.f32.mrf.mxu0
  %v7964 = vadd.f32 0.0, %v7963
  %7965 = vmatmul.f32.gmra.mxu0 %v7758
  %v7966 = vpop.f32.mrf.mxu0
  %v7967 = vadd.f32 0.0, %v7966
  %7968 = vmatmul.f32.gmra.mxu0 %v7761
  %v7969 = vpop.f32.mrf.mxu0
  %v7970 = vadd.f32 0.0, %v7969
  %7971 = vmatmul.f32.gmra.mxu0 %v7764
  %v7972 = vpop.f32.mrf.mxu0
  %v7973 = vadd.f32 0.0, %v7972
  %7974 = vmatmul.f32.gmra.mxu0 %v7767
  %v7975 = vpop.f32.mrf.mxu0
  %v7976 = vadd.f32 0.0, %v7975
  %7977 = vdwg.mxu0
  %v7978 = vsel %vm26, %v7787, 0.0
  %v7979 = vsel %vm26, %v7790, 0.0
  %v7980 = vadd.f32 %v7978, %v7979
  %v7981 = vsel %vm26, %v7793, 0.0
  %v7982 = vadd.f32 %v7980, %v7981
  %v7983 = vsel %vm26, %v7796, 0.0
  %v7984 = vadd.f32 %v7982, %v7983
  %v7985 = vsel %vm26, %v7799, 0.0
  %v7986 = vadd.f32 %v7984, %v7985
  %v7987 = vsel %vm26, %v7802, 0.0
  %v7988 = vadd.f32 %v7986, %v7987
  %v7989 = vsel %vm26, %v7805, 0.0
  %v7990 = vadd.f32 %v7988, %v7989
  %v7991 = vsel %vm26, %v7808, 0.0
  %v7992 = vadd.f32 %v7990, %v7991
  %v7993 = vsel %vm26, %v7811, 0.0
  %v7994 = vadd.f32 %v7992, %v7993
  %v7995 = vsel %vm26, %v7814, 0.0
  %v7996 = vadd.f32 %v7994, %v7995
  %v7997 = vsel %vm26, %v7817, 0.0
  %v7998 = vadd.f32 %v7996, %v7997
  %v7999 = vsel %vm26, %v7820, 0.0
  %v8000 = vadd.f32 %v7998, %v7999
  %v8001 = vsel %vm26, %v7823, 0.0
  %v8002 = vadd.f32 %v8000, %v8001
  %v8003 = vsel %vm26, %v7826, 0.0
  %v8004 = vadd.f32 %v8002, %v8003
  %v8005 = vsel %vm26, %v7829, 0.0
  %v8006 = vadd.f32 %v8004, %v8005
  %v8007 = vsel %vm26, %v7832, 0.0
  %v8008 = vadd.f32 %v8006, %v8007
  %v8009 = vsel %vm26, %v7835, 0.0
  %v8010 = vadd.f32 %v8008, %v8009
  %v8011 = vsel %vm26, %v7838, 0.0
  %v8012 = vadd.f32 %v8010, %v8011
  %v8013 = vsel %vm26, %v7841, 0.0
  %v8014 = vadd.f32 %v8012, %v8013
  %v8015 = vsel %vm26, %v7844, 0.0
  %v8016 = vadd.f32 %v8014, %v8015
  %v8017 = vsel %vm26, %v7847, 0.0
  %v8018 = vadd.f32 %v8016, %v8017
  %v8019 = vsel %vm26, %v7850, 0.0
  %v8020 = vadd.f32 %v8018, %v8019
  %v8021 = vsel %vm26, %v7853, 0.0
  %v8022 = vadd.f32 %v8020, %v8021
  %v8023 = vsel %vm26, %v7856, 0.0
  %v8024 = vadd.f32 %v8022, %v8023
  %v8025 = vsel %vm26, %v7859, 0.0
  %v8026 = vadd.f32 %v8024, %v8025
  %v8027 = vsel %vm26, %v7862, 0.0
  %v8028 = vadd.f32 %v8026, %v8027
  %v8029 = vsel %vm26, %v7865, 0.0
  %v8030 = vadd.f32 %v8028, %v8029
  %v8031 = vsel %vm26, %v7868, 0.0
  %v8032 = vadd.f32 %v8030, %v8031
  %v8033 = vsel %vm26, %v7871, 0.0
  %v8034 = vadd.f32 %v8032, %v8033
  %v8035 = vsel %vm26, %v7874, 0.0
  %v8036 = vadd.f32 %v8034, %v8035
  %v8037 = vsel %vm26, %v7877, 0.0
  %v8038 = vadd.f32 %v8036, %v8037
  %v8039 = vsel %vm26, %v7880, 0.0
  %v8040 = vadd.f32 %v8038, %v8039
  %v8041 = vsel %vm26, %v7883, 0.0
  %v8042 = vadd.f32 %v8040, %v8041
  %v8043 = vsel %vm26, %v7886, 0.0
  %v8044 = vadd.f32 %v8042, %v8043
  %v8045 = vsel %vm26, %v7889, 0.0
  %v8046 = vadd.f32 %v8044, %v8045
  %v8047 = vsel %vm26, %v7892, 0.0
  %v8048 = vadd.f32 %v8046, %v8047
  %v8049 = vsel %vm26, %v7895, 0.0
  %v8050 = vadd.f32 %v8048, %v8049
  %v8051 = vsel %vm26, %v7898, 0.0
  %v8052 = vadd.f32 %v8050, %v8051
  %v8053 = vsel %vm26, %v7901, 0.0
  %v8054 = vadd.f32 %v8052, %v8053
  %v8055 = vsel %vm26, %v7904, 0.0
  %v8056 = vadd.f32 %v8054, %v8055
  %v8057 = vsel %vm26, %v7907, 0.0
  %v8058 = vadd.f32 %v8056, %v8057
  %v8059 = vsel %vm26, %v7910, 0.0
  %v8060 = vadd.f32 %v8058, %v8059
  %v8061 = vsel %vm26, %v7913, 0.0
  %v8062 = vadd.f32 %v8060, %v8061
  %v8063 = vsel %vm26, %v7916, 0.0
  %v8064 = vadd.f32 %v8062, %v8063
  %v8065 = vsel %vm26, %v7919, 0.0
  %v8066 = vadd.f32 %v8064, %v8065
  %v8067 = vsel %vm26, %v7922, 0.0
  %v8068 = vadd.f32 %v8066, %v8067
  %v8069 = vsel %vm26, %v7925, 0.0
  %v8070 = vadd.f32 %v8068, %v8069
  %v8071 = vsel %vm26, %v7928, 0.0
  %v8072 = vadd.f32 %v8070, %v8071
  %v8073 = vsel %vm26, %v7931, 0.0
  %v8074 = vadd.f32 %v8072, %v8073
  %v8075 = vsel %vm26, %v7934, 0.0
  %v8076 = vadd.f32 %v8074, %v8075
  %v8077 = vsel %vm26, %v7937, 0.0
  %v8078 = vadd.f32 %v8076, %v8077
  %v8079 = vsel %vm26, %v7940, 0.0
  %v8080 = vadd.f32 %v8078, %v8079
  %v8081 = vsel %vm26, %v7943, 0.0
  %v8082 = vadd.f32 %v8080, %v8081
  %v8083 = vsel %vm26, %v7946, 0.0
  %v8084 = vadd.f32 %v8082, %v8083
  %v8085 = vsel %vm26, %v7949, 0.0
  %v8086 = vadd.f32 %v8084, %v8085
  %v8087 = vsel %vm26, %v7952, 0.0
  %v8088 = vadd.f32 %v8086, %v8087
  %v8089 = vsel %vm26, %v7955, 0.0
  %v8090 = vadd.f32 %v8088, %v8089
  %v8091 = vsel %vm26, %v7958, 0.0
  %v8092 = vadd.f32 %v8090, %v8091
  %v8093 = vsel %vm26, %v7961, 0.0
  %v8094 = vadd.f32 %v8092, %v8093
  %v8095 = vsel %vm26, %v7964, 0.0
  %v8096 = vadd.f32 %v8094, %v8095
  %v8097 = vsel %vm26, %v7967, 0.0
  %v8098 = vadd.f32 %v8096, %v8097
  %v8099 = vsel %vm26, %v7970, 0.0
  %v8100 = vadd.f32 %v8098, %v8099
  %v8101 = vsel %vm26, %v7973, 0.0
  %v8102 = vadd.f32 %v8100, %v8101
  %v8103 = vsel %vm26, %v7976, 0.0
  %v8104 = vadd.f32 %v8102, %v8103
  %v8105 = vrot.slane %v8104, 4
  %v8106 = vadd.f32 %v8104, %v8105
  %v8107 = vrot.slane %v8106, 2
  %v8108 = vadd.f32 %v8106, %v8107
  %v8109 = vrot.slane %v8108, 1
  %v8110 = vadd.f32 %v8108, %v8109
  %v8111 = vmul.f32 %v7787, %v7787
  %v8112 = vmul.f32 %v7790, %v7790
  %v8113 = vmul.f32 %v7793, %v7793
  %v8114 = vmul.f32 %v7796, %v7796
  %v8115 = vmul.f32 %v7799, %v7799
  %v8116 = vmul.f32 %v7802, %v7802
  %v8117 = vmul.f32 %v7805, %v7805
  %v8118 = vmul.f32 %v7808, %v7808
  %v8119 = vmul.f32 %v7811, %v7811
  %v8120 = vmul.f32 %v7814, %v7814
  %v8121 = vmul.f32 %v7817, %v7817
  %v8122 = vmul.f32 %v7820, %v7820
  %v8123 = vmul.f32 %v7823, %v7823
  %v8124 = vmul.f32 %v7826, %v7826
  %v8125 = vmul.f32 %v7829, %v7829
  %v8126 = vmul.f32 %v7832, %v7832
  %v8127 = vmul.f32 %v7835, %v7835
  %v8128 = vmul.f32 %v7838, %v7838
  %v8129 = vmul.f32 %v7841, %v7841
  %v8130 = vmul.f32 %v7844, %v7844
  %v8131 = vmul.f32 %v7847, %v7847
  %v8132 = vmul.f32 %v7850, %v7850
  %v8133 = vmul.f32 %v7853, %v7853
  %v8134 = vmul.f32 %v7856, %v7856
  %v8135 = vmul.f32 %v7859, %v7859
  %v8136 = vmul.f32 %v7862, %v7862
  %v8137 = vmul.f32 %v7865, %v7865
  %v8138 = vmul.f32 %v7868, %v7868
  %v8139 = vmul.f32 %v7871, %v7871
  %v8140 = vmul.f32 %v7874, %v7874
  %v8141 = vmul.f32 %v7877, %v7877
  %v8142 = vmul.f32 %v7880, %v7880
  %v8143 = vmul.f32 %v7883, %v7883
  %v8144 = vmul.f32 %v7886, %v7886
  %v8145 = vmul.f32 %v7889, %v7889
  %v8146 = vmul.f32 %v7892, %v7892
  %v8147 = vmul.f32 %v7895, %v7895
  %v8148 = vmul.f32 %v7898, %v7898
  %v8149 = vmul.f32 %v7901, %v7901
  %v8150 = vmul.f32 %v7904, %v7904
  %v8151 = vmul.f32 %v7907, %v7907
  %v8152 = vmul.f32 %v7910, %v7910
  %v8153 = vmul.f32 %v7913, %v7913
  %v8154 = vmul.f32 %v7916, %v7916
  %v8155 = vmul.f32 %v7919, %v7919
  %v8156 = vmul.f32 %v7922, %v7922
  %v8157 = vmul.f32 %v7925, %v7925
  %v8158 = vmul.f32 %v7928, %v7928
  %v8159 = vmul.f32 %v7931, %v7931
  %v8160 = vmul.f32 %v7934, %v7934
  %v8161 = vmul.f32 %v7937, %v7937
  %v8162 = vmul.f32 %v7940, %v7940
  %v8163 = vmul.f32 %v7943, %v7943
  %v8164 = vmul.f32 %v7946, %v7946
  %v8165 = vmul.f32 %v7949, %v7949
  %v8166 = vmul.f32 %v7952, %v7952
  %v8167 = vmul.f32 %v7955, %v7955
  %v8168 = vmul.f32 %v7958, %v7958
  %v8169 = vmul.f32 %v7961, %v7961
  %v8170 = vmul.f32 %v7964, %v7964
  %v8171 = vmul.f32 %v7967, %v7967
  %v8172 = vmul.f32 %v7970, %v7970
  %v8173 = vmul.f32 %v7973, %v7973
  %v8174 = vmul.f32 %v7976, %v7976
  %v8175 = vsel %vm26, %v8111, 0.0
  %v8176 = vsel %vm26, %v8112, 0.0
  %v8177 = vadd.f32 %v8175, %v8176
  %v8178 = vsel %vm26, %v8113, 0.0
  %v8179 = vadd.f32 %v8177, %v8178
  %v8180 = vsel %vm26, %v8114, 0.0
  %v8181 = vadd.f32 %v8179, %v8180
  %v8182 = vsel %vm26, %v8115, 0.0
  %v8183 = vadd.f32 %v8181, %v8182
  %v8184 = vsel %vm26, %v8116, 0.0
  %v8185 = vadd.f32 %v8183, %v8184
  %v8186 = vsel %vm26, %v8117, 0.0
  %v8187 = vadd.f32 %v8185, %v8186
  %v8188 = vsel %vm26, %v8118, 0.0
  %v8189 = vadd.f32 %v8187, %v8188
  %v8190 = vsel %vm26, %v8119, 0.0
  %v8191 = vadd.f32 %v8189, %v8190
  %v8192 = vsel %vm26, %v8120, 0.0
  %v8193 = vadd.f32 %v8191, %v8192
  %v8194 = vsel %vm26, %v8121, 0.0
  %v8195 = vadd.f32 %v8193, %v8194
  %v8196 = vsel %vm26, %v8122, 0.0
  %v8197 = vadd.f32 %v8195, %v8196
  %v8198 = vsel %vm26, %v8123, 0.0
  %v8199 = vadd.f32 %v8197, %v8198
  %v8200 = vsel %vm26, %v8124, 0.0
  %v8201 = vadd.f32 %v8199, %v8200
  %v8202 = vsel %vm26, %v8125, 0.0
  %v8203 = vadd.f32 %v8201, %v8202
  %v8204 = vsel %vm26, %v8126, 0.0
  %v8205 = vadd.f32 %v8203, %v8204
  %v8206 = vsel %vm26, %v8127, 0.0
  %v8207 = vadd.f32 %v8205, %v8206
  %v8208 = vsel %vm26, %v8128, 0.0
  %v8209 = vadd.f32 %v8207, %v8208
  %v8210 = vsel %vm26, %v8129, 0.0
  %v8211 = vadd.f32 %v8209, %v8210
  %v8212 = vsel %vm26, %v8130, 0.0
  %v8213 = vadd.f32 %v8211, %v8212
  %v8214 = vsel %vm26, %v8131, 0.0
  %v8215 = vadd.f32 %v8213, %v8214
  %v8216 = vsel %vm26, %v8132, 0.0
  %v8217 = vadd.f32 %v8215, %v8216
  %v8218 = vsel %vm26, %v8133, 0.0
  %v8219 = vadd.f32 %v8217, %v8218
  %v8220 = vsel %vm26, %v8134, 0.0
  %v8221 = vadd.f32 %v8219, %v8220
  %v8222 = vsel %vm26, %v8135, 0.0
  %v8223 = vadd.f32 %v8221, %v8222
  %v8224 = vsel %vm26, %v8136, 0.0
  %v8225 = vadd.f32 %v8223, %v8224
  %v8226 = vsel %vm26, %v8137, 0.0
  %v8227 = vadd.f32 %v8225, %v8226
  %v8228 = vsel %vm26, %v8138, 0.0
  %v8229 = vadd.f32 %v8227, %v8228
  %v8230 = vsel %vm26, %v8139, 0.0
  %v8231 = vadd.f32 %v8229, %v8230
  %v8232 = vsel %vm26, %v8140, 0.0
  %v8233 = vadd.f32 %v8231, %v8232
  %v8234 = vsel %vm26, %v8141, 0.0
  %v8235 = vadd.f32 %v8233, %v8234
  %v8236 = vsel %vm26, %v8142, 0.0
  %v8237 = vadd.f32 %v8235, %v8236
  %v8238 = vsel %vm26, %v8143, 0.0
  %v8239 = vadd.f32 %v8237, %v8238
  %v8240 = vsel %vm26, %v8144, 0.0
  %v8241 = vadd.f32 %v8239, %v8240
  %v8242 = vsel %vm26, %v8145, 0.0
  %v8243 = vadd.f32 %v8241, %v8242
  %v8244 = vsel %vm26, %v8146, 0.0
  %v8245 = vadd.f32 %v8243, %v8244
  %v8246 = vsel %vm26, %v8147, 0.0
  %v8247 = vadd.f32 %v8245, %v8246
  %v8248 = vsel %vm26, %v8148, 0.0
  %v8249 = vadd.f32 %v8247, %v8248
  %v8250 = vsel %vm26, %v8149, 0.0
  %v8251 = vadd.f32 %v8249, %v8250
  %v8252 = vsel %vm26, %v8150, 0.0
  %v8253 = vadd.f32 %v8251, %v8252
  %v8254 = vsel %vm26, %v8151, 0.0
  %v8255 = vadd.f32 %v8253, %v8254
  %v8256 = vsel %vm26, %v8152, 0.0
  %v8257 = vadd.f32 %v8255, %v8256
  %v8258 = vsel %vm26, %v8153, 0.0
  %v8259 = vadd.f32 %v8257, %v8258
  %v8260 = vsel %vm26, %v8154, 0.0
  %v8261 = vadd.f32 %v8259, %v8260
  %v8262 = vsel %vm26, %v8155, 0.0
  %v8263 = vadd.f32 %v8261, %v8262
  %v8264 = vsel %vm26, %v8156, 0.0
  %v8265 = vadd.f32 %v8263, %v8264
  %v8266 = vsel %vm26, %v8157, 0.0
  %v8267 = vadd.f32 %v8265, %v8266
  %v8268 = vsel %vm26, %v8158, 0.0
  %v8269 = vadd.f32 %v8267, %v8268
  %v8270 = vsel %vm26, %v8159, 0.0
  %v8271 = vadd.f32 %v8269, %v8270
  %v8272 = vsel %vm26, %v8160, 0.0
  %v8273 = vadd.f32 %v8271, %v8272
  %v8274 = vsel %vm26, %v8161, 0.0
  %v8275 = vadd.f32 %v8273, %v8274
  %v8276 = vsel %vm26, %v8162, 0.0
  %v8277 = vadd.f32 %v8275, %v8276
  %v8278 = vsel %vm26, %v8163, 0.0
  %v8279 = vadd.f32 %v8277, %v8278
  %v8280 = vsel %vm26, %v8164, 0.0
  %v8281 = vadd.f32 %v8279, %v8280
  %v8282 = vsel %vm26, %v8165, 0.0
  %v8283 = vadd.f32 %v8281, %v8282
  %v8284 = vsel %vm26, %v8166, 0.0
  %v8285 = vadd.f32 %v8283, %v8284
  %v8286 = vsel %vm26, %v8167, 0.0
  %v8287 = vadd.f32 %v8285, %v8286
  %v8288 = vsel %vm26, %v8168, 0.0
  %v8289 = vadd.f32 %v8287, %v8288
  %v8290 = vsel %vm26, %v8169, 0.0
  %v8291 = vadd.f32 %v8289, %v8290
  %v8292 = vsel %vm26, %v8170, 0.0
  %v8293 = vadd.f32 %v8291, %v8292
  %v8294 = vsel %vm26, %v8171, 0.0
  %v8295 = vadd.f32 %v8293, %v8294
  %v8296 = vsel %vm26, %v8172, 0.0
  %v8297 = vadd.f32 %v8295, %v8296
  %v8298 = vsel %vm26, %v8173, 0.0
  %v8299 = vadd.f32 %v8297, %v8298
  %v8300 = vsel %vm26, %v8174, 0.0
  %v8301 = vadd.f32 %v8299, %v8300
  %v8302 = vrot.slane %v8301, 4
  %v8303 = vadd.f32 %v8301, %v8302
  %v8304 = vrot.slane %v8303, 2
  %v8305 = vadd.f32 %v8303, %v8304
  %v8306 = vrot.slane %v8305, 1
  %v8307 = vadd.f32 %v8305, %v8306
  %v8308 = vmul.f32 %v8110, 0.001953125
  %v8309 = vmul.f32 %v8307, 0.001953125
  %v8310 = vmul.f32 %v8308, %v8308
  %v8311 = vsub.f32 %v8309, %v8310
  %v8312 = vld [vmem:[%s5] sm:$0x1]
  %v8313 = vadd.f32 %v8311, 1e-05
  %v8314 = vrsqrt.pop %v8313
  %v8315 = vmul.f32 %v8314, %v8313
  %v8316 = vmul.f32 %v8315, %v8314
  %v8317 = vmul.f32 0.5, %v8316
  %v8318 = vsub.f32 1.5, %v8317
  %v8319 = vmul.f32 %v8314, %v8318
  %vm8320 = vweird.f32 %v8313
  %vm8321 = vweird.f32 %v8314
  %vm8322 = vmor %vm8320, %vm8321
  %v8323 = vsel %vm8322, %v8314, %v8319
  %v8324 = vmul.f32 %v8312, %v8323
  %v8325 = vld [vmem:[%s6] sm:$0x1]
  %v8326 = vmul.f32 %v8308, %v8324
  %v8327 = vsub.f32 %v8325, %v8326
  %v8329 = vperm.slane %v8324, 0
  %v8331 = vmul.f32 %v7787, %v8329
  %v8332 = vmul.f32 %v7790, %v8329
  %v8333 = vmul.f32 %v7793, %v8329
  %v8334 = vmul.f32 %v7796, %v8329
  %v8335 = vmul.f32 %v7799, %v8329
  %v8336 = vmul.f32 %v7802, %v8329
  %v8337 = vmul.f32 %v7805, %v8329
  %v8338 = vmul.f32 %v7808, %v8329
  %v8339 = vmul.f32 %v7811, %v8329
  %v8340 = vmul.f32 %v7814, %v8329
  %v8341 = vmul.f32 %v7817, %v8329
  %v8342 = vmul.f32 %v7820, %v8329
  %v8343 = vmul.f32 %v7823, %v8329
  %v8344 = vmul.f32 %v7826, %v8329
  %v8345 = vmul.f32 %v7829, %v8329
  %v8346 = vmul.f32 %v7832, %v8329
  %v8347 = vmul.f32 %v7835, %v8329
  %v8348 = vmul.f32 %v7838, %v8329
  %v8349 = vmul.f32 %v7841, %v8329
  %v8350 = vmul.f32 %v7844, %v8329
  %v8351 = vmul.f32 %v7847, %v8329
  %v8352 = vmul.f32 %v7850, %v8329
  %v8353 = vmul.f32 %v7853, %v8329
  %v8354 = vmul.f32 %v7856, %v8329
  %v8355 = vmul.f32 %v7859, %v8329
  %v8356 = vmul.f32 %v7862, %v8329
  %v8357 = vmul.f32 %v7865, %v8329
  %v8358 = vmul.f32 %v7868, %v8329
  %v8359 = vmul.f32 %v7871, %v8329
  %v8360 = vmul.f32 %v7874, %v8329
  %v8361 = vmul.f32 %v7877, %v8329
  %v8362 = vmul.f32 %v7880, %v8329
  %v8363 = vmul.f32 %v7883, %v8329
  %v8364 = vmul.f32 %v7886, %v8329
  %v8365 = vmul.f32 %v7889, %v8329
  %v8366 = vmul.f32 %v7892, %v8329
  %v8367 = vmul.f32 %v7895, %v8329
  %v8368 = vmul.f32 %v7898, %v8329
  %v8369 = vmul.f32 %v7901, %v8329
  %v8370 = vmul.f32 %v7904, %v8329
  %v8371 = vmul.f32 %v7907, %v8329
  %v8372 = vmul.f32 %v7910, %v8329
  %v8373 = vmul.f32 %v7913, %v8329
  %v8374 = vmul.f32 %v7916, %v8329
  %v8375 = vmul.f32 %v7919, %v8329
  %v8376 = vmul.f32 %v7922, %v8329
  %v8377 = vmul.f32 %v7925, %v8329
  %v8378 = vmul.f32 %v7928, %v8329
  %v8379 = vmul.f32 %v7931, %v8329
  %v8380 = vmul.f32 %v7934, %v8329
  %v8381 = vmul.f32 %v7937, %v8329
  %v8382 = vmul.f32 %v7940, %v8329
  %v8383 = vmul.f32 %v7943, %v8329
  %v8384 = vmul.f32 %v7946, %v8329
  %v8385 = vmul.f32 %v7949, %v8329
  %v8386 = vmul.f32 %v7952, %v8329
  %v8387 = vmul.f32 %v7955, %v8329
  %v8388 = vmul.f32 %v7958, %v8329
  %v8389 = vmul.f32 %v7961, %v8329
  %v8390 = vmul.f32 %v7964, %v8329
  %v8391 = vmul.f32 %v7967, %v8329
  %v8392 = vmul.f32 %v7970, %v8329
  %v8393 = vmul.f32 %v7973, %v8329
  %v8394 = vmul.f32 %v7976, %v8329
  %v8396 = vperm.slane %v8327, 0
  %v8398 = vadd.f32 %v8331, %v8396
  %v8399 = vadd.f32 %v8332, %v8396
  %v8400 = vadd.f32 %v8333, %v8396
  %v8401 = vadd.f32 %v8334, %v8396
  %v8402 = vadd.f32 %v8335, %v8396
  %v8403 = vadd.f32 %v8336, %v8396
  %v8404 = vadd.f32 %v8337, %v8396
  %v8405 = vadd.f32 %v8338, %v8396
  %v8406 = vadd.f32 %v8339, %v8396
  %v8407 = vadd.f32 %v8340, %v8396
  %v8408 = vadd.f32 %v8341, %v8396
  %v8409 = vadd.f32 %v8342, %v8396
  %v8410 = vadd.f32 %v8343, %v8396
  %v8411 = vadd.f32 %v8344, %v8396
  %v8412 = vadd.f32 %v8345, %v8396
  %v8413 = vadd.f32 %v8346, %v8396
  %v8414 = vadd.f32 %v8347, %v8396
  %v8415 = vadd.f32 %v8348, %v8396
  %v8416 = vadd.f32 %v8349, %v8396
  %v8417 = vadd.f32 %v8350, %v8396
  %v8418 = vadd.f32 %v8351, %v8396
  %v8419 = vadd.f32 %v8352, %v8396
  %v8420 = vadd.f32 %v8353, %v8396
  %v8421 = vadd.f32 %v8354, %v8396
  %v8422 = vadd.f32 %v8355, %v8396
  %v8423 = vadd.f32 %v8356, %v8396
  %v8424 = vadd.f32 %v8357, %v8396
  %v8425 = vadd.f32 %v8358, %v8396
  %v8426 = vadd.f32 %v8359, %v8396
  %v8427 = vadd.f32 %v8360, %v8396
  %v8428 = vadd.f32 %v8361, %v8396
  %v8429 = vadd.f32 %v8362, %v8396
  %v8430 = vadd.f32 %v8363, %v8396
  %v8431 = vadd.f32 %v8364, %v8396
  %v8432 = vadd.f32 %v8365, %v8396
  %v8433 = vadd.f32 %v8366, %v8396
  %v8434 = vadd.f32 %v8367, %v8396
  %v8435 = vadd.f32 %v8368, %v8396
  %v8436 = vadd.f32 %v8369, %v8396
  %v8437 = vadd.f32 %v8370, %v8396
  %v8438 = vadd.f32 %v8371, %v8396
  %v8439 = vadd.f32 %v8372, %v8396
  %v8440 = vadd.f32 %v8373, %v8396
  %v8441 = vadd.f32 %v8374, %v8396
  %v8442 = vadd.f32 %v8375, %v8396
  %v8443 = vadd.f32 %v8376, %v8396
  %v8444 = vadd.f32 %v8377, %v8396
  %v8445 = vadd.f32 %v8378, %v8396
  %v8446 = vadd.f32 %v8379, %v8396
  %v8447 = vadd.f32 %v8380, %v8396
  %v8448 = vadd.f32 %v8381, %v8396
  %v8449 = vadd.f32 %v8382, %v8396
  %v8450 = vadd.f32 %v8383, %v8396
  %v8451 = vadd.f32 %v8384, %v8396
  %v8452 = vadd.f32 %v8385, %v8396
  %v8453 = vadd.f32 %v8386, %v8396
  %v8454 = vadd.f32 %v8387, %v8396
  %v8455 = vadd.f32 %v8388, %v8396
  %v8456 = vadd.f32 %v8389, %v8396
  %v8457 = vadd.f32 %v8390, %v8396
  %v8458 = vadd.f32 %v8391, %v8396
  %v8459 = vadd.f32 %v8392, %v8396
  %v8460 = vadd.f32 %v8393, %v8396
  %v8461 = vadd.f32 %v8394, %v8396
  %v8462 = vadd.f32 %v8398, %v136
  %v8463 = vadd.f32 %v8399, %v137
  %v8464 = vadd.f32 %v8400, %v138
  %v8465 = vadd.f32 %v8401, %v139
  %v8466 = vadd.f32 %v8402, %v140
  %v8467 = vadd.f32 %v8403, %v141
  %v8468 = vadd.f32 %v8404, %v142
  %v8469 = vadd.f32 %v8405, %v143
  %v8470 = vadd.f32 %v8406, %v144
  %v8471 = vadd.f32 %v8407, %v145
  %v8472 = vadd.f32 %v8408, %v146
  %v8473 = vadd.f32 %v8409, %v147
  %v8474 = vadd.f32 %v8410, %v148
  %v8475 = vadd.f32 %v8411, %v149
  %v8476 = vadd.f32 %v8412, %v150
  %v8477 = vadd.f32 %v8413, %v151
  %v8478 = vadd.f32 %v8414, %v152
  %v8479 = vadd.f32 %v8415, %v153
  %v8480 = vadd.f32 %v8416, %v154
  %v8481 = vadd.f32 %v8417, %v155
  %v8482 = vadd.f32 %v8418, %v156
  %v8483 = vadd.f32 %v8419, %v157
  %v8484 = vadd.f32 %v8420, %v158
  %v8485 = vadd.f32 %v8421, %v159
  %v8486 = vadd.f32 %v8422, %v160
  %v8487 = vadd.f32 %v8423, %v161
  %v8488 = vadd.f32 %v8424, %v162
  %v8489 = vadd.f32 %v8425, %v163
  %v8490 = vadd.f32 %v8426, %v164
  %v8491 = vadd.f32 %v8427, %v165
  %v8492 = vadd.f32 %v8428, %v166
  %v8493 = vadd.f32 %v8429, %v167
  %v8494 = vadd.f32 %v8430, %v168
  %v8495 = vadd.f32 %v8431, %v169
  %v8496 = vadd.f32 %v8432, %v170
  %v8497 = vadd.f32 %v8433, %v171
  %v8498 = vadd.f32 %v8434, %v172
  %v8499 = vadd.f32 %v8435, %v173
  %v8500 = vadd.f32 %v8436, %v174
  %v8501 = vadd.f32 %v8437, %v175
  %v8502 = vadd.f32 %v8438, %v176
  %v8503 = vadd.f32 %v8439, %v177
  %v8504 = vadd.f32 %v8440, %v178
  %v8505 = vadd.f32 %v8441, %v179
  %v8506 = vadd.f32 %v8442, %v180
  %v8507 = vadd.f32 %v8443, %v181
  %v8508 = vadd.f32 %v8444, %v182
  %v8509 = vadd.f32 %v8445, %v183
  %v8510 = vadd.f32 %v8446, %v184
  %v8511 = vadd.f32 %v8447, %v185
  %v8512 = vadd.f32 %v8448, %v186
  %v8513 = vadd.f32 %v8449, %v187
  %v8514 = vadd.f32 %v8450, %v188
  %v8515 = vadd.f32 %v8451, %v189
  %v8516 = vadd.f32 %v8452, %v190
  %v8517 = vadd.f32 %v8453, %v191
  %v8518 = vadd.f32 %v8454, %v192
  %v8519 = vadd.f32 %v8455, %v193
  %v8520 = vadd.f32 %v8456, %v194
  %v8521 = vadd.f32 %v8457, %v195
  %v8522 = vadd.f32 %v8458, %v196
  %v8523 = vadd.f32 %v8459, %v197
  %v8524 = vadd.f32 %v8460, %v198
  %v8525 = vadd.f32 %v8461, %v199
  %v8526 = vmax.f32 %v8462, 0.0
  %v8527 = vmax.f32 %v8463, 0.0
  %v8528 = vmax.f32 %v8464, 0.0
  %v8529 = vmax.f32 %v8465, 0.0
  %v8530 = vmax.f32 %v8466, 0.0
  %v8531 = vmax.f32 %v8467, 0.0
  %v8532 = vmax.f32 %v8468, 0.0
  %v8533 = vmax.f32 %v8469, 0.0
  %v8534 = vmax.f32 %v8470, 0.0
  %v8535 = vmax.f32 %v8471, 0.0
  %v8536 = vmax.f32 %v8472, 0.0
  %v8537 = vmax.f32 %v8473, 0.0
  %v8538 = vmax.f32 %v8474, 0.0
  %v8539 = vmax.f32 %v8475, 0.0
  %v8540 = vmax.f32 %v8476, 0.0
  %v8541 = vmax.f32 %v8477, 0.0
  %v8542 = vmax.f32 %v8478, 0.0
  %v8543 = vmax.f32 %v8479, 0.0
  %v8544 = vmax.f32 %v8480, 0.0
  %v8545 = vmax.f32 %v8481, 0.0
  %v8546 = vmax.f32 %v8482, 0.0
  %v8547 = vmax.f32 %v8483, 0.0
  %v8548 = vmax.f32 %v8484, 0.0
  %v8549 = vmax.f32 %v8485, 0.0
  %v8550 = vmax.f32 %v8486, 0.0
  %v8551 = vmax.f32 %v8487, 0.0
  %v8552 = vmax.f32 %v8488, 0.0
  %v8553 = vmax.f32 %v8489, 0.0
  %v8554 = vmax.f32 %v8490, 0.0
  %v8555 = vmax.f32 %v8491, 0.0
  %v8556 = vmax.f32 %v8492, 0.0
  %v8557 = vmax.f32 %v8493, 0.0
  %v8558 = vmax.f32 %v8494, 0.0
  %v8559 = vmax.f32 %v8495, 0.0
  %v8560 = vmax.f32 %v8496, 0.0
  %v8561 = vmax.f32 %v8497, 0.0
  %v8562 = vmax.f32 %v8498, 0.0
  %v8563 = vmax.f32 %v8499, 0.0
  %v8564 = vmax.f32 %v8500, 0.0
  %v8565 = vmax.f32 %v8501, 0.0
  %v8566 = vmax.f32 %v8502, 0.0
  %v8567 = vmax.f32 %v8503, 0.0
  %v8568 = vmax.f32 %v8504, 0.0
  %v8569 = vmax.f32 %v8505, 0.0
  %v8570 = vmax.f32 %v8506, 0.0
  %v8571 = vmax.f32 %v8507, 0.0
  %v8572 = vmax.f32 %v8508, 0.0
  %v8573 = vmax.f32 %v8509, 0.0
  %v8574 = vmax.f32 %v8510, 0.0
  %v8575 = vmax.f32 %v8511, 0.0
  %v8576 = vmax.f32 %v8512, 0.0
  %v8577 = vmax.f32 %v8513, 0.0
  %v8578 = vmax.f32 %v8514, 0.0
  %v8579 = vmax.f32 %v8515, 0.0
  %v8580 = vmax.f32 %v8516, 0.0
  %v8581 = vmax.f32 %v8517, 0.0
  %v8582 = vmax.f32 %v8518, 0.0
  %v8583 = vmax.f32 %v8519, 0.0
  %v8584 = vmax.f32 %v8520, 0.0
  %v8585 = vmax.f32 %v8521, 0.0
  %v8586 = vmax.f32 %v8522, 0.0
  %v8587 = vmax.f32 %v8523, 0.0
  %v8588 = vmax.f32 %v8524, 0.0
  %v8589 = vmax.f32 %v8525, 0.0
  %8590 = vst.msk [vmem:[%s7] sm:$0xff] %vm26, %v8526
  %8591 = vst.msk [vmem:[%s7 + $0x8] sm:$0xff] %vm26, %v8527
  %8592 = vst.msk [vmem:[%s7 + $0x10] sm:$0xff] %vm26, %v8528
  %8593 = vst.msk [vmem:[%s7 + $0x18] sm:$0xff] %vm26, %v8529
  %8594 = vst.msk [vmem:[%s7 + $0x20] sm:$0xff] %vm26, %v8530
  %8595 = vst.msk [vmem:[%s7 + $0x28] sm:$0xff] %vm26, %v8531
  %8596 = vst.msk [vmem:[%s7 + $0x30] sm:$0xff] %vm26, %v8532
  %8597 = vst.msk [vmem:[%s7 + $0x38] sm:$0xff] %vm26, %v8533
  %8598 = vst.msk [vmem:[%s7 + $0x40] sm:$0xff] %vm26, %v8534
  %8599 = vst.msk [vmem:[%s7 + $0x48] sm:$0xff] %vm26, %v8535
  %8600 = vst.msk [vmem:[%s7 + $0x50] sm:$0xff] %vm26, %v8536
  %8601 = vst.msk [vmem:[%s7 + $0x58] sm:$0xff] %vm26, %v8537
  %8602 = vst.msk [vmem:[%s7 + $0x60] sm:$0xff] %vm26, %v8538
  %8603 = vst.msk [vmem:[%s7 + $0x68] sm:$0xff] %vm26, %v8539
  %8604 = vst.msk [vmem:[%s7 + $0x70] sm:$0xff] %vm26, %v8540
  %8605 = vst.msk [vmem:[%s7 + $0x78] sm:$0xff] %vm26, %v8541
  %8606 = vst.msk [vmem:[%s7 + $0x80] sm:$0xff] %vm26, %v8542
  %8607 = vst.msk [vmem:[%s7 + $0x88] sm:$0xff] %vm26, %v8543
  %8608 = vst.msk [vmem:[%s7 + $0x90] sm:$0xff] %vm26, %v8544
  %8609 = vst.msk [vmem:[%s7 + $0x98] sm:$0xff] %vm26, %v8545
  %8610 = vst.msk [vmem:[%s7 + $0xa0] sm:$0xff] %vm26, %v8546
  %8611 = vst.msk [vmem:[%s7 + $0xa8] sm:$0xff] %vm26, %v8547
  %8612 = vst.msk [vmem:[%s7 + $0xb0] sm:$0xff] %vm26, %v8548
  %8613 = vst.msk [vmem:[%s7 + $0xb8] sm:$0xff] %vm26, %v8549
  %8614 = vst.msk [vmem:[%s7 + $0xc0] sm:$0xff] %vm26, %v8550
  %8615 = vst.msk [vmem:[%s7 + $0xc8] sm:$0xff] %vm26, %v8551
  %8616 = vst.msk [vmem:[%s7 + $0xd0] sm:$0xff] %vm26, %v8552
  %8617 = vst.msk [vmem:[%s7 + $0xd8] sm:$0xff] %vm26, %v8553
  %8618 = vst.msk [vmem:[%s7 + $0xe0] sm:$0xff] %vm26, %v8554
  %8619 = vst.msk [vmem:[%s7 + $0xe8] sm:$0xff] %vm26, %v8555
  %8620 = vst.msk [vmem:[%s7 + $0xf0] sm:$0xff] %vm26, %v8556
  %8621 = vst.msk [vmem:[%s7 + $0xf8] sm:$0xff] %vm26, %v8557
  %8622 = vst.msk [vmem:[%s7 + $0x100] sm:$0xff] %vm26, %v8558
  %8623 = vst.msk [vmem:[%s7 + $0x108] sm:$0xff] %vm26, %v8559
  %8624 = vst.msk [vmem:[%s7 + $0x110] sm:$0xff] %vm26, %v8560
  %8625 = vst.msk [vmem:[%s7 + $0x118] sm:$0xff] %vm26, %v8561
  %8626 = vst.msk [vmem:[%s7 + $0x120] sm:$0xff] %vm26, %v8562
  %8627 = vst.msk [vmem:[%s7 + $0x128] sm:$0xff] %vm26, %v8563
  %8628 = vst.msk [vmem:[%s7 + $0x130] sm:$0xff] %vm26, %v8564
  %8629 = vst.msk [vmem:[%s7 + $0x138] sm:$0xff] %vm26, %v8565
  %8630 = vst.msk [vmem:[%s7 + $0x140] sm:$0xff] %vm26, %v8566
  %8631 = vst.msk [vmem:[%s7 + $0x148] sm:$0xff] %vm26, %v8567
  %8632 = vst.msk [vmem:[%s7 + $0x150] sm:$0xff] %vm26, %v8568
  %8633 = vst.msk [vmem:[%s7 + $0x158] sm:$0xff] %vm26, %v8569
  %8634 = vst.msk [vmem:[%s7 + $0x160] sm:$0xff] %vm26, %v8570
  %8635 = vst.msk [vmem:[%s7 + $0x168] sm:$0xff] %vm26, %v8571
  %8636 = vst.msk [vmem:[%s7 + $0x170] sm:$0xff] %vm26, %v8572
  %8637 = vst.msk [vmem:[%s7 + $0x178] sm:$0xff] %vm26, %v8573
  %8638 = vst.msk [vmem:[%s7 + $0x180] sm:$0xff] %vm26, %v8574
  %8639 = vst.msk [vmem:[%s7 + $0x188] sm:$0xff] %vm26, %v8575
  %8640 = vst.msk [vmem:[%s7 + $0x190] sm:$0xff] %vm26, %v8576
  %8641 = vst.msk [vmem:[%s7 + $0x198] sm:$0xff] %vm26, %v8577
  %8642 = vst.msk [vmem:[%s7 + $0x1a0] sm:$0xff] %vm26, %v8578
  %8643 = vst.msk [vmem:[%s7 + $0x1a8] sm:$0xff] %vm26, %v8579
  %8644 = vst.msk [vmem:[%s7 + $0x1b0] sm:$0xff] %vm26, %v8580
  %8645 = vst.msk [vmem:[%s7 + $0x1b8] sm:$0xff] %vm26, %v8581
  %8646 = vst.msk [vmem:[%s7 + $0x1c0] sm:$0xff] %vm26, %v8582
  %8647 = vst.msk [vmem:[%s7 + $0x1c8] sm:$0xff] %vm26, %v8583
  %8648 = vst.msk [vmem:[%s7 + $0x1d0] sm:$0xff] %vm26, %v8584
  %8649 = vst.msk [vmem:[%s7 + $0x1d8] sm:$0xff] %vm26, %v8585
  %8650 = vst.msk [vmem:[%s7 + $0x1e0] sm:$0xff] %vm26, %v8586
  %8651 = vst.msk [vmem:[%s7 + $0x1e8] sm:$0xff] %vm26, %v8587
  %8652 = vst.msk [vmem:[%s7 + $0x1f0] sm:$0xff] %vm26, %v8588
  %8653 = vst.msk [vmem:[%s7 + $0x1f8] sm:$0xff] %vm26, %v8589
  // Predicated region
  $region30: #{tpu_custom_call.1} parent=0 // pred_check
    _
  $region31: #{tpu_custom_call.1} parent=0 // pred_check_branch
    %8655 = sbr.rel (0) target = $region33
  $region32: #{tpu_custom_call.1} parent=0 // pred_region
    _
  $region33: #{tpu_custom_call.1} parent=0 // pred_fallthru
    _
  // Predicated region
  $region34: #{tpu_custom_call.1} parent=0 // pred_check
    _
  $region35: #{tpu_custom_call.1} parent=0 // pred_check_branch
    %8657 = sbr.rel (0) target = $region37
  $region36: #{tpu_custom_call.1} parent=0 // pred_region
    _
  $region37: #{tpu_custom_call.1} parent=0 // pred_fallthru
    _

</llo_original>
